<compile_context>
chip_gen: v7x
topology: tpu7x:2x2x1
jax: 0.10.0
libtpu: 0.0.40
codegen_flags: <defaults>
</compile_context>

<pallas_src>
import math
import jax
import jax.numpy as jnp
from jax.experimental import pallas as pl
from jax.experimental.pallas import tpu as pltpu  # noqa: F401  (kept for TPU-specific tuning hooks)

# ---------------- config (small, consistent with the module) ----------------
B        = 2
T        = 16
BT       = B * T
D_MOTION = 15                  # 6*J + 3 with J = 2 joints
D_MODEL  = 32
N_LAYERS = 2
N_HEADS  = 2
D_HEAD   = D_MODEL // N_HEADS
D_FF     = 64
PRE_LN   = True                # config.pre_layernorm
T_CTX    = 4                   # config.context_frames
LN_EPS   = 1e-5
D_OUT    = D_MOTION - 3
ATT_SCALE = 1.0 / math.sqrt(D_HEAD)
NEG_INF  = -1e30

assert (T & (T - 1)) == 0      # power-of-two T -> bit tricks for frame / batch ids
LOG2_T = T.bit_length() - 1


# ---------------- small in-kernel helpers ----------------
def _layer_norm(v, g, b):
    mu = jnp.mean(v, axis=-1, keepdims=True)
    var = jnp.mean((v - mu) ** 2, axis=-1, keepdims=True)
    return (v - mu) * jax.lax.rsqrt(var + LN_EPS) * g + b


def _prelu(v, a):
    return jnp.where(v > 0, v, a * v)


# ---------------- the single fused kernel ----------------
def fused_forward_kernel(
    x_ref, kf_ref, erel_ref,
    we1x_ref, we1m_ref, be1_ref, ae1_ref, we2_ref, be2_ref, ae2_ref,
    wqkv_ref, bqkv_ref, wo_ref, bo_ref, lng_ref, lnb_ref,
    wf1_ref, bf1_ref, wf2_ref, bf2_ref,
    flng_ref, flnb_ref, wd1_ref, bd1_ref, ad_ref, wd2_ref, bd2_ref,
    out_ref,
):
    f32 = jnp.float32
    x2 = x_ref[...]                              # (B*T, D_MOTION)
    erel = erel_ref[...]                         # (B*T, B*T, D_HEAD), shared by heads/layers

    # ---- keyframe mask built in-kernel ----
    row = jax.lax.broadcasted_iota(jnp.int32, (BT, 1), 0)
    frame = jnp.bitwise_and(row, T - 1)          # frame index within each sequence
    kf = kf_ref[...]                             # (1, NK) int32
    is_kf = jnp.sum((frame == kf).astype(f32), axis=-1, keepdims=True) > 0
    mask = ((frame < T_CTX) | (frame == T - 1) | is_kf).astype(f32)     # (B*T, 1)

    # ---- motion encoder: Linear(D+1,dm) PReLU Linear(dm,dm) PReLU ----
    # concat([x, mask]) @ W1  ==  x @ W1[:D] + mask * W1[D:]  (no lane concat)
    h = (jnp.dot(x2, we1x_ref[...], preferred_element_type=f32)
         + mask * we1m_ref[...] + be1_ref[...])
    h = _prelu(h, ae1_ref[...])
    h = jnp.dot(h, we2_ref[...], preferred_element_type=f32) + be2_ref[...]
    h = _prelu(h, ae2_ref[...])                  # (B*T, D_MODEL)

    # ---- block-diagonal (per-sequence) additive attention mask, loop-invariant ----
    r_idx = jax.lax.broadcasted_iota(jnp.int32, (BT, BT), 0)
    c_idx = jax.lax.broadcasted_iota(jnp.int32, (BT, BT), 1)
    same_b = (jax.lax.shift_right_logical(r_idx, LOG2_T)
              == jax.lax.shift_right_logical(c_idx, LOG2_T))
    neg = jnp.where(same_b, 0.0, NEG_INF).astype(f32)          # (B*T, B*T)

    # ---- transformer layers (static unroll) ----
    for l in range(N_LAYERS):
        # --- multi-head self-attention sublayer ---
        res = h
        xn = _layer_norm(h, lng_ref[2 * l], lnb_ref[2 * l]) if PRE_LN else h
        attn = bo_ref[l]                         # (1, D_MODEL), broadcasts over rows
        for hd in range(N_HEADS):                # static unroll (N_HEADS = 2)
            iq = (l * 3 + 0) * N_HEADS + hd
            ik = (l * 3 + 1) * N_HEADS + hd
            iv = (l * 3 + 2) * N_HEADS + hd
            # per-head projections directly: (32,32)x(32,16) -> (32,16); no lane slicing
            qh = (jnp.dot(xn, wqkv_ref[iq], preferred_element_type=f32)
                  + bqkv_ref[iq]) * ATT_SCALE    # scale folded into q (applies to QK^T and Srel)
            kh = jnp.dot(xn, wqkv_ref[ik], preferred_element_type=f32) + bqkv_ref[ik]
            vh = jnp.dot(xn, wqkv_ref[iv], preferred_element_type=f32) + bqkv_ref[iv]

            # full-sequence scores with cross-batch entries masked to -inf
            s = jax.lax.dot_general(qh, kh, (((1,), (1,)), ((), ())),
                                    preferred_element_type=f32)          # (B*T, B*T)
            # relative-position term: rel[r,c] = q[r,:] . E_{(c%T)-(r%T)}
            rel = jnp.sum(qh[:, None, :] * erel, axis=-1)                # (B*T, B*T)
            s = s + rel + neg
            s = s - jnp.max(s, axis=-1, keepdims=True)
            p = jnp.exp(s)                       # masked entries underflow to exactly 0
            p = p * pl.reciprocal(jnp.sum(p, axis=-1, keepdims=True), approx=True)
            oh = jnp.dot(p, vh, preferred_element_type=f32)              # (B*T, D_HEAD)
            # fold this head directly through its rows of W_o (no concatenate)
            attn = attn + jnp.dot(oh, wo_ref[l * N_HEADS + hd],
                                  preferred_element_type=f32)
        h = res + attn
        if not PRE_LN:
            h = _layer_norm(h, lng_ref[2 * l], lnb_ref[2 * l])

        # --- position-wise feed-forward sublayer ---
        res = h
        xn = _layer_norm(h, lng_ref[2 * l + 1], lnb_ref[2 * l + 1]) if PRE_LN else h
        f = jnp.dot(xn, wf1_ref[l], preferred_element_type=f32) + bf1_ref[l]
        f = jnp.maximum(f, 0.0)
        f = jnp.dot(f, wf2_ref[l], preferred_element_type=f32) + bf2_ref[l]
        h = res + f
        if not PRE_LN:
            h = _layer_norm(h, lng_ref[2 * l + 1], lnb_ref[2 * l + 1])

    # ---- final LayerNorm (pre-LN) + decoder + residual to original motion ----
    if PRE_LN:
        h = _layer_norm(h, flng_ref[...], flnb_ref[...])
    d = jnp.dot(h, wd1_ref[...], preferred_element_type=f32) + bd1_ref[...]
    d = _prelu(d, ad_ref[...])
    d = jnp.dot(d, wd2_ref[...], preferred_element_type=f32) + bd2_ref[...]
    out_ref[...] = x2[:, :D_OUT] + d


# ---------------- deterministic parameter init (synthetic) ----------------
def init_params(key):
    keys = iter(jax.random.split(key, 128))

    def lin(fin, fout):
        w = jax.random.normal(next(keys), (fin, fout), jnp.float32) / math.sqrt(fin)
        b = 0.01 * jax.random.normal(next(keys), (1, fout), jnp.float32)
        return w, b

    def prelu_a():
        return jnp.full((1, 1), 0.25, jnp.float32)   # nn.PReLU() default

    def ln(dim):
        return jnp.ones((1, dim), jnp.float32), jnp.zeros((1, dim), jnp.float32)

    params = {}
    # motion_encoder: Linear(D+1,dm) PReLU Linear(dm,dm) PReLU
    w1, b1 = lin(D_MOTION + 1, D_MODEL)
    w2, b2 = lin(D_MODEL, D_MODEL)
    params["enc"] = [w1, b1, prelu_a(), w2, b2, prelu_a()]

    # relative_pos_encoder: Linear(1,dm) PReLU Linear(dm,dh)
    wr1, br1 = lin(1, D_MODEL)
    wr2, br2 = lin(D_MODEL, D_HEAD)
    params["relpos"] = [wr1, br1, prelu_a(), wr2, br2]

    # transformer layers
    params["layers"] = []
    for _ in range(N_LAYERS):
        wq, bq = lin(D_MODEL, N_HEADS * D_HEAD)
        wk, bk = lin(D_MODEL, N_HEADS * D_HEAD)
        wv, bv = lin(D_MODEL, N_HEADS * D_HEAD)
        wo, bo = lin(N_HEADS * D_HEAD, D_MODEL)
        g1, be1 = ln(D_MODEL)
        wf1, bf1 = lin(D_MODEL, D_FF)
        wf2, bf2 = lin(D_FF, D_MODEL)
        g2, be2 = ln(D_MODEL)
        params["layers"].append([wq, bq, wk, bk, wv, bv, wo, bo, g1, be1,
                                 wf1, bf1, wf2, bf2, g2, be2])

    # final layer_norm + decoder: Linear(dm,dm) PReLU Linear(dm, d_motion-3)
    lg, lb = ln(D_MODEL)
    wd1, bd1 = lin(D_MODEL, D_MODEL)
    wd2, bd2 = lin(D_MODEL, D_MOTION - 3)
    params["dec"] = [lg, lb, wd1, bd1, prelu_a(), wd2, bd2]
    return params


# ---------------- per-layer parameter packing (10 stacked operands) ----------------
def _pack_layer_params(layers):
    wqkv, bqkv, wo, bo = [], [], [], []
    lng, lnb = [], []
    wf1, bf1, wf2, bf2 = [], [], [], []
    for lp in layers:
        wq, bq, wk, bk, wv, bv, wo_l, bo_l, g1, c1, wf1_l, bf1_l, wf2_l, bf2_l, g2, c2 = lp
        for wi, bi in ((wq, bq), (wk, bk), (wv, bv)):
            # (D_MODEL, NH*DH) -> per-head (NH, D_MODEL, D_HEAD); bias -> (NH, 1, D_HEAD)
            wqkv.append(wi.reshape(D_MODEL, N_HEADS, D_HEAD).transpose(1, 0, 2))
            bqkv.append(bi.reshape(N_HEADS, 1, D_HEAD))
        wo.append(wo_l.reshape(N_HEADS, D_HEAD, D_MODEL))
        bo.append(bo_l)
        lng += [g1, g2]
        lnb += [c1, c2]
        wf1.append(wf1_l); bf1.append(bf1_l); wf2.append(wf2_l); bf2.append(bf2_l)
    return (jnp.concatenate(wqkv, axis=0),   # (L*3*NH, D_MODEL, D_HEAD)
            jnp.concatenate(bqkv, axis=0),   # (L*3*NH, 1, D_HEAD)
            jnp.concatenate(wo, axis=0),     # (L*NH, D_HEAD, D_MODEL)
            jnp.stack(bo, axis=0),           # (L, 1, D_MODEL)
            jnp.stack(lng, axis=0),          # (2L, 1, D_MODEL)
            jnp.stack(lnb, axis=0),          # (2L, 1, D_MODEL)
            jnp.stack(wf1, axis=0),          # (L, D_MODEL, D_FF)
            jnp.stack(bf1, axis=0),          # (L, 1, D_FF)
            jnp.stack(wf2, axis=0),          # (L, D_FF, D_MODEL)
            jnp.stack(bf2, axis=0))          # (L, 1, D_MODEL)


# ---------------- forward: thin glue + one fused pallas_call ----------------
def _forward(x, keyframes, params):
    x2 = x.reshape(BT, D_MOTION)
    kf = keyframes.reshape(1, -1).astype(jnp.int32)

    # relative-position lookup table + gather (position-only, input-independent, tiny)
    wr1, br1, ar1, wr2, br2 = params["relpos"]
    rel_dist = jnp.arange(-T + 1, T, dtype=jnp.float32)[:, None]     # (2T-1, 1)
    lt = rel_dist @ wr1 + br1
    lt = jnp.where(lt > 0, lt, ar1 * lt)                              # PReLU
    lt = lt @ wr2 + br2                                               # (2T-1, D_HEAD)
    pos = jnp.arange(BT, dtype=jnp.int32) % T
    idx = pos[None, :] - pos[:, None] + (T - 1)                       # (B*T, B*T), all valid
    erel = lt[idx]                                                    # (B*T, B*T, D_HEAD)

    we1, be1, ae1, we2, be2, ae2 = params["enc"]
    we1x, we1m = we1[:D_MOTION], we1[D_MOTION:]                       # split mask column

    packed = _pack_layer_params(params["layers"])
    lg, lb, wd1, bd1, ad, wd2, bd2 = params["dec"]

    out2 = pl.pallas_call(
        fused_forward_kernel,
        out_shape=jax.ShapeDtypeStruct((BT, D_OUT), jnp.float32),
    )(x2, kf, erel,
      we1x, we1m, be1, ae1, we2, be2, ae2,
      *packed,
      lg, lb, wd1, bd1, ad, wd2, bd2)
    return out2.reshape(B, T, D_OUT)


forward = jax.jit(_forward)


if __name__ == "__main__":
    key = jax.random.PRNGKey(0)
    kx, kp = jax.random.split(key)
    x = jax.random.normal(kx, (B, T, D_MOTION), jnp.float32)
    keyframes = jnp.array([T_CTX - 1, 9, T - 1], dtype=jnp.int32)   # deterministic keyframes
    params = init_params(kp)

    out = forward(x, keyframes, params)
    out = jax.block_until_ready(out)
    assert out.shape == (B, T, D_MOTION - 3)
    assert bool(jnp.all(jnp.isfinite(out)))
    print("KERNEL_OK")
</pallas_src>

<mosaic_0001>
module attributes {stable_mosaic.version = 11 : i64} {
  func.func @fused_forward_kernel(%arg0: memref<32x15xf32, #tpu.memory_space<vmem>>, %arg1: memref<1x3xi32, #tpu.memory_space<vmem>>, %arg2: memref<32x32x16xf32, #tpu.memory_space<vmem>>, %arg3: memref<15x32xf32, #tpu.memory_space<vmem>>, %arg4: memref<1x32xf32, #tpu.memory_space<vmem>>, %arg5: memref<1x32xf32, #tpu.memory_space<vmem>>, %arg6: memref<1x1xf32, #tpu.memory_space<vmem>>, %arg7: memref<32x32xf32, #tpu.memory_space<vmem>>, %arg8: memref<1x32xf32, #tpu.memory_space<vmem>>, %arg9: memref<1x1xf32, #tpu.memory_space<vmem>>, %arg10: memref<12x32x16xf32, #tpu.memory_space<vmem>>, %arg11: memref<12x1x16xf32, #tpu.memory_space<vmem>>, %arg12: memref<4x16x32xf32, #tpu.memory_space<vmem>>, %arg13: memref<2x1x32xf32, #tpu.memory_space<vmem>>, %arg14: memref<4x1x32xf32, #tpu.memory_space<vmem>>, %arg15: memref<4x1x32xf32, #tpu.memory_space<vmem>>, %arg16: memref<2x32x64xf32, #tpu.memory_space<vmem>>, %arg17: memref<2x1x64xf32, #tpu.memory_space<vmem>>, %arg18: memref<2x64x32xf32, #tpu.memory_space<vmem>>, %arg19: memref<2x1x32xf32, #tpu.memory_space<vmem>>, %arg20: memref<1x32xf32, #tpu.memory_space<vmem>>, %arg21: memref<1x32xf32, #tpu.memory_space<vmem>>, %arg22: memref<32x32xf32, #tpu.memory_space<vmem>>, %arg23: memref<1x32xf32, #tpu.memory_space<vmem>>, %arg24: memref<1x1xf32, #tpu.memory_space<vmem>>, %arg25: memref<32x12xf32, #tpu.memory_space<vmem>>, %arg26: memref<1x12xf32, #tpu.memory_space<vmem>>, %arg27: memref<32x12xf32, #tpu.memory_space<vmem>>) attributes {dimension_semantics = [], scalar_prefetch = 0 : i64, scratch_operands = 0 : i64, tpu.core_type = #tpu.core_type<tc>} {
    %c0 = arith.constant 0 : index
    %c0_0 = arith.constant 0 : index
    %0 = vector.load %arg0[%c0, %c0_0] : memref<32x15xf32, #tpu.memory_space<vmem>>, vector<32x15xf32>
    %c0_1 = arith.constant 0 : index
    %c0_2 = arith.constant 0 : index
    %c0_3 = arith.constant 0 : index
    %1 = vector.load %arg2[%c0_1, %c0_2, %c0_3] : memref<32x32x16xf32, #tpu.memory_space<vmem>>, vector<32x32x16xf32>
    %2 = tpu.iota {dimensions = array<i32: 0>} : vector<32x1xi32>
    %c15_i32 = arith.constant 15 : i32
    %3 = vector.broadcast %c15_i32 : i32 to vector<32x1xi32>
    %4 = arith.andi %2, %3 : vector<32x1xi32>
    %c0_4 = arith.constant 0 : index
    %c0_5 = arith.constant 0 : index
    %5 = vector.load %arg1[%c0_4, %c0_5] : memref<1x3xi32, #tpu.memory_space<vmem>>, vector<1x3xi32>
    %6 = vector.broadcast %4 : vector<32x1xi32> to vector<32x3xi32>
    %7 = vector.broadcast %5 : vector<1x3xi32> to vector<32x3xi32>
    %8 = arith.cmpi eq, %6, %7 : vector<32x3xi32>
    %9 = arith.extui %8 : vector<32x3xi1> to vector<32x3xi32>
    %10 = arith.sitofp %9 : vector<32x3xi32> to vector<32x3xf32>
    %cst = arith.constant dense<0.000000e+00> : vector<32xf32>
    %11 = vector.multi_reduction <add>, %10, %cst [1] : vector<32x3xf32> to vector<32xf32>
    %12 = vector.shape_cast %11 : vector<32xf32> to vector<32x1xf32>
    %cst_6 = arith.constant 0.000000e+00 : f32
    %13 = vector.broadcast %cst_6 : f32 to vector<32x1xf32>
    %14 = arith.cmpf ogt, %12, %13 : vector<32x1xf32>
    %c4_i32 = arith.constant 4 : i32
    %15 = vector.broadcast %c4_i32 : i32 to vector<32x1xi32>
    %16 = arith.cmpi slt, %4, %15 : vector<32x1xi32>
    %c15_i32_7 = arith.constant 15 : i32
    %17 = vector.broadcast %c15_i32_7 : i32 to vector<32x1xi32>
    %18 = arith.cmpi eq, %4, %17 : vector<32x1xi32>
    %19 = arith.ori %16, %18 : vector<32x1xi1>
    %20 = arith.ori %19, %14 : vector<32x1xi1>
    %21 = arith.extui %20 : vector<32x1xi1> to vector<32x1xi32>
    %22 = arith.sitofp %21 : vector<32x1xi32> to vector<32x1xf32>
    %c0_8 = arith.constant 0 : index
    %c0_9 = arith.constant 0 : index
    %23 = vector.load %arg3[%c0_8, %c0_9] : memref<15x32xf32, #tpu.memory_space<vmem>>, vector<15x32xf32>
    %cst_10 = arith.constant dense<0.000000e+00> : vector<32x32xf32>
    %24 = tpu.matmul %0, %23, %cst_10 {dimension_numbers = #tpu.dot_dimension_numbers<[1], [0], [0], [1], [0, 0, 1, 1], [], []>} : vector<32x15xf32>, vector<15x32xf32>, vector<32x32xf32> -> vector<32x32xf32>
    %c0_11 = arith.constant 0 : index
    %c0_12 = arith.constant 0 : index
    %25 = vector.load %arg4[%c0_11, %c0_12] : memref<1x32xf32, #tpu.memory_space<vmem>>, vector<1x32xf32>
    %26 = vector.broadcast %22 : vector<32x1xf32> to vector<32x32xf32>
    %27 = vector.broadcast %25 : vector<1x32xf32> to vector<32x32xf32>
    %28 = arith.mulf %26, %27 : vector<32x32xf32>
    %29 = arith.addf %24, %28 : vector<32x32xf32>
    %c0_13 = arith.constant 0 : index
    %c0_14 = arith.constant 0 : index
    %30 = vector.load %arg5[%c0_13, %c0_14] : memref<1x32xf32, #tpu.memory_space<vmem>>, vector<1x32xf32>
    %31 = vector.broadcast %30 : vector<1x32xf32> to vector<32x32xf32>
    %32 = arith.addf %29, %31 : vector<32x32xf32>
    %c0_15 = arith.constant 0 : index
    %c0_16 = arith.constant 0 : index
    %33 = vector.load %arg6[%c0_15, %c0_16] : memref<1x1xf32, #tpu.memory_space<vmem>>, vector<1x1xf32>
    %cst_17 = arith.constant 0.000000e+00 : f32
    %34 = vector.broadcast %cst_17 : f32 to vector<32x32xf32>
    %35 = arith.cmpf ogt, %32, %34 : vector<32x32xf32>
    %36 = vector.broadcast %33 : vector<1x1xf32> to vector<32x32xf32>
    %37 = arith.mulf %36, %32 : vector<32x32xf32>
    %38 = arith.select %35, %32, %37 : vector<32x32xi1>, vector<32x32xf32>
    %c0_18 = arith.constant 0 : index
    %c0_19 = arith.constant 0 : index
    %39 = vector.load %arg7[%c0_18, %c0_19] : memref<32x32xf32, #tpu.memory_space<vmem>>, vector<32x32xf32>
    %cst_20 = arith.constant dense<0.000000e+00> : vector<32x32xf32>
    %40 = tpu.matmul %38, %39, %cst_20 {dimension_numbers = #tpu.dot_dimension_numbers<[1], [0], [0], [1], [0, 0, 1, 1], [], []>} : vector<32x32xf32>, vector<32x32xf32>, vector<32x32xf32> -> vector<32x32xf32>
    %c0_21 = arith.constant 0 : index
    %c0_22 = arith.constant 0 : index
    %41 = vector.load %arg8[%c0_21, %c0_22] : memref<1x32xf32, #tpu.memory_space<vmem>>, vector<1x32xf32>
    %42 = vector.broadcast %41 : vector<1x32xf32> to vector<32x32xf32>
    %43 = arith.addf %40, %42 : vector<32x32xf32>
    %c0_23 = arith.constant 0 : index
    %c0_24 = arith.constant 0 : index
    %44 = vector.load %arg9[%c0_23, %c0_24] : memref<1x1xf32, #tpu.memory_space<vmem>>, vector<1x1xf32>
    %cst_25 = arith.constant 0.000000e+00 : f32
    %45 = vector.broadcast %cst_25 : f32 to vector<32x32xf32>
    %46 = arith.cmpf ogt, %43, %45 : vector<32x32xf32>
    %47 = vector.broadcast %44 : vector<1x1xf32> to vector<32x32xf32>
    %48 = arith.mulf %47, %43 : vector<32x32xf32>
    %49 = arith.select %46, %43, %48 : vector<32x32xi1>, vector<32x32xf32>
    %50 = tpu.iota {dimensions = array<i32: 0>} : vector<32x32xi32>
    %51 = tpu.iota {dimensions = array<i32: 1>} : vector<32x32xi32>
    %c4_i32_26 = arith.constant 4 : i32
    %52 = vector.broadcast %c4_i32_26 : i32 to vector<32x32xi32>
    %53 = arith.shrui %50, %52 : vector<32x32xi32>
    %c4_i32_27 = arith.constant 4 : i32
    %54 = vector.broadcast %c4_i32_27 : i32 to vector<32x32xi32>
    %55 = arith.shrui %51, %54 : vector<32x32xi32>
    %56 = arith.cmpi eq, %53, %55 : vector<32x32xi32>
    %cst_28 = arith.constant 0.000000e+00 : f32
    %cst_29 = arith.constant -1.000000e+30 : f32
    %57 = vector.broadcast %cst_28 : f32 to vector<32x32xf32>
    %58 = vector.broadcast %cst_29 : f32 to vector<32x32xf32>
    %59 = arith.select %56, %57, %58 : vector<32x32xi1>, vector<32x32xf32>
    %c0_30 = arith.constant 0 : index
    %c0_31 = arith.constant 0 : index
    %c0_32 = arith.constant 0 : index
    %60 = vector.load %arg14[%c0_30, %c0_31, %c0_32] : memref<4x1x32xf32, #tpu.memory_space<vmem>>, vector<1x1x32xf32>
    %61 = vector.shape_cast %60 : vector<1x1x32xf32> to vector<1x32xf32>
    %c0_33 = arith.constant 0 : index
    %c0_34 = arith.constant 0 : index
    %c0_35 = arith.constant 0 : index
    %62 = vector.load %arg15[%c0_33, %c0_34, %c0_35] : memref<4x1x32xf32, #tpu.memory_space<vmem>>, vector<1x1x32xf32>
    %63 = vector.shape_cast %62 : vector<1x1x32xf32> to vector<1x32xf32>
    %cst_36 = arith.constant dense<0.000000e+00> : vector<32xf32>
    %64 = vector.multi_reduction <add>, %49, %cst_36 [1] : vector<32x32xf32> to vector<32xf32>
    %65 = vector.shape_cast %64 : vector<32xf32> to vector<32x1xf32>
    %cst_37 = arith.constant 3.200000e+01 : f32
    %66 = vector.broadcast %cst_37 : f32 to vector<32x1xf32>
    %67 = arith.divf %65, %66 : vector<32x1xf32>
    %68 = vector.broadcast %67 : vector<32x1xf32> to vector<32x32xf32>
    %69 = arith.subf %49, %68 : vector<32x32xf32>
    %70 = arith.mulf %69, %69 : vector<32x32xf32>
    %cst_38 = arith.constant dense<0.000000e+00> : vector<32xf32>
    %71 = vector.multi_reduction <add>, %70, %cst_38 [1] : vector<32x32xf32> to vector<32xf32>
    %72 = vector.shape_cast %71 : vector<32xf32> to vector<32x1xf32>
    %cst_39 = arith.constant 3.200000e+01 : f32
    %73 = vector.broadcast %cst_39 : f32 to vector<32x1xf32>
    %74 = arith.divf %72, %73 : vector<32x1xf32>
    %75 = vector.broadcast %67 : vector<32x1xf32> to vector<32x32xf32>
    %76 = arith.subf %49, %75 : vector<32x32xf32>
    %cst_40 = arith.constant 9.99999974E-6 : f32
    %77 = vector.broadcast %cst_40 : f32 to vector<32x1xf32>
    %78 = arith.addf %74, %77 : vector<32x1xf32>
    %79 = math.rsqrt %78 : vector<32x1xf32>
    %80 = vector.broadcast %79 : vector<32x1xf32> to vector<32x32xf32>
    %81 = arith.mulf %76, %80 : vector<32x32xf32>
    %82 = vector.broadcast %61 : vector<1x32xf32> to vector<32x32xf32>
    %83 = arith.mulf %81, %82 : vector<32x32xf32>
    %84 = vector.broadcast %63 : vector<1x32xf32> to vector<32x32xf32>
    %85 = arith.addf %83, %84 : vector<32x32xf32>
    %c0_41 = arith.constant 0 : index
    %c0_42 = arith.constant 0 : index
    %c0_43 = arith.constant 0 : index
    %86 = vector.load %arg13[%c0_41, %c0_42, %c0_43] : memref<2x1x32xf32, #tpu.memory_space<vmem>>, vector<1x1x32xf32>
    %87 = vector.shape_cast %86 : vector<1x1x32xf32> to vector<1x32xf32>
    %c0_44 = arith.constant 0 : index
    %c0_45 = arith.constant 0 : index
    %c0_46 = arith.constant 0 : index
    %88 = vector.load %arg10[%c0_44, %c0_45, %c0_46] : memref<12x32x16xf32, #tpu.memory_space<vmem>>, vector<1x32x16xf32>
    %89 = vector.shape_cast %88 : vector<1x32x16xf32> to vector<32x16xf32>
    %cst_47 = arith.constant dense<0.000000e+00> : vector<32x16xf32>
    %90 = tpu.matmul %85, %89, %cst_47 {dimension_numbers = #tpu.dot_dimension_numbers<[1], [0], [0], [1], [0, 0, 1, 1], [], []>} : vector<32x32xf32>, vector<32x16xf32>, vector<32x16xf32> -> vector<32x16xf32>
    %c0_48 = arith.constant 0 : index
    %c0_49 = arith.constant 0 : index
    %c0_50 = arith.constant 0 : index
    %91 = vector.load %arg11[%c0_48, %c0_49, %c0_50] : memref<12x1x16xf32, #tpu.memory_space<vmem>>, vector<1x1x16xf32>
    %92 = vector.shape_cast %91 : vector<1x1x16xf32> to vector<1x16xf32>
    %93 = vector.broadcast %92 : vector<1x16xf32> to vector<32x16xf32>
    %94 = arith.addf %90, %93 : vector<32x16xf32>
    %cst_51 = arith.constant 2.500000e-01 : f32
    %95 = vector.broadcast %cst_51 : f32 to vector<32x16xf32>
    %96 = arith.mulf %94, %95 : vector<32x16xf32>
    %c2 = arith.constant 2 : index
    %c0_52 = arith.constant 0 : index
    %c0_53 = arith.constant 0 : index
    %97 = vector.load %arg10[%c2, %c0_52, %c0_53] : memref<12x32x16xf32, #tpu.memory_space<vmem>>, vector<1x32x16xf32>
    %98 = vector.shape_cast %97 : vector<1x32x16xf32> to vector<32x16xf32>
    %cst_54 = arith.constant dense<0.000000e+00> : vector<32x16xf32>
    %99 = tpu.matmul %85, %98, %cst_54 {dimension_numbers = #tpu.dot_dimension_numbers<[1], [0], [0], [1], [0, 0, 1, 1], [], []>} : vector<32x32xf32>, vector<32x16xf32>, vector<32x16xf32> -> vector<32x16xf32>
    %c2_55 = arith.constant 2 : index
    %c0_56 = arith.constant 0 : index
    %c0_57 = arith.constant 0 : index
    %100 = vector.load %arg11[%c2_55, %c0_56, %c0_57] : memref<12x1x16xf32, #tpu.memory_space<vmem>>, vector<1x1x16xf32>
    %101 = vector.shape_cast %100 : vector<1x1x16xf32> to vector<1x16xf32>
    %102 = vector.broadcast %101 : vector<1x16xf32> to vector<32x16xf32>
    %103 = arith.addf %99, %102 : vector<32x16xf32>
    %c4 = arith.constant 4 : index
    %c0_58 = arith.constant 0 : index
    %c0_59 = arith.constant 0 : index
    %104 = vector.load %arg10[%c4, %c0_58, %c0_59] : memref<12x32x16xf32, #tpu.memory_space<vmem>>, vector<1x32x16xf32>
    %105 = vector.shape_cast %104 : vector<1x32x16xf32> to vector<32x16xf32>
    %cst_60 = arith.constant dense<0.000000e+00> : vector<32x16xf32>
    %106 = tpu.matmul %85, %105, %cst_60 {dimension_numbers = #tpu.dot_dimension_numbers<[1], [0], [0], [1], [0, 0, 1, 1], [], []>} : vector<32x32xf32>, vector<32x16xf32>, vector<32x16xf32> -> vector<32x16xf32>
    %c4_61 = arith.constant 4 : index
    %c0_62 = arith.constant 0 : index
    %c0_63 = arith.constant 0 : index
    %107 = vector.load %arg11[%c4_61, %c0_62, %c0_63] : memref<12x1x16xf32, #tpu.memory_space<vmem>>, vector<1x1x16xf32>
    %108 = vector.shape_cast %107 : vector<1x1x16xf32> to vector<1x16xf32>
    %109 = vector.broadcast %108 : vector<1x16xf32> to vector<32x16xf32>
    %110 = arith.addf %106, %109 : vector<32x16xf32>
    %cst_64 = arith.constant dense<0.000000e+00> : vector<32x32xf32>
    %111 = tpu.matmul %96, %103, %cst_64 {dimension_numbers = #tpu.dot_dimension_numbers<[1], [1], [0], [0], [0, 0, 1, 0], [], []>} : vector<32x16xf32>, vector<32x16xf32>, vector<32x32xf32> -> vector<32x32xf32>
    %112 = vector.shape_cast %96 : vector<32x16xf32> to vector<32x1x16xf32>
    %113 = vector.broadcast %112 : vector<32x1x16xf32> to vector<32x32x16xf32>
    %114 = arith.mulf %113, %1 : vector<32x32x16xf32>
    %cst_65 = arith.constant dense<0.000000e+00> : vector<32x32xf32>
    %115 = vector.multi_reduction <add>, %114, %cst_65 [2] : vector<32x32x16xf32> to vector<32x32xf32>
    %116 = arith.addf %111, %115 : vector<32x32xf32>
    %117 = arith.addf %116, %59 : vector<32x32xf32>
    %cst_66 = arith.constant dense<0xFF800000> : vector<32xf32>
    %118 = vector.multi_reduction <maximumf>, %117, %cst_66 [1] : vector<32x32xf32> to vector<32xf32>
    %119 = vector.shape_cast %118 : vector<32xf32> to vector<32x1xf32>
    %120 = vector.broadcast %119 : vector<32x1xf32> to vector<32x32xf32>
    %121 = arith.subf %117, %120 : vector<32x32xf32>
    %122 = math.exp %121 : vector<32x32xf32>
    %cst_67 = arith.constant dense<0.000000e+00> : vector<32xf32>
    %123 = vector.multi_reduction <add>, %122, %cst_67 [1] : vector<32x32xf32> to vector<32xf32>
    %124 = vector.shape_cast %123 : vector<32xf32> to vector<32x1xf32>
    %125 = tpu.reciprocal %124 {approx = true} : vector<32x1xf32> -> vector<32x1xf32>
    %126 = vector.broadcast %125 : vector<32x1xf32> to vector<32x32xf32>
    %127 = arith.mulf %122, %126 : vector<32x32xf32>
    %cst_68 = arith.constant dense<0.000000e+00> : vector<32x16xf32>
    %128 = tpu.matmul %127, %110, %cst_68 {dimension_numbers = #tpu.dot_dimension_numbers<[1], [0], [0], [1], [0, 0, 1, 1], [], []>} : vector<32x32xf32>, vector<32x16xf32>, vector<32x16xf32> -> vector<32x16xf32>
    %c0_69 = arith.constant 0 : index
    %c0_70 = arith.constant 0 : index
    %c0_71 = arith.constant 0 : index
    %129 = vector.load %arg12[%c0_69, %c0_70, %c0_71] : memref<4x16x32xf32, #tpu.memory_space<vmem>>, vector<1x16x32xf32>
    %130 = vector.shape_cast %129 : vector<1x16x32xf32> to vector<16x32xf32>
    %cst_72 = arith.constant dense<0.000000e+00> : vector<32x32xf32>
    %131 = tpu.matmul %128, %130, %cst_72 {dimension_numbers = #tpu.dot_dimension_numbers<[1], [0], [0], [1], [0, 0, 1, 1], [], []>} : vector<32x16xf32>, vector<16x32xf32>, vector<32x32xf32> -> vector<32x32xf32>
    %132 = vector.broadcast %87 : vector<1x32xf32> to vector<32x32xf32>
    %133 = arith.addf %132, %131 : vector<32x32xf32>
    %c1 = arith.constant 1 : index
    %c0_73 = arith.constant 0 : index
    %c0_74 = arith.constant 0 : index
    %134 = vector.load %arg10[%c1, %c0_73, %c0_74] : memref<12x32x16xf32, #tpu.memory_space<vmem>>, vector<1x32x16xf32>
    %135 = vector.shape_cast %134 : vector<1x32x16xf32> to vector<32x16xf32>
    %cst_75 = arith.constant dense<0.000000e+00> : vector<32x16xf32>
    %136 = tpu.matmul %85, %135, %cst_75 {dimension_numbers = #tpu.dot_dimension_numbers<[1], [0], [0], [1], [0, 0, 1, 1], [], []>} : vector<32x32xf32>, vector<32x16xf32>, vector<32x16xf32> -> vector<32x16xf32>
    %c1_76 = arith.constant 1 : index
    %c0_77 = arith.constant 0 : index
    %c0_78 = arith.constant 0 : index
    %137 = vector.load %arg11[%c1_76, %c0_77, %c0_78] : memref<12x1x16xf32, #tpu.memory_space<vmem>>, vector<1x1x16xf32>
    %138 = vector.shape_cast %137 : vector<1x1x16xf32> to vector<1x16xf32>
    %139 = vector.broadcast %138 : vector<1x16xf32> to vector<32x16xf32>
    %140 = arith.addf %136, %139 : vector<32x16xf32>
    %cst_79 = arith.constant 2.500000e-01 : f32
    %141 = vector.broadcast %cst_79 : f32 to vector<32x16xf32>
    %142 = arith.mulf %140, %141 : vector<32x16xf32>
    %c3 = arith.constant 3 : index
    %c0_80 = arith.constant 0 : index
    %c0_81 = arith.constant 0 : index
    %143 = vector.load %arg10[%c3, %c0_80, %c0_81] : memref<12x32x16xf32, #tpu.memory_space<vmem>>, vector<1x32x16xf32>
    %144 = vector.shape_cast %143 : vector<1x32x16xf32> to vector<32x16xf32>
    %cst_82 = arith.constant dense<0.000000e+00> : vector<32x16xf32>
    %145 = tpu.matmul %85, %144, %cst_82 {dimension_numbers = #tpu.dot_dimension_numbers<[1], [0], [0], [1], [0, 0, 1, 1], [], []>} : vector<32x32xf32>, vector<32x16xf32>, vector<32x16xf32> -> vector<32x16xf32>
    %c3_83 = arith.constant 3 : index
    %c0_84 = arith.constant 0 : index
    %c0_85 = arith.constant 0 : index
    %146 = vector.load %arg11[%c3_83, %c0_84, %c0_85] : memref<12x1x16xf32, #tpu.memory_space<vmem>>, vector<1x1x16xf32>
    %147 = vector.shape_cast %146 : vector<1x1x16xf32> to vector<1x16xf32>
    %148 = vector.broadcast %147 : vector<1x16xf32> to vector<32x16xf32>
    %149 = arith.addf %145, %148 : vector<32x16xf32>
    %c5 = arith.constant 5 : index
    %c0_86 = arith.constant 0 : index
    %c0_87 = arith.constant 0 : index
    %150 = vector.load %arg10[%c5, %c0_86, %c0_87] : memref<12x32x16xf32, #tpu.memory_space<vmem>>, vector<1x32x16xf32>
    %151 = vector.shape_cast %150 : vector<1x32x16xf32> to vector<32x16xf32>
    %cst_88 = arith.constant dense<0.000000e+00> : vector<32x16xf32>
    %152 = tpu.matmul %85, %151, %cst_88 {dimension_numbers = #tpu.dot_dimension_numbers<[1], [0], [0], [1], [0, 0, 1, 1], [], []>} : vector<32x32xf32>, vector<32x16xf32>, vector<32x16xf32> -> vector<32x16xf32>
    %c5_89 = arith.constant 5 : index
    %c0_90 = arith.constant 0 : index
    %c0_91 = arith.constant 0 : index
    %153 = vector.load %arg11[%c5_89, %c0_90, %c0_91] : memref<12x1x16xf32, #tpu.memory_space<vmem>>, vector<1x1x16xf32>
    %154 = vector.shape_cast %153 : vector<1x1x16xf32> to vector<1x16xf32>
    %155 = vector.broadcast %154 : vector<1x16xf32> to vector<32x16xf32>
    %156 = arith.addf %152, %155 : vector<32x16xf32>
    %cst_92 = arith.constant dense<0.000000e+00> : vector<32x32xf32>
    %157 = tpu.matmul %142, %149, %cst_92 {dimension_numbers = #tpu.dot_dimension_numbers<[1], [1], [0], [0], [0, 0, 1, 0], [], []>} : vector<32x16xf32>, vector<32x16xf32>, vector<32x32xf32> -> vector<32x32xf32>
    %158 = vector.shape_cast %142 : vector<32x16xf32> to vector<32x1x16xf32>
    %159 = vector.broadcast %158 : vector<32x1x16xf32> to vector<32x32x16xf32>
    %160 = arith.mulf %159, %1 : vector<32x32x16xf32>
    %cst_93 = arith.constant dense<0.000000e+00> : vector<32x32xf32>
    %161 = vector.multi_reduction <add>, %160, %cst_93 [2] : vector<32x32x16xf32> to vector<32x32xf32>
    %162 = arith.addf %157, %161 : vector<32x32xf32>
    %163 = arith.addf %162, %59 : vector<32x32xf32>
    %cst_94 = arith.constant dense<0xFF800000> : vector<32xf32>
    %164 = vector.multi_reduction <maximumf>, %163, %cst_94 [1] : vector<32x32xf32> to vector<32xf32>
    %165 = vector.shape_cast %164 : vector<32xf32> to vector<32x1xf32>
    %166 = vector.broadcast %165 : vector<32x1xf32> to vector<32x32xf32>
    %167 = arith.subf %163, %166 : vector<32x32xf32>
    %168 = math.exp %167 : vector<32x32xf32>
    %cst_95 = arith.constant dense<0.000000e+00> : vector<32xf32>
    %169 = vector.multi_reduction <add>, %168, %cst_95 [1] : vector<32x32xf32> to vector<32xf32>
    %170 = vector.shape_cast %169 : vector<32xf32> to vector<32x1xf32>
    %171 = tpu.reciprocal %170 {approx = true} : vector<32x1xf32> -> vector<32x1xf32>
    %172 = vector.broadcast %171 : vector<32x1xf32> to vector<32x32xf32>
    %173 = arith.mulf %168, %172 : vector<32x32xf32>
    %cst_96 = arith.constant dense<0.000000e+00> : vector<32x16xf32>
    %174 = tpu.matmul %173, %156, %cst_96 {dimension_numbers = #tpu.dot_dimension_numbers<[1], [0], [0], [1], [0, 0, 1, 1], [], []>} : vector<32x32xf32>, vector<32x16xf32>, vector<32x16xf32> -> vector<32x16xf32>
    %c1_97 = arith.constant 1 : index
    %c0_98 = arith.constant 0 : index
    %c0_99 = arith.constant 0 : index
    %175 = vector.load %arg12[%c1_97, %c0_98, %c0_99] : memref<4x16x32xf32, #tpu.memory_space<vmem>>, vector<1x16x32xf32>
    %176 = vector.shape_cast %175 : vector<1x16x32xf32> to vector<16x32xf32>
    %cst_100 = arith.constant dense<0.000000e+00> : vector<32x32xf32>
    %177 = tpu.matmul %174, %176, %cst_100 {dimension_numbers = #tpu.dot_dimension_numbers<[1], [0], [0], [1], [0, 0, 1, 1], [], []>} : vector<32x16xf32>, vector<16x32xf32>, vector<32x32xf32> -> vector<32x32xf32>
    %178 = arith.addf %133, %177 : vector<32x32xf32>
    %179 = arith.addf %49, %178 : vector<32x32xf32>
    %c1_101 = arith.constant 1 : index
    %c0_102 = arith.constant 0 : index
    %c0_103 = arith.constant 0 : index
    %180 = vector.load %arg14[%c1_101, %c0_102, %c0_103] : memref<4x1x32xf32, #tpu.memory_space<vmem>>, vector<1x1x32xf32>
    %181 = vector.shape_cast %180 : vector<1x1x32xf32> to vector<1x32xf32>
    %c1_104 = arith.constant 1 : index
    %c0_105 = arith.constant 0 : index
    %c0_106 = arith.constant 0 : index
    %182 = vector.load %arg15[%c1_104, %c0_105, %c0_106] : memref<4x1x32xf32, #tpu.memory_space<vmem>>, vector<1x1x32xf32>
    %183 = vector.shape_cast %182 : vector<1x1x32xf32> to vector<1x32xf32>
    %cst_107 = arith.constant dense<0.000000e+00> : vector<32xf32>
    %184 = vector.multi_reduction <add>, %179, %cst_107 [1] : vector<32x32xf32> to vector<32xf32>
    %185 = vector.shape_cast %184 : vector<32xf32> to vector<32x1xf32>
    %cst_108 = arith.constant 3.200000e+01 : f32
    %186 = vector.broadcast %cst_108 : f32 to vector<32x1xf32>
    %187 = arith.divf %185, %186 : vector<32x1xf32>
    %188 = vector.broadcast %187 : vector<32x1xf32> to vector<32x32xf32>
    %189 = arith.subf %179, %188 : vector<32x32xf32>
    %190 = arith.mulf %189, %189 : vector<32x32xf32>
    %cst_109 = arith.constant dense<0.000000e+00> : vector<32xf32>
    %191 = vector.multi_reduction <add>, %190, %cst_109 [1] : vector<32x32xf32> to vector<32xf32>
    %192 = vector.shape_cast %191 : vector<32xf32> to vector<32x1xf32>
    %cst_110 = arith.constant 3.200000e+01 : f32
    %193 = vector.broadcast %cst_110 : f32 to vector<32x1xf32>
    %194 = arith.divf %192, %193 : vector<32x1xf32>
    %195 = vector.broadcast %187 : vector<32x1xf32> to vector<32x32xf32>
    %196 = arith.subf %179, %195 : vector<32x32xf32>
    %cst_111 = arith.constant 9.99999974E-6 : f32
    %197 = vector.broadcast %cst_111 : f32 to vector<32x1xf32>
    %198 = arith.addf %194, %197 : vector<32x1xf32>
    %199 = math.rsqrt %198 : vector<32x1xf32>
    %200 = vector.broadcast %199 : vector<32x1xf32> to vector<32x32xf32>
    %201 = arith.mulf %196, %200 : vector<32x32xf32>
    %202 = vector.broadcast %181 : vector<1x32xf32> to vector<32x32xf32>
    %203 = arith.mulf %201, %202 : vector<32x32xf32>
    %204 = vector.broadcast %183 : vector<1x32xf32> to vector<32x32xf32>
    %205 = arith.addf %203, %204 : vector<32x32xf32>
    %c0_112 = arith.constant 0 : index
    %c0_113 = arith.constant 0 : index
    %c0_114 = arith.constant 0 : index
    %206 = vector.load %arg16[%c0_112, %c0_113, %c0_114] : memref<2x32x64xf32, #tpu.memory_space<vmem>>, vector<1x32x64xf32>
    %207 = vector.shape_cast %206 : vector<1x32x64xf32> to vector<32x64xf32>
    %cst_115 = arith.constant dense<0.000000e+00> : vector<32x64xf32>
    %208 = tpu.matmul %205, %207, %cst_115 {dimension_numbers = #tpu.dot_dimension_numbers<[1], [0], [0], [1], [0, 0, 1, 1], [], []>} : vector<32x32xf32>, vector<32x64xf32>, vector<32x64xf32> -> vector<32x64xf32>
    %c0_116 = arith.constant 0 : index
    %c0_117 = arith.constant 0 : index
    %c0_118 = arith.constant 0 : index
    %209 = vector.load %arg17[%c0_116, %c0_117, %c0_118] : memref<2x1x64xf32, #tpu.memory_space<vmem>>, vector<1x1x64xf32>
    %210 = vector.shape_cast %209 : vector<1x1x64xf32> to vector<1x64xf32>
    %211 = vector.broadcast %210 : vector<1x64xf32> to vector<32x64xf32>
    %212 = arith.addf %208, %211 : vector<32x64xf32>
    %cst_119 = arith.constant 0.000000e+00 : f32
    %213 = vector.broadcast %cst_119 : f32 to vector<32x64xf32>
    %214 = arith.maximumf %212, %213 : vector<32x64xf32>
    %c0_120 = arith.constant 0 : index
    %c0_121 = arith.constant 0 : index
    %c0_122 = arith.constant 0 : index
    %215 = vector.load %arg18[%c0_120, %c0_121, %c0_122] : memref<2x64x32xf32, #tpu.memory_space<vmem>>, vector<1x64x32xf32>
    %216 = vector.shape_cast %215 : vector<1x64x32xf32> to vector<64x32xf32>
    %cst_123 = arith.constant dense<0.000000e+00> : vector<32x32xf32>
    %217 = tpu.matmul %214, %216, %cst_123 {dimension_numbers = #tpu.dot_dimension_numbers<[1], [0], [0], [1], [0, 0, 1, 1], [], []>} : vector<32x64xf32>, vector<64x32xf32>, vector<32x32xf32> -> vector<32x32xf32>
    %c0_124 = arith.constant 0 : index
    %c0_125 = arith.constant 0 : index
    %c0_126 = arith.constant 0 : index
    %218 = vector.load %arg19[%c0_124, %c0_125, %c0_126] : memref<2x1x32xf32, #tpu.memory_space<vmem>>, vector<1x1x32xf32>
    %219 = vector.shape_cast %218 : vector<1x1x32xf32> to vector<1x32xf32>
    %220 = vector.broadcast %219 : vector<1x32xf32> to vector<32x32xf32>
    %221 = arith.addf %217, %220 : vector<32x32xf32>
    %222 = arith.addf %179, %221 : vector<32x32xf32>
    %c2_127 = arith.constant 2 : index
    %c0_128 = arith.constant 0 : index
    %c0_129 = arith.constant 0 : index
    %223 = vector.load %arg14[%c2_127, %c0_128, %c0_129] : memref<4x1x32xf32, #tpu.memory_space<vmem>>, vector<1x1x32xf32>
    %224 = vector.shape_cast %223 : vector<1x1x32xf32> to vector<1x32xf32>
    %c2_130 = arith.constant 2 : index
    %c0_131 = arith.constant 0 : index
    %c0_132 = arith.constant 0 : index
    %225 = vector.load %arg15[%c2_130, %c0_131, %c0_132] : memref<4x1x32xf32, #tpu.memory_space<vmem>>, vector<1x1x32xf32>
    %226 = vector.shape_cast %225 : vector<1x1x32xf32> to vector<1x32xf32>
    %cst_133 = arith.constant dense<0.000000e+00> : vector<32xf32>
    %227 = vector.multi_reduction <add>, %222, %cst_133 [1] : vector<32x32xf32> to vector<32xf32>
    %228 = vector.shape_cast %227 : vector<32xf32> to vector<32x1xf32>
    %cst_134 = arith.constant 3.200000e+01 : f32
    %229 = vector.broadcast %cst_134 : f32 to vector<32x1xf32>
    %230 = arith.divf %228, %229 : vector<32x1xf32>
    %231 = vector.broadcast %230 : vector<32x1xf32> to vector<32x32xf32>
    %232 = arith.subf %222, %231 : vector<32x32xf32>
    %233 = arith.mulf %232, %232 : vector<32x32xf32>
    %cst_135 = arith.constant dense<0.000000e+00> : vector<32xf32>
    %234 = vector.multi_reduction <add>, %233, %cst_135 [1] : vector<32x32xf32> to vector<32xf32>
    %235 = vector.shape_cast %234 : vector<32xf32> to vector<32x1xf32>
    %cst_136 = arith.constant 3.200000e+01 : f32
    %236 = vector.broadcast %cst_136 : f32 to vector<32x1xf32>
    %237 = arith.divf %235, %236 : vector<32x1xf32>
    %238 = vector.broadcast %230 : vector<32x1xf32> to vector<32x32xf32>
    %239 = arith.subf %222, %238 : vector<32x32xf32>
    %cst_137 = arith.constant 9.99999974E-6 : f32
    %240 = vector.broadcast %cst_137 : f32 to vector<32x1xf32>
    %241 = arith.addf %237, %240 : vector<32x1xf32>
    %242 = math.rsqrt %241 : vector<32x1xf32>
    %243 = vector.broadcast %242 : vector<32x1xf32> to vector<32x32xf32>
    %244 = arith.mulf %239, %243 : vector<32x32xf32>
    %245 = vector.broadcast %224 : vector<1x32xf32> to vector<32x32xf32>
    %246 = arith.mulf %244, %245 : vector<32x32xf32>
    %247 = vector.broadcast %226 : vector<1x32xf32> to vector<32x32xf32>
    %248 = arith.addf %246, %247 : vector<32x32xf32>
    %c1_138 = arith.constant 1 : index
    %c0_139 = arith.constant 0 : index
    %c0_140 = arith.constant 0 : index
    %249 = vector.load %arg13[%c1_138, %c0_139, %c0_140] : memref<2x1x32xf32, #tpu.memory_space<vmem>>, vector<1x1x32xf32>
    %250 = vector.shape_cast %249 : vector<1x1x32xf32> to vector<1x32xf32>
    %c6 = arith.constant 6 : index
    %c0_141 = arith.constant 0 : index
    %c0_142 = arith.constant 0 : index
    %251 = vector.load %arg10[%c6, %c0_141, %c0_142] : memref<12x32x16xf32, #tpu.memory_space<vmem>>, vector<1x32x16xf32>
    %252 = vector.shape_cast %251 : vector<1x32x16xf32> to vector<32x16xf32>
    %cst_143 = arith.constant dense<0.000000e+00> : vector<32x16xf32>
    %253 = tpu.matmul %248, %252, %cst_143 {dimension_numbers = #tpu.dot_dimension_numbers<[1], [0], [0], [1], [0, 0, 1, 1], [], []>} : vector<32x32xf32>, vector<32x16xf32>, vector<32x16xf32> -> vector<32x16xf32>
    %c6_144 = arith.constant 6 : index
    %c0_145 = arith.constant 0 : index
    %c0_146 = arith.constant 0 : index
    %254 = vector.load %arg11[%c6_144, %c0_145, %c0_146] : memref<12x1x16xf32, #tpu.memory_space<vmem>>, vector<1x1x16xf32>
    %255 = vector.shape_cast %254 : vector<1x1x16xf32> to vector<1x16xf32>
    %256 = vector.broadcast %255 : vector<1x16xf32> to vector<32x16xf32>
    %257 = arith.addf %253, %256 : vector<32x16xf32>
    %cst_147 = arith.constant 2.500000e-01 : f32
    %258 = vector.broadcast %cst_147 : f32 to vector<32x16xf32>
    %259 = arith.mulf %257, %258 : vector<32x16xf32>
    %c8 = arith.constant 8 : index
    %c0_148 = arith.constant 0 : index
    %c0_149 = arith.constant 0 : index
    %260 = vector.load %arg10[%c8, %c0_148, %c0_149] : memref<12x32x16xf32, #tpu.memory_space<vmem>>, vector<1x32x16xf32>
    %261 = vector.shape_cast %260 : vector<1x32x16xf32> to vector<32x16xf32>
    %cst_150 = arith.constant dense<0.000000e+00> : vector<32x16xf32>
    %262 = tpu.matmul %248, %261, %cst_150 {dimension_numbers = #tpu.dot_dimension_numbers<[1], [0], [0], [1], [0, 0, 1, 1], [], []>} : vector<32x32xf32>, vector<32x16xf32>, vector<32x16xf32> -> vector<32x16xf32>
    %c8_151 = arith.constant 8 : index
    %c0_152 = arith.constant 0 : index
    %c0_153 = arith.constant 0 : index
    %263 = vector.load %arg11[%c8_151, %c0_152, %c0_153] : memref<12x1x16xf32, #tpu.memory_space<vmem>>, vector<1x1x16xf32>
    %264 = vector.shape_cast %263 : vector<1x1x16xf32> to vector<1x16xf32>
    %265 = vector.broadcast %264 : vector<1x16xf32> to vector<32x16xf32>
    %266 = arith.addf %262, %265 : vector<32x16xf32>
    %c10 = arith.constant 10 : index
    %c0_154 = arith.constant 0 : index
    %c0_155 = arith.constant 0 : index
    %267 = vector.load %arg10[%c10, %c0_154, %c0_155] : memref<12x32x16xf32, #tpu.memory_space<vmem>>, vector<1x32x16xf32>
    %268 = vector.shape_cast %267 : vector<1x32x16xf32> to vector<32x16xf32>
    %cst_156 = arith.constant dense<0.000000e+00> : vector<32x16xf32>
    %269 = tpu.matmul %248, %268, %cst_156 {dimension_numbers = #tpu.dot_dimension_numbers<[1], [0], [0], [1], [0, 0, 1, 1], [], []>} : vector<32x32xf32>, vector<32x16xf32>, vector<32x16xf32> -> vector<32x16xf32>
    %c10_157 = arith.constant 10 : index
    %c0_158 = arith.constant 0 : index
    %c0_159 = arith.constant 0 : index
    %270 = vector.load %arg11[%c10_157, %c0_158, %c0_159] : memref<12x1x16xf32, #tpu.memory_space<vmem>>, vector<1x1x16xf32>
    %271 = vector.shape_cast %270 : vector<1x1x16xf32> to vector<1x16xf32>
    %272 = vector.broadcast %271 : vector<1x16xf32> to vector<32x16xf32>
    %273 = arith.addf %269, %272 : vector<32x16xf32>
    %cst_160 = arith.constant dense<0.000000e+00> : vector<32x32xf32>
    %274 = tpu.matmul %259, %266, %cst_160 {dimension_numbers = #tpu.dot_dimension_numbers<[1], [1], [0], [0], [0, 0, 1, 0], [], []>} : vector<32x16xf32>, vector<32x16xf32>, vector<32x32xf32> -> vector<32x32xf32>
    %275 = vector.shape_cast %259 : vector<32x16xf32> to vector<32x1x16xf32>
    %276 = vector.broadcast %275 : vector<32x1x16xf32> to vector<32x32x16xf32>
    %277 = arith.mulf %276, %1 : vector<32x32x16xf32>
    %cst_161 = arith.constant dense<0.000000e+00> : vector<32x32xf32>
    %278 = vector.multi_reduction <add>, %277, %cst_161 [2] : vector<32x32x16xf32> to vector<32x32xf32>
    %279 = arith.addf %274, %278 : vector<32x32xf32>
    %280 = arith.addf %279, %59 : vector<32x32xf32>
    %cst_162 = arith.constant dense<0xFF800000> : vector<32xf32>
    %281 = vector.multi_reduction <maximumf>, %280, %cst_162 [1] : vector<32x32xf32> to vector<32xf32>
    %282 = vector.shape_cast %281 : vector<32xf32> to vector<32x1xf32>
    %283 = vector.broadcast %282 : vector<32x1xf32> to vector<32x32xf32>
    %284 = arith.subf %280, %283 : vector<32x32xf32>
    %285 = math.exp %284 : vector<32x32xf32>
    %cst_163 = arith.constant dense<0.000000e+00> : vector<32xf32>
    %286 = vector.multi_reduction <add>, %285, %cst_163 [1] : vector<32x32xf32> to vector<32xf32>
    %287 = vector.shape_cast %286 : vector<32xf32> to vector<32x1xf32>
    %288 = tpu.reciprocal %287 {approx = true} : vector<32x1xf32> -> vector<32x1xf32>
    %289 = vector.broadcast %288 : vector<32x1xf32> to vector<32x32xf32>
    %290 = arith.mulf %285, %289 : vector<32x32xf32>
    %cst_164 = arith.constant dense<0.000000e+00> : vector<32x16xf32>
    %291 = tpu.matmul %290, %273, %cst_164 {dimension_numbers = #tpu.dot_dimension_numbers<[1], [0], [0], [1], [0, 0, 1, 1], [], []>} : vector<32x32xf32>, vector<32x16xf32>, vector<32x16xf32> -> vector<32x16xf32>
    %c2_165 = arith.constant 2 : index
    %c0_166 = arith.constant 0 : index
    %c0_167 = arith.constant 0 : index
    %292 = vector.load %arg12[%c2_165, %c0_166, %c0_167] : memref<4x16x32xf32, #tpu.memory_space<vmem>>, vector<1x16x32xf32>
    %293 = vector.shape_cast %292 : vector<1x16x32xf32> to vector<16x32xf32>
    %cst_168 = arith.constant dense<0.000000e+00> : vector<32x32xf32>
    %294 = tpu.matmul %291, %293, %cst_168 {dimension_numbers = #tpu.dot_dimension_numbers<[1], [0], [0], [1], [0, 0, 1, 1], [], []>} : vector<32x16xf32>, vector<16x32xf32>, vector<32x32xf32> -> vector<32x32xf32>
    %295 = vector.broadcast %250 : vector<1x32xf32> to vector<32x32xf32>
    %296 = arith.addf %295, %294 : vector<32x32xf32>
    %c7 = arith.constant 7 : index
    %c0_169 = arith.constant 0 : index
    %c0_170 = arith.constant 0 : index
    %297 = vector.load %arg10[%c7, %c0_169, %c0_170] : memref<12x32x16xf32, #tpu.memory_space<vmem>>, vector<1x32x16xf32>
    %298 = vector.shape_cast %297 : vector<1x32x16xf32> to vector<32x16xf32>
    %cst_171 = arith.constant dense<0.000000e+00> : vector<32x16xf32>
    %299 = tpu.matmul %248, %298, %cst_171 {dimension_numbers = #tpu.dot_dimension_numbers<[1], [0], [0], [1], [0, 0, 1, 1], [], []>} : vector<32x32xf32>, vector<32x16xf32>, vector<32x16xf32> -> vector<32x16xf32>
    %c7_172 = arith.constant 7 : index
    %c0_173 = arith.constant 0 : index
    %c0_174 = arith.constant 0 : index
    %300 = vector.load %arg11[%c7_172, %c0_173, %c0_174] : memref<12x1x16xf32, #tpu.memory_space<vmem>>, vector<1x1x16xf32>
    %301 = vector.shape_cast %300 : vector<1x1x16xf32> to vector<1x16xf32>
    %302 = vector.broadcast %301 : vector<1x16xf32> to vector<32x16xf32>
    %303 = arith.addf %299, %302 : vector<32x16xf32>
    %cst_175 = arith.constant 2.500000e-01 : f32
    %304 = vector.broadcast %cst_175 : f32 to vector<32x16xf32>
    %305 = arith.mulf %303, %304 : vector<32x16xf32>
    %c9 = arith.constant 9 : index
    %c0_176 = arith.constant 0 : index
    %c0_177 = arith.constant 0 : index
    %306 = vector.load %arg10[%c9, %c0_176, %c0_177] : memref<12x32x16xf32, #tpu.memory_space<vmem>>, vector<1x32x16xf32>
    %307 = vector.shape_cast %306 : vector<1x32x16xf32> to vector<32x16xf32>
    %cst_178 = arith.constant dense<0.000000e+00> : vector<32x16xf32>
    %308 = tpu.matmul %248, %307, %cst_178 {dimension_numbers = #tpu.dot_dimension_numbers<[1], [0], [0], [1], [0, 0, 1, 1], [], []>} : vector<32x32xf32>, vector<32x16xf32>, vector<32x16xf32> -> vector<32x16xf32>
    %c9_179 = arith.constant 9 : index
    %c0_180 = arith.constant 0 : index
    %c0_181 = arith.constant 0 : index
    %309 = vector.load %arg11[%c9_179, %c0_180, %c0_181] : memref<12x1x16xf32, #tpu.memory_space<vmem>>, vector<1x1x16xf32>
    %310 = vector.shape_cast %309 : vector<1x1x16xf32> to vector<1x16xf32>
    %311 = vector.broadcast %310 : vector<1x16xf32> to vector<32x16xf32>
    %312 = arith.addf %308, %311 : vector<32x16xf32>
    %c11 = arith.constant 11 : index
    %c0_182 = arith.constant 0 : index
    %c0_183 = arith.constant 0 : index
    %313 = vector.load %arg10[%c11, %c0_182, %c0_183] : memref<12x32x16xf32, #tpu.memory_space<vmem>>, vector<1x32x16xf32>
    %314 = vector.shape_cast %313 : vector<1x32x16xf32> to vector<32x16xf32>
    %cst_184 = arith.constant dense<0.000000e+00> : vector<32x16xf32>
    %315 = tpu.matmul %248, %314, %cst_184 {dimension_numbers = #tpu.dot_dimension_numbers<[1], [0], [0], [1], [0, 0, 1, 1], [], []>} : vector<32x32xf32>, vector<32x16xf32>, vector<32x16xf32> -> vector<32x16xf32>
    %c11_185 = arith.constant 11 : index
    %c0_186 = arith.constant 0 : index
    %c0_187 = arith.constant 0 : index
    %316 = vector.load %arg11[%c11_185, %c0_186, %c0_187] : memref<12x1x16xf32, #tpu.memory_space<vmem>>, vector<1x1x16xf32>
    %317 = vector.shape_cast %316 : vector<1x1x16xf32> to vector<1x16xf32>
    %318 = vector.broadcast %317 : vector<1x16xf32> to vector<32x16xf32>
    %319 = arith.addf %315, %318 : vector<32x16xf32>
    %cst_188 = arith.constant dense<0.000000e+00> : vector<32x32xf32>
    %320 = tpu.matmul %305, %312, %cst_188 {dimension_numbers = #tpu.dot_dimension_numbers<[1], [1], [0], [0], [0, 0, 1, 0], [], []>} : vector<32x16xf32>, vector<32x16xf32>, vector<32x32xf32> -> vector<32x32xf32>
    %321 = vector.shape_cast %305 : vector<32x16xf32> to vector<32x1x16xf32>
    %322 = vector.broadcast %321 : vector<32x1x16xf32> to vector<32x32x16xf32>
    %323 = arith.mulf %322, %1 : vector<32x32x16xf32>
    %cst_189 = arith.constant dense<0.000000e+00> : vector<32x32xf32>
    %324 = vector.multi_reduction <add>, %323, %cst_189 [2] : vector<32x32x16xf32> to vector<32x32xf32>
    %325 = arith.addf %320, %324 : vector<32x32xf32>
    %326 = arith.addf %325, %59 : vector<32x32xf32>
    %cst_190 = arith.constant dense<0xFF800000> : vector<32xf32>
    %327 = vector.multi_reduction <maximumf>, %326, %cst_190 [1] : vector<32x32xf32> to vector<32xf32>
    %328 = vector.shape_cast %327 : vector<32xf32> to vector<32x1xf32>
    %329 = vector.broadcast %328 : vector<32x1xf32> to vector<32x32xf32>
    %330 = arith.subf %326, %329 : vector<32x32xf32>
    %331 = math.exp %330 : vector<32x32xf32>
    %cst_191 = arith.constant dense<0.000000e+00> : vector<32xf32>
    %332 = vector.multi_reduction <add>, %331, %cst_191 [1] : vector<32x32xf32> to vector<32xf32>
    %333 = vector.shape_cast %332 : vector<32xf32> to vector<32x1xf32>
    %334 = tpu.reciprocal %333 {approx = true} : vector<32x1xf32> -> vector<32x1xf32>
    %335 = vector.broadcast %334 : vector<32x1xf32> to vector<32x32xf32>
    %336 = arith.mulf %331, %335 : vector<32x32xf32>
    %cst_192 = arith.constant dense<0.000000e+00> : vector<32x16xf32>
    %337 = tpu.matmul %336, %319, %cst_192 {dimension_numbers = #tpu.dot_dimension_numbers<[1], [0], [0], [1], [0, 0, 1, 1], [], []>} : vector<32x32xf32>, vector<32x16xf32>, vector<32x16xf32> -> vector<32x16xf32>
    %c3_193 = arith.constant 3 : index
    %c0_194 = arith.constant 0 : index
    %c0_195 = arith.constant 0 : index
    %338 = vector.load %arg12[%c3_193, %c0_194, %c0_195] : memref<4x16x32xf32, #tpu.memory_space<vmem>>, vector<1x16x32xf32>
    %339 = vector.shape_cast %338 : vector<1x16x32xf32> to vector<16x32xf32>
    %cst_196 = arith.constant dense<0.000000e+00> : vector<32x32xf32>
    %340 = tpu.matmul %337, %339, %cst_196 {dimension_numbers = #tpu.dot_dimension_numbers<[1], [0], [0], [1], [0, 0, 1, 1], [], []>} : vector<32x16xf32>, vector<16x32xf32>, vector<32x32xf32> -> vector<32x32xf32>
    %341 = arith.addf %296, %340 : vector<32x32xf32>
    %342 = arith.addf %222, %341 : vector<32x32xf32>
    %c3_197 = arith.constant 3 : index
    %c0_198 = arith.constant 0 : index
    %c0_199 = arith.constant 0 : index
    %343 = vector.load %arg14[%c3_197, %c0_198, %c0_199] : memref<4x1x32xf32, #tpu.memory_space<vmem>>, vector<1x1x32xf32>
    %344 = vector.shape_cast %343 : vector<1x1x32xf32> to vector<1x32xf32>
    %c3_200 = arith.constant 3 : index
    %c0_201 = arith.constant 0 : index
    %c0_202 = arith.constant 0 : index
    %345 = vector.load %arg15[%c3_200, %c0_201, %c0_202] : memref<4x1x32xf32, #tpu.memory_space<vmem>>, vector<1x1x32xf32>
    %346 = vector.shape_cast %345 : vector<1x1x32xf32> to vector<1x32xf32>
    %cst_203 = arith.constant dense<0.000000e+00> : vector<32xf32>
    %347 = vector.multi_reduction <add>, %342, %cst_203 [1] : vector<32x32xf32> to vector<32xf32>
    %348 = vector.shape_cast %347 : vector<32xf32> to vector<32x1xf32>
    %cst_204 = arith.constant 3.200000e+01 : f32
    %349 = vector.broadcast %cst_204 : f32 to vector<32x1xf32>
    %350 = arith.divf %348, %349 : vector<32x1xf32>
    %351 = vector.broadcast %350 : vector<32x1xf32> to vector<32x32xf32>
    %352 = arith.subf %342, %351 : vector<32x32xf32>
    %353 = arith.mulf %352, %352 : vector<32x32xf32>
    %cst_205 = arith.constant dense<0.000000e+00> : vector<32xf32>
    %354 = vector.multi_reduction <add>, %353, %cst_205 [1] : vector<32x32xf32> to vector<32xf32>
    %355 = vector.shape_cast %354 : vector<32xf32> to vector<32x1xf32>
    %cst_206 = arith.constant 3.200000e+01 : f32
    %356 = vector.broadcast %cst_206 : f32 to vector<32x1xf32>
    %357 = arith.divf %355, %356 : vector<32x1xf32>
    %358 = vector.broadcast %350 : vector<32x1xf32> to vector<32x32xf32>
    %359 = arith.subf %342, %358 : vector<32x32xf32>
    %cst_207 = arith.constant 9.99999974E-6 : f32
    %360 = vector.broadcast %cst_207 : f32 to vector<32x1xf32>
    %361 = arith.addf %357, %360 : vector<32x1xf32>
    %362 = math.rsqrt %361 : vector<32x1xf32>
    %363 = vector.broadcast %362 : vector<32x1xf32> to vector<32x32xf32>
    %364 = arith.mulf %359, %363 : vector<32x32xf32>
    %365 = vector.broadcast %344 : vector<1x32xf32> to vector<32x32xf32>
    %366 = arith.mulf %364, %365 : vector<32x32xf32>
    %367 = vector.broadcast %346 : vector<1x32xf32> to vector<32x32xf32>
    %368 = arith.addf %366, %367 : vector<32x32xf32>
    %c1_208 = arith.constant 1 : index
    %c0_209 = arith.constant 0 : index
    %c0_210 = arith.constant 0 : index
    %369 = vector.load %arg16[%c1_208, %c0_209, %c0_210] : memref<2x32x64xf32, #tpu.memory_space<vmem>>, vector<1x32x64xf32>
    %370 = vector.shape_cast %369 : vector<1x32x64xf32> to vector<32x64xf32>
    %cst_211 = arith.constant dense<0.000000e+00> : vector<32x64xf32>
    %371 = tpu.matmul %368, %370, %cst_211 {dimension_numbers = #tpu.dot_dimension_numbers<[1], [0], [0], [1], [0, 0, 1, 1], [], []>} : vector<32x32xf32>, vector<32x64xf32>, vector<32x64xf32> -> vector<32x64xf32>
    %c1_212 = arith.constant 1 : index
    %c0_213 = arith.constant 0 : index
    %c0_214 = arith.constant 0 : index
    %372 = vector.load %arg17[%c1_212, %c0_213, %c0_214] : memref<2x1x64xf32, #tpu.memory_space<vmem>>, vector<1x1x64xf32>
    %373 = vector.shape_cast %372 : vector<1x1x64xf32> to vector<1x64xf32>
    %374 = vector.broadcast %373 : vector<1x64xf32> to vector<32x64xf32>
    %375 = arith.addf %371, %374 : vector<32x64xf32>
    %cst_215 = arith.constant 0.000000e+00 : f32
    %376 = vector.broadcast %cst_215 : f32 to vector<32x64xf32>
    %377 = arith.maximumf %375, %376 : vector<32x64xf32>
    %c1_216 = arith.constant 1 : index
    %c0_217 = arith.constant 0 : index
    %c0_218 = arith.constant 0 : index
    %378 = vector.load %arg18[%c1_216, %c0_217, %c0_218] : memref<2x64x32xf32, #tpu.memory_space<vmem>>, vector<1x64x32xf32>
    %379 = vector.shape_cast %378 : vector<1x64x32xf32> to vector<64x32xf32>
    %cst_219 = arith.constant dense<0.000000e+00> : vector<32x32xf32>
    %380 = tpu.matmul %377, %379, %cst_219 {dimension_numbers = #tpu.dot_dimension_numbers<[1], [0], [0], [1], [0, 0, 1, 1], [], []>} : vector<32x64xf32>, vector<64x32xf32>, vector<32x32xf32> -> vector<32x32xf32>
    %c1_220 = arith.constant 1 : index
    %c0_221 = arith.constant 0 : index
    %c0_222 = arith.constant 0 : index
    %381 = vector.load %arg19[%c1_220, %c0_221, %c0_222] : memref<2x1x32xf32, #tpu.memory_space<vmem>>, vector<1x1x32xf32>
    %382 = vector.shape_cast %381 : vector<1x1x32xf32> to vector<1x32xf32>
    %383 = vector.broadcast %382 : vector<1x32xf32> to vector<32x32xf32>
    %384 = arith.addf %380, %383 : vector<32x32xf32>
    %385 = arith.addf %342, %384 : vector<32x32xf32>
    %c0_223 = arith.constant 0 : index
    %c0_224 = arith.constant 0 : index
    %386 = vector.load %arg20[%c0_223, %c0_224] : memref<1x32xf32, #tpu.memory_space<vmem>>, vector<1x32xf32>
    %c0_225 = arith.constant 0 : index
    %c0_226 = arith.constant 0 : index
    %387 = vector.load %arg21[%c0_225, %c0_226] : memref<1x32xf32, #tpu.memory_space<vmem>>, vector<1x32xf32>
    %cst_227 = arith.constant dense<0.000000e+00> : vector<32xf32>
    %388 = vector.multi_reduction <add>, %385, %cst_227 [1] : vector<32x32xf32> to vector<32xf32>
    %389 = vector.shape_cast %388 : vector<32xf32> to vector<32x1xf32>
    %cst_228 = arith.constant 3.200000e+01 : f32
    %390 = vector.broadcast %cst_228 : f32 to vector<32x1xf32>
    %391 = arith.divf %389, %390 : vector<32x1xf32>
    %392 = vector.broadcast %391 : vector<32x1xf32> to vector<32x32xf32>
    %393 = arith.subf %385, %392 : vector<32x32xf32>
    %394 = arith.mulf %393, %393 : vector<32x32xf32>
    %cst_229 = arith.constant dense<0.000000e+00> : vector<32xf32>
    %395 = vector.multi_reduction <add>, %394, %cst_229 [1] : vector<32x32xf32> to vector<32xf32>
    %396 = vector.shape_cast %395 : vector<32xf32> to vector<32x1xf32>
    %cst_230 = arith.constant 3.200000e+01 : f32
    %397 = vector.broadcast %cst_230 : f32 to vector<32x1xf32>
    %398 = arith.divf %396, %397 : vector<32x1xf32>
    %399 = vector.broadcast %391 : vector<32x1xf32> to vector<32x32xf32>
    %400 = arith.subf %385, %399 : vector<32x32xf32>
    %cst_231 = arith.constant 9.99999974E-6 : f32
    %401 = vector.broadcast %cst_231 : f32 to vector<32x1xf32>
    %402 = arith.addf %398, %401 : vector<32x1xf32>
    %403 = math.rsqrt %402 : vector<32x1xf32>
    %404 = vector.broadcast %403 : vector<32x1xf32> to vector<32x32xf32>
    %405 = arith.mulf %400, %404 : vector<32x32xf32>
    %406 = vector.broadcast %386 : vector<1x32xf32> to vector<32x32xf32>
    %407 = arith.mulf %405, %406 : vector<32x32xf32>
    %408 = vector.broadcast %387 : vector<1x32xf32> to vector<32x32xf32>
    %409 = arith.addf %407, %408 : vector<32x32xf32>
    %c0_232 = arith.constant 0 : index
    %c0_233 = arith.constant 0 : index
    %410 = vector.load %arg22[%c0_232, %c0_233] : memref<32x32xf32, #tpu.memory_space<vmem>>, vector<32x32xf32>
    %cst_234 = arith.constant dense<0.000000e+00> : vector<32x32xf32>
    %411 = tpu.matmul %409, %410, %cst_234 {dimension_numbers = #tpu.dot_dimension_numbers<[1], [0], [0], [1], [0, 0, 1, 1], [], []>} : vector<32x32xf32>, vector<32x32xf32>, vector<32x32xf32> -> vector<32x32xf32>
    %c0_235 = arith.constant 0 : index
    %c0_236 = arith.constant 0 : index
    %412 = vector.load %arg23[%c0_235, %c0_236] : memref<1x32xf32, #tpu.memory_space<vmem>>, vector<1x32xf32>
    %413 = vector.broadcast %412 : vector<1x32xf32> to vector<32x32xf32>
    %414 = arith.addf %411, %413 : vector<32x32xf32>
    %c0_237 = arith.constant 0 : index
    %c0_238 = arith.constant 0 : index
    %415 = vector.load %arg24[%c0_237, %c0_238] : memref<1x1xf32, #tpu.memory_space<vmem>>, vector<1x1xf32>
    %cst_239 = arith.constant 0.000000e+00 : f32
    %416 = vector.broadcast %cst_239 : f32 to vector<32x32xf32>
    %417 = arith.cmpf ogt, %414, %416 : vector<32x32xf32>
    %418 = vector.broadcast %415 : vector<1x1xf32> to vector<32x32xf32>
    %419 = arith.mulf %418, %414 : vector<32x32xf32>
    %420 = arith.select %417, %414, %419 : vector<32x32xi1>, vector<32x32xf32>
    %c0_240 = arith.constant 0 : index
    %c0_241 = arith.constant 0 : index
    %421 = vector.load %arg25[%c0_240, %c0_241] : memref<32x12xf32, #tpu.memory_space<vmem>>, vector<32x12xf32>
    %cst_242 = arith.constant dense<0.000000e+00> : vector<32x12xf32>
    %422 = tpu.matmul %420, %421, %cst_242 {dimension_numbers = #tpu.dot_dimension_numbers<[1], [0], [0], [1], [0, 0, 1, 1], [], []>} : vector<32x32xf32>, vector<32x12xf32>, vector<32x12xf32> -> vector<32x12xf32>
    %c0_243 = arith.constant 0 : index
    %c0_244 = arith.constant 0 : index
    %423 = vector.load %arg26[%c0_243, %c0_244] : memref<1x12xf32, #tpu.memory_space<vmem>>, vector<1x12xf32>
    %424 = vector.broadcast %423 : vector<1x12xf32> to vector<32x12xf32>
    %425 = arith.addf %422, %424 : vector<32x12xf32>
    %426 = vector.extract_strided_slice %0 {offsets = [0, 0], sizes = [32, 12], strides = [1, 1]} : vector<32x15xf32> to vector<32x12xf32>
    %427 = arith.addf %426, %425 : vector<32x12xf32>
    %c0_245 = arith.constant 0 : index
    %c0_246 = arith.constant 0 : index
    %428 = vector.load %arg27[%c0_245, %c0_246] : memref<32x12xf32, #tpu.memory_space<vmem>>, vector<32x12xf32>
    tpu.vector_store %arg27[%c0_245, %c0_246], %427 {strides = array<i32>} : memref<32x12xf32, #tpu.memory_space<vmem>>, vector<32x12xf32>,
    return
  }
}

</mosaic_0001>

<llo_original>
// kernel: _forward.1
$region0: #{_forward.1}
  #allocation0 [shape = 'u32[]', space=smem, size = 0x4, offset = 0x4, fixed_abs, tag = 'smem constant byte address 0x4 - core index']
  #allocation1 [shape = 'u32[144,128]{1,0:T(1,128)}', space=vmem, size = 0x12000, scoped, tag = 'internal scratch']
  #allocation2 [shape = 'f32[1,1]{1,0:T(1,128)S(1)}', space=vmem, size = 0x200, scoped, tag = 'scoped memory for _forward.1']
  #allocation3 [shape = 'f32[1,1]{1,0:T(1,128)S(1)}', space=vmem, size = 0x200, scoped, tag = 'scoped memory for _forward.1']
  #allocation4 [shape = 'f32[1,1]{1,0:T(1,128)S(1)}', space=vmem, size = 0x200, scoped, tag = 'scoped memory for _forward.1']
  %s0 = inlined_call_operand.vmem [shape: f32[32,15], index: 0, kind: input, shape index: {}]
  %s1 = inlined_call_operand.vmem [shape: s32[1,3], index: 1, kind: input, shape index: {}]
  %s2 = inlined_call_operand.vmem [shape: f32[32,32,16], index: 2, kind: input, shape index: {}]
  %s3 = inlined_call_operand.vmem [shape: f32[15,32], index: 3, kind: input, shape index: {}]
  %s4 = inlined_call_operand.vmem [shape: f32[1,32], index: 4, kind: input, shape index: {}]
  %s5 = inlined_call_operand.vmem [shape: f32[1,32], index: 5, kind: input, shape index: {}]
  %s6 = inlined_call_operand.<no memory space> [shape: f32[1,1], index: 6, kind: input, shape index: {}]
  %s7 = inlined_call_operand.vmem [shape: f32[32,32], index: 7, kind: input, shape index: {}]
  %s8 = inlined_call_operand.vmem [shape: f32[1,32], index: 8, kind: input, shape index: {}]
  %s9 = inlined_call_operand.<no memory space> [shape: f32[1,1], index: 9, kind: input, shape index: {}]
  %s10 = inlined_call_operand.vmem [shape: f32[12,32,16], index: 10, kind: input, shape index: {}]
  %s11 = inlined_call_operand.vmem [shape: f32[12,1,16], index: 11, kind: input, shape index: {}]
  %s12 = inlined_call_operand.vmem [shape: f32[4,16,32], index: 12, kind: input, shape index: {}]
  %s13 = inlined_call_operand.vmem [shape: f32[2,1,32], index: 13, kind: input, shape index: {}]
  %s14 = inlined_call_operand.vmem [shape: f32[4,1,32], index: 14, kind: input, shape index: {}]
  %s15 = inlined_call_operand.vmem [shape: f32[4,1,32], index: 15, kind: input, shape index: {}]
  %s16 = inlined_call_operand.vmem [shape: f32[2,32,64], index: 16, kind: input, shape index: {}]
  %s17 = inlined_call_operand.vmem [shape: f32[2,1,64], index: 17, kind: input, shape index: {}]
  %s18 = inlined_call_operand.vmem [shape: f32[2,64,32], index: 18, kind: input, shape index: {}]
  %s19 = inlined_call_operand.vmem [shape: f32[2,1,32], index: 19, kind: input, shape index: {}]
  %s20 = inlined_call_operand.vmem [shape: f32[1,32], index: 20, kind: input, shape index: {}]
  %s21 = inlined_call_operand.vmem [shape: f32[1,32], index: 21, kind: input, shape index: {}]
  %s22 = inlined_call_operand.vmem [shape: f32[32,32], index: 22, kind: input, shape index: {}]
  %s23 = inlined_call_operand.vmem [shape: f32[1,32], index: 23, kind: input, shape index: {}]
  %s24 = inlined_call_operand.<no memory space> [shape: f32[1,1], index: 24, kind: input, shape index: {}]
  %s25 = inlined_call_operand.vmem [shape: f32[32,12], index: 25, kind: input, shape index: {}]
  %s26 = inlined_call_operand.vmem [shape: f32[1,12], index: 26, kind: input, shape index: {}]
  %s27 = inlined_call_operand.vmem [shape: f32[32,12], index: 27, kind: output, shape index: {}]
  %s28 = sld [smem:[#allocation0]]
  $region118: #{_forward.1} parent=0
    _
  %s30 = ssub.s32 1, %s28
  %s31 = scalar_select 0, %s30, %s28
  %v32 = vstv %s6
  %33 = vst [vmem:[#allocation2] sm:$0x1] %v32
  %v34 = vstv %s9
  %35 = vst [vmem:[#allocation3] sm:$0x1] %v34
  %v36 = vstv %s24
  %37 = vst [vmem:[#allocation4] sm:$0x1] %v36
  // Predicated region
  $region2: #{_forward.1} parent=0 // pred_check
    _
  $region3: #{_forward.1} parent=0 // pred_check_branch
    %39 = sbr.rel (0) target = $region5
  $region4: #{_forward.1} parent=0 // pred_region
    _
  $region5: #{_forward.1} parent=0 // pred_fallthru
    _
  // Predicated region
  $region6: #{_forward.1} parent=0 // pred_check
    _
  $region7: #{_forward.1} parent=0 // pred_check_branch
    %41 = sbr.rel (0) target = $region9
  $region8: #{_forward.1} parent=0 // pred_region
    _
  $region9: #{_forward.1} parent=0 // pred_fallthru
    _
  // Predicated region
  $region10: #{_forward.1} parent=0 // pred_check
    _
  $region11: #{_forward.1} parent=0 // pred_check_branch
    %43 = sbr.rel (0) target = $region13
  $region12: #{_forward.1} parent=0 // pred_region
    _
  $region13: #{_forward.1} parent=0 // pred_fallthru
    _
  // Predicated region
  $region14: #{_forward.1} parent=0 // pred_check
    _
  $region15: #{_forward.1} parent=0 // pred_check_branch
    %45 = sbr.rel (0) target = $region17
  $region16: #{_forward.1} parent=0 // pred_region
    _
  $region17: #{_forward.1} parent=0 // pred_fallthru
    _
  // Predicated region
  $region18: #{_forward.1} parent=0 // pred_check
    _
  $region19: #{_forward.1} parent=0 // pred_check_branch
    %47 = sbr.rel (0) target = $region21
  $region20: #{_forward.1} parent=0 // pred_region
    _
  $region21: #{_forward.1} parent=0 // pred_fallthru
    _
  // Predicated region
  $region22: #{_forward.1} parent=0 // pred_check
    _
  $region23: #{_forward.1} parent=0 // pred_check_branch
    %49 = sbr.rel (0) target = $region25
  $region24: #{_forward.1} parent=0 // pred_region
    _
  $region25: #{_forward.1} parent=0 // pred_fallthru
    _
  // Predicated region
  $region26: #{_forward.1} parent=0 // pred_check
    _
  $region27: #{_forward.1} parent=0 // pred_check_branch
    %51 = sbr.rel (0) target = $region29
  $region28: #{_forward.1} parent=0 // pred_region
    _
  $region29: #{_forward.1} parent=0 // pred_fallthru
    _
  // Predicated region
  $region30: #{_forward.1} parent=0 // pred_check
    _
  $region31: #{_forward.1} parent=0 // pred_check_branch
    %53 = sbr.rel (0) target = $region33
  $region32: #{_forward.1} parent=0 // pred_region
    _
  $region33: #{_forward.1} parent=0 // pred_fallthru
    _
  // Predicated region
  $region34: #{_forward.1} parent=0 // pred_check
    _
  $region35: #{_forward.1} parent=0 // pred_check_branch
    %55 = sbr.rel (0) target = $region37
  $region36: #{_forward.1} parent=0 // pred_region
    _
  $region37: #{_forward.1} parent=0 // pred_fallthru
    _
  // Predicated region
  $region38: #{_forward.1} parent=0 // pred_check
    _
  $region39: #{_forward.1} parent=0 // pred_check_branch
    %57 = sbr.rel (0) target = $region41
  $region40: #{_forward.1} parent=0 // pred_region
    _
  $region41: #{_forward.1} parent=0 // pred_fallthru
    _
  // Predicated region
  $region42: #{_forward.1} parent=0 // pred_check
    _
  $region43: #{_forward.1} parent=0 // pred_check_branch
    %59 = sbr.rel (0) target = $region45
  $region44: #{_forward.1} parent=0 // pred_region
    _
  $region45: #{_forward.1} parent=0 // pred_fallthru
    _
  // Predicated region
  $region46: #{_forward.1} parent=0 // pred_check
    _
  $region47: #{_forward.1} parent=0 // pred_check_branch
    %61 = sbr.rel (0) target = $region49
  $region48: #{_forward.1} parent=0 // pred_region
    _
  $region49: #{_forward.1} parent=0 // pred_fallthru
    _
  // Predicated region
  $region50: #{_forward.1} parent=0 // pred_check
    _
  $region51: #{_forward.1} parent=0 // pred_check_branch
    %63 = sbr.rel (0) target = $region53
  $region52: #{_forward.1} parent=0 // pred_region
    _
  $region53: #{_forward.1} parent=0 // pred_fallthru
    _
  // Predicated region
  $region54: #{_forward.1} parent=0 // pred_check
    _
  $region55: #{_forward.1} parent=0 // pred_check_branch
    %65 = sbr.rel (0) target = $region57
  $region56: #{_forward.1} parent=0 // pred_region
    _
  $region57: #{_forward.1} parent=0 // pred_fallthru
    _
  // Predicated region
  $region58: #{_forward.1} parent=0 // pred_check
    _
  $region59: #{_forward.1} parent=0 // pred_check_branch
    %67 = sbr.rel (0) target = $region61
  $region60: #{_forward.1} parent=0 // pred_region
    _
  $region61: #{_forward.1} parent=0 // pred_fallthru
    _
  // Predicated region
  $region62: #{_forward.1} parent=0 // pred_check
    _
  $region63: #{_forward.1} parent=0 // pred_check_branch
    %69 = sbr.rel (0) target = $region65
  $region64: #{_forward.1} parent=0 // pred_region
    _
  $region65: #{_forward.1} parent=0 // pred_fallthru
    _
  // Predicated region
  $region66: #{_forward.1} parent=0 // pred_check
    _
  $region67: #{_forward.1} parent=0 // pred_check_branch
    %71 = sbr.rel (0) target = $region69
  $region68: #{_forward.1} parent=0 // pred_region
    _
  $region69: #{_forward.1} parent=0 // pred_fallthru
    _
  // Predicated region
  $region70: #{_forward.1} parent=0 // pred_check
    _
  $region71: #{_forward.1} parent=0 // pred_check_branch
    %73 = sbr.rel (0) target = $region73
  $region72: #{_forward.1} parent=0 // pred_region
    _
  $region73: #{_forward.1} parent=0 // pred_fallthru
    _
  // Predicated region
  $region74: #{_forward.1} parent=0 // pred_check
    _
  $region75: #{_forward.1} parent=0 // pred_check_branch
    %75 = sbr.rel (0) target = $region77
  $region76: #{_forward.1} parent=0 // pred_region
    _
  $region77: #{_forward.1} parent=0 // pred_fallthru
    _
  // Predicated region
  $region78: #{_forward.1} parent=0 // pred_check
    _
  $region79: #{_forward.1} parent=0 // pred_check_branch
    %77 = sbr.rel (0) target = $region81
  $region80: #{_forward.1} parent=0 // pred_region
    _
  $region81: #{_forward.1} parent=0 // pred_fallthru
    _
  // Predicated region
  $region82: #{_forward.1} parent=0 // pred_check
    _
  $region83: #{_forward.1} parent=0 // pred_check_branch
    %79 = sbr.rel (0) target = $region85
  $region84: #{_forward.1} parent=0 // pred_region
    _
  $region85: #{_forward.1} parent=0 // pred_fallthru
    _
  // Predicated region
  $region86: #{_forward.1} parent=0 // pred_check
    _
  $region87: #{_forward.1} parent=0 // pred_check_branch
    %81 = sbr.rel (0) target = $region89
  $region88: #{_forward.1} parent=0 // pred_region
    _
  $region89: #{_forward.1} parent=0 // pred_fallthru
    _
  // Predicated region
  $region90: #{_forward.1} parent=0 // pred_check
    _
  $region91: #{_forward.1} parent=0 // pred_check_branch
    %83 = sbr.rel (0) target = $region93
  $region92: #{_forward.1} parent=0 // pred_region
    _
  $region93: #{_forward.1} parent=0 // pred_fallthru
    _
  // Predicated region
  $region94: #{_forward.1} parent=0 // pred_check
    _
  $region95: #{_forward.1} parent=0 // pred_check_branch
    %85 = sbr.rel (0) target = $region97
  $region96: #{_forward.1} parent=0 // pred_region
    _
  $region97: #{_forward.1} parent=0 // pred_fallthru
    _
  // Predicated region
  $region98: #{_forward.1} parent=0 // pred_check
    _
  $region99: #{_forward.1} parent=0 // pred_check_branch
    %87 = sbr.rel (0) target = $region101
  $region100: #{_forward.1} parent=0 // pred_region
    _
  $region101: #{_forward.1} parent=0 // pred_fallthru
    _
  // Predicated region
  $region102: #{_forward.1} parent=0 // pred_check
    _
  $region103: #{_forward.1} parent=0 // pred_check_branch
    %89 = sbr.rel (0) target = $region105
  $region104: #{_forward.1} parent=0 // pred_region
    _
  $region105: #{_forward.1} parent=0 // pred_fallthru
    _
  // Predicated region
  $region106: #{_forward.1} parent=0 // pred_check
    _
  $region107: #{_forward.1} parent=0 // pred_check_branch
    %91 = sbr.rel (0) target = $region109
  $region108: #{_forward.1} parent=0 // pred_region
    _
  $region109: #{_forward.1} parent=0 // pred_fallthru
    _
  %v92 = vld [vmem:[%s0] sm:$0xff]
  %v93 = vld [vmem:[%s0 + $0x8] sm:$0xff]
  %v94 = vld [vmem:[%s0 + $0x10] sm:$0xff]
  %v95 = vld [vmem:[%s0 + $0x18] sm:$0xff]
  %v96 = vld [vmem:[%s2] sm:$0xff]
  %v97 = vld [vmem:[%s2 + $0x8] sm:$0xff]
  %v98 = vld [vmem:[%s2 + $0x10] sm:$0xff]
  %v99 = vld [vmem:[%s2 + $0x18] sm:$0xff]
  %v100 = vld [vmem:[%s2 + $0x20] sm:$0xff]
  %v101 = vld [vmem:[%s2 + $0x28] sm:$0xff]
  %v102 = vld [vmem:[%s2 + $0x30] sm:$0xff]
  %v103 = vld [vmem:[%s2 + $0x38] sm:$0xff]
  %v104 = vld [vmem:[%s2 + $0x40] sm:$0xff]
  %v105 = vld [vmem:[%s2 + $0x48] sm:$0xff]
  %v106 = vld [vmem:[%s2 + $0x50] sm:$0xff]
  %v107 = vld [vmem:[%s2 + $0x58] sm:$0xff]
  %v108 = vld [vmem:[%s2 + $0x60] sm:$0xff]
  %v109 = vld [vmem:[%s2 + $0x68] sm:$0xff]
  %v110 = vld [vmem:[%s2 + $0x70] sm:$0xff]
  %v111 = vld [vmem:[%s2 + $0x78] sm:$0xff]
  %v112 = vld [vmem:[%s2 + $0x80] sm:$0xff]
  %v113 = vld [vmem:[%s2 + $0x88] sm:$0xff]
  %v114 = vld [vmem:[%s2 + $0x90] sm:$0xff]
  %v115 = vld [vmem:[%s2 + $0x98] sm:$0xff]
  %v116 = vld [vmem:[%s2 + $0xa0] sm:$0xff]
  %v117 = vld [vmem:[%s2 + $0xa8] sm:$0xff]
  %v118 = vld [vmem:[%s2 + $0xb0] sm:$0xff]
  %v119 = vld [vmem:[%s2 + $0xb8] sm:$0xff]
  %v120 = vld [vmem:[%s2 + $0xc0] sm:$0xff]
  %v121 = vld [vmem:[%s2 + $0xc8] sm:$0xff]
  %v122 = vld [vmem:[%s2 + $0xd0] sm:$0xff]
  %v123 = vld [vmem:[%s2 + $0xd8] sm:$0xff]
  %v124 = vld [vmem:[%s2 + $0xe0] sm:$0xff]
  %v125 = vld [vmem:[%s2 + $0xe8] sm:$0xff]
  %v126 = vld [vmem:[%s2 + $0xf0] sm:$0xff]
  %v127 = vld [vmem:[%s2 + $0xf8] sm:$0xff]
  %v128 = vld [vmem:[%s2 + $0x100] sm:$0xff]
  %v129 = vld [vmem:[%s2 + $0x108] sm:$0xff]
  %v130 = vld [vmem:[%s2 + $0x110] sm:$0xff]
  %v131 = vld [vmem:[%s2 + $0x118] sm:$0xff]
  %v132 = vld [vmem:[%s2 + $0x120] sm:$0xff]
  %v133 = vld [vmem:[%s2 + $0x128] sm:$0xff]
  %v134 = vld [vmem:[%s2 + $0x130] sm:$0xff]
  %v135 = vld [vmem:[%s2 + $0x138] sm:$0xff]
  %v136 = vld [vmem:[%s2 + $0x140] sm:$0xff]
  %v137 = vld [vmem:[%s2 + $0x148] sm:$0xff]
  %v138 = vld [vmem:[%s2 + $0x150] sm:$0xff]
  %v139 = vld [vmem:[%s2 + $0x158] sm:$0xff]
  %v140 = vld [vmem:[%s2 + $0x160] sm:$0xff]
  %v141 = vld [vmem:[%s2 + $0x168] sm:$0xff]
  %v142 = vld [vmem:[%s2 + $0x170] sm:$0xff]
  %v143 = vld [vmem:[%s2 + $0x178] sm:$0xff]
  %v144 = vld [vmem:[%s2 + $0x180] sm:$0xff]
  %v145 = vld [vmem:[%s2 + $0x188] sm:$0xff]
  %v146 = vld [vmem:[%s2 + $0x190] sm:$0xff]
  %v147 = vld [vmem:[%s2 + $0x198] sm:$0xff]
  %v148 = vld [vmem:[%s2 + $0x1a0] sm:$0xff]
  %v149 = vld [vmem:[%s2 + $0x1a8] sm:$0xff]
  %v150 = vld [vmem:[%s2 + $0x1b0] sm:$0xff]
  %v151 = vld [vmem:[%s2 + $0x1b8] sm:$0xff]
  %v152 = vld [vmem:[%s2 + $0x1c0] sm:$0xff]
  %v153 = vld [vmem:[%s2 + $0x1c8] sm:$0xff]
  %v154 = vld [vmem:[%s2 + $0x1d0] sm:$0xff]
  %v155 = vld [vmem:[%s2 + $0x1d8] sm:$0xff]
  %v156 = vld [vmem:[%s2 + $0x1e0] sm:$0xff]
  %v157 = vld [vmem:[%s2 + $0x1e8] sm:$0xff]
  %v158 = vld [vmem:[%s2 + $0x1f0] sm:$0xff]
  %v159 = vld [vmem:[%s2 + $0x1f8] sm:$0xff]
  %v160 = vld [vmem:[%s2 + $0x200] sm:$0xff]
  %v161 = vld [vmem:[%s2 + $0x208] sm:$0xff]
  %v162 = vld [vmem:[%s2 + $0x210] sm:$0xff]
  %v163 = vld [vmem:[%s2 + $0x218] sm:$0xff]
  %v164 = vld [vmem:[%s2 + $0x220] sm:$0xff]
  %v165 = vld [vmem:[%s2 + $0x228] sm:$0xff]
  %v166 = vld [vmem:[%s2 + $0x230] sm:$0xff]
  %v167 = vld [vmem:[%s2 + $0x238] sm:$0xff]
  %v168 = vld [vmem:[%s2 + $0x240] sm:$0xff]
  %v169 = vld [vmem:[%s2 + $0x248] sm:$0xff]
  %v170 = vld [vmem:[%s2 + $0x250] sm:$0xff]
  %v171 = vld [vmem:[%s2 + $0x258] sm:$0xff]
  %v172 = vld [vmem:[%s2 + $0x260] sm:$0xff]
  %v173 = vld [vmem:[%s2 + $0x268] sm:$0xff]
  %v174 = vld [vmem:[%s2 + $0x270] sm:$0xff]
  %v175 = vld [vmem:[%s2 + $0x278] sm:$0xff]
  %v176 = vld [vmem:[%s2 + $0x280] sm:$0xff]
  %v177 = vld [vmem:[%s2 + $0x288] sm:$0xff]
  %v178 = vld [vmem:[%s2 + $0x290] sm:$0xff]
  %v179 = vld [vmem:[%s2 + $0x298] sm:$0xff]
  %v180 = vld [vmem:[%s2 + $0x2a0] sm:$0xff]
  %v181 = vld [vmem:[%s2 + $0x2a8] sm:$0xff]
  %v182 = vld [vmem:[%s2 + $0x2b0] sm:$0xff]
  %v183 = vld [vmem:[%s2 + $0x2b8] sm:$0xff]
  %v184 = vld [vmem:[%s2 + $0x2c0] sm:$0xff]
  %v185 = vld [vmem:[%s2 + $0x2c8] sm:$0xff]
  %v186 = vld [vmem:[%s2 + $0x2d0] sm:$0xff]
  %v187 = vld [vmem:[%s2 + $0x2d8] sm:$0xff]
  %v188 = vld [vmem:[%s2 + $0x2e0] sm:$0xff]
  %v189 = vld [vmem:[%s2 + $0x2e8] sm:$0xff]
  %v190 = vld [vmem:[%s2 + $0x2f0] sm:$0xff]
  %v191 = vld [vmem:[%s2 + $0x2f8] sm:$0xff]
  %v192 = vld [vmem:[%s2 + $0x300] sm:$0xff]
  %v193 = vld [vmem:[%s2 + $0x308] sm:$0xff]
  %v194 = vld [vmem:[%s2 + $0x310] sm:$0xff]
  %v195 = vld [vmem:[%s2 + $0x318] sm:$0xff]
  %v196 = vld [vmem:[%s2 + $0x320] sm:$0xff]
  %v197 = vld [vmem:[%s2 + $0x328] sm:$0xff]
  %v198 = vld [vmem:[%s2 + $0x330] sm:$0xff]
  %v199 = vld [vmem:[%s2 + $0x338] sm:$0xff]
  %v200 = vld [vmem:[%s2 + $0x340] sm:$0xff]
  %v201 = vld [vmem:[%s2 + $0x348] sm:$0xff]
  %v202 = vld [vmem:[%s2 + $0x350] sm:$0xff]
  %v203 = vld [vmem:[%s2 + $0x358] sm:$0xff]
  %v204 = vld [vmem:[%s2 + $0x360] sm:$0xff]
  %v205 = vld [vmem:[%s2 + $0x368] sm:$0xff]
  %v206 = vld [vmem:[%s2 + $0x370] sm:$0xff]
  %v207 = vld [vmem:[%s2 + $0x378] sm:$0xff]
  %v208 = vld [vmem:[%s2 + $0x380] sm:$0xff]
  %v209 = vld [vmem:[%s2 + $0x388] sm:$0xff]
  %v210 = vld [vmem:[%s2 + $0x390] sm:$0xff]
  %v211 = vld [vmem:[%s2 + $0x398] sm:$0xff]
  %v212 = vld [vmem:[%s2 + $0x3a0] sm:$0xff]
  %v213 = vld [vmem:[%s2 + $0x3a8] sm:$0xff]
  %v214 = vld [vmem:[%s2 + $0x3b0] sm:$0xff]
  %v215 = vld [vmem:[%s2 + $0x3b8] sm:$0xff]
  %v216 = vld [vmem:[%s2 + $0x3c0] sm:$0xff]
  %v217 = vld [vmem:[%s2 + $0x3c8] sm:$0xff]
  %v218 = vld [vmem:[%s2 + $0x3d0] sm:$0xff]
  %v219 = vld [vmem:[%s2 + $0x3d8] sm:$0xff]
  %v220 = vld [vmem:[%s2 + $0x3e0] sm:$0xff]
  %v221 = vld [vmem:[%s2 + $0x3e8] sm:$0xff]
  %v222 = vld [vmem:[%s2 + $0x3f0] sm:$0xff]
  %v223 = vld [vmem:[%s2 + $0x3f8] sm:$0xff]
  %v224 = vlaneseq
  %v225 = vshrl.u32 %v224, 7
  %v226 = vadd.s32 %v225, 8
  %v227 = vadd.s32 %v225, 16
  %v228 = vadd.s32 %v225, 24
  %v229 = vand.u32 %v225, 15
  %v230 = vand.u32 %v226, 15
  %v231 = vand.u32 %v227, 15
  %v232 = vand.u32 %v228, 15
  %v233 = vld [vmem:[%s1] sm:$0x1]
  %v234 = vlaneseq
  %v235 = vshrl.u32 %v234, 7
  %v236 = vsub.s32 0, %v235
  %v237 = vrot.slane %v233, %v236
  %vm238 = vcmp.eq.s32.totalorder %v229, %v237
  %vm239 = vcmp.eq.s32.totalorder %v230, %v237
  %vm240 = vcmp.eq.s32.totalorder %v231, %v237
  %vm241 = vcmp.eq.s32.totalorder %v232, %v237
  %v242 = vsel %vm238, 1, 0
  %v243 = vsel %vm239, 1, 0
  %v244 = vsel %vm240, 1, 0
  %v245 = vsel %vm241, 1, 0
  %v246 = vcvt.s32.f32 %v242
  %v247 = vcvt.s32.f32 %v243
  %v248 = vcvt.s32.f32 %v244
  %v249 = vcvt.s32.f32 %v245
  %vm250 = vcmask 23552
  %v251 = vsel %vm250, %v246, 0.0
  %252 = vadd.xlane.f32.xlu0 %v251
  %v253 = vpop.xlane.xlu0 %252
  %v254 = vsel %vm250, %v247, 0.0
  %255 = vadd.xlane.f32.xlu0 %v254
  %v256 = vpop.xlane.xlu0 %255
  %v257 = vsel %vm250, %v248, 0.0
  %258 = vadd.xlane.f32.xlu0 %v257
  %v259 = vpop.xlane.xlu0 %258
  %v260 = vsel %vm250, %v249, 0.0
  %261 = vadd.xlane.f32.xlu0 %v260
  %v262 = vpop.xlane.xlu0 %261
  %vm263 = vcmp.gt.f32.partialorder %v253, 0.0
  %vm264 = vcmp.gt.f32.partialorder %v256, 0.0
  %vm265 = vcmp.gt.f32.partialorder %v259, 0.0
  %vm266 = vcmp.gt.f32.partialorder %v262, 0.0
  %vm267 = vcmp.lt.s32.totalorder %v229, 4
  %vm268 = vcmp.lt.s32.totalorder %v230, 4
  %vm269 = vcmp.lt.s32.totalorder %v231, 4
  %vm270 = vcmp.lt.s32.totalorder %v232, 4
  %vm271 = vcmp.eq.s32.totalorder %v229, 15
  %vm272 = vcmp.eq.s32.totalorder %v230, 15
  %vm273 = vcmp.eq.s32.totalorder %v231, 15
  %vm274 = vcmp.eq.s32.totalorder %v232, 15
  %vm275 = vmor %vm267, %vm271
  %vm276 = vmor %vm268, %vm272
  %vm277 = vmor %vm269, %vm273
  %vm278 = vmor %vm270, %vm274
  %vm279 = vmor %vm275, %vm263
  %vm280 = vmor %vm276, %vm264
  %vm281 = vmor %vm277, %vm265
  %vm282 = vmor %vm278, %vm266
  %v283 = vsel %vm279, 1, 0
  %v284 = vsel %vm280, 1, 0
  %v285 = vsel %vm281, 1, 0
  %v286 = vsel %vm282, 1, 0
  %v287 = vcvt.s32.f32 %v283
  %v288 = vcvt.s32.f32 %v284
  %v289 = vcvt.s32.f32 %v285
  %v290 = vcvt.s32.f32 %v286
  %v291 = vld [vmem:[%s3] sm:$0xff]
  %v292 = vld [vmem:[%s3 + $0x8] sm:$0x7f]
  %v293 = vld [vmem:[%s4] sm:$0x1]
  %v295 = vlaneseq
  %v296 = vshrl.u32 %v295, 7
  %v297 = vsub.s32 0, %v296
  %v298 = vrot.slane %v293, %v297
  %v300 = vmul.f32 %v287, %v298
  %v301 = vmul.f32 %v288, %v298
  %v302 = vmul.f32 %v289, %v298
  %v303 = vmul.f32 %v290, %v298
  %vm304 = vcmask 121856
  %v306 = vsel %vm304, %v92, 0
  %v309 = vsel %vm304, %v93, 0
  %v312 = vsel %vm304, %v94, 0
  %v315 = vsel %vm304, %v95, 0
  %vm317 = vcmask 1046528
  %v319 = vsel %vm317, %v292, 0
  %321 = vmatprep.subr.mxu0 0.0
  %322 = vmatpush1.msra.mxu0 %v291
  %323 = vmatprep.subr.mxu0 0.0
  %324 = vmatpush1.msra.mxu0 %v319
  %325 = vmatprep.subr.mxu0 0.0
  %326 = vmatpush1.msra.mxu0 0.0
  %327 = vmatprep.subr.mxu0 0.0
  %328 = vmatpush1.msra.mxu0 0.0
  %329 = vmatprep.subr.mxu0 0.0
  %330 = vmatpush1.msra.mxu0 0.0
  %331 = vmatprep.subr.mxu0 0.0
  %332 = vmatpush1.msra.mxu0 0.0
  %333 = vmatprep.subr.mxu0 0.0
  %334 = vmatpush1.msra.mxu0 0.0
  %335 = vmatprep.subr.mxu0 0.0
  %336 = vmatpush1.msra.mxu0 0.0
  %337 = vmatprep.subr.mxu0 0.0
  %338 = vmatpush1.msra.mxu0 0.0
  %339 = vmatprep.subr.mxu0 0.0
  %340 = vmatpush1.msra.mxu0 0.0
  %341 = vmatprep.subr.mxu0 0.0
  %342 = vmatpush1.msra.mxu0 0.0
  %343 = vmatprep.subr.mxu0 0.0
  %344 = vmatpush1.msra.mxu0 0.0
  %345 = vmatprep.subr.mxu0 0.0
  %346 = vmatpush1.msra.mxu0 0.0
  %347 = vmatprep.subr.mxu0 0.0
  %348 = vmatpush1.msra.mxu0 0.0
  %349 = vmatprep.subr.mxu0 0.0
  %350 = vmatpush1.msra.mxu0 0.0
  %351 = vmatprep.subr.mxu0 0.0
  %352 = vmatpush1.msra.mxu0 0.0
  %353 = vmatprep.subr.mxu0 0.0
  %354 = vmatpush1.msra.mxu0 0.0
  %355 = vmatprep.subr.mxu0 0.0
  %356 = vmatpush1.msra.mxu0 0.0
  %357 = vmatprep.subr.mxu0 0.0
  %358 = vmatpush1.msra.mxu0 0.0
  %359 = vmatprep.subr.mxu0 0.0
  %360 = vmatpush1.msra.mxu0 0.0
  %361 = vmatprep.subr.mxu0 0.0
  %362 = vmatpush1.msra.mxu0 0.0
  %363 = vmatprep.subr.mxu0 0.0
  %364 = vmatpush1.msra.mxu0 0.0
  %365 = vmatprep.subr.mxu0 0.0
  %366 = vmatpush1.msra.mxu0 0.0
  %367 = vmatprep.subr.mxu0 0.0
  %368 = vmatpush1.msra.mxu0 0.0
  %369 = vmatprep.subr.mxu0 0.0
  %370 = vmatpush1.msra.mxu0 0.0
  %371 = vmatprep.subr.mxu0 0.0
  %372 = vmatpush1.msra.mxu0 0.0
  %373 = vmatprep.subr.mxu0 0.0
  %374 = vmatpush1.msra.mxu0 0.0
  %375 = vmatprep.subr.mxu0 0.0
  %376 = vmatpush1.msra.mxu0 0.0
  %377 = vmatprep.subr.mxu0 0.0
  %378 = vmatpush1.msra.mxu0 0.0
  %379 = vmatprep.subr.mxu0 0.0
  %380 = vmatpush1.msra.mxu0 0.0
  %381 = vmatprep.subr.mxu0 0.0
  %382 = vmatpush1.msra.mxu0 0.0
  %383 = vmatprep.subr.mxu0 0.0
  %384 = vmatpush1.msra.mxu0 0.0
  %385 = vmatprep.mubr.f32.mxu0 0.0
  %386 = vmatmul.mubr.f32.gmra.mrb[0].mxu0 %v306
  %v387 = vpop.f32.mrb[0].mxu0
  %v388 = vadd.f32 %v300, %v387
  %v389 = vpop.f32.mrb[0].mxu0
  %390 = vmatprep.mubr.f32.mxu0 0.0
  %391 = vmatmul.mubr.f32.gmra.mrb[0].mxu0 %v309
  %v392 = vpop.f32.mrb[0].mxu0
  %v393 = vadd.f32 %v301, %v392
  %v394 = vpop.f32.mrb[0].mxu0
  %395 = vmatprep.mubr.f32.mxu0 0.0
  %396 = vmatmul.mubr.f32.gmra.mrb[0].mxu0 %v312
  %v397 = vpop.f32.mrb[0].mxu0
  %v398 = vadd.f32 %v302, %v397
  %v399 = vpop.f32.mrb[0].mxu0
  %400 = vmatprep.mubr.f32.mxu0 0.0
  %401 = vmatmul.mubr.f32.gmra.mrb[0].mxu0 %v315
  %v402 = vpop.f32.mrb[0].mxu0
  %v403 = vadd.f32 %v303, %v402
  %v404 = vpop.f32.mrb[0].mxu0
  %405 = vdwg.mxu0
  %v406 = vld [vmem:[%s5] sm:$0x1]
  %v408 = vlaneseq
  %v409 = vshrl.u32 %v408, 7
  %v410 = vsub.s32 0, %v409
  %v411 = vrot.slane %v406, %v410
  %v413 = vadd.f32 %v388, %v411
  %v414 = vadd.f32 %v393, %v411
  %v415 = vadd.f32 %v398, %v411
  %v416 = vadd.f32 %v403, %v411
  %v417 = vld [vmem:[#allocation2] sm:$0x1]
  %vm418 = vcmp.gt.f32.partialorder %v413, 0.0
  %vm419 = vcmp.gt.f32.partialorder %v414, 0.0
  %vm420 = vcmp.gt.f32.partialorder %v415, 0.0
  %vm421 = vcmp.gt.f32.partialorder %v416, 0.0
  %v423 = vlaneseq
  %v424 = vshrl.u32 %v423, 7
  %v425 = vsub.s32 0, %v424
  %v426 = vrot.slane %v417, %v425
  %427 = vset.pattern.permute.xlu0 0
  %428 = vperm.xlu0 %427, %v426
  %v429 = vpop.permute.xlu0 %428
  %v431 = vmul.f32 %v429, %v413
  %v432 = vmul.f32 %v429, %v414
  %v433 = vmul.f32 %v429, %v415
  %v434 = vmul.f32 %v429, %v416
  %v435 = vsel %vm418, %v413, %v431
  %v436 = vsel %vm419, %v414, %v432
  %v437 = vsel %vm420, %v415, %v433
  %v438 = vsel %vm421, %v416, %v434
  %v439 = vld [vmem:[%s7] sm:$0xff]
  %v440 = vld [vmem:[%s7 + $0x8] sm:$0xff]
  %v441 = vld [vmem:[%s7 + $0x10] sm:$0xff]
  %v442 = vld [vmem:[%s7 + $0x18] sm:$0xff]
  %v443 = vld [vmem:[%s8] sm:$0x1]
  %v445 = vlaneseq
  %v446 = vshrl.u32 %v445, 7
  %v447 = vsub.s32 0, %v446
  %v448 = vrot.slane %v443, %v447
  %vm450 = vcmask 261120
  %v452 = vsel %vm450, %v435, 0
  %v455 = vsel %vm450, %v436, 0
  %v458 = vsel %vm450, %v437, 0
  %v461 = vsel %vm450, %v438, 0
  %463 = vmatprep.subr.mxu0 0.0
  %464 = vmatpush1.msra.mxu0 %v439
  %465 = vmatprep.subr.mxu0 0.0
  %466 = vmatpush1.msra.mxu0 %v440
  %467 = vmatprep.subr.mxu0 0.0
  %468 = vmatpush1.msra.mxu0 %v441
  %469 = vmatprep.subr.mxu0 0.0
  %470 = vmatpush1.msra.mxu0 %v442
  %471 = vmatprep.subr.mxu0 0.0
  %472 = vmatpush1.msra.mxu0 0.0
  %473 = vmatprep.subr.mxu0 0.0
  %474 = vmatpush1.msra.mxu0 0.0
  %475 = vmatprep.subr.mxu0 0.0
  %476 = vmatpush1.msra.mxu0 0.0
  %477 = vmatprep.subr.mxu0 0.0
  %478 = vmatpush1.msra.mxu0 0.0
  %479 = vmatprep.subr.mxu0 0.0
  %480 = vmatpush1.msra.mxu0 0.0
  %481 = vmatprep.subr.mxu0 0.0
  %482 = vmatpush1.msra.mxu0 0.0
  %483 = vmatprep.subr.mxu0 0.0
  %484 = vmatpush1.msra.mxu0 0.0
  %485 = vmatprep.subr.mxu0 0.0
  %486 = vmatpush1.msra.mxu0 0.0
  %487 = vmatprep.subr.mxu0 0.0
  %488 = vmatpush1.msra.mxu0 0.0
  %489 = vmatprep.subr.mxu0 0.0
  %490 = vmatpush1.msra.mxu0 0.0
  %491 = vmatprep.subr.mxu0 0.0
  %492 = vmatpush1.msra.mxu0 0.0
  %493 = vmatprep.subr.mxu0 0.0
  %494 = vmatpush1.msra.mxu0 0.0
  %495 = vmatprep.subr.mxu0 0.0
  %496 = vmatpush1.msra.mxu0 0.0
  %497 = vmatprep.subr.mxu0 0.0
  %498 = vmatpush1.msra.mxu0 0.0
  %499 = vmatprep.subr.mxu0 0.0
  %500 = vmatpush1.msra.mxu0 0.0
  %501 = vmatprep.subr.mxu0 0.0
  %502 = vmatpush1.msra.mxu0 0.0
  %503 = vmatprep.subr.mxu0 0.0
  %504 = vmatpush1.msra.mxu0 0.0
  %505 = vmatprep.subr.mxu0 0.0
  %506 = vmatpush1.msra.mxu0 0.0
  %507 = vmatprep.subr.mxu0 0.0
  %508 = vmatpush1.msra.mxu0 0.0
  %509 = vmatprep.subr.mxu0 0.0
  %510 = vmatpush1.msra.mxu0 0.0
  %511 = vmatprep.subr.mxu0 0.0
  %512 = vmatpush1.msra.mxu0 0.0
  %513 = vmatprep.subr.mxu0 0.0
  %514 = vmatpush1.msra.mxu0 0.0
  %515 = vmatprep.subr.mxu0 0.0
  %516 = vmatpush1.msra.mxu0 0.0
  %517 = vmatprep.subr.mxu0 0.0
  %518 = vmatpush1.msra.mxu0 0.0
  %519 = vmatprep.subr.mxu0 0.0
  %520 = vmatpush1.msra.mxu0 0.0
  %521 = vmatprep.subr.mxu0 0.0
  %522 = vmatpush1.msra.mxu0 0.0
  %523 = vmatprep.subr.mxu0 0.0
  %524 = vmatpush1.msra.mxu0 0.0
  %525 = vmatprep.subr.mxu0 0.0
  %526 = vmatpush1.msra.mxu0 0.0
  %527 = vmatprep.mubr.f32.mxu0 0.0
  %528 = vmatmul.mubr.f32.gmra.mrb[0].mxu0 %v452
  %v529 = vpop.f32.mrb[0].mxu0
  %v530 = vadd.f32 %v448, %v529
  %v531 = vpop.f32.mrb[0].mxu0
  %532 = vmatprep.mubr.f32.mxu0 0.0
  %533 = vmatmul.mubr.f32.gmra.mrb[0].mxu0 %v455
  %v534 = vpop.f32.mrb[0].mxu0
  %v535 = vadd.f32 %v448, %v534
  %v536 = vpop.f32.mrb[0].mxu0
  %537 = vmatprep.mubr.f32.mxu0 0.0
  %538 = vmatmul.mubr.f32.gmra.mrb[0].mxu0 %v458
  %v539 = vpop.f32.mrb[0].mxu0
  %v540 = vadd.f32 %v448, %v539
  %v541 = vpop.f32.mrb[0].mxu0
  %542 = vmatprep.mubr.f32.mxu0 0.0
  %543 = vmatmul.mubr.f32.gmra.mrb[0].mxu0 %v461
  %v544 = vpop.f32.mrb[0].mxu0
  %v545 = vadd.f32 %v448, %v544
  %v546 = vpop.f32.mrb[0].mxu0
  %547 = vdwg.mxu0
  %v548 = vld [vmem:[#allocation3] sm:$0x1]
  %vm549 = vcmp.gt.f32.partialorder %v530, 0.0
  %vm550 = vcmp.gt.f32.partialorder %v535, 0.0
  %vm551 = vcmp.gt.f32.partialorder %v540, 0.0
  %vm552 = vcmp.gt.f32.partialorder %v545, 0.0
  %v554 = vlaneseq
  %v555 = vshrl.u32 %v554, 7
  %v556 = vsub.s32 0, %v555
  %v557 = vrot.slane %v548, %v556
  %558 = vset.pattern.permute.xlu0 0
  %559 = vperm.xlu0 %558, %v557
  %v560 = vpop.permute.xlu0 %559
  %v562 = vmul.f32 %v560, %v530
  %v563 = vmul.f32 %v560, %v535
  %v564 = vmul.f32 %v560, %v540
  %v565 = vmul.f32 %v560, %v545
  %v566 = vsel %vm549, %v530, %v562
  %v567 = vsel %vm550, %v535, %v563
  %v568 = vsel %vm551, %v540, %v564
  %v569 = vsel %vm552, %v545, %v565
  %v570 = vlaneseq
  %v571 = vand.u32 %v570, 127
  %v572 = vshrl.u32 %v225, 4
  %v573 = vshrl.u32 %v226, 4
  %v574 = vshrl.u32 %v227, 4
  %v575 = vshrl.u32 %v228, 4
  %v576 = vshrl.u32 %v571, 4
  %vm577 = vcmp.eq.s32.totalorder %v572, %v576
  %vm578 = vcmp.eq.s32.totalorder %v573, %v576
  %vm579 = vcmp.eq.s32.totalorder %v574, %v576
  %vm580 = vcmp.eq.s32.totalorder %v575, %v576
  %v581 = vsel %vm577, 0.0, -1e+30
  %v582 = vsel %vm578, 0.0, -1e+30
  %v583 = vsel %vm579, 0.0, -1e+30
  %v584 = vsel %vm580, 0.0, -1e+30
  %v585 = vld [vmem:[%s14] sm:$0x1]
  %v586 = vld [vmem:[%s15] sm:$0x1]
  %v587 = vsel %vm450, %v566, 0.0
  %588 = vadd.xlane.f32.xlu0 %v587
  %v589 = vpop.xlane.xlu0 %588
  %v590 = vsel %vm450, %v567, 0.0
  %591 = vadd.xlane.f32.xlu0 %v590
  %v592 = vpop.xlane.xlu0 %591
  %v593 = vsel %vm450, %v568, 0.0
  %594 = vadd.xlane.f32.xlu0 %v593
  %v595 = vpop.xlane.xlu0 %594
  %v596 = vsel %vm450, %v569, 0.0
  %597 = vadd.xlane.f32.xlu0 %v596
  %v598 = vpop.xlane.xlu0 %597
  %v599 = vrcp.pop 32.0
  %v600 = vmul.f32 %v589, %v599
  %v601 = vmul.f32 %v592, %v599
  %v602 = vmul.f32 %v595, %v599
  %v603 = vmul.f32 %v598, %v599
  %v604 = vsub.f32 %v566, %v600
  %v605 = vsub.f32 %v567, %v601
  %v606 = vsub.f32 %v568, %v602
  %v607 = vsub.f32 %v569, %v603
  %v608 = vmul.f32 %v604, %v604
  %v609 = vmul.f32 %v605, %v605
  %v610 = vmul.f32 %v606, %v606
  %v611 = vmul.f32 %v607, %v607
  %v612 = vsel %vm450, %v608, 0.0
  %613 = vadd.xlane.f32.xlu0 %v612
  %v614 = vpop.xlane.xlu0 %613
  %v615 = vsel %vm450, %v609, 0.0
  %616 = vadd.xlane.f32.xlu0 %v615
  %v617 = vpop.xlane.xlu0 %616
  %v618 = vsel %vm450, %v610, 0.0
  %619 = vadd.xlane.f32.xlu0 %v618
  %v620 = vpop.xlane.xlu0 %619
  %v621 = vsel %vm450, %v611, 0.0
  %622 = vadd.xlane.f32.xlu0 %v621
  %v623 = vpop.xlane.xlu0 %622
  %v624 = vmul.f32 %v614, %v599
  %v625 = vmul.f32 %v617, %v599
  %v626 = vmul.f32 %v620, %v599
  %v627 = vmul.f32 %v623, %v599
  %v628 = vadd.f32 %v624, 1e-05
  %v629 = vadd.f32 %v625, 1e-05
  %v630 = vadd.f32 %v626, 1e-05
  %v631 = vadd.f32 %v627, 1e-05
  %v632 = vrsqrt.pop %v628
  %v633 = vrsqrt.pop %v629
  %v634 = vrsqrt.pop %v630
  %v635 = vrsqrt.pop %v631
  %v636 = vmul.f32 %v604, %v632
  %v637 = vmul.f32 %v605, %v633
  %v638 = vmul.f32 %v606, %v634
  %v639 = vmul.f32 %v607, %v635
  %v641 = vlaneseq
  %v642 = vshrl.u32 %v641, 7
  %v643 = vsub.s32 0, %v642
  %v644 = vrot.slane %v585, %v643
  %v646 = vmul.f32 %v636, %v644
  %v647 = vmul.f32 %v637, %v644
  %v648 = vmul.f32 %v638, %v644
  %v649 = vmul.f32 %v639, %v644
  %v651 = vlaneseq
  %v652 = vshrl.u32 %v651, 7
  %v653 = vsub.s32 0, %v652
  %v654 = vrot.slane %v586, %v653
  %v656 = vadd.f32 %v646, %v654
  %v657 = vadd.f32 %v647, %v654
  %v658 = vadd.f32 %v648, %v654
  %v659 = vadd.f32 %v649, %v654
  %v660 = vld [vmem:[%s13] sm:$0x1]
  %v661 = vld [vmem:[%s10] sm:$0xff]
  %v662 = vld [vmem:[%s10 + $0x8] sm:$0xff]
  %v663 = vld [vmem:[%s10 + $0x10] sm:$0xff]
  %v664 = vld [vmem:[%s10 + $0x18] sm:$0xff]
  %v665 = vld [vmem:[%s11] sm:$0x1]
  %v667 = vlaneseq
  %v668 = vshrl.u32 %v667, 7
  %v669 = vsub.s32 0, %v668
  %v670 = vrot.slane %v665, %v669
  %v673 = vsel %vm450, %v656, 0
  %v676 = vsel %vm450, %v657, 0
  %v679 = vsel %vm450, %v658, 0
  %v682 = vsel %vm450, %v659, 0
  %684 = vmatprep.subr.mxu0 0.0
  %685 = vmatpush1.msra.mxu0 %v661
  %686 = vmatprep.subr.mxu0 0.0
  %687 = vmatpush1.msra.mxu0 %v662
  %688 = vmatprep.subr.mxu0 0.0
  %689 = vmatpush1.msra.mxu0 %v663
  %690 = vmatprep.subr.mxu0 0.0
  %691 = vmatpush1.msra.mxu0 %v664
  %692 = vmatprep.subr.mxu0 0.0
  %693 = vmatpush1.msra.mxu0 0.0
  %694 = vmatprep.subr.mxu0 0.0
  %695 = vmatpush1.msra.mxu0 0.0
  %696 = vmatprep.subr.mxu0 0.0
  %697 = vmatpush1.msra.mxu0 0.0
  %698 = vmatprep.subr.mxu0 0.0
  %699 = vmatpush1.msra.mxu0 0.0
  %700 = vmatprep.subr.mxu0 0.0
  %701 = vmatpush1.msra.mxu0 0.0
  %702 = vmatprep.subr.mxu0 0.0
  %703 = vmatpush1.msra.mxu0 0.0
  %704 = vmatprep.subr.mxu0 0.0
  %705 = vmatpush1.msra.mxu0 0.0
  %706 = vmatprep.subr.mxu0 0.0
  %707 = vmatpush1.msra.mxu0 0.0
  %708 = vmatprep.subr.mxu0 0.0
  %709 = vmatpush1.msra.mxu0 0.0
  %710 = vmatprep.subr.mxu0 0.0
  %711 = vmatpush1.msra.mxu0 0.0
  %712 = vmatprep.subr.mxu0 0.0
  %713 = vmatpush1.msra.mxu0 0.0
  %714 = vmatprep.subr.mxu0 0.0
  %715 = vmatpush1.msra.mxu0 0.0
  %716 = vmatprep.subr.mxu0 0.0
  %717 = vmatpush1.msra.mxu0 0.0
  %718 = vmatprep.subr.mxu0 0.0
  %719 = vmatpush1.msra.mxu0 0.0
  %720 = vmatprep.subr.mxu0 0.0
  %721 = vmatpush1.msra.mxu0 0.0
  %722 = vmatprep.subr.mxu0 0.0
  %723 = vmatpush1.msra.mxu0 0.0
  %724 = vmatprep.subr.mxu0 0.0
  %725 = vmatpush1.msra.mxu0 0.0
  %726 = vmatprep.subr.mxu0 0.0
  %727 = vmatpush1.msra.mxu0 0.0
  %728 = vmatprep.subr.mxu0 0.0
  %729 = vmatpush1.msra.mxu0 0.0
  %730 = vmatprep.subr.mxu0 0.0
  %731 = vmatpush1.msra.mxu0 0.0
  %732 = vmatprep.subr.mxu0 0.0
  %733 = vmatpush1.msra.mxu0 0.0
  %734 = vmatprep.subr.mxu0 0.0
  %735 = vmatpush1.msra.mxu0 0.0
  %736 = vmatprep.subr.mxu0 0.0
  %737 = vmatpush1.msra.mxu0 0.0
  %738 = vmatprep.subr.mxu0 0.0
  %739 = vmatpush1.msra.mxu0 0.0
  %740 = vmatprep.subr.mxu0 0.0
  %741 = vmatpush1.msra.mxu0 0.0
  %742 = vmatprep.subr.mxu0 0.0
  %743 = vmatpush1.msra.mxu0 0.0
  %744 = vmatprep.subr.mxu0 0.0
  %745 = vmatpush1.msra.mxu0 0.0
  %746 = vmatprep.subr.mxu0 0.0
  %747 = vmatpush1.msra.mxu0 0.0
  %748 = vmatprep.mubr.f32.mxu0 0.0
  %749 = vmatmul.mubr.f32.gmra.mrb[0].mxu0 %v673
  %v750 = vpop.f32.mrb[0].mxu0
  %v751 = vadd.f32 %v670, %v750
  %v752 = vpop.f32.mrb[0].mxu0
  %753 = vmatprep.mubr.f32.mxu0 0.0
  %754 = vmatmul.mubr.f32.gmra.mrb[0].mxu0 %v676
  %v755 = vpop.f32.mrb[0].mxu0
  %v756 = vadd.f32 %v670, %v755
  %v757 = vpop.f32.mrb[0].mxu0
  %758 = vmatprep.mubr.f32.mxu0 0.0
  %759 = vmatmul.mubr.f32.gmra.mrb[0].mxu0 %v679
  %v760 = vpop.f32.mrb[0].mxu0
  %v761 = vadd.f32 %v670, %v760
  %v762 = vpop.f32.mrb[0].mxu0
  %763 = vmatprep.mubr.f32.mxu0 0.0
  %764 = vmatmul.mubr.f32.gmra.mrb[0].mxu0 %v682
  %v765 = vpop.f32.mrb[0].mxu0
  %v766 = vadd.f32 %v670, %v765
  %v767 = vpop.f32.mrb[0].mxu0
  %768 = vdwg.mxu0
  %v769 = vmul.f32 %v751, 0.25
  %v770 = vmul.f32 %v756, 0.25
  %v771 = vmul.f32 %v761, 0.25
  %v772 = vmul.f32 %v766, 0.25
  %s773 = scalar_lea.vmem %s10, 64
  %v774 = vld [vmem:[%s773] sm:$0xff]
  %v775 = vld [vmem:[%s773 + $0x8] sm:$0xff]
  %v776 = vld [vmem:[%s773 + $0x10] sm:$0xff]
  %v777 = vld [vmem:[%s773 + $0x18] sm:$0xff]
  %s778 = scalar_lea.vmem %s11, 2
  %v779 = vld [vmem:[%s778] sm:$0x1]
  %v781 = vlaneseq
  %v782 = vshrl.u32 %v781, 7
  %v783 = vsub.s32 0, %v782
  %v784 = vrot.slane %v779, %v783
  %786 = vmatprep.subr.mxu0 0.0
  %787 = vmatpush1.msra.mxu0 %v774
  %788 = vmatprep.subr.mxu0 0.0
  %789 = vmatpush1.msra.mxu0 %v775
  %790 = vmatprep.subr.mxu0 0.0
  %791 = vmatpush1.msra.mxu0 %v776
  %792 = vmatprep.subr.mxu0 0.0
  %793 = vmatpush1.msra.mxu0 %v777
  %794 = vmatprep.subr.mxu0 0.0
  %795 = vmatpush1.msra.mxu0 0.0
  %796 = vmatprep.subr.mxu0 0.0
  %797 = vmatpush1.msra.mxu0 0.0
  %798 = vmatprep.subr.mxu0 0.0
  %799 = vmatpush1.msra.mxu0 0.0
  %800 = vmatprep.subr.mxu0 0.0
  %801 = vmatpush1.msra.mxu0 0.0
  %802 = vmatprep.subr.mxu0 0.0
  %803 = vmatpush1.msra.mxu0 0.0
  %804 = vmatprep.subr.mxu0 0.0
  %805 = vmatpush1.msra.mxu0 0.0
  %806 = vmatprep.subr.mxu0 0.0
  %807 = vmatpush1.msra.mxu0 0.0
  %808 = vmatprep.subr.mxu0 0.0
  %809 = vmatpush1.msra.mxu0 0.0
  %810 = vmatprep.subr.mxu0 0.0
  %811 = vmatpush1.msra.mxu0 0.0
  %812 = vmatprep.subr.mxu0 0.0
  %813 = vmatpush1.msra.mxu0 0.0
  %814 = vmatprep.subr.mxu0 0.0
  %815 = vmatpush1.msra.mxu0 0.0
  %816 = vmatprep.subr.mxu0 0.0
  %817 = vmatpush1.msra.mxu0 0.0
  %818 = vmatprep.subr.mxu0 0.0
  %819 = vmatpush1.msra.mxu0 0.0
  %820 = vmatprep.subr.mxu0 0.0
  %821 = vmatpush1.msra.mxu0 0.0
  %822 = vmatprep.subr.mxu0 0.0
  %823 = vmatpush1.msra.mxu0 0.0
  %824 = vmatprep.subr.mxu0 0.0
  %825 = vmatpush1.msra.mxu0 0.0
  %826 = vmatprep.subr.mxu0 0.0
  %827 = vmatpush1.msra.mxu0 0.0
  %828 = vmatprep.subr.mxu0 0.0
  %829 = vmatpush1.msra.mxu0 0.0
  %830 = vmatprep.subr.mxu0 0.0
  %831 = vmatpush1.msra.mxu0 0.0
  %832 = vmatprep.subr.mxu0 0.0
  %833 = vmatpush1.msra.mxu0 0.0
  %834 = vmatprep.subr.mxu0 0.0
  %835 = vmatpush1.msra.mxu0 0.0
  %836 = vmatprep.subr.mxu0 0.0
  %837 = vmatpush1.msra.mxu0 0.0
  %838 = vmatprep.subr.mxu0 0.0
  %839 = vmatpush1.msra.mxu0 0.0
  %840 = vmatprep.subr.mxu0 0.0
  %841 = vmatpush1.msra.mxu0 0.0
  %842 = vmatprep.subr.mxu0 0.0
  %843 = vmatpush1.msra.mxu0 0.0
  %844 = vmatprep.subr.mxu0 0.0
  %845 = vmatpush1.msra.mxu0 0.0
  %846 = vmatprep.subr.mxu0 0.0
  %847 = vmatpush1.msra.mxu0 0.0
  %848 = vmatprep.subr.mxu0 0.0
  %849 = vmatpush1.msra.mxu0 0.0
  %850 = vmatprep.mubr.f32.mxu0 0.0
  %851 = vmatmul.mubr.f32.gmra.mrb[0].mxu0 %v673
  %v852 = vpop.f32.mrb[0].mxu0
  %v853 = vadd.f32 %v784, %v852
  %v854 = vpop.f32.mrb[0].mxu0
  %855 = vmatprep.mubr.f32.mxu0 0.0
  %856 = vmatmul.mubr.f32.gmra.mrb[0].mxu0 %v676
  %v857 = vpop.f32.mrb[0].mxu0
  %v858 = vadd.f32 %v784, %v857
  %v859 = vpop.f32.mrb[0].mxu0
  %860 = vmatprep.mubr.f32.mxu0 0.0
  %861 = vmatmul.mubr.f32.gmra.mrb[0].mxu0 %v679
  %v862 = vpop.f32.mrb[0].mxu0
  %v863 = vadd.f32 %v784, %v862
  %v864 = vpop.f32.mrb[0].mxu0
  %865 = vmatprep.mubr.f32.mxu0 0.0
  %866 = vmatmul.mubr.f32.gmra.mrb[0].mxu0 %v682
  %v867 = vpop.f32.mrb[0].mxu0
  %v868 = vadd.f32 %v784, %v867
  %v869 = vpop.f32.mrb[0].mxu0
  %870 = vdwg.mxu0
  %s871 = scalar_lea.vmem %s10, 128
  %v872 = vld [vmem:[%s871] sm:$0xff]
  %v873 = vld [vmem:[%s871 + $0x8] sm:$0xff]
  %v874 = vld [vmem:[%s871 + $0x10] sm:$0xff]
  %v875 = vld [vmem:[%s871 + $0x18] sm:$0xff]
  %s876 = scalar_lea.vmem %s11, 4
  %v877 = vld [vmem:[%s876] sm:$0x1]
  %v879 = vlaneseq
  %v880 = vshrl.u32 %v879, 7
  %v881 = vsub.s32 0, %v880
  %v882 = vrot.slane %v877, %v881
  %884 = vmatprep.subr.mxu0 0.0
  %885 = vmatpush1.msra.mxu0 %v872
  %886 = vmatprep.subr.mxu0 0.0
  %887 = vmatpush1.msra.mxu0 %v873
  %888 = vmatprep.subr.mxu0 0.0
  %889 = vmatpush1.msra.mxu0 %v874
  %890 = vmatprep.subr.mxu0 0.0
  %891 = vmatpush1.msra.mxu0 %v875
  %892 = vmatprep.subr.mxu0 0.0
  %893 = vmatpush1.msra.mxu0 0.0
  %894 = vmatprep.subr.mxu0 0.0
  %895 = vmatpush1.msra.mxu0 0.0
  %896 = vmatprep.subr.mxu0 0.0
  %897 = vmatpush1.msra.mxu0 0.0
  %898 = vmatprep.subr.mxu0 0.0
  %899 = vmatpush1.msra.mxu0 0.0
  %900 = vmatprep.subr.mxu0 0.0
  %901 = vmatpush1.msra.mxu0 0.0
  %902 = vmatprep.subr.mxu0 0.0
  %903 = vmatpush1.msra.mxu0 0.0
  %904 = vmatprep.subr.mxu0 0.0
  %905 = vmatpush1.msra.mxu0 0.0
  %906 = vmatprep.subr.mxu0 0.0
  %907 = vmatpush1.msra.mxu0 0.0
  %908 = vmatprep.subr.mxu0 0.0
  %909 = vmatpush1.msra.mxu0 0.0
  %910 = vmatprep.subr.mxu0 0.0
  %911 = vmatpush1.msra.mxu0 0.0
  %912 = vmatprep.subr.mxu0 0.0
  %913 = vmatpush1.msra.mxu0 0.0
  %914 = vmatprep.subr.mxu0 0.0
  %915 = vmatpush1.msra.mxu0 0.0
  %916 = vmatprep.subr.mxu0 0.0
  %917 = vmatpush1.msra.mxu0 0.0
  %918 = vmatprep.subr.mxu0 0.0
  %919 = vmatpush1.msra.mxu0 0.0
  %920 = vmatprep.subr.mxu0 0.0
  %921 = vmatpush1.msra.mxu0 0.0
  %922 = vmatprep.subr.mxu0 0.0
  %923 = vmatpush1.msra.mxu0 0.0
  %924 = vmatprep.subr.mxu0 0.0
  %925 = vmatpush1.msra.mxu0 0.0
  %926 = vmatprep.subr.mxu0 0.0
  %927 = vmatpush1.msra.mxu0 0.0
  %928 = vmatprep.subr.mxu0 0.0
  %929 = vmatpush1.msra.mxu0 0.0
  %930 = vmatprep.subr.mxu0 0.0
  %931 = vmatpush1.msra.mxu0 0.0
  %932 = vmatprep.subr.mxu0 0.0
  %933 = vmatpush1.msra.mxu0 0.0
  %934 = vmatprep.subr.mxu0 0.0
  %935 = vmatpush1.msra.mxu0 0.0
  %936 = vmatprep.subr.mxu0 0.0
  %937 = vmatpush1.msra.mxu0 0.0
  %938 = vmatprep.subr.mxu0 0.0
  %939 = vmatpush1.msra.mxu0 0.0
  %940 = vmatprep.subr.mxu0 0.0
  %941 = vmatpush1.msra.mxu0 0.0
  %942 = vmatprep.subr.mxu0 0.0
  %943 = vmatpush1.msra.mxu0 0.0
  %944 = vmatprep.subr.mxu0 0.0
  %945 = vmatpush1.msra.mxu0 0.0
  %946 = vmatprep.subr.mxu0 0.0
  %947 = vmatpush1.msra.mxu0 0.0
  %948 = vmatprep.mubr.f32.mxu0 0.0
  %949 = vmatmul.mubr.f32.gmra.mrb[0].mxu0 %v673
  %v950 = vpop.f32.mrb[0].mxu0
  %v951 = vadd.f32 %v882, %v950
  %v952 = vpop.f32.mrb[0].mxu0
  %953 = vmatprep.mubr.f32.mxu0 0.0
  %954 = vmatmul.mubr.f32.gmra.mrb[0].mxu0 %v676
  %v955 = vpop.f32.mrb[0].mxu0
  %v956 = vadd.f32 %v882, %v955
  %v957 = vpop.f32.mrb[0].mxu0
  %958 = vmatprep.mubr.f32.mxu0 0.0
  %959 = vmatmul.mubr.f32.gmra.mrb[0].mxu0 %v679
  %v960 = vpop.f32.mrb[0].mxu0
  %v961 = vadd.f32 %v882, %v960
  %v962 = vpop.f32.mrb[0].mxu0
  %963 = vmatprep.mubr.f32.mxu0 0.0
  %964 = vmatmul.mubr.f32.gmra.mrb[0].mxu0 %v682
  %v965 = vpop.f32.mrb[0].mxu0
  %v966 = vadd.f32 %v882, %v965
  %v967 = vpop.f32.mrb[0].mxu0
  %968 = vdwg.mxu0
  %v973 = vcombine.high %v769, %v769
  %v975 = vunpack.c.l.s4 1966171168
  %v976 = vunpack.c.0.s8 %v975
  %v977 = vlaneseq
  %v978 = vshrl.u32 %v977, 7
  %v979 = vsub.s32 %v976, %v978
  %v980 = vrot.slane %v769, %v979
  %v982 = vunpack.c.l.s4 1966171168
  %v983 = vunpack.c.0.s8 %v982
  %v984 = vlaneseq
  %v985 = vshrl.u32 %v984, 7
  %v986 = vsub.s32 %v983, %v985
  %v987 = vrot.slane %v973, %v986
  %v988 = vcombine.high %v980, %v980
  %v989 = vcombine.high %v987, %v987
  %v991 = vunpack.c.l.s4 1966171168
  %v992 = vunpack.c.0.s8 %v991
  %v993 = vlaneseq
  %v994 = vshrl.u32 %v993, 7
  %v995 = vsub.s32 %v992, %v994
  %v996 = vrot.slane %v980, %v995
  %v998 = vunpack.c.l.s4 1966171168
  %v999 = vunpack.c.0.s8 %v998
  %v1000 = vlaneseq
  %v1001 = vshrl.u32 %v1000, 7
  %v1002 = vsub.s32 %v999, %v1001
  %v1003 = vrot.slane %v987, %v1002
  %v1005 = vunpack.c.l.s4 1966171168
  %v1006 = vunpack.c.0.s8 %v1005
  %v1007 = vlaneseq
  %v1008 = vshrl.u32 %v1007, 7
  %v1009 = vsub.s32 %v1006, %v1008
  %v1010 = vrot.slane %v988, %v1009
  %v1012 = vunpack.c.l.s4 1966171168
  %v1013 = vunpack.c.0.s8 %v1012
  %v1014 = vlaneseq
  %v1015 = vshrl.u32 %v1014, 7
  %v1016 = vsub.s32 %v1013, %v1015
  %v1017 = vrot.slane %v989, %v1016
  %v1018 = vcombine.high %v996, %v996
  %v1019 = vcombine.high %v1003, %v1003
  %v1020 = vcombine.high %v1010, %v1010
  %v1021 = vcombine.high %v1017, %v1017
  %v1022 = vcombine.high %v770, %v770
  %v1024 = vunpack.c.l.s4 1966171168
  %v1025 = vunpack.c.0.s8 %v1024
  %v1026 = vlaneseq
  %v1027 = vshrl.u32 %v1026, 7
  %v1028 = vsub.s32 %v1025, %v1027
  %v1029 = vrot.slane %v770, %v1028
  %v1031 = vunpack.c.l.s4 1966171168
  %v1032 = vunpack.c.0.s8 %v1031
  %v1033 = vlaneseq
  %v1034 = vshrl.u32 %v1033, 7
  %v1035 = vsub.s32 %v1032, %v1034
  %v1036 = vrot.slane %v1022, %v1035
  %v1037 = vcombine.high %v1029, %v1029
  %v1038 = vcombine.high %v1036, %v1036
  %v1040 = vunpack.c.l.s4 1966171168
  %v1041 = vunpack.c.0.s8 %v1040
  %v1042 = vlaneseq
  %v1043 = vshrl.u32 %v1042, 7
  %v1044 = vsub.s32 %v1041, %v1043
  %v1045 = vrot.slane %v1029, %v1044
  %v1047 = vunpack.c.l.s4 1966171168
  %v1048 = vunpack.c.0.s8 %v1047
  %v1049 = vlaneseq
  %v1050 = vshrl.u32 %v1049, 7
  %v1051 = vsub.s32 %v1048, %v1050
  %v1052 = vrot.slane %v1036, %v1051
  %v1054 = vunpack.c.l.s4 1966171168
  %v1055 = vunpack.c.0.s8 %v1054
  %v1056 = vlaneseq
  %v1057 = vshrl.u32 %v1056, 7
  %v1058 = vsub.s32 %v1055, %v1057
  %v1059 = vrot.slane %v1037, %v1058
  %v1061 = vunpack.c.l.s4 1966171168
  %v1062 = vunpack.c.0.s8 %v1061
  %v1063 = vlaneseq
  %v1064 = vshrl.u32 %v1063, 7
  %v1065 = vsub.s32 %v1062, %v1064
  %v1066 = vrot.slane %v1038, %v1065
  %v1067 = vcombine.high %v1045, %v1045
  %v1068 = vcombine.high %v1052, %v1052
  %v1069 = vcombine.high %v1059, %v1059
  %v1070 = vcombine.high %v1066, %v1066
  %v1071 = vcombine.high %v771, %v771
  %v1073 = vunpack.c.l.s4 1966171168
  %v1074 = vunpack.c.0.s8 %v1073
  %v1075 = vlaneseq
  %v1076 = vshrl.u32 %v1075, 7
  %v1077 = vsub.s32 %v1074, %v1076
  %v1078 = vrot.slane %v771, %v1077
  %v1080 = vunpack.c.l.s4 1966171168
  %v1081 = vunpack.c.0.s8 %v1080
  %v1082 = vlaneseq
  %v1083 = vshrl.u32 %v1082, 7
  %v1084 = vsub.s32 %v1081, %v1083
  %v1085 = vrot.slane %v1071, %v1084
  %v1086 = vcombine.high %v1078, %v1078
  %v1087 = vcombine.high %v1085, %v1085
  %v1089 = vunpack.c.l.s4 1966171168
  %v1090 = vunpack.c.0.s8 %v1089
  %v1091 = vlaneseq
  %v1092 = vshrl.u32 %v1091, 7
  %v1093 = vsub.s32 %v1090, %v1092
  %v1094 = vrot.slane %v1078, %v1093
  %v1096 = vunpack.c.l.s4 1966171168
  %v1097 = vunpack.c.0.s8 %v1096
  %v1098 = vlaneseq
  %v1099 = vshrl.u32 %v1098, 7
  %v1100 = vsub.s32 %v1097, %v1099
  %v1101 = vrot.slane %v1085, %v1100
  %v1103 = vunpack.c.l.s4 1966171168
  %v1104 = vunpack.c.0.s8 %v1103
  %v1105 = vlaneseq
  %v1106 = vshrl.u32 %v1105, 7
  %v1107 = vsub.s32 %v1104, %v1106
  %v1108 = vrot.slane %v1086, %v1107
  %v1110 = vunpack.c.l.s4 1966171168
  %v1111 = vunpack.c.0.s8 %v1110
  %v1112 = vlaneseq
  %v1113 = vshrl.u32 %v1112, 7
  %v1114 = vsub.s32 %v1111, %v1113
  %v1115 = vrot.slane %v1087, %v1114
  %v1116 = vcombine.high %v1094, %v1094
  %v1117 = vcombine.high %v1101, %v1101
  %v1118 = vcombine.high %v1108, %v1108
  %v1119 = vcombine.high %v1115, %v1115
  %v1120 = vcombine.high %v772, %v772
  %v1122 = vunpack.c.l.s4 1966171168
  %v1123 = vunpack.c.0.s8 %v1122
  %v1124 = vlaneseq
  %v1125 = vshrl.u32 %v1124, 7
  %v1126 = vsub.s32 %v1123, %v1125
  %v1127 = vrot.slane %v772, %v1126
  %v1129 = vunpack.c.l.s4 1966171168
  %v1130 = vunpack.c.0.s8 %v1129
  %v1131 = vlaneseq
  %v1132 = vshrl.u32 %v1131, 7
  %v1133 = vsub.s32 %v1130, %v1132
  %v1134 = vrot.slane %v1120, %v1133
  %v1135 = vcombine.high %v1127, %v1127
  %v1136 = vcombine.high %v1134, %v1134
  %v1138 = vunpack.c.l.s4 1966171168
  %v1139 = vunpack.c.0.s8 %v1138
  %v1140 = vlaneseq
  %v1141 = vshrl.u32 %v1140, 7
  %v1142 = vsub.s32 %v1139, %v1141
  %v1143 = vrot.slane %v1127, %v1142
  %v1145 = vunpack.c.l.s4 1966171168
  %v1146 = vunpack.c.0.s8 %v1145
  %v1147 = vlaneseq
  %v1148 = vshrl.u32 %v1147, 7
  %v1149 = vsub.s32 %v1146, %v1148
  %v1150 = vrot.slane %v1134, %v1149
  %v1152 = vunpack.c.l.s4 1966171168
  %v1153 = vunpack.c.0.s8 %v1152
  %v1154 = vlaneseq
  %v1155 = vshrl.u32 %v1154, 7
  %v1156 = vsub.s32 %v1153, %v1155
  %v1157 = vrot.slane %v1135, %v1156
  %v1159 = vunpack.c.l.s4 1966171168
  %v1160 = vunpack.c.0.s8 %v1159
  %v1161 = vlaneseq
  %v1162 = vshrl.u32 %v1161, 7
  %v1163 = vsub.s32 %v1160, %v1162
  %v1164 = vrot.slane %v1136, %v1163
  %v1165 = vcombine.high %v1143, %v1143
  %v1166 = vcombine.high %v1150, %v1150
  %v1167 = vcombine.high %v1157, %v1157
  %v1168 = vcombine.high %v1164, %v1164
  %v1169 = vlaneseq
  %v1170 = vshrl.u32 %v1169, 7
  %v1171 = vsub.s32 0, %v1170
  %v1172 = vrot.slane %v996, %v1171
  %v1173 = vlaneseq
  %v1174 = vshrl.u32 %v1173, 7
  %v1175 = vsub.s32 0, %v1174
  %v1176 = vrot.slane %v1010, %v1175
  %v1177 = vlaneseq
  %v1178 = vshrl.u32 %v1177, 7
  %v1179 = vsub.s32 0, %v1178
  %v1180 = vrot.slane %v1018, %v1179
  %v1181 = vlaneseq
  %v1182 = vshrl.u32 %v1181, 7
  %v1183 = vsub.s32 0, %v1182
  %v1184 = vrot.slane %v1020, %v1183
  %v1185 = vlaneseq
  %v1186 = vshrl.u32 %v1185, 7
  %v1187 = vsub.s32 0, %v1186
  %v1188 = vrot.slane %v1003, %v1187
  %v1189 = vlaneseq
  %v1190 = vshrl.u32 %v1189, 7
  %v1191 = vsub.s32 0, %v1190
  %v1192 = vrot.slane %v1017, %v1191
  %v1193 = vlaneseq
  %v1194 = vshrl.u32 %v1193, 7
  %v1195 = vsub.s32 0, %v1194
  %v1196 = vrot.slane %v1019, %v1195
  %v1197 = vlaneseq
  %v1198 = vshrl.u32 %v1197, 7
  %v1199 = vsub.s32 0, %v1198
  %v1200 = vrot.slane %v1021, %v1199
  %v1201 = vlaneseq
  %v1202 = vshrl.u32 %v1201, 7
  %v1203 = vsub.s32 0, %v1202
  %v1204 = vrot.slane %v1045, %v1203
  %v1205 = vlaneseq
  %v1206 = vshrl.u32 %v1205, 7
  %v1207 = vsub.s32 0, %v1206
  %v1208 = vrot.slane %v1059, %v1207
  %v1209 = vlaneseq
  %v1210 = vshrl.u32 %v1209, 7
  %v1211 = vsub.s32 0, %v1210
  %v1212 = vrot.slane %v1067, %v1211
  %v1213 = vlaneseq
  %v1214 = vshrl.u32 %v1213, 7
  %v1215 = vsub.s32 0, %v1214
  %v1216 = vrot.slane %v1069, %v1215
  %v1217 = vlaneseq
  %v1218 = vshrl.u32 %v1217, 7
  %v1219 = vsub.s32 0, %v1218
  %v1220 = vrot.slane %v1052, %v1219
  %v1221 = vlaneseq
  %v1222 = vshrl.u32 %v1221, 7
  %v1223 = vsub.s32 0, %v1222
  %v1224 = vrot.slane %v1066, %v1223
  %v1225 = vlaneseq
  %v1226 = vshrl.u32 %v1225, 7
  %v1227 = vsub.s32 0, %v1226
  %v1228 = vrot.slane %v1068, %v1227
  %v1229 = vlaneseq
  %v1230 = vshrl.u32 %v1229, 7
  %v1231 = vsub.s32 0, %v1230
  %v1232 = vrot.slane %v1070, %v1231
  %v1233 = vlaneseq
  %v1234 = vshrl.u32 %v1233, 7
  %v1235 = vsub.s32 0, %v1234
  %v1236 = vrot.slane %v1094, %v1235
  %v1237 = vlaneseq
  %v1238 = vshrl.u32 %v1237, 7
  %v1239 = vsub.s32 0, %v1238
  %v1240 = vrot.slane %v1108, %v1239
  %v1241 = vlaneseq
  %v1242 = vshrl.u32 %v1241, 7
  %v1243 = vsub.s32 0, %v1242
  %v1244 = vrot.slane %v1116, %v1243
  %v1245 = vlaneseq
  %v1246 = vshrl.u32 %v1245, 7
  %v1247 = vsub.s32 0, %v1246
  %v1248 = vrot.slane %v1118, %v1247
  %v1249 = vlaneseq
  %v1250 = vshrl.u32 %v1249, 7
  %v1251 = vsub.s32 0, %v1250
  %v1252 = vrot.slane %v1101, %v1251
  %v1253 = vlaneseq
  %v1254 = vshrl.u32 %v1253, 7
  %v1255 = vsub.s32 0, %v1254
  %v1256 = vrot.slane %v1115, %v1255
  %v1257 = vlaneseq
  %v1258 = vshrl.u32 %v1257, 7
  %v1259 = vsub.s32 0, %v1258
  %v1260 = vrot.slane %v1117, %v1259
  %v1261 = vlaneseq
  %v1262 = vshrl.u32 %v1261, 7
  %v1263 = vsub.s32 0, %v1262
  %v1264 = vrot.slane %v1119, %v1263
  %v1265 = vlaneseq
  %v1266 = vshrl.u32 %v1265, 7
  %v1267 = vsub.s32 0, %v1266
  %v1268 = vrot.slane %v1143, %v1267
  %v1269 = vlaneseq
  %v1270 = vshrl.u32 %v1269, 7
  %v1271 = vsub.s32 0, %v1270
  %v1272 = vrot.slane %v1157, %v1271
  %v1273 = vlaneseq
  %v1274 = vshrl.u32 %v1273, 7
  %v1275 = vsub.s32 0, %v1274
  %v1276 = vrot.slane %v1165, %v1275
  %v1277 = vlaneseq
  %v1278 = vshrl.u32 %v1277, 7
  %v1279 = vsub.s32 0, %v1278
  %v1280 = vrot.slane %v1167, %v1279
  %v1281 = vlaneseq
  %v1282 = vshrl.u32 %v1281, 7
  %v1283 = vsub.s32 0, %v1282
  %v1284 = vrot.slane %v1150, %v1283
  %v1285 = vlaneseq
  %v1286 = vshrl.u32 %v1285, 7
  %v1287 = vsub.s32 0, %v1286
  %v1288 = vrot.slane %v1164, %v1287
  %v1289 = vlaneseq
  %v1290 = vshrl.u32 %v1289, 7
  %v1291 = vsub.s32 0, %v1290
  %v1292 = vrot.slane %v1166, %v1291
  %v1293 = vlaneseq
  %v1294 = vshrl.u32 %v1293, 7
  %v1295 = vsub.s32 0, %v1294
  %v1296 = vrot.slane %v1168, %v1295
  %v1329 = vmul.f32 %v1172, %v96
  %v1330 = vmul.f32 %v1172, %v97
  %v1331 = vmul.f32 %v1172, %v98
  %v1332 = vmul.f32 %v1172, %v99
  %v1333 = vmul.f32 %v1176, %v100
  %v1334 = vmul.f32 %v1176, %v101
  %v1335 = vmul.f32 %v1176, %v102
  %v1336 = vmul.f32 %v1176, %v103
  %v1337 = vmul.f32 %v1180, %v104
  %v1338 = vmul.f32 %v1180, %v105
  %v1339 = vmul.f32 %v1180, %v106
  %v1340 = vmul.f32 %v1180, %v107
  %v1341 = vmul.f32 %v1184, %v108
  %v1342 = vmul.f32 %v1184, %v109
  %v1343 = vmul.f32 %v1184, %v110
  %v1344 = vmul.f32 %v1184, %v111
  %v1345 = vmul.f32 %v1188, %v112
  %v1346 = vmul.f32 %v1188, %v113
  %v1347 = vmul.f32 %v1188, %v114
  %v1348 = vmul.f32 %v1188, %v115
  %v1349 = vmul.f32 %v1192, %v116
  %v1350 = vmul.f32 %v1192, %v117
  %v1351 = vmul.f32 %v1192, %v118
  %v1352 = vmul.f32 %v1192, %v119
  %v1353 = vmul.f32 %v1196, %v120
  %v1354 = vmul.f32 %v1196, %v121
  %v1355 = vmul.f32 %v1196, %v122
  %v1356 = vmul.f32 %v1196, %v123
  %v1357 = vmul.f32 %v1200, %v124
  %v1358 = vmul.f32 %v1200, %v125
  %v1359 = vmul.f32 %v1200, %v126
  %v1360 = vmul.f32 %v1200, %v127
  %v1361 = vmul.f32 %v1204, %v128
  %v1362 = vmul.f32 %v1204, %v129
  %v1363 = vmul.f32 %v1204, %v130
  %v1364 = vmul.f32 %v1204, %v131
  %v1365 = vmul.f32 %v1208, %v132
  %v1366 = vmul.f32 %v1208, %v133
  %v1367 = vmul.f32 %v1208, %v134
  %v1368 = vmul.f32 %v1208, %v135
  %v1369 = vmul.f32 %v1212, %v136
  %v1370 = vmul.f32 %v1212, %v137
  %v1371 = vmul.f32 %v1212, %v138
  %v1372 = vmul.f32 %v1212, %v139
  %v1373 = vmul.f32 %v1216, %v140
  %v1374 = vmul.f32 %v1216, %v141
  %v1375 = vmul.f32 %v1216, %v142
  %v1376 = vmul.f32 %v1216, %v143
  %v1377 = vmul.f32 %v1220, %v144
  %v1378 = vmul.f32 %v1220, %v145
  %v1379 = vmul.f32 %v1220, %v146
  %v1380 = vmul.f32 %v1220, %v147
  %v1381 = vmul.f32 %v1224, %v148
  %v1382 = vmul.f32 %v1224, %v149
  %v1383 = vmul.f32 %v1224, %v150
  %v1384 = vmul.f32 %v1224, %v151
  %v1385 = vmul.f32 %v1228, %v152
  %v1386 = vmul.f32 %v1228, %v153
  %v1387 = vmul.f32 %v1228, %v154
  %v1388 = vmul.f32 %v1228, %v155
  %v1389 = vmul.f32 %v1232, %v156
  %v1390 = vmul.f32 %v1232, %v157
  %v1391 = vmul.f32 %v1232, %v158
  %v1392 = vmul.f32 %v1232, %v159
  %v1393 = vmul.f32 %v1236, %v160
  %v1394 = vmul.f32 %v1236, %v161
  %v1395 = vmul.f32 %v1236, %v162
  %v1396 = vmul.f32 %v1236, %v163
  %v1397 = vmul.f32 %v1240, %v164
  %v1398 = vmul.f32 %v1240, %v165
  %v1399 = vmul.f32 %v1240, %v166
  %v1400 = vmul.f32 %v1240, %v167
  %v1401 = vmul.f32 %v1244, %v168
  %v1402 = vmul.f32 %v1244, %v169
  %v1403 = vmul.f32 %v1244, %v170
  %v1404 = vmul.f32 %v1244, %v171
  %v1405 = vmul.f32 %v1248, %v172
  %v1406 = vmul.f32 %v1248, %v173
  %v1407 = vmul.f32 %v1248, %v174
  %v1408 = vmul.f32 %v1248, %v175
  %v1409 = vmul.f32 %v1252, %v176
  %v1410 = vmul.f32 %v1252, %v177
  %v1411 = vmul.f32 %v1252, %v178
  %v1412 = vmul.f32 %v1252, %v179
  %v1413 = vmul.f32 %v1256, %v180
  %v1414 = vmul.f32 %v1256, %v181
  %v1415 = vmul.f32 %v1256, %v182
  %v1416 = vmul.f32 %v1256, %v183
  %v1417 = vmul.f32 %v1260, %v184
  %v1418 = vmul.f32 %v1260, %v185
  %v1419 = vmul.f32 %v1260, %v186
  %v1420 = vmul.f32 %v1260, %v187
  %v1421 = vmul.f32 %v1264, %v188
  %v1422 = vmul.f32 %v1264, %v189
  %v1423 = vmul.f32 %v1264, %v190
  %v1424 = vmul.f32 %v1264, %v191
  %v1425 = vmul.f32 %v1268, %v192
  %v1426 = vmul.f32 %v1268, %v193
  %v1427 = vmul.f32 %v1268, %v194
  %v1428 = vmul.f32 %v1268, %v195
  %v1429 = vmul.f32 %v1272, %v196
  %v1430 = vmul.f32 %v1272, %v197
  %v1431 = vmul.f32 %v1272, %v198
  %v1432 = vmul.f32 %v1272, %v199
  %v1433 = vmul.f32 %v1276, %v200
  %v1434 = vmul.f32 %v1276, %v201
  %v1435 = vmul.f32 %v1276, %v202
  %v1436 = vmul.f32 %v1276, %v203
  %v1437 = vmul.f32 %v1280, %v204
  %v1438 = vmul.f32 %v1280, %v205
  %v1439 = vmul.f32 %v1280, %v206
  %v1440 = vmul.f32 %v1280, %v207
  %v1441 = vmul.f32 %v1284, %v208
  %v1442 = vmul.f32 %v1284, %v209
  %v1443 = vmul.f32 %v1284, %v210
  %v1444 = vmul.f32 %v1284, %v211
  %v1445 = vmul.f32 %v1288, %v212
  %v1446 = vmul.f32 %v1288, %v213
  %v1447 = vmul.f32 %v1288, %v214
  %v1448 = vmul.f32 %v1288, %v215
  %v1449 = vmul.f32 %v1292, %v216
  %v1450 = vmul.f32 %v1292, %v217
  %v1451 = vmul.f32 %v1292, %v218
  %v1452 = vmul.f32 %v1292, %v219
  %v1453 = vmul.f32 %v1296, %v220
  %v1454 = vmul.f32 %v1296, %v221
  %v1455 = vmul.f32 %v1296, %v222
  %v1456 = vmul.f32 %v1296, %v223
  %vm1457 = vcmask 130048
  %v1458 = vsel %vm1457, %v1329, 0.0
  %1459 = vadd.xlane.f32.xlu0 %v1458
  %v1460 = vpop.xlane.xlu0 %1459
  %v1461 = vsel %vm1457, %v1330, 0.0
  %1462 = vadd.xlane.f32.xlu0 %v1461
  %v1463 = vpop.xlane.xlu0 %1462
  %v1464 = vsel %vm1457, %v1331, 0.0
  %1465 = vadd.xlane.f32.xlu0 %v1464
  %v1466 = vpop.xlane.xlu0 %1465
  %v1467 = vsel %vm1457, %v1332, 0.0
  %1468 = vadd.xlane.f32.xlu0 %v1467
  %v1469 = vpop.xlane.xlu0 %1468
  %v1470 = vsel %vm1457, %v1333, 0.0
  %1471 = vadd.xlane.f32.xlu0 %v1470
  %v1472 = vpop.xlane.xlu0 %1471
  %v1473 = vsel %vm1457, %v1334, 0.0
  %1474 = vadd.xlane.f32.xlu0 %v1473
  %v1475 = vpop.xlane.xlu0 %1474
  %v1476 = vsel %vm1457, %v1335, 0.0
  %1477 = vadd.xlane.f32.xlu0 %v1476
  %v1478 = vpop.xlane.xlu0 %1477
  %v1479 = vsel %vm1457, %v1336, 0.0
  %1480 = vadd.xlane.f32.xlu0 %v1479
  %v1481 = vpop.xlane.xlu0 %1480
  %v1482 = vsel %vm1457, %v1337, 0.0
  %1483 = vadd.xlane.f32.xlu0 %v1482
  %v1484 = vpop.xlane.xlu0 %1483
  %v1485 = vsel %vm1457, %v1338, 0.0
  %1486 = vadd.xlane.f32.xlu0 %v1485
  %v1487 = vpop.xlane.xlu0 %1486
  %v1488 = vsel %vm1457, %v1339, 0.0
  %1489 = vadd.xlane.f32.xlu0 %v1488
  %v1490 = vpop.xlane.xlu0 %1489
  %v1491 = vsel %vm1457, %v1340, 0.0
  %1492 = vadd.xlane.f32.xlu0 %v1491
  %v1493 = vpop.xlane.xlu0 %1492
  %v1494 = vsel %vm1457, %v1341, 0.0
  %1495 = vadd.xlane.f32.xlu0 %v1494
  %v1496 = vpop.xlane.xlu0 %1495
  %v1497 = vsel %vm1457, %v1342, 0.0
  %1498 = vadd.xlane.f32.xlu0 %v1497
  %v1499 = vpop.xlane.xlu0 %1498
  %v1500 = vsel %vm1457, %v1343, 0.0
  %1501 = vadd.xlane.f32.xlu0 %v1500
  %v1502 = vpop.xlane.xlu0 %1501
  %v1503 = vsel %vm1457, %v1344, 0.0
  %1504 = vadd.xlane.f32.xlu0 %v1503
  %v1505 = vpop.xlane.xlu0 %1504
  %v1506 = vsel %vm1457, %v1345, 0.0
  %1507 = vadd.xlane.f32.xlu0 %v1506
  %v1508 = vpop.xlane.xlu0 %1507
  %v1509 = vsel %vm1457, %v1346, 0.0
  %1510 = vadd.xlane.f32.xlu0 %v1509
  %v1511 = vpop.xlane.xlu0 %1510
  %v1512 = vsel %vm1457, %v1347, 0.0
  %1513 = vadd.xlane.f32.xlu0 %v1512
  %v1514 = vpop.xlane.xlu0 %1513
  %v1515 = vsel %vm1457, %v1348, 0.0
  %1516 = vadd.xlane.f32.xlu0 %v1515
  %v1517 = vpop.xlane.xlu0 %1516
  %v1518 = vsel %vm1457, %v1349, 0.0
  %1519 = vadd.xlane.f32.xlu0 %v1518
  %v1520 = vpop.xlane.xlu0 %1519
  %v1521 = vsel %vm1457, %v1350, 0.0
  %1522 = vadd.xlane.f32.xlu0 %v1521
  %v1523 = vpop.xlane.xlu0 %1522
  %v1524 = vsel %vm1457, %v1351, 0.0
  %1525 = vadd.xlane.f32.xlu0 %v1524
  %v1526 = vpop.xlane.xlu0 %1525
  %v1527 = vsel %vm1457, %v1352, 0.0
  %1528 = vadd.xlane.f32.xlu0 %v1527
  %v1529 = vpop.xlane.xlu0 %1528
  %v1530 = vsel %vm1457, %v1353, 0.0
  %1531 = vadd.xlane.f32.xlu0 %v1530
  %v1532 = vpop.xlane.xlu0 %1531
  %v1533 = vsel %vm1457, %v1354, 0.0
  %1534 = vadd.xlane.f32.xlu0 %v1533
  %v1535 = vpop.xlane.xlu0 %1534
  %v1536 = vsel %vm1457, %v1355, 0.0
  %1537 = vadd.xlane.f32.xlu0 %v1536
  %v1538 = vpop.xlane.xlu0 %1537
  %v1539 = vsel %vm1457, %v1356, 0.0
  %1540 = vadd.xlane.f32.xlu0 %v1539
  %v1541 = vpop.xlane.xlu0 %1540
  %v1542 = vsel %vm1457, %v1357, 0.0
  %1543 = vadd.xlane.f32.xlu0 %v1542
  %v1544 = vpop.xlane.xlu0 %1543
  %v1545 = vsel %vm1457, %v1358, 0.0
  %1546 = vadd.xlane.f32.xlu0 %v1545
  %v1547 = vpop.xlane.xlu0 %1546
  %v1548 = vsel %vm1457, %v1359, 0.0
  %1549 = vadd.xlane.f32.xlu0 %v1548
  %v1550 = vpop.xlane.xlu0 %1549
  %v1551 = vsel %vm1457, %v1360, 0.0
  %1552 = vadd.xlane.f32.xlu0 %v1551
  %v1553 = vpop.xlane.xlu0 %1552
  %v1554 = vsel %vm1457, %v1361, 0.0
  %1555 = vadd.xlane.f32.xlu0 %v1554
  %v1556 = vpop.xlane.xlu0 %1555
  %v1557 = vsel %vm1457, %v1362, 0.0
  %1558 = vadd.xlane.f32.xlu0 %v1557
  %v1559 = vpop.xlane.xlu0 %1558
  %v1560 = vsel %vm1457, %v1363, 0.0
  %1561 = vadd.xlane.f32.xlu0 %v1560
  %v1562 = vpop.xlane.xlu0 %1561
  %v1563 = vsel %vm1457, %v1364, 0.0
  %1564 = vadd.xlane.f32.xlu0 %v1563
  %v1565 = vpop.xlane.xlu0 %1564
  %v1566 = vsel %vm1457, %v1365, 0.0
  %1567 = vadd.xlane.f32.xlu0 %v1566
  %v1568 = vpop.xlane.xlu0 %1567
  %v1569 = vsel %vm1457, %v1366, 0.0
  %1570 = vadd.xlane.f32.xlu0 %v1569
  %v1571 = vpop.xlane.xlu0 %1570
  %v1572 = vsel %vm1457, %v1367, 0.0
  %1573 = vadd.xlane.f32.xlu0 %v1572
  %v1574 = vpop.xlane.xlu0 %1573
  %v1575 = vsel %vm1457, %v1368, 0.0
  %1576 = vadd.xlane.f32.xlu0 %v1575
  %v1577 = vpop.xlane.xlu0 %1576
  %v1578 = vsel %vm1457, %v1369, 0.0
  %1579 = vadd.xlane.f32.xlu0 %v1578
  %v1580 = vpop.xlane.xlu0 %1579
  %v1581 = vsel %vm1457, %v1370, 0.0
  %1582 = vadd.xlane.f32.xlu0 %v1581
  %v1583 = vpop.xlane.xlu0 %1582
  %v1584 = vsel %vm1457, %v1371, 0.0
  %1585 = vadd.xlane.f32.xlu0 %v1584
  %v1586 = vpop.xlane.xlu0 %1585
  %v1587 = vsel %vm1457, %v1372, 0.0
  %1588 = vadd.xlane.f32.xlu0 %v1587
  %v1589 = vpop.xlane.xlu0 %1588
  %v1590 = vsel %vm1457, %v1373, 0.0
  %1591 = vadd.xlane.f32.xlu0 %v1590
  %v1592 = vpop.xlane.xlu0 %1591
  %v1593 = vsel %vm1457, %v1374, 0.0
  %1594 = vadd.xlane.f32.xlu0 %v1593
  %v1595 = vpop.xlane.xlu0 %1594
  %v1596 = vsel %vm1457, %v1375, 0.0
  %1597 = vadd.xlane.f32.xlu0 %v1596
  %v1598 = vpop.xlane.xlu0 %1597
  %v1599 = vsel %vm1457, %v1376, 0.0
  %1600 = vadd.xlane.f32.xlu0 %v1599
  %v1601 = vpop.xlane.xlu0 %1600
  %v1602 = vsel %vm1457, %v1377, 0.0
  %1603 = vadd.xlane.f32.xlu0 %v1602
  %v1604 = vpop.xlane.xlu0 %1603
  %v1605 = vsel %vm1457, %v1378, 0.0
  %1606 = vadd.xlane.f32.xlu0 %v1605
  %v1607 = vpop.xlane.xlu0 %1606
  %v1608 = vsel %vm1457, %v1379, 0.0
  %1609 = vadd.xlane.f32.xlu0 %v1608
  %v1610 = vpop.xlane.xlu0 %1609
  %v1611 = vsel %vm1457, %v1380, 0.0
  %1612 = vadd.xlane.f32.xlu0 %v1611
  %v1613 = vpop.xlane.xlu0 %1612
  %v1614 = vsel %vm1457, %v1381, 0.0
  %1615 = vadd.xlane.f32.xlu0 %v1614
  %v1616 = vpop.xlane.xlu0 %1615
  %v1617 = vsel %vm1457, %v1382, 0.0
  %1618 = vadd.xlane.f32.xlu0 %v1617
  %v1619 = vpop.xlane.xlu0 %1618
  %v1620 = vsel %vm1457, %v1383, 0.0
  %1621 = vadd.xlane.f32.xlu0 %v1620
  %v1622 = vpop.xlane.xlu0 %1621
  %v1623 = vsel %vm1457, %v1384, 0.0
  %1624 = vadd.xlane.f32.xlu0 %v1623
  %v1625 = vpop.xlane.xlu0 %1624
  %v1626 = vsel %vm1457, %v1385, 0.0
  %1627 = vadd.xlane.f32.xlu0 %v1626
  %v1628 = vpop.xlane.xlu0 %1627
  %v1629 = vsel %vm1457, %v1386, 0.0
  %1630 = vadd.xlane.f32.xlu0 %v1629
  %v1631 = vpop.xlane.xlu0 %1630
  %v1632 = vsel %vm1457, %v1387, 0.0
  %1633 = vadd.xlane.f32.xlu0 %v1632
  %v1634 = vpop.xlane.xlu0 %1633
  %v1635 = vsel %vm1457, %v1388, 0.0
  %1636 = vadd.xlane.f32.xlu0 %v1635
  %v1637 = vpop.xlane.xlu0 %1636
  %v1638 = vsel %vm1457, %v1389, 0.0
  %1639 = vadd.xlane.f32.xlu0 %v1638
  %v1640 = vpop.xlane.xlu0 %1639
  %v1641 = vsel %vm1457, %v1390, 0.0
  %1642 = vadd.xlane.f32.xlu0 %v1641
  %v1643 = vpop.xlane.xlu0 %1642
  %v1644 = vsel %vm1457, %v1391, 0.0
  %1645 = vadd.xlane.f32.xlu0 %v1644
  %v1646 = vpop.xlane.xlu0 %1645
  %v1647 = vsel %vm1457, %v1392, 0.0
  %1648 = vadd.xlane.f32.xlu0 %v1647
  %v1649 = vpop.xlane.xlu0 %1648
  %v1650 = vsel %vm1457, %v1393, 0.0
  %1651 = vadd.xlane.f32.xlu0 %v1650
  %v1652 = vpop.xlane.xlu0 %1651
  %v1653 = vsel %vm1457, %v1394, 0.0
  %1654 = vadd.xlane.f32.xlu0 %v1653
  %v1655 = vpop.xlane.xlu0 %1654
  %v1656 = vsel %vm1457, %v1395, 0.0
  %1657 = vadd.xlane.f32.xlu0 %v1656
  %v1658 = vpop.xlane.xlu0 %1657
  %v1659 = vsel %vm1457, %v1396, 0.0
  %1660 = vadd.xlane.f32.xlu0 %v1659
  %v1661 = vpop.xlane.xlu0 %1660
  %v1662 = vsel %vm1457, %v1397, 0.0
  %1663 = vadd.xlane.f32.xlu0 %v1662
  %v1664 = vpop.xlane.xlu0 %1663
  %v1665 = vsel %vm1457, %v1398, 0.0
  %1666 = vadd.xlane.f32.xlu0 %v1665
  %v1667 = vpop.xlane.xlu0 %1666
  %v1668 = vsel %vm1457, %v1399, 0.0
  %1669 = vadd.xlane.f32.xlu0 %v1668
  %v1670 = vpop.xlane.xlu0 %1669
  %v1671 = vsel %vm1457, %v1400, 0.0
  %1672 = vadd.xlane.f32.xlu0 %v1671
  %v1673 = vpop.xlane.xlu0 %1672
  %v1674 = vsel %vm1457, %v1401, 0.0
  %1675 = vadd.xlane.f32.xlu0 %v1674
  %v1676 = vpop.xlane.xlu0 %1675
  %v1677 = vsel %vm1457, %v1402, 0.0
  %1678 = vadd.xlane.f32.xlu0 %v1677
  %v1679 = vpop.xlane.xlu0 %1678
  %v1680 = vsel %vm1457, %v1403, 0.0
  %1681 = vadd.xlane.f32.xlu0 %v1680
  %v1682 = vpop.xlane.xlu0 %1681
  %v1683 = vsel %vm1457, %v1404, 0.0
  %1684 = vadd.xlane.f32.xlu0 %v1683
  %v1685 = vpop.xlane.xlu0 %1684
  %v1686 = vsel %vm1457, %v1405, 0.0
  %1687 = vadd.xlane.f32.xlu0 %v1686
  %v1688 = vpop.xlane.xlu0 %1687
  %v1689 = vsel %vm1457, %v1406, 0.0
  %1690 = vadd.xlane.f32.xlu0 %v1689
  %v1691 = vpop.xlane.xlu0 %1690
  %v1692 = vsel %vm1457, %v1407, 0.0
  %1693 = vadd.xlane.f32.xlu0 %v1692
  %v1694 = vpop.xlane.xlu0 %1693
  %v1695 = vsel %vm1457, %v1408, 0.0
  %1696 = vadd.xlane.f32.xlu0 %v1695
  %v1697 = vpop.xlane.xlu0 %1696
  %v1698 = vsel %vm1457, %v1409, 0.0
  %1699 = vadd.xlane.f32.xlu0 %v1698
  %v1700 = vpop.xlane.xlu0 %1699
  %v1701 = vsel %vm1457, %v1410, 0.0
  %1702 = vadd.xlane.f32.xlu0 %v1701
  %v1703 = vpop.xlane.xlu0 %1702
  %v1704 = vsel %vm1457, %v1411, 0.0
  %1705 = vadd.xlane.f32.xlu0 %v1704
  %v1706 = vpop.xlane.xlu0 %1705
  %v1707 = vsel %vm1457, %v1412, 0.0
  %1708 = vadd.xlane.f32.xlu0 %v1707
  %v1709 = vpop.xlane.xlu0 %1708
  %v1710 = vsel %vm1457, %v1413, 0.0
  %1711 = vadd.xlane.f32.xlu0 %v1710
  %v1712 = vpop.xlane.xlu0 %1711
  %v1713 = vsel %vm1457, %v1414, 0.0
  %1714 = vadd.xlane.f32.xlu0 %v1713
  %v1715 = vpop.xlane.xlu0 %1714
  %v1716 = vsel %vm1457, %v1415, 0.0
  %1717 = vadd.xlane.f32.xlu0 %v1716
  %v1718 = vpop.xlane.xlu0 %1717
  %v1719 = vsel %vm1457, %v1416, 0.0
  %1720 = vadd.xlane.f32.xlu0 %v1719
  %v1721 = vpop.xlane.xlu0 %1720
  %v1722 = vsel %vm1457, %v1417, 0.0
  %1723 = vadd.xlane.f32.xlu0 %v1722
  %v1724 = vpop.xlane.xlu0 %1723
  %v1725 = vsel %vm1457, %v1418, 0.0
  %1726 = vadd.xlane.f32.xlu0 %v1725
  %v1727 = vpop.xlane.xlu0 %1726
  %v1728 = vsel %vm1457, %v1419, 0.0
  %1729 = vadd.xlane.f32.xlu0 %v1728
  %v1730 = vpop.xlane.xlu0 %1729
  %v1731 = vsel %vm1457, %v1420, 0.0
  %1732 = vadd.xlane.f32.xlu0 %v1731
  %v1733 = vpop.xlane.xlu0 %1732
  %v1734 = vsel %vm1457, %v1421, 0.0
  %1735 = vadd.xlane.f32.xlu0 %v1734
  %v1736 = vpop.xlane.xlu0 %1735
  %v1737 = vsel %vm1457, %v1422, 0.0
  %1738 = vadd.xlane.f32.xlu0 %v1737
  %v1739 = vpop.xlane.xlu0 %1738
  %v1740 = vsel %vm1457, %v1423, 0.0
  %1741 = vadd.xlane.f32.xlu0 %v1740
  %v1742 = vpop.xlane.xlu0 %1741
  %v1743 = vsel %vm1457, %v1424, 0.0
  %1744 = vadd.xlane.f32.xlu0 %v1743
  %v1745 = vpop.xlane.xlu0 %1744
  %v1746 = vsel %vm1457, %v1425, 0.0
  %1747 = vadd.xlane.f32.xlu0 %v1746
  %v1748 = vpop.xlane.xlu0 %1747
  %v1749 = vsel %vm1457, %v1426, 0.0
  %1750 = vadd.xlane.f32.xlu0 %v1749
  %v1751 = vpop.xlane.xlu0 %1750
  %v1752 = vsel %vm1457, %v1427, 0.0
  %1753 = vadd.xlane.f32.xlu0 %v1752
  %v1754 = vpop.xlane.xlu0 %1753
  %v1755 = vsel %vm1457, %v1428, 0.0
  %1756 = vadd.xlane.f32.xlu0 %v1755
  %v1757 = vpop.xlane.xlu0 %1756
  %v1758 = vsel %vm1457, %v1429, 0.0
  %1759 = vadd.xlane.f32.xlu0 %v1758
  %v1760 = vpop.xlane.xlu0 %1759
  %v1761 = vsel %vm1457, %v1430, 0.0
  %1762 = vadd.xlane.f32.xlu0 %v1761
  %v1763 = vpop.xlane.xlu0 %1762
  %v1764 = vsel %vm1457, %v1431, 0.0
  %1765 = vadd.xlane.f32.xlu0 %v1764
  %v1766 = vpop.xlane.xlu0 %1765
  %v1767 = vsel %vm1457, %v1432, 0.0
  %1768 = vadd.xlane.f32.xlu0 %v1767
  %v1769 = vpop.xlane.xlu0 %1768
  %v1770 = vsel %vm1457, %v1433, 0.0
  %1771 = vadd.xlane.f32.xlu0 %v1770
  %v1772 = vpop.xlane.xlu0 %1771
  %v1773 = vsel %vm1457, %v1434, 0.0
  %1774 = vadd.xlane.f32.xlu0 %v1773
  %v1775 = vpop.xlane.xlu0 %1774
  %v1776 = vsel %vm1457, %v1435, 0.0
  %1777 = vadd.xlane.f32.xlu0 %v1776
  %v1778 = vpop.xlane.xlu0 %1777
  %v1779 = vsel %vm1457, %v1436, 0.0
  %1780 = vadd.xlane.f32.xlu0 %v1779
  %v1781 = vpop.xlane.xlu0 %1780
  %v1782 = vsel %vm1457, %v1437, 0.0
  %1783 = vadd.xlane.f32.xlu0 %v1782
  %v1784 = vpop.xlane.xlu0 %1783
  %v1785 = vsel %vm1457, %v1438, 0.0
  %1786 = vadd.xlane.f32.xlu0 %v1785
  %v1787 = vpop.xlane.xlu0 %1786
  %v1788 = vsel %vm1457, %v1439, 0.0
  %1789 = vadd.xlane.f32.xlu0 %v1788
  %v1790 = vpop.xlane.xlu0 %1789
  %v1791 = vsel %vm1457, %v1440, 0.0
  %1792 = vadd.xlane.f32.xlu0 %v1791
  %v1793 = vpop.xlane.xlu0 %1792
  %v1794 = vsel %vm1457, %v1441, 0.0
  %1795 = vadd.xlane.f32.xlu0 %v1794
  %v1796 = vpop.xlane.xlu0 %1795
  %v1797 = vsel %vm1457, %v1442, 0.0
  %1798 = vadd.xlane.f32.xlu0 %v1797
  %v1799 = vpop.xlane.xlu0 %1798
  %v1800 = vsel %vm1457, %v1443, 0.0
  %1801 = vadd.xlane.f32.xlu0 %v1800
  %v1802 = vpop.xlane.xlu0 %1801
  %v1803 = vsel %vm1457, %v1444, 0.0
  %1804 = vadd.xlane.f32.xlu0 %v1803
  %v1805 = vpop.xlane.xlu0 %1804
  %v1806 = vsel %vm1457, %v1445, 0.0
  %1807 = vadd.xlane.f32.xlu0 %v1806
  %v1808 = vpop.xlane.xlu0 %1807
  %v1809 = vsel %vm1457, %v1446, 0.0
  %1810 = vadd.xlane.f32.xlu0 %v1809
  %v1811 = vpop.xlane.xlu0 %1810
  %v1812 = vsel %vm1457, %v1447, 0.0
  %1813 = vadd.xlane.f32.xlu0 %v1812
  %v1814 = vpop.xlane.xlu0 %1813
  %v1815 = vsel %vm1457, %v1448, 0.0
  %1816 = vadd.xlane.f32.xlu0 %v1815
  %v1817 = vpop.xlane.xlu0 %1816
  %v1818 = vsel %vm1457, %v1449, 0.0
  %1819 = vadd.xlane.f32.xlu0 %v1818
  %v1820 = vpop.xlane.xlu0 %1819
  %v1821 = vsel %vm1457, %v1450, 0.0
  %1822 = vadd.xlane.f32.xlu0 %v1821
  %v1823 = vpop.xlane.xlu0 %1822
  %v1824 = vsel %vm1457, %v1451, 0.0
  %1825 = vadd.xlane.f32.xlu0 %v1824
  %v1826 = vpop.xlane.xlu0 %1825
  %v1827 = vsel %vm1457, %v1452, 0.0
  %1828 = vadd.xlane.f32.xlu0 %v1827
  %v1829 = vpop.xlane.xlu0 %1828
  %v1830 = vsel %vm1457, %v1453, 0.0
  %1831 = vadd.xlane.f32.xlu0 %v1830
  %v1832 = vpop.xlane.xlu0 %1831
  %v1833 = vsel %vm1457, %v1454, 0.0
  %1834 = vadd.xlane.f32.xlu0 %v1833
  %v1835 = vpop.xlane.xlu0 %1834
  %v1836 = vsel %vm1457, %v1455, 0.0
  %1837 = vadd.xlane.f32.xlu0 %v1836
  %v1838 = vpop.xlane.xlu0 %1837
  %v1839 = vsel %vm1457, %v1456, 0.0
  %1840 = vadd.xlane.f32.xlu0 %v1839
  %v1841 = vpop.xlane.xlu0 %1840
  %v1970 = vlaneseq
  %v1971 = vshrl.u32 %v1970, 7
  %v1972 = vsub.s32 %v571, %v1971
  %v1973 = vrot.slane %v1460, %v1972
  %v1974 = vadd.s32 %v571, 4294967288
  %v1975 = vlaneseq
  %v1976 = vshrl.u32 %v1975, 7
  %v1977 = vsub.s32 %v1974, %v1976
  %v1978 = vrot.slane %v1463, %v1977
  %vm1979 = vcmask 130112
  %v1980 = vsel %vm1979, %v1978, %v1973
  %v1981 = vadd.s32 %v571, 4294967280
  %v1982 = vlaneseq
  %v1983 = vshrl.u32 %v1982, 7
  %v1984 = vsub.s32 %v1981, %v1983
  %v1985 = vrot.slane %v1466, %v1984
  %vm1986 = vcmask 195712
  %v1987 = vsel %vm1986, %v1985, %v1980
  %v1988 = vadd.s32 %v571, 4294967272
  %v1989 = vlaneseq
  %v1990 = vshrl.u32 %v1989, 7
  %v1991 = vsub.s32 %v1988, %v1990
  %v1992 = vrot.slane %v1469, %v1991
  %vm1993 = vcmask 261312
  %v1994 = vsel %vm1993, %v1992, %v1987
  %v1995 = vlaneseq
  %v1996 = vshrl.u32 %v1995, 7
  %v1997 = vsub.s32 %v571, %v1996
  %v1998 = vrot.slane %v1472, %v1997
  %v1999 = vlaneseq
  %v2000 = vshrl.u32 %v1999, 7
  %v2001 = vsub.s32 %v1974, %v2000
  %v2002 = vrot.slane %v1475, %v2001
  %v2003 = vsel %vm1979, %v2002, %v1998
  %v2004 = vlaneseq
  %v2005 = vshrl.u32 %v2004, 7
  %v2006 = vsub.s32 %v1981, %v2005
  %v2007 = vrot.slane %v1478, %v2006
  %v2008 = vsel %vm1986, %v2007, %v2003
  %v2009 = vlaneseq
  %v2010 = vshrl.u32 %v2009, 7
  %v2011 = vsub.s32 %v1988, %v2010
  %v2012 = vrot.slane %v1481, %v2011
  %v2013 = vsel %vm1993, %v2012, %v2008
  %v2014 = vlaneseq
  %v2015 = vshrl.u32 %v2014, 7
  %v2016 = vsub.s32 %v571, %v2015
  %v2017 = vrot.slane %v1484, %v2016
  %v2018 = vlaneseq
  %v2019 = vshrl.u32 %v2018, 7
  %v2020 = vsub.s32 %v1974, %v2019
  %v2021 = vrot.slane %v1487, %v2020
  %v2022 = vsel %vm1979, %v2021, %v2017
  %v2023 = vlaneseq
  %v2024 = vshrl.u32 %v2023, 7
  %v2025 = vsub.s32 %v1981, %v2024
  %v2026 = vrot.slane %v1490, %v2025
  %v2027 = vsel %vm1986, %v2026, %v2022
  %v2028 = vlaneseq
  %v2029 = vshrl.u32 %v2028, 7
  %v2030 = vsub.s32 %v1988, %v2029
  %v2031 = vrot.slane %v1493, %v2030
  %v2032 = vsel %vm1993, %v2031, %v2027
  %v2033 = vlaneseq
  %v2034 = vshrl.u32 %v2033, 7
  %v2035 = vsub.s32 %v571, %v2034
  %v2036 = vrot.slane %v1496, %v2035
  %v2037 = vlaneseq
  %v2038 = vshrl.u32 %v2037, 7
  %v2039 = vsub.s32 %v1974, %v2038
  %v2040 = vrot.slane %v1499, %v2039
  %v2041 = vsel %vm1979, %v2040, %v2036
  %v2042 = vlaneseq
  %v2043 = vshrl.u32 %v2042, 7
  %v2044 = vsub.s32 %v1981, %v2043
  %v2045 = vrot.slane %v1502, %v2044
  %v2046 = vsel %vm1986, %v2045, %v2041
  %v2047 = vlaneseq
  %v2048 = vshrl.u32 %v2047, 7
  %v2049 = vsub.s32 %v1988, %v2048
  %v2050 = vrot.slane %v1505, %v2049
  %v2051 = vsel %vm1993, %v2050, %v2046
  %v2052 = vlaneseq
  %v2053 = vshrl.u32 %v2052, 7
  %v2054 = vsub.s32 %v571, %v2053
  %v2055 = vrot.slane %v1508, %v2054
  %v2056 = vlaneseq
  %v2057 = vshrl.u32 %v2056, 7
  %v2058 = vsub.s32 %v1974, %v2057
  %v2059 = vrot.slane %v1511, %v2058
  %v2060 = vsel %vm1979, %v2059, %v2055
  %v2061 = vlaneseq
  %v2062 = vshrl.u32 %v2061, 7
  %v2063 = vsub.s32 %v1981, %v2062
  %v2064 = vrot.slane %v1514, %v2063
  %v2065 = vsel %vm1986, %v2064, %v2060
  %v2066 = vlaneseq
  %v2067 = vshrl.u32 %v2066, 7
  %v2068 = vsub.s32 %v1988, %v2067
  %v2069 = vrot.slane %v1517, %v2068
  %v2070 = vsel %vm1993, %v2069, %v2065
  %v2071 = vlaneseq
  %v2072 = vshrl.u32 %v2071, 7
  %v2073 = vsub.s32 %v571, %v2072
  %v2074 = vrot.slane %v1520, %v2073
  %v2075 = vlaneseq
  %v2076 = vshrl.u32 %v2075, 7
  %v2077 = vsub.s32 %v1974, %v2076
  %v2078 = vrot.slane %v1523, %v2077
  %v2079 = vsel %vm1979, %v2078, %v2074
  %v2080 = vlaneseq
  %v2081 = vshrl.u32 %v2080, 7
  %v2082 = vsub.s32 %v1981, %v2081
  %v2083 = vrot.slane %v1526, %v2082
  %v2084 = vsel %vm1986, %v2083, %v2079
  %v2085 = vlaneseq
  %v2086 = vshrl.u32 %v2085, 7
  %v2087 = vsub.s32 %v1988, %v2086
  %v2088 = vrot.slane %v1529, %v2087
  %v2089 = vsel %vm1993, %v2088, %v2084
  %v2090 = vlaneseq
  %v2091 = vshrl.u32 %v2090, 7
  %v2092 = vsub.s32 %v571, %v2091
  %v2093 = vrot.slane %v1532, %v2092
  %v2094 = vlaneseq
  %v2095 = vshrl.u32 %v2094, 7
  %v2096 = vsub.s32 %v1974, %v2095
  %v2097 = vrot.slane %v1535, %v2096
  %v2098 = vsel %vm1979, %v2097, %v2093
  %v2099 = vlaneseq
  %v2100 = vshrl.u32 %v2099, 7
  %v2101 = vsub.s32 %v1981, %v2100
  %v2102 = vrot.slane %v1538, %v2101
  %v2103 = vsel %vm1986, %v2102, %v2098
  %v2104 = vlaneseq
  %v2105 = vshrl.u32 %v2104, 7
  %v2106 = vsub.s32 %v1988, %v2105
  %v2107 = vrot.slane %v1541, %v2106
  %v2108 = vsel %vm1993, %v2107, %v2103
  %v2109 = vlaneseq
  %v2110 = vshrl.u32 %v2109, 7
  %v2111 = vsub.s32 %v571, %v2110
  %v2112 = vrot.slane %v1544, %v2111
  %v2113 = vlaneseq
  %v2114 = vshrl.u32 %v2113, 7
  %v2115 = vsub.s32 %v1974, %v2114
  %v2116 = vrot.slane %v1547, %v2115
  %v2117 = vsel %vm1979, %v2116, %v2112
  %v2118 = vlaneseq
  %v2119 = vshrl.u32 %v2118, 7
  %v2120 = vsub.s32 %v1981, %v2119
  %v2121 = vrot.slane %v1550, %v2120
  %v2122 = vsel %vm1986, %v2121, %v2117
  %v2123 = vlaneseq
  %v2124 = vshrl.u32 %v2123, 7
  %v2125 = vsub.s32 %v1988, %v2124
  %v2126 = vrot.slane %v1553, %v2125
  %v2127 = vsel %vm1993, %v2126, %v2122
  %v2128 = vlaneseq
  %v2129 = vshrl.u32 %v2128, 7
  %v2130 = vsub.s32 %v571, %v2129
  %v2131 = vrot.slane %v1556, %v2130
  %v2132 = vlaneseq
  %v2133 = vshrl.u32 %v2132, 7
  %v2134 = vsub.s32 %v1974, %v2133
  %v2135 = vrot.slane %v1559, %v2134
  %v2136 = vsel %vm1979, %v2135, %v2131
  %v2137 = vlaneseq
  %v2138 = vshrl.u32 %v2137, 7
  %v2139 = vsub.s32 %v1981, %v2138
  %v2140 = vrot.slane %v1562, %v2139
  %v2141 = vsel %vm1986, %v2140, %v2136
  %v2142 = vlaneseq
  %v2143 = vshrl.u32 %v2142, 7
  %v2144 = vsub.s32 %v1988, %v2143
  %v2145 = vrot.slane %v1565, %v2144
  %v2146 = vsel %vm1993, %v2145, %v2141
  %v2147 = vlaneseq
  %v2148 = vshrl.u32 %v2147, 7
  %v2149 = vsub.s32 %v571, %v2148
  %v2150 = vrot.slane %v1568, %v2149
  %v2151 = vlaneseq
  %v2152 = vshrl.u32 %v2151, 7
  %v2153 = vsub.s32 %v1974, %v2152
  %v2154 = vrot.slane %v1571, %v2153
  %v2155 = vsel %vm1979, %v2154, %v2150
  %v2156 = vlaneseq
  %v2157 = vshrl.u32 %v2156, 7
  %v2158 = vsub.s32 %v1981, %v2157
  %v2159 = vrot.slane %v1574, %v2158
  %v2160 = vsel %vm1986, %v2159, %v2155
  %v2161 = vlaneseq
  %v2162 = vshrl.u32 %v2161, 7
  %v2163 = vsub.s32 %v1988, %v2162
  %v2164 = vrot.slane %v1577, %v2163
  %v2165 = vsel %vm1993, %v2164, %v2160
  %v2166 = vlaneseq
  %v2167 = vshrl.u32 %v2166, 7
  %v2168 = vsub.s32 %v571, %v2167
  %v2169 = vrot.slane %v1580, %v2168
  %v2170 = vlaneseq
  %v2171 = vshrl.u32 %v2170, 7
  %v2172 = vsub.s32 %v1974, %v2171
  %v2173 = vrot.slane %v1583, %v2172
  %v2174 = vsel %vm1979, %v2173, %v2169
  %v2175 = vlaneseq
  %v2176 = vshrl.u32 %v2175, 7
  %v2177 = vsub.s32 %v1981, %v2176
  %v2178 = vrot.slane %v1586, %v2177
  %v2179 = vsel %vm1986, %v2178, %v2174
  %v2180 = vlaneseq
  %v2181 = vshrl.u32 %v2180, 7
  %v2182 = vsub.s32 %v1988, %v2181
  %v2183 = vrot.slane %v1589, %v2182
  %v2184 = vsel %vm1993, %v2183, %v2179
  %v2185 = vlaneseq
  %v2186 = vshrl.u32 %v2185, 7
  %v2187 = vsub.s32 %v571, %v2186
  %v2188 = vrot.slane %v1592, %v2187
  %v2189 = vlaneseq
  %v2190 = vshrl.u32 %v2189, 7
  %v2191 = vsub.s32 %v1974, %v2190
  %v2192 = vrot.slane %v1595, %v2191
  %v2193 = vsel %vm1979, %v2192, %v2188
  %v2194 = vlaneseq
  %v2195 = vshrl.u32 %v2194, 7
  %v2196 = vsub.s32 %v1981, %v2195
  %v2197 = vrot.slane %v1598, %v2196
  %v2198 = vsel %vm1986, %v2197, %v2193
  %v2199 = vlaneseq
  %v2200 = vshrl.u32 %v2199, 7
  %v2201 = vsub.s32 %v1988, %v2200
  %v2202 = vrot.slane %v1601, %v2201
  %v2203 = vsel %vm1993, %v2202, %v2198
  %v2204 = vlaneseq
  %v2205 = vshrl.u32 %v2204, 7
  %v2206 = vsub.s32 %v571, %v2205
  %v2207 = vrot.slane %v1604, %v2206
  %v2208 = vlaneseq
  %v2209 = vshrl.u32 %v2208, 7
  %v2210 = vsub.s32 %v1974, %v2209
  %v2211 = vrot.slane %v1607, %v2210
  %v2212 = vsel %vm1979, %v2211, %v2207
  %v2213 = vlaneseq
  %v2214 = vshrl.u32 %v2213, 7
  %v2215 = vsub.s32 %v1981, %v2214
  %v2216 = vrot.slane %v1610, %v2215
  %v2217 = vsel %vm1986, %v2216, %v2212
  %v2218 = vlaneseq
  %v2219 = vshrl.u32 %v2218, 7
  %v2220 = vsub.s32 %v1988, %v2219
  %v2221 = vrot.slane %v1613, %v2220
  %v2222 = vsel %vm1993, %v2221, %v2217
  %v2223 = vlaneseq
  %v2224 = vshrl.u32 %v2223, 7
  %v2225 = vsub.s32 %v571, %v2224
  %v2226 = vrot.slane %v1616, %v2225
  %v2227 = vlaneseq
  %v2228 = vshrl.u32 %v2227, 7
  %v2229 = vsub.s32 %v1974, %v2228
  %v2230 = vrot.slane %v1619, %v2229
  %v2231 = vsel %vm1979, %v2230, %v2226
  %v2232 = vlaneseq
  %v2233 = vshrl.u32 %v2232, 7
  %v2234 = vsub.s32 %v1981, %v2233
  %v2235 = vrot.slane %v1622, %v2234
  %v2236 = vsel %vm1986, %v2235, %v2231
  %v2237 = vlaneseq
  %v2238 = vshrl.u32 %v2237, 7
  %v2239 = vsub.s32 %v1988, %v2238
  %v2240 = vrot.slane %v1625, %v2239
  %v2241 = vsel %vm1993, %v2240, %v2236
  %v2242 = vlaneseq
  %v2243 = vshrl.u32 %v2242, 7
  %v2244 = vsub.s32 %v571, %v2243
  %v2245 = vrot.slane %v1628, %v2244
  %v2246 = vlaneseq
  %v2247 = vshrl.u32 %v2246, 7
  %v2248 = vsub.s32 %v1974, %v2247
  %v2249 = vrot.slane %v1631, %v2248
  %v2250 = vsel %vm1979, %v2249, %v2245
  %v2251 = vlaneseq
  %v2252 = vshrl.u32 %v2251, 7
  %v2253 = vsub.s32 %v1981, %v2252
  %v2254 = vrot.slane %v1634, %v2253
  %v2255 = vsel %vm1986, %v2254, %v2250
  %v2256 = vlaneseq
  %v2257 = vshrl.u32 %v2256, 7
  %v2258 = vsub.s32 %v1988, %v2257
  %v2259 = vrot.slane %v1637, %v2258
  %v2260 = vsel %vm1993, %v2259, %v2255
  %v2261 = vlaneseq
  %v2262 = vshrl.u32 %v2261, 7
  %v2263 = vsub.s32 %v571, %v2262
  %v2264 = vrot.slane %v1640, %v2263
  %v2265 = vlaneseq
  %v2266 = vshrl.u32 %v2265, 7
  %v2267 = vsub.s32 %v1974, %v2266
  %v2268 = vrot.slane %v1643, %v2267
  %v2269 = vsel %vm1979, %v2268, %v2264
  %v2270 = vlaneseq
  %v2271 = vshrl.u32 %v2270, 7
  %v2272 = vsub.s32 %v1981, %v2271
  %v2273 = vrot.slane %v1646, %v2272
  %v2274 = vsel %vm1986, %v2273, %v2269
  %v2275 = vlaneseq
  %v2276 = vshrl.u32 %v2275, 7
  %v2277 = vsub.s32 %v1988, %v2276
  %v2278 = vrot.slane %v1649, %v2277
  %v2279 = vsel %vm1993, %v2278, %v2274
  %v2280 = vlaneseq
  %v2281 = vshrl.u32 %v2280, 7
  %v2282 = vsub.s32 %v571, %v2281
  %v2283 = vrot.slane %v1652, %v2282
  %v2284 = vlaneseq
  %v2285 = vshrl.u32 %v2284, 7
  %v2286 = vsub.s32 %v1974, %v2285
  %v2287 = vrot.slane %v1655, %v2286
  %v2288 = vsel %vm1979, %v2287, %v2283
  %v2289 = vlaneseq
  %v2290 = vshrl.u32 %v2289, 7
  %v2291 = vsub.s32 %v1981, %v2290
  %v2292 = vrot.slane %v1658, %v2291
  %v2293 = vsel %vm1986, %v2292, %v2288
  %v2294 = vlaneseq
  %v2295 = vshrl.u32 %v2294, 7
  %v2296 = vsub.s32 %v1988, %v2295
  %v2297 = vrot.slane %v1661, %v2296
  %v2298 = vsel %vm1993, %v2297, %v2293
  %v2299 = vlaneseq
  %v2300 = vshrl.u32 %v2299, 7
  %v2301 = vsub.s32 %v571, %v2300
  %v2302 = vrot.slane %v1664, %v2301
  %v2303 = vlaneseq
  %v2304 = vshrl.u32 %v2303, 7
  %v2305 = vsub.s32 %v1974, %v2304
  %v2306 = vrot.slane %v1667, %v2305
  %v2307 = vsel %vm1979, %v2306, %v2302
  %v2308 = vlaneseq
  %v2309 = vshrl.u32 %v2308, 7
  %v2310 = vsub.s32 %v1981, %v2309
  %v2311 = vrot.slane %v1670, %v2310
  %v2312 = vsel %vm1986, %v2311, %v2307
  %v2313 = vlaneseq
  %v2314 = vshrl.u32 %v2313, 7
  %v2315 = vsub.s32 %v1988, %v2314
  %v2316 = vrot.slane %v1673, %v2315
  %v2317 = vsel %vm1993, %v2316, %v2312
  %v2318 = vlaneseq
  %v2319 = vshrl.u32 %v2318, 7
  %v2320 = vsub.s32 %v571, %v2319
  %v2321 = vrot.slane %v1676, %v2320
  %v2322 = vlaneseq
  %v2323 = vshrl.u32 %v2322, 7
  %v2324 = vsub.s32 %v1974, %v2323
  %v2325 = vrot.slane %v1679, %v2324
  %v2326 = vsel %vm1979, %v2325, %v2321
  %v2327 = vlaneseq
  %v2328 = vshrl.u32 %v2327, 7
  %v2329 = vsub.s32 %v1981, %v2328
  %v2330 = vrot.slane %v1682, %v2329
  %v2331 = vsel %vm1986, %v2330, %v2326
  %v2332 = vlaneseq
  %v2333 = vshrl.u32 %v2332, 7
  %v2334 = vsub.s32 %v1988, %v2333
  %v2335 = vrot.slane %v1685, %v2334
  %v2336 = vsel %vm1993, %v2335, %v2331
  %v2337 = vlaneseq
  %v2338 = vshrl.u32 %v2337, 7
  %v2339 = vsub.s32 %v571, %v2338
  %v2340 = vrot.slane %v1688, %v2339
  %v2341 = vlaneseq
  %v2342 = vshrl.u32 %v2341, 7
  %v2343 = vsub.s32 %v1974, %v2342
  %v2344 = vrot.slane %v1691, %v2343
  %v2345 = vsel %vm1979, %v2344, %v2340
  %v2346 = vlaneseq
  %v2347 = vshrl.u32 %v2346, 7
  %v2348 = vsub.s32 %v1981, %v2347
  %v2349 = vrot.slane %v1694, %v2348
  %v2350 = vsel %vm1986, %v2349, %v2345
  %v2351 = vlaneseq
  %v2352 = vshrl.u32 %v2351, 7
  %v2353 = vsub.s32 %v1988, %v2352
  %v2354 = vrot.slane %v1697, %v2353
  %v2355 = vsel %vm1993, %v2354, %v2350
  %v2356 = vlaneseq
  %v2357 = vshrl.u32 %v2356, 7
  %v2358 = vsub.s32 %v571, %v2357
  %v2359 = vrot.slane %v1700, %v2358
  %v2360 = vlaneseq
  %v2361 = vshrl.u32 %v2360, 7
  %v2362 = vsub.s32 %v1974, %v2361
  %v2363 = vrot.slane %v1703, %v2362
  %v2364 = vsel %vm1979, %v2363, %v2359
  %v2365 = vlaneseq
  %v2366 = vshrl.u32 %v2365, 7
  %v2367 = vsub.s32 %v1981, %v2366
  %v2368 = vrot.slane %v1706, %v2367
  %v2369 = vsel %vm1986, %v2368, %v2364
  %v2370 = vlaneseq
  %v2371 = vshrl.u32 %v2370, 7
  %v2372 = vsub.s32 %v1988, %v2371
  %v2373 = vrot.slane %v1709, %v2372
  %v2374 = vsel %vm1993, %v2373, %v2369
  %v2375 = vlaneseq
  %v2376 = vshrl.u32 %v2375, 7
  %v2377 = vsub.s32 %v571, %v2376
  %v2378 = vrot.slane %v1712, %v2377
  %v2379 = vlaneseq
  %v2380 = vshrl.u32 %v2379, 7
  %v2381 = vsub.s32 %v1974, %v2380
  %v2382 = vrot.slane %v1715, %v2381
  %v2383 = vsel %vm1979, %v2382, %v2378
  %v2384 = vlaneseq
  %v2385 = vshrl.u32 %v2384, 7
  %v2386 = vsub.s32 %v1981, %v2385
  %v2387 = vrot.slane %v1718, %v2386
  %v2388 = vsel %vm1986, %v2387, %v2383
  %v2389 = vlaneseq
  %v2390 = vshrl.u32 %v2389, 7
  %v2391 = vsub.s32 %v1988, %v2390
  %v2392 = vrot.slane %v1721, %v2391
  %v2393 = vsel %vm1993, %v2392, %v2388
  %v2394 = vlaneseq
  %v2395 = vshrl.u32 %v2394, 7
  %v2396 = vsub.s32 %v571, %v2395
  %v2397 = vrot.slane %v1724, %v2396
  %v2398 = vlaneseq
  %v2399 = vshrl.u32 %v2398, 7
  %v2400 = vsub.s32 %v1974, %v2399
  %v2401 = vrot.slane %v1727, %v2400
  %v2402 = vsel %vm1979, %v2401, %v2397
  %v2403 = vlaneseq
  %v2404 = vshrl.u32 %v2403, 7
  %v2405 = vsub.s32 %v1981, %v2404
  %v2406 = vrot.slane %v1730, %v2405
  %v2407 = vsel %vm1986, %v2406, %v2402
  %v2408 = vlaneseq
  %v2409 = vshrl.u32 %v2408, 7
  %v2410 = vsub.s32 %v1988, %v2409
  %v2411 = vrot.slane %v1733, %v2410
  %v2412 = vsel %vm1993, %v2411, %v2407
  %v2413 = vlaneseq
  %v2414 = vshrl.u32 %v2413, 7
  %v2415 = vsub.s32 %v571, %v2414
  %v2416 = vrot.slane %v1736, %v2415
  %v2417 = vlaneseq
  %v2418 = vshrl.u32 %v2417, 7
  %v2419 = vsub.s32 %v1974, %v2418
  %v2420 = vrot.slane %v1739, %v2419
  %v2421 = vsel %vm1979, %v2420, %v2416
  %v2422 = vlaneseq
  %v2423 = vshrl.u32 %v2422, 7
  %v2424 = vsub.s32 %v1981, %v2423
  %v2425 = vrot.slane %v1742, %v2424
  %v2426 = vsel %vm1986, %v2425, %v2421
  %v2427 = vlaneseq
  %v2428 = vshrl.u32 %v2427, 7
  %v2429 = vsub.s32 %v1988, %v2428
  %v2430 = vrot.slane %v1745, %v2429
  %v2431 = vsel %vm1993, %v2430, %v2426
  %v2432 = vlaneseq
  %v2433 = vshrl.u32 %v2432, 7
  %v2434 = vsub.s32 %v571, %v2433
  %v2435 = vrot.slane %v1748, %v2434
  %v2436 = vlaneseq
  %v2437 = vshrl.u32 %v2436, 7
  %v2438 = vsub.s32 %v1974, %v2437
  %v2439 = vrot.slane %v1751, %v2438
  %v2440 = vsel %vm1979, %v2439, %v2435
  %v2441 = vlaneseq
  %v2442 = vshrl.u32 %v2441, 7
  %v2443 = vsub.s32 %v1981, %v2442
  %v2444 = vrot.slane %v1754, %v2443
  %v2445 = vsel %vm1986, %v2444, %v2440
  %v2446 = vlaneseq
  %v2447 = vshrl.u32 %v2446, 7
  %v2448 = vsub.s32 %v1988, %v2447
  %v2449 = vrot.slane %v1757, %v2448
  %v2450 = vsel %vm1993, %v2449, %v2445
  %v2451 = vlaneseq
  %v2452 = vshrl.u32 %v2451, 7
  %v2453 = vsub.s32 %v571, %v2452
  %v2454 = vrot.slane %v1760, %v2453
  %v2455 = vlaneseq
  %v2456 = vshrl.u32 %v2455, 7
  %v2457 = vsub.s32 %v1974, %v2456
  %v2458 = vrot.slane %v1763, %v2457
  %v2459 = vsel %vm1979, %v2458, %v2454
  %v2460 = vlaneseq
  %v2461 = vshrl.u32 %v2460, 7
  %v2462 = vsub.s32 %v1981, %v2461
  %v2463 = vrot.slane %v1766, %v2462
  %v2464 = vsel %vm1986, %v2463, %v2459
  %v2465 = vlaneseq
  %v2466 = vshrl.u32 %v2465, 7
  %v2467 = vsub.s32 %v1988, %v2466
  %v2468 = vrot.slane %v1769, %v2467
  %v2469 = vsel %vm1993, %v2468, %v2464
  %v2470 = vlaneseq
  %v2471 = vshrl.u32 %v2470, 7
  %v2472 = vsub.s32 %v571, %v2471
  %v2473 = vrot.slane %v1772, %v2472
  %v2474 = vlaneseq
  %v2475 = vshrl.u32 %v2474, 7
  %v2476 = vsub.s32 %v1974, %v2475
  %v2477 = vrot.slane %v1775, %v2476
  %v2478 = vsel %vm1979, %v2477, %v2473
  %v2479 = vlaneseq
  %v2480 = vshrl.u32 %v2479, 7
  %v2481 = vsub.s32 %v1981, %v2480
  %v2482 = vrot.slane %v1778, %v2481
  %v2483 = vsel %vm1986, %v2482, %v2478
  %v2484 = vlaneseq
  %v2485 = vshrl.u32 %v2484, 7
  %v2486 = vsub.s32 %v1988, %v2485
  %v2487 = vrot.slane %v1781, %v2486
  %v2488 = vsel %vm1993, %v2487, %v2483
  %v2489 = vlaneseq
  %v2490 = vshrl.u32 %v2489, 7
  %v2491 = vsub.s32 %v571, %v2490
  %v2492 = vrot.slane %v1784, %v2491
  %v2493 = vlaneseq
  %v2494 = vshrl.u32 %v2493, 7
  %v2495 = vsub.s32 %v1974, %v2494
  %v2496 = vrot.slane %v1787, %v2495
  %v2497 = vsel %vm1979, %v2496, %v2492
  %v2498 = vlaneseq
  %v2499 = vshrl.u32 %v2498, 7
  %v2500 = vsub.s32 %v1981, %v2499
  %v2501 = vrot.slane %v1790, %v2500
  %v2502 = vsel %vm1986, %v2501, %v2497
  %v2503 = vlaneseq
  %v2504 = vshrl.u32 %v2503, 7
  %v2505 = vsub.s32 %v1988, %v2504
  %v2506 = vrot.slane %v1793, %v2505
  %v2507 = vsel %vm1993, %v2506, %v2502
  %v2508 = vlaneseq
  %v2509 = vshrl.u32 %v2508, 7
  %v2510 = vsub.s32 %v571, %v2509
  %v2511 = vrot.slane %v1796, %v2510
  %v2512 = vlaneseq
  %v2513 = vshrl.u32 %v2512, 7
  %v2514 = vsub.s32 %v1974, %v2513
  %v2515 = vrot.slane %v1799, %v2514
  %v2516 = vsel %vm1979, %v2515, %v2511
  %v2517 = vlaneseq
  %v2518 = vshrl.u32 %v2517, 7
  %v2519 = vsub.s32 %v1981, %v2518
  %v2520 = vrot.slane %v1802, %v2519
  %v2521 = vsel %vm1986, %v2520, %v2516
  %v2522 = vlaneseq
  %v2523 = vshrl.u32 %v2522, 7
  %v2524 = vsub.s32 %v1988, %v2523
  %v2525 = vrot.slane %v1805, %v2524
  %v2526 = vsel %vm1993, %v2525, %v2521
  %v2527 = vlaneseq
  %v2528 = vshrl.u32 %v2527, 7
  %v2529 = vsub.s32 %v571, %v2528
  %v2530 = vrot.slane %v1808, %v2529
  %v2531 = vlaneseq
  %v2532 = vshrl.u32 %v2531, 7
  %v2533 = vsub.s32 %v1974, %v2532
  %v2534 = vrot.slane %v1811, %v2533
  %v2535 = vsel %vm1979, %v2534, %v2530
  %v2536 = vlaneseq
  %v2537 = vshrl.u32 %v2536, 7
  %v2538 = vsub.s32 %v1981, %v2537
  %v2539 = vrot.slane %v1814, %v2538
  %v2540 = vsel %vm1986, %v2539, %v2535
  %v2541 = vlaneseq
  %v2542 = vshrl.u32 %v2541, 7
  %v2543 = vsub.s32 %v1988, %v2542
  %v2544 = vrot.slane %v1817, %v2543
  %v2545 = vsel %vm1993, %v2544, %v2540
  %v2546 = vlaneseq
  %v2547 = vshrl.u32 %v2546, 7
  %v2548 = vsub.s32 %v571, %v2547
  %v2549 = vrot.slane %v1820, %v2548
  %v2550 = vlaneseq
  %v2551 = vshrl.u32 %v2550, 7
  %v2552 = vsub.s32 %v1974, %v2551
  %v2553 = vrot.slane %v1823, %v2552
  %v2554 = vsel %vm1979, %v2553, %v2549
  %v2555 = vlaneseq
  %v2556 = vshrl.u32 %v2555, 7
  %v2557 = vsub.s32 %v1981, %v2556
  %v2558 = vrot.slane %v1826, %v2557
  %v2559 = vsel %vm1986, %v2558, %v2554
  %v2560 = vlaneseq
  %v2561 = vshrl.u32 %v2560, 7
  %v2562 = vsub.s32 %v1988, %v2561
  %v2563 = vrot.slane %v1829, %v2562
  %v2564 = vsel %vm1993, %v2563, %v2559
  %v2565 = vlaneseq
  %v2566 = vshrl.u32 %v2565, 7
  %v2567 = vsub.s32 %v571, %v2566
  %v2568 = vrot.slane %v1832, %v2567
  %v2569 = vlaneseq
  %v2570 = vshrl.u32 %v2569, 7
  %v2571 = vsub.s32 %v1974, %v2570
  %v2572 = vrot.slane %v1835, %v2571
  %v2573 = vsel %vm1979, %v2572, %v2568
  %v2574 = vlaneseq
  %v2575 = vshrl.u32 %v2574, 7
  %v2576 = vsub.s32 %v1981, %v2575
  %v2577 = vrot.slane %v1838, %v2576
  %v2578 = vsel %vm1986, %v2577, %v2573
  %v2579 = vlaneseq
  %v2580 = vshrl.u32 %v2579, 7
  %v2581 = vsub.s32 %v1988, %v2580
  %v2582 = vrot.slane %v1841, %v2581
  %v2583 = vsel %vm1993, %v2582, %v2578
  %vm2584 = vcmask 1041409
  %v2585 = vsel %vm2584, %v2013, %v1994
  %vm2586 = vcmask 1042434
  %v2587 = vsel %vm2586, %v2032, %v2585
  %vm2588 = vcmask 1043459
  %v2589 = vsel %vm2588, %v2051, %v2587
  %vm2590 = vcmask 1044484
  %v2591 = vsel %vm2590, %v2070, %v2589
  %vm2592 = vcmask 1045509
  %v2593 = vsel %vm2592, %v2089, %v2591
  %vm2594 = vcmask 1046534
  %v2595 = vsel %vm2594, %v2108, %v2593
  %vm2596 = vcmask 1047559
  %v2597 = vsel %vm2596, %v2127, %v2595
  %v2598 = vsel %vm2584, %v2165, %v2146
  %v2599 = vsel %vm2586, %v2184, %v2598
  %v2600 = vsel %vm2588, %v2203, %v2599
  %v2601 = vsel %vm2590, %v2222, %v2600
  %v2602 = vsel %vm2592, %v2241, %v2601
  %v2603 = vsel %vm2594, %v2260, %v2602
  %v2604 = vsel %vm2596, %v2279, %v2603
  %v2605 = vsel %vm2584, %v2317, %v2298
  %v2606 = vsel %vm2586, %v2336, %v2605
  %v2607 = vsel %vm2588, %v2355, %v2606
  %v2608 = vsel %vm2590, %v2374, %v2607
  %v2609 = vsel %vm2592, %v2393, %v2608
  %v2610 = vsel %vm2594, %v2412, %v2609
  %v2611 = vsel %vm2596, %v2431, %v2610
  %v2612 = vsel %vm2584, %v2469, %v2450
  %v2613 = vsel %vm2586, %v2488, %v2612
  %v2614 = vsel %vm2588, %v2507, %v2613
  %v2615 = vsel %vm2590, %v2526, %v2614
  %v2616 = vsel %vm2592, %v2545, %v2615
  %v2617 = vsel %vm2594, %v2564, %v2616
  %v2618 = vsel %vm2596, %v2583, %v2617
  %v2623 = vsel %vm1457, %v769, 0
  %v2625 = vsel %vm1457, %v770, 0
  %v2627 = vsel %vm1457, %v771, 0
  %v2629 = vsel %vm1457, %v772, 0
  %v2632 = vsel %vm1457, %v853, 0
  %v2635 = vsel %vm1457, %v858, 0
  %v2638 = vsel %vm1457, %v863, 0
  %v2641 = vsel %vm1457, %v868, 0
  %2643 = vmatprep.subr.mxu0 0.0
  %2644 = vmatpush1.xpose.msra.mxu0 %v2632
  %2645 = vmatprep.subr.mxu0 0.0
  %2646 = vmatpush1.xpose.msra.mxu0 %v2635
  %2647 = vmatprep.subr.mxu0 0.0
  %2648 = vmatpush1.xpose.msra.mxu0 %v2638
  %2649 = vmatprep.subr.mxu0 0.0
  %2650 = vmatpush1.xpose.msra.mxu0 %v2641
  %2651 = vmatprep.subr.mxu0 0.0
  %2652 = vmatpush1.xpose.msra.mxu0 0.0
  %2653 = vmatprep.subr.mxu0 0.0
  %2654 = vmatpush1.xpose.msra.mxu0 0.0
  %2655 = vmatprep.subr.mxu0 0.0
  %2656 = vmatpush1.xpose.msra.mxu0 0.0
  %2657 = vmatprep.subr.mxu0 0.0
  %2658 = vmatpush1.xpose.msra.mxu0 0.0
  %2659 = vmatprep.subr.mxu0 0.0
  %2660 = vmatpush1.xpose.msra.mxu0 0.0
  %2661 = vmatprep.subr.mxu0 0.0
  %2662 = vmatpush1.xpose.msra.mxu0 0.0
  %2663 = vmatprep.subr.mxu0 0.0
  %2664 = vmatpush1.xpose.msra.mxu0 0.0
  %2665 = vmatprep.subr.mxu0 0.0
  %2666 = vmatpush1.xpose.msra.mxu0 0.0
  %2667 = vmatprep.subr.mxu0 0.0
  %2668 = vmatpush1.xpose.msra.mxu0 0.0
  %2669 = vmatprep.subr.mxu0 0.0
  %2670 = vmatpush1.xpose.msra.mxu0 0.0
  %2671 = vmatprep.subr.mxu0 0.0
  %2672 = vmatpush1.xpose.msra.mxu0 0.0
  %2673 = vmatprep.subr.mxu0 0.0
  %2674 = vmatpush1.xpose.msra.mxu0 0.0
  %2675 = vmatprep.subr.mxu0 0.0
  %2676 = vmatpush1.xpose.msra.mxu0 0.0
  %2677 = vmatprep.subr.mxu0 0.0
  %2678 = vmatpush1.xpose.msra.mxu0 0.0
  %2679 = vmatprep.subr.mxu0 0.0
  %2680 = vmatpush1.xpose.msra.mxu0 0.0
  %2681 = vmatprep.subr.mxu0 0.0
  %2682 = vmatpush1.xpose.msra.mxu0 0.0
  %2683 = vmatprep.subr.mxu0 0.0
  %2684 = vmatpush1.xpose.msra.mxu0 0.0
  %2685 = vmatprep.subr.mxu0 0.0
  %2686 = vmatpush1.xpose.msra.mxu0 0.0
  %2687 = vmatprep.subr.mxu0 0.0
  %2688 = vmatpush1.xpose.msra.mxu0 0.0
  %2689 = vmatprep.subr.mxu0 0.0
  %2690 = vmatpush1.xpose.msra.mxu0 0.0
  %2691 = vmatprep.subr.mxu0 0.0
  %2692 = vmatpush1.xpose.msra.mxu0 0.0
  %2693 = vmatprep.subr.mxu0 0.0
  %2694 = vmatpush1.xpose.msra.mxu0 0.0
  %2695 = vmatprep.subr.mxu0 0.0
  %2696 = vmatpush1.xpose.msra.mxu0 0.0
  %2697 = vmatprep.subr.mxu0 0.0
  %2698 = vmatpush1.xpose.msra.mxu0 0.0
  %2699 = vmatprep.subr.mxu0 0.0
  %2700 = vmatpush1.xpose.msra.mxu0 0.0
  %2701 = vmatprep.subr.mxu0 0.0
  %2702 = vmatpush1.xpose.msra.mxu0 0.0
  %2703 = vmatprep.subr.mxu0 0.0
  %2704 = vmatpush1.xpose.msra.mxu0 0.0
  %2705 = vmatprep.subr.mxu0 0.0
  %2706 = vmatpush1.xpose.msra.mxu0 0.0
  %2707 = vmatprep.mubr.f32.mxu0 0.0
  %2708 = vmatmul.mubr.f32.gmra.mrb[0].mxu0 %v2623
  %v2709 = vpop.f32.mrb[0].mxu0
  %v2710 = vadd.f32 %v2597, %v2709
  %v2711 = vpop.f32.mrb[0].mxu0
  %2712 = vmatprep.mubr.f32.mxu0 0.0
  %2713 = vmatmul.mubr.f32.gmra.mrb[0].mxu0 %v2625
  %v2714 = vpop.f32.mrb[0].mxu0
  %v2715 = vadd.f32 %v2604, %v2714
  %v2716 = vpop.f32.mrb[0].mxu0
  %2717 = vmatprep.mubr.f32.mxu0 0.0
  %2718 = vmatmul.mubr.f32.gmra.mrb[0].mxu0 %v2627
  %v2719 = vpop.f32.mrb[0].mxu0
  %v2720 = vadd.f32 %v2611, %v2719
  %v2721 = vpop.f32.mrb[0].mxu0
  %2722 = vmatprep.mubr.f32.mxu0 0.0
  %2723 = vmatmul.mubr.f32.gmra.mrb[0].mxu0 %v2629
  %v2724 = vpop.f32.mrb[0].mxu0
  %v2725 = vadd.f32 %v2618, %v2724
  %v2726 = vpop.f32.mrb[0].mxu0
  %2727 = vdwg.mxu0
  %v2728 = vadd.f32 %v2710, %v581
  %v2729 = vadd.f32 %v2715, %v582
  %v2730 = vadd.f32 %v2720, %v583
  %v2731 = vadd.f32 %v2725, %v584
  %v2732 = vsel %vm450, %v2728, -inf
  %2733 = vmax.xlane.f32.xlu0 %v2732
  %v2734 = vpop.xlane.xlu0 %2733
  %v2735 = vsel %vm450, %v2729, -inf
  %2736 = vmax.xlane.f32.xlu0 %v2735
  %v2737 = vpop.xlane.xlu0 %2736
  %v2738 = vsel %vm450, %v2730, -inf
  %2739 = vmax.xlane.f32.xlu0 %v2738
  %v2740 = vpop.xlane.xlu0 %2739
  %v2741 = vsel %vm450, %v2731, -inf
  %2742 = vmax.xlane.f32.xlu0 %v2741
  %v2743 = vpop.xlane.xlu0 %2742
  %v2744 = vsub.f32 %v2728, %v2734
  %v2745 = vsub.f32 %v2729, %v2737
  %v2746 = vsub.f32 %v2730, %v2740
  %v2747 = vsub.f32 %v2731, %v2743
  %v2748 = vmul.f32 %v2744, 1.442695
  %v2749 = vpow.pop %v2748
  %v2750 = vmul.f32 %v2745, 1.442695
  %v2751 = vpow.pop %v2750
  %v2752 = vmul.f32 %v2746, 1.442695
  %v2753 = vpow.pop %v2752
  %v2754 = vmul.f32 %v2747, 1.442695
  %v2755 = vpow.pop %v2754
  %v2756 = vsel %vm450, %v2749, 0.0
  %2757 = vadd.xlane.f32.xlu0 %v2756
  %v2758 = vpop.xlane.xlu0 %2757
  %v2759 = vsel %vm450, %v2751, 0.0
  %2760 = vadd.xlane.f32.xlu0 %v2759
  %v2761 = vpop.xlane.xlu0 %2760
  %v2762 = vsel %vm450, %v2753, 0.0
  %2763 = vadd.xlane.f32.xlu0 %v2762
  %v2764 = vpop.xlane.xlu0 %2763
  %v2765 = vsel %vm450, %v2755, 0.0
  %2766 = vadd.xlane.f32.xlu0 %v2765
  %v2767 = vpop.xlane.xlu0 %2766
  %v2768 = vrcp.pop %v2758
  %v2769 = vrcp.pop %v2761
  %v2770 = vrcp.pop %v2764
  %v2771 = vrcp.pop %v2767
  %v2772 = vmul.f32 %v2749, %v2768
  %v2773 = vmul.f32 %v2751, %v2769
  %v2774 = vmul.f32 %v2753, %v2770
  %v2775 = vmul.f32 %v2755, %v2771
  %v2777 = vsel %vm450, %v2772, 0
  %v2780 = vsel %vm450, %v2773, 0
  %v2783 = vsel %vm450, %v2774, 0
  %v2786 = vsel %vm450, %v2775, 0
  %2788 = vmatprep.subr.mxu0 0.0
  %2789 = vmatpush1.msra.mxu0 %v951
  %2790 = vmatprep.subr.mxu0 0.0
  %2791 = vmatpush1.msra.mxu0 %v956
  %2792 = vmatprep.subr.mxu0 0.0
  %2793 = vmatpush1.msra.mxu0 %v961
  %2794 = vmatprep.subr.mxu0 0.0
  %2795 = vmatpush1.msra.mxu0 %v966
  %2796 = vmatprep.subr.mxu0 0.0
  %2797 = vmatpush1.msra.mxu0 0.0
  %2798 = vmatprep.subr.mxu0 0.0
  %2799 = vmatpush1.msra.mxu0 0.0
  %2800 = vmatprep.subr.mxu0 0.0
  %2801 = vmatpush1.msra.mxu0 0.0
  %2802 = vmatprep.subr.mxu0 0.0
  %2803 = vmatpush1.msra.mxu0 0.0
  %2804 = vmatprep.subr.mxu0 0.0
  %2805 = vmatpush1.msra.mxu0 0.0
  %2806 = vmatprep.subr.mxu0 0.0
  %2807 = vmatpush1.msra.mxu0 0.0
  %2808 = vmatprep.subr.mxu0 0.0
  %2809 = vmatpush1.msra.mxu0 0.0
  %2810 = vmatprep.subr.mxu0 0.0
  %2811 = vmatpush1.msra.mxu0 0.0
  %2812 = vmatprep.subr.mxu0 0.0
  %2813 = vmatpush1.msra.mxu0 0.0
  %2814 = vmatprep.subr.mxu0 0.0
  %2815 = vmatpush1.msra.mxu0 0.0
  %2816 = vmatprep.subr.mxu0 0.0
  %2817 = vmatpush1.msra.mxu0 0.0
  %2818 = vmatprep.subr.mxu0 0.0
  %2819 = vmatpush1.msra.mxu0 0.0
  %2820 = vmatprep.subr.mxu0 0.0
  %2821 = vmatpush1.msra.mxu0 0.0
  %2822 = vmatprep.subr.mxu0 0.0
  %2823 = vmatpush1.msra.mxu0 0.0
  %2824 = vmatprep.subr.mxu0 0.0
  %2825 = vmatpush1.msra.mxu0 0.0
  %2826 = vmatprep.subr.mxu0 0.0
  %2827 = vmatpush1.msra.mxu0 0.0
  %2828 = vmatprep.subr.mxu0 0.0
  %2829 = vmatpush1.msra.mxu0 0.0
  %2830 = vmatprep.subr.mxu0 0.0
  %2831 = vmatpush1.msra.mxu0 0.0
  %2832 = vmatprep.subr.mxu0 0.0
  %2833 = vmatpush1.msra.mxu0 0.0
  %2834 = vmatprep.subr.mxu0 0.0
  %2835 = vmatpush1.msra.mxu0 0.0
  %2836 = vmatprep.subr.mxu0 0.0
  %2837 = vmatpush1.msra.mxu0 0.0
  %2838 = vmatprep.subr.mxu0 0.0
  %2839 = vmatpush1.msra.mxu0 0.0
  %2840 = vmatprep.subr.mxu0 0.0
  %2841 = vmatpush1.msra.mxu0 0.0
  %2842 = vmatprep.subr.mxu0 0.0
  %2843 = vmatpush1.msra.mxu0 0.0
  %2844 = vmatprep.subr.mxu0 0.0
  %2845 = vmatpush1.msra.mxu0 0.0
  %2846 = vmatprep.subr.mxu0 0.0
  %2847 = vmatpush1.msra.mxu0 0.0
  %2848 = vmatprep.subr.mxu0 0.0
  %2849 = vmatpush1.msra.mxu0 0.0
  %2850 = vmatprep.subr.mxu0 0.0
  %2851 = vmatpush1.msra.mxu0 0.0
  %2852 = vmatprep.mubr.f32.mxu0 0.0
  %2853 = vmatmul.mubr.f32.gmra.mrb[0].mxu0 %v2777
  %v2854 = vpop.f32.mrb[0].mxu0
  %v2855 = vadd.f32 0.0, %v2854
  %v2856 = vpop.f32.mrb[0].mxu0
  %2857 = vmatprep.mubr.f32.mxu0 0.0
  %2858 = vmatmul.mubr.f32.gmra.mrb[0].mxu0 %v2780
  %v2859 = vpop.f32.mrb[0].mxu0
  %v2860 = vadd.f32 0.0, %v2859
  %v2861 = vpop.f32.mrb[0].mxu0
  %2862 = vmatprep.mubr.f32.mxu0 0.0
  %2863 = vmatmul.mubr.f32.gmra.mrb[0].mxu0 %v2783
  %v2864 = vpop.f32.mrb[0].mxu0
  %v2865 = vadd.f32 0.0, %v2864
  %v2866 = vpop.f32.mrb[0].mxu0
  %2867 = vmatprep.mubr.f32.mxu0 0.0
  %2868 = vmatmul.mubr.f32.gmra.mrb[0].mxu0 %v2786
  %v2869 = vpop.f32.mrb[0].mxu0
  %v2870 = vadd.f32 0.0, %v2869
  %v2871 = vpop.f32.mrb[0].mxu0
  %2872 = vdwg.mxu0
  %v2873 = vld [vmem:[%s12] sm:$0xff]
  %v2874 = vld [vmem:[%s12 + $0x8] sm:$0xff]
  %v2876 = vsel %vm1457, %v2855, 0
  %v2879 = vsel %vm1457, %v2860, 0
  %v2882 = vsel %vm1457, %v2865, 0
  %v2885 = vsel %vm1457, %v2870, 0
  %2887 = vmatprep.subr.mxu0 0.0
  %2888 = vmatpush1.msra.mxu0 %v2873
  %2889 = vmatprep.subr.mxu0 0.0
  %2890 = vmatpush1.msra.mxu0 %v2874
  %2891 = vmatprep.subr.mxu0 0.0
  %2892 = vmatpush1.msra.mxu0 0.0
  %2893 = vmatprep.subr.mxu0 0.0
  %2894 = vmatpush1.msra.mxu0 0.0
  %2895 = vmatprep.subr.mxu0 0.0
  %2896 = vmatpush1.msra.mxu0 0.0
  %2897 = vmatprep.subr.mxu0 0.0
  %2898 = vmatpush1.msra.mxu0 0.0
  %2899 = vmatprep.subr.mxu0 0.0
  %2900 = vmatpush1.msra.mxu0 0.0
  %2901 = vmatprep.subr.mxu0 0.0
  %2902 = vmatpush1.msra.mxu0 0.0
  %2903 = vmatprep.subr.mxu0 0.0
  %2904 = vmatpush1.msra.mxu0 0.0
  %2905 = vmatprep.subr.mxu0 0.0
  %2906 = vmatpush1.msra.mxu0 0.0
  %2907 = vmatprep.subr.mxu0 0.0
  %2908 = vmatpush1.msra.mxu0 0.0
  %2909 = vmatprep.subr.mxu0 0.0
  %2910 = vmatpush1.msra.mxu0 0.0
  %2911 = vmatprep.subr.mxu0 0.0
  %2912 = vmatpush1.msra.mxu0 0.0
  %2913 = vmatprep.subr.mxu0 0.0
  %2914 = vmatpush1.msra.mxu0 0.0
  %2915 = vmatprep.subr.mxu0 0.0
  %2916 = vmatpush1.msra.mxu0 0.0
  %2917 = vmatprep.subr.mxu0 0.0
  %2918 = vmatpush1.msra.mxu0 0.0
  %2919 = vmatprep.subr.mxu0 0.0
  %2920 = vmatpush1.msra.mxu0 0.0
  %2921 = vmatprep.subr.mxu0 0.0
  %2922 = vmatpush1.msra.mxu0 0.0
  %2923 = vmatprep.subr.mxu0 0.0
  %2924 = vmatpush1.msra.mxu0 0.0
  %2925 = vmatprep.subr.mxu0 0.0
  %2926 = vmatpush1.msra.mxu0 0.0
  %2927 = vmatprep.subr.mxu0 0.0
  %2928 = vmatpush1.msra.mxu0 0.0
  %2929 = vmatprep.subr.mxu0 0.0
  %2930 = vmatpush1.msra.mxu0 0.0
  %2931 = vmatprep.subr.mxu0 0.0
  %2932 = vmatpush1.msra.mxu0 0.0
  %2933 = vmatprep.subr.mxu0 0.0
  %2934 = vmatpush1.msra.mxu0 0.0
  %2935 = vmatprep.subr.mxu0 0.0
  %2936 = vmatpush1.msra.mxu0 0.0
  %2937 = vmatprep.subr.mxu0 0.0
  %2938 = vmatpush1.msra.mxu0 0.0
  %2939 = vmatprep.subr.mxu0 0.0
  %2940 = vmatpush1.msra.mxu0 0.0
  %2941 = vmatprep.subr.mxu0 0.0
  %2942 = vmatpush1.msra.mxu0 0.0
  %2943 = vmatprep.subr.mxu0 0.0
  %2944 = vmatpush1.msra.mxu0 0.0
  %2945 = vmatprep.subr.mxu0 0.0
  %2946 = vmatpush1.msra.mxu0 0.0
  %2947 = vmatprep.subr.mxu0 0.0
  %2948 = vmatpush1.msra.mxu0 0.0
  %2949 = vmatprep.subr.mxu0 0.0
  %2950 = vmatpush1.msra.mxu0 0.0
  %2951 = vmatprep.mubr.f32.mxu0 0.0
  %2952 = vmatmul.mubr.f32.gmra.mrb[0].mxu0 %v2876
  %v2953 = vpop.f32.mrb[0].mxu0
  %v2954 = vadd.f32 0.0, %v2953
  %v2955 = vpop.f32.mrb[0].mxu0
  %2956 = vmatprep.mubr.f32.mxu0 0.0
  %2957 = vmatmul.mubr.f32.gmra.mrb[0].mxu0 %v2879
  %v2958 = vpop.f32.mrb[0].mxu0
  %v2959 = vadd.f32 0.0, %v2958
  %v2960 = vpop.f32.mrb[0].mxu0
  %2961 = vmatprep.mubr.f32.mxu0 0.0
  %2962 = vmatmul.mubr.f32.gmra.mrb[0].mxu0 %v2882
  %v2963 = vpop.f32.mrb[0].mxu0
  %v2964 = vadd.f32 0.0, %v2963
  %v2965 = vpop.f32.mrb[0].mxu0
  %2966 = vmatprep.mubr.f32.mxu0 0.0
  %2967 = vmatmul.mubr.f32.gmra.mrb[0].mxu0 %v2885
  %v2968 = vpop.f32.mrb[0].mxu0
  %v2969 = vadd.f32 0.0, %v2968
  %v2970 = vpop.f32.mrb[0].mxu0
  %2971 = vdwg.mxu0
  %v2973 = vlaneseq
  %v2974 = vshrl.u32 %v2973, 7
  %v2975 = vsub.s32 0, %v2974
  %v2976 = vrot.slane %v660, %v2975
  %v2978 = vadd.f32 %v2976, %v2954
  %v2979 = vadd.f32 %v2976, %v2959
  %v2980 = vadd.f32 %v2976, %v2964
  %v2981 = vadd.f32 %v2976, %v2969
  %s2982 = scalar_lea.vmem %s10, 32
  %v2983 = vld [vmem:[%s2982] sm:$0xff]
  %v2984 = vld [vmem:[%s2982 + $0x8] sm:$0xff]
  %v2985 = vld [vmem:[%s2982 + $0x10] sm:$0xff]
  %v2986 = vld [vmem:[%s2982 + $0x18] sm:$0xff]
  %s2987 = scalar_lea.vmem %s11, 1
  %v2988 = vld [vmem:[%s2987] sm:$0x1]
  %v2990 = vlaneseq
  %v2991 = vshrl.u32 %v2990, 7
  %v2992 = vsub.s32 0, %v2991
  %v2993 = vrot.slane %v2988, %v2992
  %2995 = vmatprep.subr.mxu0 0.0
  %2996 = vmatpush1.msra.mxu0 %v2983
  %2997 = vmatprep.subr.mxu0 0.0
  %2998 = vmatpush1.msra.mxu0 %v2984
  %2999 = vmatprep.subr.mxu0 0.0
  %3000 = vmatpush1.msra.mxu0 %v2985
  %3001 = vmatprep.subr.mxu0 0.0
  %3002 = vmatpush1.msra.mxu0 %v2986
  %3003 = vmatprep.subr.mxu0 0.0
  %3004 = vmatpush1.msra.mxu0 0.0
  %3005 = vmatprep.subr.mxu0 0.0
  %3006 = vmatpush1.msra.mxu0 0.0
  %3007 = vmatprep.subr.mxu0 0.0
  %3008 = vmatpush1.msra.mxu0 0.0
  %3009 = vmatprep.subr.mxu0 0.0
  %3010 = vmatpush1.msra.mxu0 0.0
  %3011 = vmatprep.subr.mxu0 0.0
  %3012 = vmatpush1.msra.mxu0 0.0
  %3013 = vmatprep.subr.mxu0 0.0
  %3014 = vmatpush1.msra.mxu0 0.0
  %3015 = vmatprep.subr.mxu0 0.0
  %3016 = vmatpush1.msra.mxu0 0.0
  %3017 = vmatprep.subr.mxu0 0.0
  %3018 = vmatpush1.msra.mxu0 0.0
  %3019 = vmatprep.subr.mxu0 0.0
  %3020 = vmatpush1.msra.mxu0 0.0
  %3021 = vmatprep.subr.mxu0 0.0
  %3022 = vmatpush1.msra.mxu0 0.0
  %3023 = vmatprep.subr.mxu0 0.0
  %3024 = vmatpush1.msra.mxu0 0.0
  %3025 = vmatprep.subr.mxu0 0.0
  %3026 = vmatpush1.msra.mxu0 0.0
  %3027 = vmatprep.subr.mxu0 0.0
  %3028 = vmatpush1.msra.mxu0 0.0
  %3029 = vmatprep.subr.mxu0 0.0
  %3030 = vmatpush1.msra.mxu0 0.0
  %3031 = vmatprep.subr.mxu0 0.0
  %3032 = vmatpush1.msra.mxu0 0.0
  %3033 = vmatprep.subr.mxu0 0.0
  %3034 = vmatpush1.msra.mxu0 0.0
  %3035 = vmatprep.subr.mxu0 0.0
  %3036 = vmatpush1.msra.mxu0 0.0
  %3037 = vmatprep.subr.mxu0 0.0
  %3038 = vmatpush1.msra.mxu0 0.0
  %3039 = vmatprep.subr.mxu0 0.0
  %3040 = vmatpush1.msra.mxu0 0.0
  %3041 = vmatprep.subr.mxu0 0.0
  %3042 = vmatpush1.msra.mxu0 0.0
  %3043 = vmatprep.subr.mxu0 0.0
  %3044 = vmatpush1.msra.mxu0 0.0
  %3045 = vmatprep.subr.mxu0 0.0
  %3046 = vmatpush1.msra.mxu0 0.0
  %3047 = vmatprep.subr.mxu0 0.0
  %3048 = vmatpush1.msra.mxu0 0.0
  %3049 = vmatprep.subr.mxu0 0.0
  %3050 = vmatpush1.msra.mxu0 0.0
  %3051 = vmatprep.subr.mxu0 0.0
  %3052 = vmatpush1.msra.mxu0 0.0
  %3053 = vmatprep.subr.mxu0 0.0
  %3054 = vmatpush1.msra.mxu0 0.0
  %3055 = vmatprep.subr.mxu0 0.0
  %3056 = vmatpush1.msra.mxu0 0.0
  %3057 = vmatprep.subr.mxu0 0.0
  %3058 = vmatpush1.msra.mxu0 0.0
  %3059 = vmatprep.mubr.f32.mxu0 0.0
  %3060 = vmatmul.mubr.f32.gmra.mrb[0].mxu0 %v673
  %v3061 = vpop.f32.mrb[0].mxu0
  %v3062 = vadd.f32 %v2993, %v3061
  %v3063 = vpop.f32.mrb[0].mxu0
  %3064 = vmatprep.mubr.f32.mxu0 0.0
  %3065 = vmatmul.mubr.f32.gmra.mrb[0].mxu0 %v676
  %v3066 = vpop.f32.mrb[0].mxu0
  %v3067 = vadd.f32 %v2993, %v3066
  %v3068 = vpop.f32.mrb[0].mxu0
  %3069 = vmatprep.mubr.f32.mxu0 0.0
  %3070 = vmatmul.mubr.f32.gmra.mrb[0].mxu0 %v679
  %v3071 = vpop.f32.mrb[0].mxu0
  %v3072 = vadd.f32 %v2993, %v3071
  %v3073 = vpop.f32.mrb[0].mxu0
  %3074 = vmatprep.mubr.f32.mxu0 0.0
  %3075 = vmatmul.mubr.f32.gmra.mrb[0].mxu0 %v682
  %v3076 = vpop.f32.mrb[0].mxu0
  %v3077 = vadd.f32 %v2993, %v3076
  %v3078 = vpop.f32.mrb[0].mxu0
  %3079 = vdwg.mxu0
  %v3080 = vmul.f32 %v3062, 0.25
  %v3081 = vmul.f32 %v3067, 0.25
  %v3082 = vmul.f32 %v3072, 0.25
  %v3083 = vmul.f32 %v3077, 0.25
  %s3084 = scalar_lea.vmem %s10, 96
  %v3085 = vld [vmem:[%s3084] sm:$0xff]
  %v3086 = vld [vmem:[%s3084 + $0x8] sm:$0xff]
  %v3087 = vld [vmem:[%s3084 + $0x10] sm:$0xff]
  %v3088 = vld [vmem:[%s3084 + $0x18] sm:$0xff]
  %s3089 = scalar_lea.vmem %s11, 3
  %v3090 = vld [vmem:[%s3089] sm:$0x1]
  %v3092 = vlaneseq
  %v3093 = vshrl.u32 %v3092, 7
  %v3094 = vsub.s32 0, %v3093
  %v3095 = vrot.slane %v3090, %v3094
  %3097 = vmatprep.subr.mxu0 0.0
  %3098 = vmatpush1.msra.mxu0 %v3085
  %3099 = vmatprep.subr.mxu0 0.0
  %3100 = vmatpush1.msra.mxu0 %v3086
  %3101 = vmatprep.subr.mxu0 0.0
  %3102 = vmatpush1.msra.mxu0 %v3087
  %3103 = vmatprep.subr.mxu0 0.0
  %3104 = vmatpush1.msra.mxu0 %v3088
  %3105 = vmatprep.subr.mxu0 0.0
  %3106 = vmatpush1.msra.mxu0 0.0
  %3107 = vmatprep.subr.mxu0 0.0
  %3108 = vmatpush1.msra.mxu0 0.0
  %3109 = vmatprep.subr.mxu0 0.0
  %3110 = vmatpush1.msra.mxu0 0.0
  %3111 = vmatprep.subr.mxu0 0.0
  %3112 = vmatpush1.msra.mxu0 0.0
  %3113 = vmatprep.subr.mxu0 0.0
  %3114 = vmatpush1.msra.mxu0 0.0
  %3115 = vmatprep.subr.mxu0 0.0
  %3116 = vmatpush1.msra.mxu0 0.0
  %3117 = vmatprep.subr.mxu0 0.0
  %3118 = vmatpush1.msra.mxu0 0.0
  %3119 = vmatprep.subr.mxu0 0.0
  %3120 = vmatpush1.msra.mxu0 0.0
  %3121 = vmatprep.subr.mxu0 0.0
  %3122 = vmatpush1.msra.mxu0 0.0
  %3123 = vmatprep.subr.mxu0 0.0
  %3124 = vmatpush1.msra.mxu0 0.0
  %3125 = vmatprep.subr.mxu0 0.0
  %3126 = vmatpush1.msra.mxu0 0.0
  %3127 = vmatprep.subr.mxu0 0.0
  %3128 = vmatpush1.msra.mxu0 0.0
  %3129 = vmatprep.subr.mxu0 0.0
  %3130 = vmatpush1.msra.mxu0 0.0
  %3131 = vmatprep.subr.mxu0 0.0
  %3132 = vmatpush1.msra.mxu0 0.0
  %3133 = vmatprep.subr.mxu0 0.0
  %3134 = vmatpush1.msra.mxu0 0.0
  %3135 = vmatprep.subr.mxu0 0.0
  %3136 = vmatpush1.msra.mxu0 0.0
  %3137 = vmatprep.subr.mxu0 0.0
  %3138 = vmatpush1.msra.mxu0 0.0
  %3139 = vmatprep.subr.mxu0 0.0
  %3140 = vmatpush1.msra.mxu0 0.0
  %3141 = vmatprep.subr.mxu0 0.0
  %3142 = vmatpush1.msra.mxu0 0.0
  %3143 = vmatprep.subr.mxu0 0.0
  %3144 = vmatpush1.msra.mxu0 0.0
  %3145 = vmatprep.subr.mxu0 0.0
  %3146 = vmatpush1.msra.mxu0 0.0
  %3147 = vmatprep.subr.mxu0 0.0
  %3148 = vmatpush1.msra.mxu0 0.0
  %3149 = vmatprep.subr.mxu0 0.0
  %3150 = vmatpush1.msra.mxu0 0.0
  %3151 = vmatprep.subr.mxu0 0.0
  %3152 = vmatpush1.msra.mxu0 0.0
  %3153 = vmatprep.subr.mxu0 0.0
  %3154 = vmatpush1.msra.mxu0 0.0
  %3155 = vmatprep.subr.mxu0 0.0
  %3156 = vmatpush1.msra.mxu0 0.0
  %3157 = vmatprep.subr.mxu0 0.0
  %3158 = vmatpush1.msra.mxu0 0.0
  %3159 = vmatprep.subr.mxu0 0.0
  %3160 = vmatpush1.msra.mxu0 0.0
  %3161 = vmatprep.mubr.f32.mxu0 0.0
  %3162 = vmatmul.mubr.f32.gmra.mrb[0].mxu0 %v673
  %v3163 = vpop.f32.mrb[0].mxu0
  %v3164 = vadd.f32 %v3095, %v3163
  %v3165 = vpop.f32.mrb[0].mxu0
  %3166 = vmatprep.mubr.f32.mxu0 0.0
  %3167 = vmatmul.mubr.f32.gmra.mrb[0].mxu0 %v676
  %v3168 = vpop.f32.mrb[0].mxu0
  %v3169 = vadd.f32 %v3095, %v3168
  %v3170 = vpop.f32.mrb[0].mxu0
  %3171 = vmatprep.mubr.f32.mxu0 0.0
  %3172 = vmatmul.mubr.f32.gmra.mrb[0].mxu0 %v679
  %v3173 = vpop.f32.mrb[0].mxu0
  %v3174 = vadd.f32 %v3095, %v3173
  %v3175 = vpop.f32.mrb[0].mxu0
  %3176 = vmatprep.mubr.f32.mxu0 0.0
  %3177 = vmatmul.mubr.f32.gmra.mrb[0].mxu0 %v682
  %v3178 = vpop.f32.mrb[0].mxu0
  %v3179 = vadd.f32 %v3095, %v3178
  %v3180 = vpop.f32.mrb[0].mxu0
  %3181 = vdwg.mxu0
  %s3182 = scalar_lea.vmem %s10, 160
  %v3183 = vld [vmem:[%s3182] sm:$0xff]
  %v3184 = vld [vmem:[%s3182 + $0x8] sm:$0xff]
  %v3185 = vld [vmem:[%s3182 + $0x10] sm:$0xff]
  %v3186 = vld [vmem:[%s3182 + $0x18] sm:$0xff]
  %s3187 = scalar_lea.vmem %s11, 5
  %v3188 = vld [vmem:[%s3187] sm:$0x1]
  %v3190 = vlaneseq
  %v3191 = vshrl.u32 %v3190, 7
  %v3192 = vsub.s32 0, %v3191
  %v3193 = vrot.slane %v3188, %v3192
  %3195 = vmatprep.subr.mxu0 0.0
  %3196 = vmatpush1.msra.mxu0 %v3183
  %3197 = vmatprep.subr.mxu0 0.0
  %3198 = vmatpush1.msra.mxu0 %v3184
  %3199 = vmatprep.subr.mxu0 0.0
  %3200 = vmatpush1.msra.mxu0 %v3185
  %3201 = vmatprep.subr.mxu0 0.0
  %3202 = vmatpush1.msra.mxu0 %v3186
  %3203 = vmatprep.subr.mxu0 0.0
  %3204 = vmatpush1.msra.mxu0 0.0
  %3205 = vmatprep.subr.mxu0 0.0
  %3206 = vmatpush1.msra.mxu0 0.0
  %3207 = vmatprep.subr.mxu0 0.0
  %3208 = vmatpush1.msra.mxu0 0.0
  %3209 = vmatprep.subr.mxu0 0.0
  %3210 = vmatpush1.msra.mxu0 0.0
  %3211 = vmatprep.subr.mxu0 0.0
  %3212 = vmatpush1.msra.mxu0 0.0
  %3213 = vmatprep.subr.mxu0 0.0
  %3214 = vmatpush1.msra.mxu0 0.0
  %3215 = vmatprep.subr.mxu0 0.0
  %3216 = vmatpush1.msra.mxu0 0.0
  %3217 = vmatprep.subr.mxu0 0.0
  %3218 = vmatpush1.msra.mxu0 0.0
  %3219 = vmatprep.subr.mxu0 0.0
  %3220 = vmatpush1.msra.mxu0 0.0
  %3221 = vmatprep.subr.mxu0 0.0
  %3222 = vmatpush1.msra.mxu0 0.0
  %3223 = vmatprep.subr.mxu0 0.0
  %3224 = vmatpush1.msra.mxu0 0.0
  %3225 = vmatprep.subr.mxu0 0.0
  %3226 = vmatpush1.msra.mxu0 0.0
  %3227 = vmatprep.subr.mxu0 0.0
  %3228 = vmatpush1.msra.mxu0 0.0
  %3229 = vmatprep.subr.mxu0 0.0
  %3230 = vmatpush1.msra.mxu0 0.0
  %3231 = vmatprep.subr.mxu0 0.0
  %3232 = vmatpush1.msra.mxu0 0.0
  %3233 = vmatprep.subr.mxu0 0.0
  %3234 = vmatpush1.msra.mxu0 0.0
  %3235 = vmatprep.subr.mxu0 0.0
  %3236 = vmatpush1.msra.mxu0 0.0
  %3237 = vmatprep.subr.mxu0 0.0
  %3238 = vmatpush1.msra.mxu0 0.0
  %3239 = vmatprep.subr.mxu0 0.0
  %3240 = vmatpush1.msra.mxu0 0.0
  %3241 = vmatprep.subr.mxu0 0.0
  %3242 = vmatpush1.msra.mxu0 0.0
  %3243 = vmatprep.subr.mxu0 0.0
  %3244 = vmatpush1.msra.mxu0 0.0
  %3245 = vmatprep.subr.mxu0 0.0
  %3246 = vmatpush1.msra.mxu0 0.0
  %3247 = vmatprep.subr.mxu0 0.0
  %3248 = vmatpush1.msra.mxu0 0.0
  %3249 = vmatprep.subr.mxu0 0.0
  %3250 = vmatpush1.msra.mxu0 0.0
  %3251 = vmatprep.subr.mxu0 0.0
  %3252 = vmatpush1.msra.mxu0 0.0
  %3253 = vmatprep.subr.mxu0 0.0
  %3254 = vmatpush1.msra.mxu0 0.0
  %3255 = vmatprep.subr.mxu0 0.0
  %3256 = vmatpush1.msra.mxu0 0.0
  %3257 = vmatprep.subr.mxu0 0.0
  %3258 = vmatpush1.msra.mxu0 0.0
  %3259 = vmatprep.mubr.f32.mxu0 0.0
  %3260 = vmatmul.mubr.f32.gmra.mrb[0].mxu0 %v673
  %v3261 = vpop.f32.mrb[0].mxu0
  %v3262 = vadd.f32 %v3193, %v3261
  %v3263 = vpop.f32.mrb[0].mxu0
  %3264 = vmatprep.mubr.f32.mxu0 0.0
  %3265 = vmatmul.mubr.f32.gmra.mrb[0].mxu0 %v676
  %v3266 = vpop.f32.mrb[0].mxu0
  %v3267 = vadd.f32 %v3193, %v3266
  %v3268 = vpop.f32.mrb[0].mxu0
  %3269 = vmatprep.mubr.f32.mxu0 0.0
  %3270 = vmatmul.mubr.f32.gmra.mrb[0].mxu0 %v679
  %v3271 = vpop.f32.mrb[0].mxu0
  %v3272 = vadd.f32 %v3193, %v3271
  %v3273 = vpop.f32.mrb[0].mxu0
  %3274 = vmatprep.mubr.f32.mxu0 0.0
  %3275 = vmatmul.mubr.f32.gmra.mrb[0].mxu0 %v682
  %v3276 = vpop.f32.mrb[0].mxu0
  %v3277 = vadd.f32 %v3193, %v3276
  %v3278 = vpop.f32.mrb[0].mxu0
  %3279 = vdwg.mxu0
  %v3284 = vcombine.high %v3080, %v3080
  %v3286 = vunpack.c.l.s4 1966171168
  %v3287 = vunpack.c.0.s8 %v3286
  %v3288 = vlaneseq
  %v3289 = vshrl.u32 %v3288, 7
  %v3290 = vsub.s32 %v3287, %v3289
  %v3291 = vrot.slane %v3080, %v3290
  %v3293 = vunpack.c.l.s4 1966171168
  %v3294 = vunpack.c.0.s8 %v3293
  %v3295 = vlaneseq
  %v3296 = vshrl.u32 %v3295, 7
  %v3297 = vsub.s32 %v3294, %v3296
  %v3298 = vrot.slane %v3284, %v3297
  %v3299 = vcombine.high %v3291, %v3291
  %v3300 = vcombine.high %v3298, %v3298
  %v3302 = vunpack.c.l.s4 1966171168
  %v3303 = vunpack.c.0.s8 %v3302
  %v3304 = vlaneseq
  %v3305 = vshrl.u32 %v3304, 7
  %v3306 = vsub.s32 %v3303, %v3305
  %v3307 = vrot.slane %v3291, %v3306
  %v3309 = vunpack.c.l.s4 1966171168
  %v3310 = vunpack.c.0.s8 %v3309
  %v3311 = vlaneseq
  %v3312 = vshrl.u32 %v3311, 7
  %v3313 = vsub.s32 %v3310, %v3312
  %v3314 = vrot.slane %v3298, %v3313
  %v3316 = vunpack.c.l.s4 1966171168
  %v3317 = vunpack.c.0.s8 %v3316
  %v3318 = vlaneseq
  %v3319 = vshrl.u32 %v3318, 7
  %v3320 = vsub.s32 %v3317, %v3319
  %v3321 = vrot.slane %v3299, %v3320
  %v3323 = vunpack.c.l.s4 1966171168
  %v3324 = vunpack.c.0.s8 %v3323
  %v3325 = vlaneseq
  %v3326 = vshrl.u32 %v3325, 7
  %v3327 = vsub.s32 %v3324, %v3326
  %v3328 = vrot.slane %v3300, %v3327
  %v3329 = vcombine.high %v3307, %v3307
  %v3330 = vcombine.high %v3314, %v3314
  %v3331 = vcombine.high %v3321, %v3321
  %v3332 = vcombine.high %v3328, %v3328
  %v3333 = vcombine.high %v3081, %v3081
  %v3335 = vunpack.c.l.s4 1966171168
  %v3336 = vunpack.c.0.s8 %v3335
  %v3337 = vlaneseq
  %v3338 = vshrl.u32 %v3337, 7
  %v3339 = vsub.s32 %v3336, %v3338
  %v3340 = vrot.slane %v3081, %v3339
  %v3342 = vunpack.c.l.s4 1966171168
  %v3343 = vunpack.c.0.s8 %v3342
  %v3344 = vlaneseq
  %v3345 = vshrl.u32 %v3344, 7
  %v3346 = vsub.s32 %v3343, %v3345
  %v3347 = vrot.slane %v3333, %v3346
  %v3348 = vcombine.high %v3340, %v3340
  %v3349 = vcombine.high %v3347, %v3347
  %v3351 = vunpack.c.l.s4 1966171168
  %v3352 = vunpack.c.0.s8 %v3351
  %v3353 = vlaneseq
  %v3354 = vshrl.u32 %v3353, 7
  %v3355 = vsub.s32 %v3352, %v3354
  %v3356 = vrot.slane %v3340, %v3355
  %v3358 = vunpack.c.l.s4 1966171168
  %v3359 = vunpack.c.0.s8 %v3358
  %v3360 = vlaneseq
  %v3361 = vshrl.u32 %v3360, 7
  %v3362 = vsub.s32 %v3359, %v3361
  %v3363 = vrot.slane %v3347, %v3362
  %v3365 = vunpack.c.l.s4 1966171168
  %v3366 = vunpack.c.0.s8 %v3365
  %v3367 = vlaneseq
  %v3368 = vshrl.u32 %v3367, 7
  %v3369 = vsub.s32 %v3366, %v3368
  %v3370 = vrot.slane %v3348, %v3369
  %v3372 = vunpack.c.l.s4 1966171168
  %v3373 = vunpack.c.0.s8 %v3372
  %v3374 = vlaneseq
  %v3375 = vshrl.u32 %v3374, 7
  %v3376 = vsub.s32 %v3373, %v3375
  %v3377 = vrot.slane %v3349, %v3376
  %v3378 = vcombine.high %v3356, %v3356
  %v3379 = vcombine.high %v3363, %v3363
  %v3380 = vcombine.high %v3370, %v3370
  %v3381 = vcombine.high %v3377, %v3377
  %v3382 = vcombine.high %v3082, %v3082
  %v3384 = vunpack.c.l.s4 1966171168
  %v3385 = vunpack.c.0.s8 %v3384
  %v3386 = vlaneseq
  %v3387 = vshrl.u32 %v3386, 7
  %v3388 = vsub.s32 %v3385, %v3387
  %v3389 = vrot.slane %v3082, %v3388
  %v3391 = vunpack.c.l.s4 1966171168
  %v3392 = vunpack.c.0.s8 %v3391
  %v3393 = vlaneseq
  %v3394 = vshrl.u32 %v3393, 7
  %v3395 = vsub.s32 %v3392, %v3394
  %v3396 = vrot.slane %v3382, %v3395
  %v3397 = vcombine.high %v3389, %v3389
  %v3398 = vcombine.high %v3396, %v3396
  %v3400 = vunpack.c.l.s4 1966171168
  %v3401 = vunpack.c.0.s8 %v3400
  %v3402 = vlaneseq
  %v3403 = vshrl.u32 %v3402, 7
  %v3404 = vsub.s32 %v3401, %v3403
  %v3405 = vrot.slane %v3389, %v3404
  %v3407 = vunpack.c.l.s4 1966171168
  %v3408 = vunpack.c.0.s8 %v3407
  %v3409 = vlaneseq
  %v3410 = vshrl.u32 %v3409, 7
  %v3411 = vsub.s32 %v3408, %v3410
  %v3412 = vrot.slane %v3396, %v3411
  %v3414 = vunpack.c.l.s4 1966171168
  %v3415 = vunpack.c.0.s8 %v3414
  %v3416 = vlaneseq
  %v3417 = vshrl.u32 %v3416, 7
  %v3418 = vsub.s32 %v3415, %v3417
  %v3419 = vrot.slane %v3397, %v3418
  %v3421 = vunpack.c.l.s4 1966171168
  %v3422 = vunpack.c.0.s8 %v3421
  %v3423 = vlaneseq
  %v3424 = vshrl.u32 %v3423, 7
  %v3425 = vsub.s32 %v3422, %v3424
  %v3426 = vrot.slane %v3398, %v3425
  %v3427 = vcombine.high %v3405, %v3405
  %v3428 = vcombine.high %v3412, %v3412
  %v3429 = vcombine.high %v3419, %v3419
  %v3430 = vcombine.high %v3426, %v3426
  %v3431 = vcombine.high %v3083, %v3083
  %v3433 = vunpack.c.l.s4 1966171168
  %v3434 = vunpack.c.0.s8 %v3433
  %v3435 = vlaneseq
  %v3436 = vshrl.u32 %v3435, 7
  %v3437 = vsub.s32 %v3434, %v3436
  %v3438 = vrot.slane %v3083, %v3437
  %v3440 = vunpack.c.l.s4 1966171168
  %v3441 = vunpack.c.0.s8 %v3440
  %v3442 = vlaneseq
  %v3443 = vshrl.u32 %v3442, 7
  %v3444 = vsub.s32 %v3441, %v3443
  %v3445 = vrot.slane %v3431, %v3444
  %v3446 = vcombine.high %v3438, %v3438
  %v3447 = vcombine.high %v3445, %v3445
  %v3449 = vunpack.c.l.s4 1966171168
  %v3450 = vunpack.c.0.s8 %v3449
  %v3451 = vlaneseq
  %v3452 = vshrl.u32 %v3451, 7
  %v3453 = vsub.s32 %v3450, %v3452
  %v3454 = vrot.slane %v3438, %v3453
  %v3456 = vunpack.c.l.s4 1966171168
  %v3457 = vunpack.c.0.s8 %v3456
  %v3458 = vlaneseq
  %v3459 = vshrl.u32 %v3458, 7
  %v3460 = vsub.s32 %v3457, %v3459
  %v3461 = vrot.slane %v3445, %v3460
  %v3463 = vunpack.c.l.s4 1966171168
  %v3464 = vunpack.c.0.s8 %v3463
  %v3465 = vlaneseq
  %v3466 = vshrl.u32 %v3465, 7
  %v3467 = vsub.s32 %v3464, %v3466
  %v3468 = vrot.slane %v3446, %v3467
  %v3470 = vunpack.c.l.s4 1966171168
  %v3471 = vunpack.c.0.s8 %v3470
  %v3472 = vlaneseq
  %v3473 = vshrl.u32 %v3472, 7
  %v3474 = vsub.s32 %v3471, %v3473
  %v3475 = vrot.slane %v3447, %v3474
  %v3476 = vcombine.high %v3454, %v3454
  %v3477 = vcombine.high %v3461, %v3461
  %v3478 = vcombine.high %v3468, %v3468
  %v3479 = vcombine.high %v3475, %v3475
  %v3480 = vlaneseq
  %v3481 = vshrl.u32 %v3480, 7
  %v3482 = vsub.s32 0, %v3481
  %v3483 = vrot.slane %v3307, %v3482
  %v3484 = vlaneseq
  %v3485 = vshrl.u32 %v3484, 7
  %v3486 = vsub.s32 0, %v3485
  %v3487 = vrot.slane %v3321, %v3486
  %v3488 = vlaneseq
  %v3489 = vshrl.u32 %v3488, 7
  %v3490 = vsub.s32 0, %v3489
  %v3491 = vrot.slane %v3329, %v3490
  %v3492 = vlaneseq
  %v3493 = vshrl.u32 %v3492, 7
  %v3494 = vsub.s32 0, %v3493
  %v3495 = vrot.slane %v3331, %v3494
  %v3496 = vlaneseq
  %v3497 = vshrl.u32 %v3496, 7
  %v3498 = vsub.s32 0, %v3497
  %v3499 = vrot.slane %v3314, %v3498
  %v3500 = vlaneseq
  %v3501 = vshrl.u32 %v3500, 7
  %v3502 = vsub.s32 0, %v3501
  %v3503 = vrot.slane %v3328, %v3502
  %v3504 = vlaneseq
  %v3505 = vshrl.u32 %v3504, 7
  %v3506 = vsub.s32 0, %v3505
  %v3507 = vrot.slane %v3330, %v3506
  %v3508 = vlaneseq
  %v3509 = vshrl.u32 %v3508, 7
  %v3510 = vsub.s32 0, %v3509
  %v3511 = vrot.slane %v3332, %v3510
  %v3512 = vlaneseq
  %v3513 = vshrl.u32 %v3512, 7
  %v3514 = vsub.s32 0, %v3513
  %v3515 = vrot.slane %v3356, %v3514
  %v3516 = vlaneseq
  %v3517 = vshrl.u32 %v3516, 7
  %v3518 = vsub.s32 0, %v3517
  %v3519 = vrot.slane %v3370, %v3518
  %v3520 = vlaneseq
  %v3521 = vshrl.u32 %v3520, 7
  %v3522 = vsub.s32 0, %v3521
  %v3523 = vrot.slane %v3378, %v3522
  %v3524 = vlaneseq
  %v3525 = vshrl.u32 %v3524, 7
  %v3526 = vsub.s32 0, %v3525
  %v3527 = vrot.slane %v3380, %v3526
  %v3528 = vlaneseq
  %v3529 = vshrl.u32 %v3528, 7
  %v3530 = vsub.s32 0, %v3529
  %v3531 = vrot.slane %v3363, %v3530
  %v3532 = vlaneseq
  %v3533 = vshrl.u32 %v3532, 7
  %v3534 = vsub.s32 0, %v3533
  %v3535 = vrot.slane %v3377, %v3534
  %v3536 = vlaneseq
  %v3537 = vshrl.u32 %v3536, 7
  %v3538 = vsub.s32 0, %v3537
  %v3539 = vrot.slane %v3379, %v3538
  %v3540 = vlaneseq
  %v3541 = vshrl.u32 %v3540, 7
  %v3542 = vsub.s32 0, %v3541
  %v3543 = vrot.slane %v3381, %v3542
  %v3544 = vlaneseq
  %v3545 = vshrl.u32 %v3544, 7
  %v3546 = vsub.s32 0, %v3545
  %v3547 = vrot.slane %v3405, %v3546
  %v3548 = vlaneseq
  %v3549 = vshrl.u32 %v3548, 7
  %v3550 = vsub.s32 0, %v3549
  %v3551 = vrot.slane %v3419, %v3550
  %v3552 = vlaneseq
  %v3553 = vshrl.u32 %v3552, 7
  %v3554 = vsub.s32 0, %v3553
  %v3555 = vrot.slane %v3427, %v3554
  %v3556 = vlaneseq
  %v3557 = vshrl.u32 %v3556, 7
  %v3558 = vsub.s32 0, %v3557
  %v3559 = vrot.slane %v3429, %v3558
  %v3560 = vlaneseq
  %v3561 = vshrl.u32 %v3560, 7
  %v3562 = vsub.s32 0, %v3561
  %v3563 = vrot.slane %v3412, %v3562
  %v3564 = vlaneseq
  %v3565 = vshrl.u32 %v3564, 7
  %v3566 = vsub.s32 0, %v3565
  %v3567 = vrot.slane %v3426, %v3566
  %v3568 = vlaneseq
  %v3569 = vshrl.u32 %v3568, 7
  %v3570 = vsub.s32 0, %v3569
  %v3571 = vrot.slane %v3428, %v3570
  %v3572 = vlaneseq
  %v3573 = vshrl.u32 %v3572, 7
  %v3574 = vsub.s32 0, %v3573
  %v3575 = vrot.slane %v3430, %v3574
  %v3576 = vlaneseq
  %v3577 = vshrl.u32 %v3576, 7
  %v3578 = vsub.s32 0, %v3577
  %v3579 = vrot.slane %v3454, %v3578
  %v3580 = vlaneseq
  %v3581 = vshrl.u32 %v3580, 7
  %v3582 = vsub.s32 0, %v3581
  %v3583 = vrot.slane %v3468, %v3582
  %v3584 = vlaneseq
  %v3585 = vshrl.u32 %v3584, 7
  %v3586 = vsub.s32 0, %v3585
  %v3587 = vrot.slane %v3476, %v3586
  %v3588 = vlaneseq
  %v3589 = vshrl.u32 %v3588, 7
  %v3590 = vsub.s32 0, %v3589
  %v3591 = vrot.slane %v3478, %v3590
  %v3592 = vlaneseq
  %v3593 = vshrl.u32 %v3592, 7
  %v3594 = vsub.s32 0, %v3593
  %v3595 = vrot.slane %v3461, %v3594
  %v3596 = vlaneseq
  %v3597 = vshrl.u32 %v3596, 7
  %v3598 = vsub.s32 0, %v3597
  %v3599 = vrot.slane %v3475, %v3598
  %v3600 = vlaneseq
  %v3601 = vshrl.u32 %v3600, 7
  %v3602 = vsub.s32 0, %v3601
  %v3603 = vrot.slane %v3477, %v3602
  %v3604 = vlaneseq
  %v3605 = vshrl.u32 %v3604, 7
  %v3606 = vsub.s32 0, %v3605
  %v3607 = vrot.slane %v3479, %v3606
  %v3640 = vmul.f32 %v3483, %v96
  %v3641 = vmul.f32 %v3483, %v97
  %v3642 = vmul.f32 %v3483, %v98
  %v3643 = vmul.f32 %v3483, %v99
  %v3644 = vmul.f32 %v3487, %v100
  %v3645 = vmul.f32 %v3487, %v101
  %v3646 = vmul.f32 %v3487, %v102
  %v3647 = vmul.f32 %v3487, %v103
  %v3648 = vmul.f32 %v3491, %v104
  %v3649 = vmul.f32 %v3491, %v105
  %v3650 = vmul.f32 %v3491, %v106
  %v3651 = vmul.f32 %v3491, %v107
  %v3652 = vmul.f32 %v3495, %v108
  %v3653 = vmul.f32 %v3495, %v109
  %v3654 = vmul.f32 %v3495, %v110
  %v3655 = vmul.f32 %v3495, %v111
  %v3656 = vmul.f32 %v3499, %v112
  %v3657 = vmul.f32 %v3499, %v113
  %v3658 = vmul.f32 %v3499, %v114
  %v3659 = vmul.f32 %v3499, %v115
  %v3660 = vmul.f32 %v3503, %v116
  %v3661 = vmul.f32 %v3503, %v117
  %v3662 = vmul.f32 %v3503, %v118
  %v3663 = vmul.f32 %v3503, %v119
  %v3664 = vmul.f32 %v3507, %v120
  %v3665 = vmul.f32 %v3507, %v121
  %v3666 = vmul.f32 %v3507, %v122
  %v3667 = vmul.f32 %v3507, %v123
  %v3668 = vmul.f32 %v3511, %v124
  %v3669 = vmul.f32 %v3511, %v125
  %v3670 = vmul.f32 %v3511, %v126
  %v3671 = vmul.f32 %v3511, %v127
  %v3672 = vmul.f32 %v3515, %v128
  %v3673 = vmul.f32 %v3515, %v129
  %v3674 = vmul.f32 %v3515, %v130
  %v3675 = vmul.f32 %v3515, %v131
  %v3676 = vmul.f32 %v3519, %v132
  %v3677 = vmul.f32 %v3519, %v133
  %v3678 = vmul.f32 %v3519, %v134
  %v3679 = vmul.f32 %v3519, %v135
  %v3680 = vmul.f32 %v3523, %v136
  %v3681 = vmul.f32 %v3523, %v137
  %v3682 = vmul.f32 %v3523, %v138
  %v3683 = vmul.f32 %v3523, %v139
  %v3684 = vmul.f32 %v3527, %v140
  %v3685 = vmul.f32 %v3527, %v141
  %v3686 = vmul.f32 %v3527, %v142
  %v3687 = vmul.f32 %v3527, %v143
  %v3688 = vmul.f32 %v3531, %v144
  %v3689 = vmul.f32 %v3531, %v145
  %v3690 = vmul.f32 %v3531, %v146
  %v3691 = vmul.f32 %v3531, %v147
  %v3692 = vmul.f32 %v3535, %v148
  %v3693 = vmul.f32 %v3535, %v149
  %v3694 = vmul.f32 %v3535, %v150
  %v3695 = vmul.f32 %v3535, %v151
  %v3696 = vmul.f32 %v3539, %v152
  %v3697 = vmul.f32 %v3539, %v153
  %v3698 = vmul.f32 %v3539, %v154
  %v3699 = vmul.f32 %v3539, %v155
  %v3700 = vmul.f32 %v3543, %v156
  %v3701 = vmul.f32 %v3543, %v157
  %v3702 = vmul.f32 %v3543, %v158
  %v3703 = vmul.f32 %v3543, %v159
  %v3704 = vmul.f32 %v3547, %v160
  %v3705 = vmul.f32 %v3547, %v161
  %v3706 = vmul.f32 %v3547, %v162
  %v3707 = vmul.f32 %v3547, %v163
  %v3708 = vmul.f32 %v3551, %v164
  %v3709 = vmul.f32 %v3551, %v165
  %v3710 = vmul.f32 %v3551, %v166
  %v3711 = vmul.f32 %v3551, %v167
  %v3712 = vmul.f32 %v3555, %v168
  %v3713 = vmul.f32 %v3555, %v169
  %v3714 = vmul.f32 %v3555, %v170
  %v3715 = vmul.f32 %v3555, %v171
  %v3716 = vmul.f32 %v3559, %v172
  %v3717 = vmul.f32 %v3559, %v173
  %v3718 = vmul.f32 %v3559, %v174
  %v3719 = vmul.f32 %v3559, %v175
  %v3720 = vmul.f32 %v3563, %v176
  %v3721 = vmul.f32 %v3563, %v177
  %v3722 = vmul.f32 %v3563, %v178
  %v3723 = vmul.f32 %v3563, %v179
  %v3724 = vmul.f32 %v3567, %v180
  %v3725 = vmul.f32 %v3567, %v181
  %v3726 = vmul.f32 %v3567, %v182
  %v3727 = vmul.f32 %v3567, %v183
  %v3728 = vmul.f32 %v3571, %v184
  %v3729 = vmul.f32 %v3571, %v185
  %v3730 = vmul.f32 %v3571, %v186
  %v3731 = vmul.f32 %v3571, %v187
  %v3732 = vmul.f32 %v3575, %v188
  %v3733 = vmul.f32 %v3575, %v189
  %v3734 = vmul.f32 %v3575, %v190
  %v3735 = vmul.f32 %v3575, %v191
  %v3736 = vmul.f32 %v3579, %v192
  %v3737 = vmul.f32 %v3579, %v193
  %v3738 = vmul.f32 %v3579, %v194
  %v3739 = vmul.f32 %v3579, %v195
  %v3740 = vmul.f32 %v3583, %v196
  %v3741 = vmul.f32 %v3583, %v197
  %v3742 = vmul.f32 %v3583, %v198
  %v3743 = vmul.f32 %v3583, %v199
  %v3744 = vmul.f32 %v3587, %v200
  %v3745 = vmul.f32 %v3587, %v201
  %v3746 = vmul.f32 %v3587, %v202
  %v3747 = vmul.f32 %v3587, %v203
  %v3748 = vmul.f32 %v3591, %v204
  %v3749 = vmul.f32 %v3591, %v205
  %v3750 = vmul.f32 %v3591, %v206
  %v3751 = vmul.f32 %v3591, %v207
  %v3752 = vmul.f32 %v3595, %v208
  %v3753 = vmul.f32 %v3595, %v209
  %v3754 = vmul.f32 %v3595, %v210
  %v3755 = vmul.f32 %v3595, %v211
  %v3756 = vmul.f32 %v3599, %v212
  %v3757 = vmul.f32 %v3599, %v213
  %v3758 = vmul.f32 %v3599, %v214
  %v3759 = vmul.f32 %v3599, %v215
  %v3760 = vmul.f32 %v3603, %v216
  %v3761 = vmul.f32 %v3603, %v217
  %v3762 = vmul.f32 %v3603, %v218
  %v3763 = vmul.f32 %v3603, %v219
  %v3764 = vmul.f32 %v3607, %v220
  %v3765 = vmul.f32 %v3607, %v221
  %v3766 = vmul.f32 %v3607, %v222
  %v3767 = vmul.f32 %v3607, %v223
  %v3768 = vsel %vm1457, %v3640, 0.0
  %3769 = vadd.xlane.f32.xlu0 %v3768
  %v3770 = vpop.xlane.xlu0 %3769
  %v3771 = vsel %vm1457, %v3641, 0.0
  %3772 = vadd.xlane.f32.xlu0 %v3771
  %v3773 = vpop.xlane.xlu0 %3772
  %v3774 = vsel %vm1457, %v3642, 0.0
  %3775 = vadd.xlane.f32.xlu0 %v3774
  %v3776 = vpop.xlane.xlu0 %3775
  %v3777 = vsel %vm1457, %v3643, 0.0
  %3778 = vadd.xlane.f32.xlu0 %v3777
  %v3779 = vpop.xlane.xlu0 %3778
  %v3780 = vsel %vm1457, %v3644, 0.0
  %3781 = vadd.xlane.f32.xlu0 %v3780
  %v3782 = vpop.xlane.xlu0 %3781
  %v3783 = vsel %vm1457, %v3645, 0.0
  %3784 = vadd.xlane.f32.xlu0 %v3783
  %v3785 = vpop.xlane.xlu0 %3784
  %v3786 = vsel %vm1457, %v3646, 0.0
  %3787 = vadd.xlane.f32.xlu0 %v3786
  %v3788 = vpop.xlane.xlu0 %3787
  %v3789 = vsel %vm1457, %v3647, 0.0
  %3790 = vadd.xlane.f32.xlu0 %v3789
  %v3791 = vpop.xlane.xlu0 %3790
  %v3792 = vsel %vm1457, %v3648, 0.0
  %3793 = vadd.xlane.f32.xlu0 %v3792
  %v3794 = vpop.xlane.xlu0 %3793
  %v3795 = vsel %vm1457, %v3649, 0.0
  %3796 = vadd.xlane.f32.xlu0 %v3795
  %v3797 = vpop.xlane.xlu0 %3796
  %v3798 = vsel %vm1457, %v3650, 0.0
  %3799 = vadd.xlane.f32.xlu0 %v3798
  %v3800 = vpop.xlane.xlu0 %3799
  %v3801 = vsel %vm1457, %v3651, 0.0
  %3802 = vadd.xlane.f32.xlu0 %v3801
  %v3803 = vpop.xlane.xlu0 %3802
  %v3804 = vsel %vm1457, %v3652, 0.0
  %3805 = vadd.xlane.f32.xlu0 %v3804
  %v3806 = vpop.xlane.xlu0 %3805
  %v3807 = vsel %vm1457, %v3653, 0.0
  %3808 = vadd.xlane.f32.xlu0 %v3807
  %v3809 = vpop.xlane.xlu0 %3808
  %v3810 = vsel %vm1457, %v3654, 0.0
  %3811 = vadd.xlane.f32.xlu0 %v3810
  %v3812 = vpop.xlane.xlu0 %3811
  %v3813 = vsel %vm1457, %v3655, 0.0
  %3814 = vadd.xlane.f32.xlu0 %v3813
  %v3815 = vpop.xlane.xlu0 %3814
  %v3816 = vsel %vm1457, %v3656, 0.0
  %3817 = vadd.xlane.f32.xlu0 %v3816
  %v3818 = vpop.xlane.xlu0 %3817
  %v3819 = vsel %vm1457, %v3657, 0.0
  %3820 = vadd.xlane.f32.xlu0 %v3819
  %v3821 = vpop.xlane.xlu0 %3820
  %v3822 = vsel %vm1457, %v3658, 0.0
  %3823 = vadd.xlane.f32.xlu0 %v3822
  %v3824 = vpop.xlane.xlu0 %3823
  %v3825 = vsel %vm1457, %v3659, 0.0
  %3826 = vadd.xlane.f32.xlu0 %v3825
  %v3827 = vpop.xlane.xlu0 %3826
  %v3828 = vsel %vm1457, %v3660, 0.0
  %3829 = vadd.xlane.f32.xlu0 %v3828
  %v3830 = vpop.xlane.xlu0 %3829
  %v3831 = vsel %vm1457, %v3661, 0.0
  %3832 = vadd.xlane.f32.xlu0 %v3831
  %v3833 = vpop.xlane.xlu0 %3832
  %v3834 = vsel %vm1457, %v3662, 0.0
  %3835 = vadd.xlane.f32.xlu0 %v3834
  %v3836 = vpop.xlane.xlu0 %3835
  %v3837 = vsel %vm1457, %v3663, 0.0
  %3838 = vadd.xlane.f32.xlu0 %v3837
  %v3839 = vpop.xlane.xlu0 %3838
  %v3840 = vsel %vm1457, %v3664, 0.0
  %3841 = vadd.xlane.f32.xlu0 %v3840
  %v3842 = vpop.xlane.xlu0 %3841
  %v3843 = vsel %vm1457, %v3665, 0.0
  %3844 = vadd.xlane.f32.xlu0 %v3843
  %v3845 = vpop.xlane.xlu0 %3844
  %v3846 = vsel %vm1457, %v3666, 0.0
  %3847 = vadd.xlane.f32.xlu0 %v3846
  %v3848 = vpop.xlane.xlu0 %3847
  %v3849 = vsel %vm1457, %v3667, 0.0
  %3850 = vadd.xlane.f32.xlu0 %v3849
  %v3851 = vpop.xlane.xlu0 %3850
  %v3852 = vsel %vm1457, %v3668, 0.0
  %3853 = vadd.xlane.f32.xlu0 %v3852
  %v3854 = vpop.xlane.xlu0 %3853
  %v3855 = vsel %vm1457, %v3669, 0.0
  %3856 = vadd.xlane.f32.xlu0 %v3855
  %v3857 = vpop.xlane.xlu0 %3856
  %v3858 = vsel %vm1457, %v3670, 0.0
  %3859 = vadd.xlane.f32.xlu0 %v3858
  %v3860 = vpop.xlane.xlu0 %3859
  %v3861 = vsel %vm1457, %v3671, 0.0
  %3862 = vadd.xlane.f32.xlu0 %v3861
  %v3863 = vpop.xlane.xlu0 %3862
  %v3864 = vsel %vm1457, %v3672, 0.0
  %3865 = vadd.xlane.f32.xlu0 %v3864
  %v3866 = vpop.xlane.xlu0 %3865
  %v3867 = vsel %vm1457, %v3673, 0.0
  %3868 = vadd.xlane.f32.xlu0 %v3867
  %v3869 = vpop.xlane.xlu0 %3868
  %v3870 = vsel %vm1457, %v3674, 0.0
  %3871 = vadd.xlane.f32.xlu0 %v3870
  %v3872 = vpop.xlane.xlu0 %3871
  %v3873 = vsel %vm1457, %v3675, 0.0
  %3874 = vadd.xlane.f32.xlu0 %v3873
  %v3875 = vpop.xlane.xlu0 %3874
  %v3876 = vsel %vm1457, %v3676, 0.0
  %3877 = vadd.xlane.f32.xlu0 %v3876
  %v3878 = vpop.xlane.xlu0 %3877
  %v3879 = vsel %vm1457, %v3677, 0.0
  %3880 = vadd.xlane.f32.xlu0 %v3879
  %v3881 = vpop.xlane.xlu0 %3880
  %v3882 = vsel %vm1457, %v3678, 0.0
  %3883 = vadd.xlane.f32.xlu0 %v3882
  %v3884 = vpop.xlane.xlu0 %3883
  %v3885 = vsel %vm1457, %v3679, 0.0
  %3886 = vadd.xlane.f32.xlu0 %v3885
  %v3887 = vpop.xlane.xlu0 %3886
  %v3888 = vsel %vm1457, %v3680, 0.0
  %3889 = vadd.xlane.f32.xlu0 %v3888
  %v3890 = vpop.xlane.xlu0 %3889
  %v3891 = vsel %vm1457, %v3681, 0.0
  %3892 = vadd.xlane.f32.xlu0 %v3891
  %v3893 = vpop.xlane.xlu0 %3892
  %v3894 = vsel %vm1457, %v3682, 0.0
  %3895 = vadd.xlane.f32.xlu0 %v3894
  %v3896 = vpop.xlane.xlu0 %3895
  %v3897 = vsel %vm1457, %v3683, 0.0
  %3898 = vadd.xlane.f32.xlu0 %v3897
  %v3899 = vpop.xlane.xlu0 %3898
  %v3900 = vsel %vm1457, %v3684, 0.0
  %3901 = vadd.xlane.f32.xlu0 %v3900
  %v3902 = vpop.xlane.xlu0 %3901
  %v3903 = vsel %vm1457, %v3685, 0.0
  %3904 = vadd.xlane.f32.xlu0 %v3903
  %v3905 = vpop.xlane.xlu0 %3904
  %v3906 = vsel %vm1457, %v3686, 0.0
  %3907 = vadd.xlane.f32.xlu0 %v3906
  %v3908 = vpop.xlane.xlu0 %3907
  %v3909 = vsel %vm1457, %v3687, 0.0
  %3910 = vadd.xlane.f32.xlu0 %v3909
  %v3911 = vpop.xlane.xlu0 %3910
  %v3912 = vsel %vm1457, %v3688, 0.0
  %3913 = vadd.xlane.f32.xlu0 %v3912
  %v3914 = vpop.xlane.xlu0 %3913
  %v3915 = vsel %vm1457, %v3689, 0.0
  %3916 = vadd.xlane.f32.xlu0 %v3915
  %v3917 = vpop.xlane.xlu0 %3916
  %v3918 = vsel %vm1457, %v3690, 0.0
  %3919 = vadd.xlane.f32.xlu0 %v3918
  %v3920 = vpop.xlane.xlu0 %3919
  %v3921 = vsel %vm1457, %v3691, 0.0
  %3922 = vadd.xlane.f32.xlu0 %v3921
  %v3923 = vpop.xlane.xlu0 %3922
  %v3924 = vsel %vm1457, %v3692, 0.0
  %3925 = vadd.xlane.f32.xlu0 %v3924
  %v3926 = vpop.xlane.xlu0 %3925
  %v3927 = vsel %vm1457, %v3693, 0.0
  %3928 = vadd.xlane.f32.xlu0 %v3927
  %v3929 = vpop.xlane.xlu0 %3928
  %v3930 = vsel %vm1457, %v3694, 0.0
  %3931 = vadd.xlane.f32.xlu0 %v3930
  %v3932 = vpop.xlane.xlu0 %3931
  %v3933 = vsel %vm1457, %v3695, 0.0
  %3934 = vadd.xlane.f32.xlu0 %v3933
  %v3935 = vpop.xlane.xlu0 %3934
  %v3936 = vsel %vm1457, %v3696, 0.0
  %3937 = vadd.xlane.f32.xlu0 %v3936
  %v3938 = vpop.xlane.xlu0 %3937
  %v3939 = vsel %vm1457, %v3697, 0.0
  %3940 = vadd.xlane.f32.xlu0 %v3939
  %v3941 = vpop.xlane.xlu0 %3940
  %v3942 = vsel %vm1457, %v3698, 0.0
  %3943 = vadd.xlane.f32.xlu0 %v3942
  %v3944 = vpop.xlane.xlu0 %3943
  %v3945 = vsel %vm1457, %v3699, 0.0
  %3946 = vadd.xlane.f32.xlu0 %v3945
  %v3947 = vpop.xlane.xlu0 %3946
  %v3948 = vsel %vm1457, %v3700, 0.0
  %3949 = vadd.xlane.f32.xlu0 %v3948
  %v3950 = vpop.xlane.xlu0 %3949
  %v3951 = vsel %vm1457, %v3701, 0.0
  %3952 = vadd.xlane.f32.xlu0 %v3951
  %v3953 = vpop.xlane.xlu0 %3952
  %v3954 = vsel %vm1457, %v3702, 0.0
  %3955 = vadd.xlane.f32.xlu0 %v3954
  %v3956 = vpop.xlane.xlu0 %3955
  %v3957 = vsel %vm1457, %v3703, 0.0
  %3958 = vadd.xlane.f32.xlu0 %v3957
  %v3959 = vpop.xlane.xlu0 %3958
  %v3960 = vsel %vm1457, %v3704, 0.0
  %3961 = vadd.xlane.f32.xlu0 %v3960
  %v3962 = vpop.xlane.xlu0 %3961
  %v3963 = vsel %vm1457, %v3705, 0.0
  %3964 = vadd.xlane.f32.xlu0 %v3963
  %v3965 = vpop.xlane.xlu0 %3964
  %v3966 = vsel %vm1457, %v3706, 0.0
  %3967 = vadd.xlane.f32.xlu0 %v3966
  %v3968 = vpop.xlane.xlu0 %3967
  %v3969 = vsel %vm1457, %v3707, 0.0
  %3970 = vadd.xlane.f32.xlu0 %v3969
  %v3971 = vpop.xlane.xlu0 %3970
  %v3972 = vsel %vm1457, %v3708, 0.0
  %3973 = vadd.xlane.f32.xlu0 %v3972
  %v3974 = vpop.xlane.xlu0 %3973
  %v3975 = vsel %vm1457, %v3709, 0.0
  %3976 = vadd.xlane.f32.xlu0 %v3975
  %v3977 = vpop.xlane.xlu0 %3976
  %v3978 = vsel %vm1457, %v3710, 0.0
  %3979 = vadd.xlane.f32.xlu0 %v3978
  %v3980 = vpop.xlane.xlu0 %3979
  %v3981 = vsel %vm1457, %v3711, 0.0
  %3982 = vadd.xlane.f32.xlu0 %v3981
  %v3983 = vpop.xlane.xlu0 %3982
  %v3984 = vsel %vm1457, %v3712, 0.0
  %3985 = vadd.xlane.f32.xlu0 %v3984
  %v3986 = vpop.xlane.xlu0 %3985
  %v3987 = vsel %vm1457, %v3713, 0.0
  %3988 = vadd.xlane.f32.xlu0 %v3987
  %v3989 = vpop.xlane.xlu0 %3988
  %v3990 = vsel %vm1457, %v3714, 0.0
  %3991 = vadd.xlane.f32.xlu0 %v3990
  %v3992 = vpop.xlane.xlu0 %3991
  %v3993 = vsel %vm1457, %v3715, 0.0
  %3994 = vadd.xlane.f32.xlu0 %v3993
  %v3995 = vpop.xlane.xlu0 %3994
  %v3996 = vsel %vm1457, %v3716, 0.0
  %3997 = vadd.xlane.f32.xlu0 %v3996
  %v3998 = vpop.xlane.xlu0 %3997
  %v3999 = vsel %vm1457, %v3717, 0.0
  %4000 = vadd.xlane.f32.xlu0 %v3999
  %v4001 = vpop.xlane.xlu0 %4000
  %v4002 = vsel %vm1457, %v3718, 0.0
  %4003 = vadd.xlane.f32.xlu0 %v4002
  %v4004 = vpop.xlane.xlu0 %4003
  %v4005 = vsel %vm1457, %v3719, 0.0
  %4006 = vadd.xlane.f32.xlu0 %v4005
  %v4007 = vpop.xlane.xlu0 %4006
  %v4008 = vsel %vm1457, %v3720, 0.0
  %4009 = vadd.xlane.f32.xlu0 %v4008
  %v4010 = vpop.xlane.xlu0 %4009
  %v4011 = vsel %vm1457, %v3721, 0.0
  %4012 = vadd.xlane.f32.xlu0 %v4011
  %v4013 = vpop.xlane.xlu0 %4012
  %v4014 = vsel %vm1457, %v3722, 0.0
  %4015 = vadd.xlane.f32.xlu0 %v4014
  %v4016 = vpop.xlane.xlu0 %4015
  %v4017 = vsel %vm1457, %v3723, 0.0
  %4018 = vadd.xlane.f32.xlu0 %v4017
  %v4019 = vpop.xlane.xlu0 %4018
  %v4020 = vsel %vm1457, %v3724, 0.0
  %4021 = vadd.xlane.f32.xlu0 %v4020
  %v4022 = vpop.xlane.xlu0 %4021
  %v4023 = vsel %vm1457, %v3725, 0.0
  %4024 = vadd.xlane.f32.xlu0 %v4023
  %v4025 = vpop.xlane.xlu0 %4024
  %v4026 = vsel %vm1457, %v3726, 0.0
  %4027 = vadd.xlane.f32.xlu0 %v4026
  %v4028 = vpop.xlane.xlu0 %4027
  %v4029 = vsel %vm1457, %v3727, 0.0
  %4030 = vadd.xlane.f32.xlu0 %v4029
  %v4031 = vpop.xlane.xlu0 %4030
  %v4032 = vsel %vm1457, %v3728, 0.0
  %4033 = vadd.xlane.f32.xlu0 %v4032
  %v4034 = vpop.xlane.xlu0 %4033
  %v4035 = vsel %vm1457, %v3729, 0.0
  %4036 = vadd.xlane.f32.xlu0 %v4035
  %v4037 = vpop.xlane.xlu0 %4036
  %v4038 = vsel %vm1457, %v3730, 0.0
  %4039 = vadd.xlane.f32.xlu0 %v4038
  %v4040 = vpop.xlane.xlu0 %4039
  %v4041 = vsel %vm1457, %v3731, 0.0
  %4042 = vadd.xlane.f32.xlu0 %v4041
  %v4043 = vpop.xlane.xlu0 %4042
  %v4044 = vsel %vm1457, %v3732, 0.0
  %4045 = vadd.xlane.f32.xlu0 %v4044
  %v4046 = vpop.xlane.xlu0 %4045
  %v4047 = vsel %vm1457, %v3733, 0.0
  %4048 = vadd.xlane.f32.xlu0 %v4047
  %v4049 = vpop.xlane.xlu0 %4048
  %v4050 = vsel %vm1457, %v3734, 0.0
  %4051 = vadd.xlane.f32.xlu0 %v4050
  %v4052 = vpop.xlane.xlu0 %4051
  %v4053 = vsel %vm1457, %v3735, 0.0
  %4054 = vadd.xlane.f32.xlu0 %v4053
  %v4055 = vpop.xlane.xlu0 %4054
  %v4056 = vsel %vm1457, %v3736, 0.0
  %4057 = vadd.xlane.f32.xlu0 %v4056
  %v4058 = vpop.xlane.xlu0 %4057
  %v4059 = vsel %vm1457, %v3737, 0.0
  %4060 = vadd.xlane.f32.xlu0 %v4059
  %v4061 = vpop.xlane.xlu0 %4060
  %v4062 = vsel %vm1457, %v3738, 0.0
  %4063 = vadd.xlane.f32.xlu0 %v4062
  %v4064 = vpop.xlane.xlu0 %4063
  %v4065 = vsel %vm1457, %v3739, 0.0
  %4066 = vadd.xlane.f32.xlu0 %v4065
  %v4067 = vpop.xlane.xlu0 %4066
  %v4068 = vsel %vm1457, %v3740, 0.0
  %4069 = vadd.xlane.f32.xlu0 %v4068
  %v4070 = vpop.xlane.xlu0 %4069
  %v4071 = vsel %vm1457, %v3741, 0.0
  %4072 = vadd.xlane.f32.xlu0 %v4071
  %v4073 = vpop.xlane.xlu0 %4072
  %v4074 = vsel %vm1457, %v3742, 0.0
  %4075 = vadd.xlane.f32.xlu0 %v4074
  %v4076 = vpop.xlane.xlu0 %4075
  %v4077 = vsel %vm1457, %v3743, 0.0
  %4078 = vadd.xlane.f32.xlu0 %v4077
  %v4079 = vpop.xlane.xlu0 %4078
  %v4080 = vsel %vm1457, %v3744, 0.0
  %4081 = vadd.xlane.f32.xlu0 %v4080
  %v4082 = vpop.xlane.xlu0 %4081
  %v4083 = vsel %vm1457, %v3745, 0.0
  %4084 = vadd.xlane.f32.xlu0 %v4083
  %v4085 = vpop.xlane.xlu0 %4084
  %v4086 = vsel %vm1457, %v3746, 0.0
  %4087 = vadd.xlane.f32.xlu0 %v4086
  %v4088 = vpop.xlane.xlu0 %4087
  %v4089 = vsel %vm1457, %v3747, 0.0
  %4090 = vadd.xlane.f32.xlu0 %v4089
  %v4091 = vpop.xlane.xlu0 %4090
  %v4092 = vsel %vm1457, %v3748, 0.0
  %4093 = vadd.xlane.f32.xlu0 %v4092
  %v4094 = vpop.xlane.xlu0 %4093
  %v4095 = vsel %vm1457, %v3749, 0.0
  %4096 = vadd.xlane.f32.xlu0 %v4095
  %v4097 = vpop.xlane.xlu0 %4096
  %v4098 = vsel %vm1457, %v3750, 0.0
  %4099 = vadd.xlane.f32.xlu0 %v4098
  %v4100 = vpop.xlane.xlu0 %4099
  %v4101 = vsel %vm1457, %v3751, 0.0
  %4102 = vadd.xlane.f32.xlu0 %v4101
  %v4103 = vpop.xlane.xlu0 %4102
  %v4104 = vsel %vm1457, %v3752, 0.0
  %4105 = vadd.xlane.f32.xlu0 %v4104
  %v4106 = vpop.xlane.xlu0 %4105
  %v4107 = vsel %vm1457, %v3753, 0.0
  %4108 = vadd.xlane.f32.xlu0 %v4107
  %v4109 = vpop.xlane.xlu0 %4108
  %v4110 = vsel %vm1457, %v3754, 0.0
  %4111 = vadd.xlane.f32.xlu0 %v4110
  %v4112 = vpop.xlane.xlu0 %4111
  %v4113 = vsel %vm1457, %v3755, 0.0
  %4114 = vadd.xlane.f32.xlu0 %v4113
  %v4115 = vpop.xlane.xlu0 %4114
  %v4116 = vsel %vm1457, %v3756, 0.0
  %4117 = vadd.xlane.f32.xlu0 %v4116
  %v4118 = vpop.xlane.xlu0 %4117
  %v4119 = vsel %vm1457, %v3757, 0.0
  %4120 = vadd.xlane.f32.xlu0 %v4119
  %v4121 = vpop.xlane.xlu0 %4120
  %v4122 = vsel %vm1457, %v3758, 0.0
  %4123 = vadd.xlane.f32.xlu0 %v4122
  %v4124 = vpop.xlane.xlu0 %4123
  %v4125 = vsel %vm1457, %v3759, 0.0
  %4126 = vadd.xlane.f32.xlu0 %v4125
  %v4127 = vpop.xlane.xlu0 %4126
  %v4128 = vsel %vm1457, %v3760, 0.0
  %4129 = vadd.xlane.f32.xlu0 %v4128
  %v4130 = vpop.xlane.xlu0 %4129
  %v4131 = vsel %vm1457, %v3761, 0.0
  %4132 = vadd.xlane.f32.xlu0 %v4131
  %v4133 = vpop.xlane.xlu0 %4132
  %v4134 = vsel %vm1457, %v3762, 0.0
  %4135 = vadd.xlane.f32.xlu0 %v4134
  %v4136 = vpop.xlane.xlu0 %4135
  %v4137 = vsel %vm1457, %v3763, 0.0
  %4138 = vadd.xlane.f32.xlu0 %v4137
  %v4139 = vpop.xlane.xlu0 %4138
  %v4140 = vsel %vm1457, %v3764, 0.0
  %4141 = vadd.xlane.f32.xlu0 %v4140
  %v4142 = vpop.xlane.xlu0 %4141
  %v4143 = vsel %vm1457, %v3765, 0.0
  %4144 = vadd.xlane.f32.xlu0 %v4143
  %v4145 = vpop.xlane.xlu0 %4144
  %v4146 = vsel %vm1457, %v3766, 0.0
  %4147 = vadd.xlane.f32.xlu0 %v4146
  %v4148 = vpop.xlane.xlu0 %4147
  %v4149 = vsel %vm1457, %v3767, 0.0
  %4150 = vadd.xlane.f32.xlu0 %v4149
  %v4151 = vpop.xlane.xlu0 %4150
  %v4280 = vlaneseq
  %v4281 = vshrl.u32 %v4280, 7
  %v4282 = vsub.s32 %v571, %v4281
  %v4283 = vrot.slane %v3770, %v4282
  %v4284 = vlaneseq
  %v4285 = vshrl.u32 %v4284, 7
  %v4286 = vsub.s32 %v1974, %v4285
  %v4287 = vrot.slane %v3773, %v4286
  %v4288 = vsel %vm1979, %v4287, %v4283
  %v4289 = vlaneseq
  %v4290 = vshrl.u32 %v4289, 7
  %v4291 = vsub.s32 %v1981, %v4290
  %v4292 = vrot.slane %v3776, %v4291
  %v4293 = vsel %vm1986, %v4292, %v4288
  %v4294 = vlaneseq
  %v4295 = vshrl.u32 %v4294, 7
  %v4296 = vsub.s32 %v1988, %v4295
  %v4297 = vrot.slane %v3779, %v4296
  %v4298 = vsel %vm1993, %v4297, %v4293
  %v4299 = vlaneseq
  %v4300 = vshrl.u32 %v4299, 7
  %v4301 = vsub.s32 %v571, %v4300
  %v4302 = vrot.slane %v3782, %v4301
  %v4303 = vlaneseq
  %v4304 = vshrl.u32 %v4303, 7
  %v4305 = vsub.s32 %v1974, %v4304
  %v4306 = vrot.slane %v3785, %v4305
  %v4307 = vsel %vm1979, %v4306, %v4302
  %v4308 = vlaneseq
  %v4309 = vshrl.u32 %v4308, 7
  %v4310 = vsub.s32 %v1981, %v4309
  %v4311 = vrot.slane %v3788, %v4310
  %v4312 = vsel %vm1986, %v4311, %v4307
  %v4313 = vlaneseq
  %v4314 = vshrl.u32 %v4313, 7
  %v4315 = vsub.s32 %v1988, %v4314
  %v4316 = vrot.slane %v3791, %v4315
  %v4317 = vsel %vm1993, %v4316, %v4312
  %v4318 = vlaneseq
  %v4319 = vshrl.u32 %v4318, 7
  %v4320 = vsub.s32 %v571, %v4319
  %v4321 = vrot.slane %v3794, %v4320
  %v4322 = vlaneseq
  %v4323 = vshrl.u32 %v4322, 7
  %v4324 = vsub.s32 %v1974, %v4323
  %v4325 = vrot.slane %v3797, %v4324
  %v4326 = vsel %vm1979, %v4325, %v4321
  %v4327 = vlaneseq
  %v4328 = vshrl.u32 %v4327, 7
  %v4329 = vsub.s32 %v1981, %v4328
  %v4330 = vrot.slane %v3800, %v4329
  %v4331 = vsel %vm1986, %v4330, %v4326
  %v4332 = vlaneseq
  %v4333 = vshrl.u32 %v4332, 7
  %v4334 = vsub.s32 %v1988, %v4333
  %v4335 = vrot.slane %v3803, %v4334
  %v4336 = vsel %vm1993, %v4335, %v4331
  %v4337 = vlaneseq
  %v4338 = vshrl.u32 %v4337, 7
  %v4339 = vsub.s32 %v571, %v4338
  %v4340 = vrot.slane %v3806, %v4339
  %v4341 = vlaneseq
  %v4342 = vshrl.u32 %v4341, 7
  %v4343 = vsub.s32 %v1974, %v4342
  %v4344 = vrot.slane %v3809, %v4343
  %v4345 = vsel %vm1979, %v4344, %v4340
  %v4346 = vlaneseq
  %v4347 = vshrl.u32 %v4346, 7
  %v4348 = vsub.s32 %v1981, %v4347
  %v4349 = vrot.slane %v3812, %v4348
  %v4350 = vsel %vm1986, %v4349, %v4345
  %v4351 = vlaneseq
  %v4352 = vshrl.u32 %v4351, 7
  %v4353 = vsub.s32 %v1988, %v4352
  %v4354 = vrot.slane %v3815, %v4353
  %v4355 = vsel %vm1993, %v4354, %v4350
  %v4356 = vlaneseq
  %v4357 = vshrl.u32 %v4356, 7
  %v4358 = vsub.s32 %v571, %v4357
  %v4359 = vrot.slane %v3818, %v4358
  %v4360 = vlaneseq
  %v4361 = vshrl.u32 %v4360, 7
  %v4362 = vsub.s32 %v1974, %v4361
  %v4363 = vrot.slane %v3821, %v4362
  %v4364 = vsel %vm1979, %v4363, %v4359
  %v4365 = vlaneseq
  %v4366 = vshrl.u32 %v4365, 7
  %v4367 = vsub.s32 %v1981, %v4366
  %v4368 = vrot.slane %v3824, %v4367
  %v4369 = vsel %vm1986, %v4368, %v4364
  %v4370 = vlaneseq
  %v4371 = vshrl.u32 %v4370, 7
  %v4372 = vsub.s32 %v1988, %v4371
  %v4373 = vrot.slane %v3827, %v4372
  %v4374 = vsel %vm1993, %v4373, %v4369
  %v4375 = vlaneseq
  %v4376 = vshrl.u32 %v4375, 7
  %v4377 = vsub.s32 %v571, %v4376
  %v4378 = vrot.slane %v3830, %v4377
  %v4379 = vlaneseq
  %v4380 = vshrl.u32 %v4379, 7
  %v4381 = vsub.s32 %v1974, %v4380
  %v4382 = vrot.slane %v3833, %v4381
  %v4383 = vsel %vm1979, %v4382, %v4378
  %v4384 = vlaneseq
  %v4385 = vshrl.u32 %v4384, 7
  %v4386 = vsub.s32 %v1981, %v4385
  %v4387 = vrot.slane %v3836, %v4386
  %v4388 = vsel %vm1986, %v4387, %v4383
  %v4389 = vlaneseq
  %v4390 = vshrl.u32 %v4389, 7
  %v4391 = vsub.s32 %v1988, %v4390
  %v4392 = vrot.slane %v3839, %v4391
  %v4393 = vsel %vm1993, %v4392, %v4388
  %v4394 = vlaneseq
  %v4395 = vshrl.u32 %v4394, 7
  %v4396 = vsub.s32 %v571, %v4395
  %v4397 = vrot.slane %v3842, %v4396
  %v4398 = vlaneseq
  %v4399 = vshrl.u32 %v4398, 7
  %v4400 = vsub.s32 %v1974, %v4399
  %v4401 = vrot.slane %v3845, %v4400
  %v4402 = vsel %vm1979, %v4401, %v4397
  %v4403 = vlaneseq
  %v4404 = vshrl.u32 %v4403, 7
  %v4405 = vsub.s32 %v1981, %v4404
  %v4406 = vrot.slane %v3848, %v4405
  %v4407 = vsel %vm1986, %v4406, %v4402
  %v4408 = vlaneseq
  %v4409 = vshrl.u32 %v4408, 7
  %v4410 = vsub.s32 %v1988, %v4409
  %v4411 = vrot.slane %v3851, %v4410
  %v4412 = vsel %vm1993, %v4411, %v4407
  %v4413 = vlaneseq
  %v4414 = vshrl.u32 %v4413, 7
  %v4415 = vsub.s32 %v571, %v4414
  %v4416 = vrot.slane %v3854, %v4415
  %v4417 = vlaneseq
  %v4418 = vshrl.u32 %v4417, 7
  %v4419 = vsub.s32 %v1974, %v4418
  %v4420 = vrot.slane %v3857, %v4419
  %v4421 = vsel %vm1979, %v4420, %v4416
  %v4422 = vlaneseq
  %v4423 = vshrl.u32 %v4422, 7
  %v4424 = vsub.s32 %v1981, %v4423
  %v4425 = vrot.slane %v3860, %v4424
  %v4426 = vsel %vm1986, %v4425, %v4421
  %v4427 = vlaneseq
  %v4428 = vshrl.u32 %v4427, 7
  %v4429 = vsub.s32 %v1988, %v4428
  %v4430 = vrot.slane %v3863, %v4429
  %v4431 = vsel %vm1993, %v4430, %v4426
  %v4432 = vlaneseq
  %v4433 = vshrl.u32 %v4432, 7
  %v4434 = vsub.s32 %v571, %v4433
  %v4435 = vrot.slane %v3866, %v4434
  %v4436 = vlaneseq
  %v4437 = vshrl.u32 %v4436, 7
  %v4438 = vsub.s32 %v1974, %v4437
  %v4439 = vrot.slane %v3869, %v4438
  %v4440 = vsel %vm1979, %v4439, %v4435
  %v4441 = vlaneseq
  %v4442 = vshrl.u32 %v4441, 7
  %v4443 = vsub.s32 %v1981, %v4442
  %v4444 = vrot.slane %v3872, %v4443
  %v4445 = vsel %vm1986, %v4444, %v4440
  %v4446 = vlaneseq
  %v4447 = vshrl.u32 %v4446, 7
  %v4448 = vsub.s32 %v1988, %v4447
  %v4449 = vrot.slane %v3875, %v4448
  %v4450 = vsel %vm1993, %v4449, %v4445
  %v4451 = vlaneseq
  %v4452 = vshrl.u32 %v4451, 7
  %v4453 = vsub.s32 %v571, %v4452
  %v4454 = vrot.slane %v3878, %v4453
  %v4455 = vlaneseq
  %v4456 = vshrl.u32 %v4455, 7
  %v4457 = vsub.s32 %v1974, %v4456
  %v4458 = vrot.slane %v3881, %v4457
  %v4459 = vsel %vm1979, %v4458, %v4454
  %v4460 = vlaneseq
  %v4461 = vshrl.u32 %v4460, 7
  %v4462 = vsub.s32 %v1981, %v4461
  %v4463 = vrot.slane %v3884, %v4462
  %v4464 = vsel %vm1986, %v4463, %v4459
  %v4465 = vlaneseq
  %v4466 = vshrl.u32 %v4465, 7
  %v4467 = vsub.s32 %v1988, %v4466
  %v4468 = vrot.slane %v3887, %v4467
  %v4469 = vsel %vm1993, %v4468, %v4464
  %v4470 = vlaneseq
  %v4471 = vshrl.u32 %v4470, 7
  %v4472 = vsub.s32 %v571, %v4471
  %v4473 = vrot.slane %v3890, %v4472
  %v4474 = vlaneseq
  %v4475 = vshrl.u32 %v4474, 7
  %v4476 = vsub.s32 %v1974, %v4475
  %v4477 = vrot.slane %v3893, %v4476
  %v4478 = vsel %vm1979, %v4477, %v4473
  %v4479 = vlaneseq
  %v4480 = vshrl.u32 %v4479, 7
  %v4481 = vsub.s32 %v1981, %v4480
  %v4482 = vrot.slane %v3896, %v4481
  %v4483 = vsel %vm1986, %v4482, %v4478
  %v4484 = vlaneseq
  %v4485 = vshrl.u32 %v4484, 7
  %v4486 = vsub.s32 %v1988, %v4485
  %v4487 = vrot.slane %v3899, %v4486
  %v4488 = vsel %vm1993, %v4487, %v4483
  %v4489 = vlaneseq
  %v4490 = vshrl.u32 %v4489, 7
  %v4491 = vsub.s32 %v571, %v4490
  %v4492 = vrot.slane %v3902, %v4491
  %v4493 = vlaneseq
  %v4494 = vshrl.u32 %v4493, 7
  %v4495 = vsub.s32 %v1974, %v4494
  %v4496 = vrot.slane %v3905, %v4495
  %v4497 = vsel %vm1979, %v4496, %v4492
  %v4498 = vlaneseq
  %v4499 = vshrl.u32 %v4498, 7
  %v4500 = vsub.s32 %v1981, %v4499
  %v4501 = vrot.slane %v3908, %v4500
  %v4502 = vsel %vm1986, %v4501, %v4497
  %v4503 = vlaneseq
  %v4504 = vshrl.u32 %v4503, 7
  %v4505 = vsub.s32 %v1988, %v4504
  %v4506 = vrot.slane %v3911, %v4505
  %v4507 = vsel %vm1993, %v4506, %v4502
  %v4508 = vlaneseq
  %v4509 = vshrl.u32 %v4508, 7
  %v4510 = vsub.s32 %v571, %v4509
  %v4511 = vrot.slane %v3914, %v4510
  %v4512 = vlaneseq
  %v4513 = vshrl.u32 %v4512, 7
  %v4514 = vsub.s32 %v1974, %v4513
  %v4515 = vrot.slane %v3917, %v4514
  %v4516 = vsel %vm1979, %v4515, %v4511
  %v4517 = vlaneseq
  %v4518 = vshrl.u32 %v4517, 7
  %v4519 = vsub.s32 %v1981, %v4518
  %v4520 = vrot.slane %v3920, %v4519
  %v4521 = vsel %vm1986, %v4520, %v4516
  %v4522 = vlaneseq
  %v4523 = vshrl.u32 %v4522, 7
  %v4524 = vsub.s32 %v1988, %v4523
  %v4525 = vrot.slane %v3923, %v4524
  %v4526 = vsel %vm1993, %v4525, %v4521
  %v4527 = vlaneseq
  %v4528 = vshrl.u32 %v4527, 7
  %v4529 = vsub.s32 %v571, %v4528
  %v4530 = vrot.slane %v3926, %v4529
  %v4531 = vlaneseq
  %v4532 = vshrl.u32 %v4531, 7
  %v4533 = vsub.s32 %v1974, %v4532
  %v4534 = vrot.slane %v3929, %v4533
  %v4535 = vsel %vm1979, %v4534, %v4530
  %v4536 = vlaneseq
  %v4537 = vshrl.u32 %v4536, 7
  %v4538 = vsub.s32 %v1981, %v4537
  %v4539 = vrot.slane %v3932, %v4538
  %v4540 = vsel %vm1986, %v4539, %v4535
  %v4541 = vlaneseq
  %v4542 = vshrl.u32 %v4541, 7
  %v4543 = vsub.s32 %v1988, %v4542
  %v4544 = vrot.slane %v3935, %v4543
  %v4545 = vsel %vm1993, %v4544, %v4540
  %v4546 = vlaneseq
  %v4547 = vshrl.u32 %v4546, 7
  %v4548 = vsub.s32 %v571, %v4547
  %v4549 = vrot.slane %v3938, %v4548
  %v4550 = vlaneseq
  %v4551 = vshrl.u32 %v4550, 7
  %v4552 = vsub.s32 %v1974, %v4551
  %v4553 = vrot.slane %v3941, %v4552
  %v4554 = vsel %vm1979, %v4553, %v4549
  %v4555 = vlaneseq
  %v4556 = vshrl.u32 %v4555, 7
  %v4557 = vsub.s32 %v1981, %v4556
  %v4558 = vrot.slane %v3944, %v4557
  %v4559 = vsel %vm1986, %v4558, %v4554
  %v4560 = vlaneseq
  %v4561 = vshrl.u32 %v4560, 7
  %v4562 = vsub.s32 %v1988, %v4561
  %v4563 = vrot.slane %v3947, %v4562
  %v4564 = vsel %vm1993, %v4563, %v4559
  %v4565 = vlaneseq
  %v4566 = vshrl.u32 %v4565, 7
  %v4567 = vsub.s32 %v571, %v4566
  %v4568 = vrot.slane %v3950, %v4567
  %v4569 = vlaneseq
  %v4570 = vshrl.u32 %v4569, 7
  %v4571 = vsub.s32 %v1974, %v4570
  %v4572 = vrot.slane %v3953, %v4571
  %v4573 = vsel %vm1979, %v4572, %v4568
  %v4574 = vlaneseq
  %v4575 = vshrl.u32 %v4574, 7
  %v4576 = vsub.s32 %v1981, %v4575
  %v4577 = vrot.slane %v3956, %v4576
  %v4578 = vsel %vm1986, %v4577, %v4573
  %v4579 = vlaneseq
  %v4580 = vshrl.u32 %v4579, 7
  %v4581 = vsub.s32 %v1988, %v4580
  %v4582 = vrot.slane %v3959, %v4581
  %v4583 = vsel %vm1993, %v4582, %v4578
  %v4584 = vlaneseq
  %v4585 = vshrl.u32 %v4584, 7
  %v4586 = vsub.s32 %v571, %v4585
  %v4587 = vrot.slane %v3962, %v4586
  %v4588 = vlaneseq
  %v4589 = vshrl.u32 %v4588, 7
  %v4590 = vsub.s32 %v1974, %v4589
  %v4591 = vrot.slane %v3965, %v4590
  %v4592 = vsel %vm1979, %v4591, %v4587
  %v4593 = vlaneseq
  %v4594 = vshrl.u32 %v4593, 7
  %v4595 = vsub.s32 %v1981, %v4594
  %v4596 = vrot.slane %v3968, %v4595
  %v4597 = vsel %vm1986, %v4596, %v4592
  %v4598 = vlaneseq
  %v4599 = vshrl.u32 %v4598, 7
  %v4600 = vsub.s32 %v1988, %v4599
  %v4601 = vrot.slane %v3971, %v4600
  %v4602 = vsel %vm1993, %v4601, %v4597
  %v4603 = vlaneseq
  %v4604 = vshrl.u32 %v4603, 7
  %v4605 = vsub.s32 %v571, %v4604
  %v4606 = vrot.slane %v3974, %v4605
  %v4607 = vlaneseq
  %v4608 = vshrl.u32 %v4607, 7
  %v4609 = vsub.s32 %v1974, %v4608
  %v4610 = vrot.slane %v3977, %v4609
  %v4611 = vsel %vm1979, %v4610, %v4606
  %v4612 = vlaneseq
  %v4613 = vshrl.u32 %v4612, 7
  %v4614 = vsub.s32 %v1981, %v4613
  %v4615 = vrot.slane %v3980, %v4614
  %v4616 = vsel %vm1986, %v4615, %v4611
  %v4617 = vlaneseq
  %v4618 = vshrl.u32 %v4617, 7
  %v4619 = vsub.s32 %v1988, %v4618
  %v4620 = vrot.slane %v3983, %v4619
  %v4621 = vsel %vm1993, %v4620, %v4616
  %v4622 = vlaneseq
  %v4623 = vshrl.u32 %v4622, 7
  %v4624 = vsub.s32 %v571, %v4623
  %v4625 = vrot.slane %v3986, %v4624
  %v4626 = vlaneseq
  %v4627 = vshrl.u32 %v4626, 7
  %v4628 = vsub.s32 %v1974, %v4627
  %v4629 = vrot.slane %v3989, %v4628
  %v4630 = vsel %vm1979, %v4629, %v4625
  %v4631 = vlaneseq
  %v4632 = vshrl.u32 %v4631, 7
  %v4633 = vsub.s32 %v1981, %v4632
  %v4634 = vrot.slane %v3992, %v4633
  %v4635 = vsel %vm1986, %v4634, %v4630
  %v4636 = vlaneseq
  %v4637 = vshrl.u32 %v4636, 7
  %v4638 = vsub.s32 %v1988, %v4637
  %v4639 = vrot.slane %v3995, %v4638
  %v4640 = vsel %vm1993, %v4639, %v4635
  %v4641 = vlaneseq
  %v4642 = vshrl.u32 %v4641, 7
  %v4643 = vsub.s32 %v571, %v4642
  %v4644 = vrot.slane %v3998, %v4643
  %v4645 = vlaneseq
  %v4646 = vshrl.u32 %v4645, 7
  %v4647 = vsub.s32 %v1974, %v4646
  %v4648 = vrot.slane %v4001, %v4647
  %v4649 = vsel %vm1979, %v4648, %v4644
  %v4650 = vlaneseq
  %v4651 = vshrl.u32 %v4650, 7
  %v4652 = vsub.s32 %v1981, %v4651
  %v4653 = vrot.slane %v4004, %v4652
  %v4654 = vsel %vm1986, %v4653, %v4649
  %v4655 = vlaneseq
  %v4656 = vshrl.u32 %v4655, 7
  %v4657 = vsub.s32 %v1988, %v4656
  %v4658 = vrot.slane %v4007, %v4657
  %v4659 = vsel %vm1993, %v4658, %v4654
  %v4660 = vlaneseq
  %v4661 = vshrl.u32 %v4660, 7
  %v4662 = vsub.s32 %v571, %v4661
  %v4663 = vrot.slane %v4010, %v4662
  %v4664 = vlaneseq
  %v4665 = vshrl.u32 %v4664, 7
  %v4666 = vsub.s32 %v1974, %v4665
  %v4667 = vrot.slane %v4013, %v4666
  %v4668 = vsel %vm1979, %v4667, %v4663
  %v4669 = vlaneseq
  %v4670 = vshrl.u32 %v4669, 7
  %v4671 = vsub.s32 %v1981, %v4670
  %v4672 = vrot.slane %v4016, %v4671
  %v4673 = vsel %vm1986, %v4672, %v4668
  %v4674 = vlaneseq
  %v4675 = vshrl.u32 %v4674, 7
  %v4676 = vsub.s32 %v1988, %v4675
  %v4677 = vrot.slane %v4019, %v4676
  %v4678 = vsel %vm1993, %v4677, %v4673
  %v4679 = vlaneseq
  %v4680 = vshrl.u32 %v4679, 7
  %v4681 = vsub.s32 %v571, %v4680
  %v4682 = vrot.slane %v4022, %v4681
  %v4683 = vlaneseq
  %v4684 = vshrl.u32 %v4683, 7
  %v4685 = vsub.s32 %v1974, %v4684
  %v4686 = vrot.slane %v4025, %v4685
  %v4687 = vsel %vm1979, %v4686, %v4682
  %v4688 = vlaneseq
  %v4689 = vshrl.u32 %v4688, 7
  %v4690 = vsub.s32 %v1981, %v4689
  %v4691 = vrot.slane %v4028, %v4690
  %v4692 = vsel %vm1986, %v4691, %v4687
  %v4693 = vlaneseq
  %v4694 = vshrl.u32 %v4693, 7
  %v4695 = vsub.s32 %v1988, %v4694
  %v4696 = vrot.slane %v4031, %v4695
  %v4697 = vsel %vm1993, %v4696, %v4692
  %v4698 = vlaneseq
  %v4699 = vshrl.u32 %v4698, 7
  %v4700 = vsub.s32 %v571, %v4699
  %v4701 = vrot.slane %v4034, %v4700
  %v4702 = vlaneseq
  %v4703 = vshrl.u32 %v4702, 7
  %v4704 = vsub.s32 %v1974, %v4703
  %v4705 = vrot.slane %v4037, %v4704
  %v4706 = vsel %vm1979, %v4705, %v4701
  %v4707 = vlaneseq
  %v4708 = vshrl.u32 %v4707, 7
  %v4709 = vsub.s32 %v1981, %v4708
  %v4710 = vrot.slane %v4040, %v4709
  %v4711 = vsel %vm1986, %v4710, %v4706
  %v4712 = vlaneseq
  %v4713 = vshrl.u32 %v4712, 7
  %v4714 = vsub.s32 %v1988, %v4713
  %v4715 = vrot.slane %v4043, %v4714
  %v4716 = vsel %vm1993, %v4715, %v4711
  %v4717 = vlaneseq
  %v4718 = vshrl.u32 %v4717, 7
  %v4719 = vsub.s32 %v571, %v4718
  %v4720 = vrot.slane %v4046, %v4719
  %v4721 = vlaneseq
  %v4722 = vshrl.u32 %v4721, 7
  %v4723 = vsub.s32 %v1974, %v4722
  %v4724 = vrot.slane %v4049, %v4723
  %v4725 = vsel %vm1979, %v4724, %v4720
  %v4726 = vlaneseq
  %v4727 = vshrl.u32 %v4726, 7
  %v4728 = vsub.s32 %v1981, %v4727
  %v4729 = vrot.slane %v4052, %v4728
  %v4730 = vsel %vm1986, %v4729, %v4725
  %v4731 = vlaneseq
  %v4732 = vshrl.u32 %v4731, 7
  %v4733 = vsub.s32 %v1988, %v4732
  %v4734 = vrot.slane %v4055, %v4733
  %v4735 = vsel %vm1993, %v4734, %v4730
  %v4736 = vlaneseq
  %v4737 = vshrl.u32 %v4736, 7
  %v4738 = vsub.s32 %v571, %v4737
  %v4739 = vrot.slane %v4058, %v4738
  %v4740 = vlaneseq
  %v4741 = vshrl.u32 %v4740, 7
  %v4742 = vsub.s32 %v1974, %v4741
  %v4743 = vrot.slane %v4061, %v4742
  %v4744 = vsel %vm1979, %v4743, %v4739
  %v4745 = vlaneseq
  %v4746 = vshrl.u32 %v4745, 7
  %v4747 = vsub.s32 %v1981, %v4746
  %v4748 = vrot.slane %v4064, %v4747
  %v4749 = vsel %vm1986, %v4748, %v4744
  %v4750 = vlaneseq
  %v4751 = vshrl.u32 %v4750, 7
  %v4752 = vsub.s32 %v1988, %v4751
  %v4753 = vrot.slane %v4067, %v4752
  %v4754 = vsel %vm1993, %v4753, %v4749
  %v4755 = vlaneseq
  %v4756 = vshrl.u32 %v4755, 7
  %v4757 = vsub.s32 %v571, %v4756
  %v4758 = vrot.slane %v4070, %v4757
  %v4759 = vlaneseq
  %v4760 = vshrl.u32 %v4759, 7
  %v4761 = vsub.s32 %v1974, %v4760
  %v4762 = vrot.slane %v4073, %v4761
  %v4763 = vsel %vm1979, %v4762, %v4758
  %v4764 = vlaneseq
  %v4765 = vshrl.u32 %v4764, 7
  %v4766 = vsub.s32 %v1981, %v4765
  %v4767 = vrot.slane %v4076, %v4766
  %v4768 = vsel %vm1986, %v4767, %v4763
  %v4769 = vlaneseq
  %v4770 = vshrl.u32 %v4769, 7
  %v4771 = vsub.s32 %v1988, %v4770
  %v4772 = vrot.slane %v4079, %v4771
  %v4773 = vsel %vm1993, %v4772, %v4768
  %v4774 = vlaneseq
  %v4775 = vshrl.u32 %v4774, 7
  %v4776 = vsub.s32 %v571, %v4775
  %v4777 = vrot.slane %v4082, %v4776
  %v4778 = vlaneseq
  %v4779 = vshrl.u32 %v4778, 7
  %v4780 = vsub.s32 %v1974, %v4779
  %v4781 = vrot.slane %v4085, %v4780
  %v4782 = vsel %vm1979, %v4781, %v4777
  %v4783 = vlaneseq
  %v4784 = vshrl.u32 %v4783, 7
  %v4785 = vsub.s32 %v1981, %v4784
  %v4786 = vrot.slane %v4088, %v4785
  %v4787 = vsel %vm1986, %v4786, %v4782
  %v4788 = vlaneseq
  %v4789 = vshrl.u32 %v4788, 7
  %v4790 = vsub.s32 %v1988, %v4789
  %v4791 = vrot.slane %v4091, %v4790
  %v4792 = vsel %vm1993, %v4791, %v4787
  %v4793 = vlaneseq
  %v4794 = vshrl.u32 %v4793, 7
  %v4795 = vsub.s32 %v571, %v4794
  %v4796 = vrot.slane %v4094, %v4795
  %v4797 = vlaneseq
  %v4798 = vshrl.u32 %v4797, 7
  %v4799 = vsub.s32 %v1974, %v4798
  %v4800 = vrot.slane %v4097, %v4799
  %v4801 = vsel %vm1979, %v4800, %v4796
  %v4802 = vlaneseq
  %v4803 = vshrl.u32 %v4802, 7
  %v4804 = vsub.s32 %v1981, %v4803
  %v4805 = vrot.slane %v4100, %v4804
  %v4806 = vsel %vm1986, %v4805, %v4801
  %v4807 = vlaneseq
  %v4808 = vshrl.u32 %v4807, 7
  %v4809 = vsub.s32 %v1988, %v4808
  %v4810 = vrot.slane %v4103, %v4809
  %v4811 = vsel %vm1993, %v4810, %v4806
  %v4812 = vlaneseq
  %v4813 = vshrl.u32 %v4812, 7
  %v4814 = vsub.s32 %v571, %v4813
  %v4815 = vrot.slane %v4106, %v4814
  %v4816 = vlaneseq
  %v4817 = vshrl.u32 %v4816, 7
  %v4818 = vsub.s32 %v1974, %v4817
  %v4819 = vrot.slane %v4109, %v4818
  %v4820 = vsel %vm1979, %v4819, %v4815
  %v4821 = vlaneseq
  %v4822 = vshrl.u32 %v4821, 7
  %v4823 = vsub.s32 %v1981, %v4822
  %v4824 = vrot.slane %v4112, %v4823
  %v4825 = vsel %vm1986, %v4824, %v4820
  %v4826 = vlaneseq
  %v4827 = vshrl.u32 %v4826, 7
  %v4828 = vsub.s32 %v1988, %v4827
  %v4829 = vrot.slane %v4115, %v4828
  %v4830 = vsel %vm1993, %v4829, %v4825
  %v4831 = vlaneseq
  %v4832 = vshrl.u32 %v4831, 7
  %v4833 = vsub.s32 %v571, %v4832
  %v4834 = vrot.slane %v4118, %v4833
  %v4835 = vlaneseq
  %v4836 = vshrl.u32 %v4835, 7
  %v4837 = vsub.s32 %v1974, %v4836
  %v4838 = vrot.slane %v4121, %v4837
  %v4839 = vsel %vm1979, %v4838, %v4834
  %v4840 = vlaneseq
  %v4841 = vshrl.u32 %v4840, 7
  %v4842 = vsub.s32 %v1981, %v4841
  %v4843 = vrot.slane %v4124, %v4842
  %v4844 = vsel %vm1986, %v4843, %v4839
  %v4845 = vlaneseq
  %v4846 = vshrl.u32 %v4845, 7
  %v4847 = vsub.s32 %v1988, %v4846
  %v4848 = vrot.slane %v4127, %v4847
  %v4849 = vsel %vm1993, %v4848, %v4844
  %v4850 = vlaneseq
  %v4851 = vshrl.u32 %v4850, 7
  %v4852 = vsub.s32 %v571, %v4851
  %v4853 = vrot.slane %v4130, %v4852
  %v4854 = vlaneseq
  %v4855 = vshrl.u32 %v4854, 7
  %v4856 = vsub.s32 %v1974, %v4855
  %v4857 = vrot.slane %v4133, %v4856
  %v4858 = vsel %vm1979, %v4857, %v4853
  %v4859 = vlaneseq
  %v4860 = vshrl.u32 %v4859, 7
  %v4861 = vsub.s32 %v1981, %v4860
  %v4862 = vrot.slane %v4136, %v4861
  %v4863 = vsel %vm1986, %v4862, %v4858
  %v4864 = vlaneseq
  %v4865 = vshrl.u32 %v4864, 7
  %v4866 = vsub.s32 %v1988, %v4865
  %v4867 = vrot.slane %v4139, %v4866
  %v4868 = vsel %vm1993, %v4867, %v4863
  %v4869 = vlaneseq
  %v4870 = vshrl.u32 %v4869, 7
  %v4871 = vsub.s32 %v571, %v4870
  %v4872 = vrot.slane %v4142, %v4871
  %v4873 = vlaneseq
  %v4874 = vshrl.u32 %v4873, 7
  %v4875 = vsub.s32 %v1974, %v4874
  %v4876 = vrot.slane %v4145, %v4875
  %v4877 = vsel %vm1979, %v4876, %v4872
  %v4878 = vlaneseq
  %v4879 = vshrl.u32 %v4878, 7
  %v4880 = vsub.s32 %v1981, %v4879
  %v4881 = vrot.slane %v4148, %v4880
  %v4882 = vsel %vm1986, %v4881, %v4877
  %v4883 = vlaneseq
  %v4884 = vshrl.u32 %v4883, 7
  %v4885 = vsub.s32 %v1988, %v4884
  %v4886 = vrot.slane %v4151, %v4885
  %v4887 = vsel %vm1993, %v4886, %v4882
  %v4888 = vsel %vm2584, %v4317, %v4298
  %v4889 = vsel %vm2586, %v4336, %v4888
  %v4890 = vsel %vm2588, %v4355, %v4889
  %v4891 = vsel %vm2590, %v4374, %v4890
  %v4892 = vsel %vm2592, %v4393, %v4891
  %v4893 = vsel %vm2594, %v4412, %v4892
  %v4894 = vsel %vm2596, %v4431, %v4893
  %v4895 = vsel %vm2584, %v4469, %v4450
  %v4896 = vsel %vm2586, %v4488, %v4895
  %v4897 = vsel %vm2588, %v4507, %v4896
  %v4898 = vsel %vm2590, %v4526, %v4897
  %v4899 = vsel %vm2592, %v4545, %v4898
  %v4900 = vsel %vm2594, %v4564, %v4899
  %v4901 = vsel %vm2596, %v4583, %v4900
  %v4902 = vsel %vm2584, %v4621, %v4602
  %v4903 = vsel %vm2586, %v4640, %v4902
  %v4904 = vsel %vm2588, %v4659, %v4903
  %v4905 = vsel %vm2590, %v4678, %v4904
  %v4906 = vsel %vm2592, %v4697, %v4905
  %v4907 = vsel %vm2594, %v4716, %v4906
  %v4908 = vsel %vm2596, %v4735, %v4907
  %v4909 = vsel %vm2584, %v4773, %v4754
  %v4910 = vsel %vm2586, %v4792, %v4909
  %v4911 = vsel %vm2588, %v4811, %v4910
  %v4912 = vsel %vm2590, %v4830, %v4911
  %v4913 = vsel %vm2592, %v4849, %v4912
  %v4914 = vsel %vm2594, %v4868, %v4913
  %v4915 = vsel %vm2596, %v4887, %v4914
  %v4920 = vsel %vm1457, %v3080, 0
  %v4922 = vsel %vm1457, %v3081, 0
  %v4924 = vsel %vm1457, %v3082, 0
  %v4926 = vsel %vm1457, %v3083, 0
  %v4929 = vsel %vm1457, %v3164, 0
  %v4932 = vsel %vm1457, %v3169, 0
  %v4935 = vsel %vm1457, %v3174, 0
  %v4938 = vsel %vm1457, %v3179, 0
  %4940 = vmatprep.subr.mxu0 0.0
  %4941 = vmatpush1.xpose.msra.mxu0 %v4929
  %4942 = vmatprep.subr.mxu0 0.0
  %4943 = vmatpush1.xpose.msra.mxu0 %v4932
  %4944 = vmatprep.subr.mxu0 0.0
  %4945 = vmatpush1.xpose.msra.mxu0 %v4935
  %4946 = vmatprep.subr.mxu0 0.0
  %4947 = vmatpush1.xpose.msra.mxu0 %v4938
  %4948 = vmatprep.subr.mxu0 0.0
  %4949 = vmatpush1.xpose.msra.mxu0 0.0
  %4950 = vmatprep.subr.mxu0 0.0
  %4951 = vmatpush1.xpose.msra.mxu0 0.0
  %4952 = vmatprep.subr.mxu0 0.0
  %4953 = vmatpush1.xpose.msra.mxu0 0.0
  %4954 = vmatprep.subr.mxu0 0.0
  %4955 = vmatpush1.xpose.msra.mxu0 0.0
  %4956 = vmatprep.subr.mxu0 0.0
  %4957 = vmatpush1.xpose.msra.mxu0 0.0
  %4958 = vmatprep.subr.mxu0 0.0
  %4959 = vmatpush1.xpose.msra.mxu0 0.0
  %4960 = vmatprep.subr.mxu0 0.0
  %4961 = vmatpush1.xpose.msra.mxu0 0.0
  %4962 = vmatprep.subr.mxu0 0.0
  %4963 = vmatpush1.xpose.msra.mxu0 0.0
  %4964 = vmatprep.subr.mxu0 0.0
  %4965 = vmatpush1.xpose.msra.mxu0 0.0
  %4966 = vmatprep.subr.mxu0 0.0
  %4967 = vmatpush1.xpose.msra.mxu0 0.0
  %4968 = vmatprep.subr.mxu0 0.0
  %4969 = vmatpush1.xpose.msra.mxu0 0.0
  %4970 = vmatprep.subr.mxu0 0.0
  %4971 = vmatpush1.xpose.msra.mxu0 0.0
  %4972 = vmatprep.subr.mxu0 0.0
  %4973 = vmatpush1.xpose.msra.mxu0 0.0
  %4974 = vmatprep.subr.mxu0 0.0
  %4975 = vmatpush1.xpose.msra.mxu0 0.0
  %4976 = vmatprep.subr.mxu0 0.0
  %4977 = vmatpush1.xpose.msra.mxu0 0.0
  %4978 = vmatprep.subr.mxu0 0.0
  %4979 = vmatpush1.xpose.msra.mxu0 0.0
  %4980 = vmatprep.subr.mxu0 0.0
  %4981 = vmatpush1.xpose.msra.mxu0 0.0
  %4982 = vmatprep.subr.mxu0 0.0
  %4983 = vmatpush1.xpose.msra.mxu0 0.0
  %4984 = vmatprep.subr.mxu0 0.0
  %4985 = vmatpush1.xpose.msra.mxu0 0.0
  %4986 = vmatprep.subr.mxu0 0.0
  %4987 = vmatpush1.xpose.msra.mxu0 0.0
  %4988 = vmatprep.subr.mxu0 0.0
  %4989 = vmatpush1.xpose.msra.mxu0 0.0
  %4990 = vmatprep.subr.mxu0 0.0
  %4991 = vmatpush1.xpose.msra.mxu0 0.0
  %4992 = vmatprep.subr.mxu0 0.0
  %4993 = vmatpush1.xpose.msra.mxu0 0.0
  %4994 = vmatprep.subr.mxu0 0.0
  %4995 = vmatpush1.xpose.msra.mxu0 0.0
  %4996 = vmatprep.subr.mxu0 0.0
  %4997 = vmatpush1.xpose.msra.mxu0 0.0
  %4998 = vmatprep.subr.mxu0 0.0
  %4999 = vmatpush1.xpose.msra.mxu0 0.0
  %5000 = vmatprep.subr.mxu0 0.0
  %5001 = vmatpush1.xpose.msra.mxu0 0.0
  %5002 = vmatprep.subr.mxu0 0.0
  %5003 = vmatpush1.xpose.msra.mxu0 0.0
  %5004 = vmatprep.mubr.f32.mxu0 0.0
  %5005 = vmatmul.mubr.f32.gmra.mrb[0].mxu0 %v4920
  %v5006 = vpop.f32.mrb[0].mxu0
  %v5007 = vadd.f32 %v4894, %v5006
  %v5008 = vpop.f32.mrb[0].mxu0
  %5009 = vmatprep.mubr.f32.mxu0 0.0
  %5010 = vmatmul.mubr.f32.gmra.mrb[0].mxu0 %v4922
  %v5011 = vpop.f32.mrb[0].mxu0
  %v5012 = vadd.f32 %v4901, %v5011
  %v5013 = vpop.f32.mrb[0].mxu0
  %5014 = vmatprep.mubr.f32.mxu0 0.0
  %5015 = vmatmul.mubr.f32.gmra.mrb[0].mxu0 %v4924
  %v5016 = vpop.f32.mrb[0].mxu0
  %v5017 = vadd.f32 %v4908, %v5016
  %v5018 = vpop.f32.mrb[0].mxu0
  %5019 = vmatprep.mubr.f32.mxu0 0.0
  %5020 = vmatmul.mubr.f32.gmra.mrb[0].mxu0 %v4926
  %v5021 = vpop.f32.mrb[0].mxu0
  %v5022 = vadd.f32 %v4915, %v5021
  %v5023 = vpop.f32.mrb[0].mxu0
  %5024 = vdwg.mxu0
  %v5025 = vadd.f32 %v5007, %v581
  %v5026 = vadd.f32 %v5012, %v582
  %v5027 = vadd.f32 %v5017, %v583
  %v5028 = vadd.f32 %v5022, %v584
  %v5029 = vsel %vm450, %v5025, -inf
  %5030 = vmax.xlane.f32.xlu0 %v5029
  %v5031 = vpop.xlane.xlu0 %5030
  %v5032 = vsel %vm450, %v5026, -inf
  %5033 = vmax.xlane.f32.xlu0 %v5032
  %v5034 = vpop.xlane.xlu0 %5033
  %v5035 = vsel %vm450, %v5027, -inf
  %5036 = vmax.xlane.f32.xlu0 %v5035
  %v5037 = vpop.xlane.xlu0 %5036
  %v5038 = vsel %vm450, %v5028, -inf
  %5039 = vmax.xlane.f32.xlu0 %v5038
  %v5040 = vpop.xlane.xlu0 %5039
  %v5041 = vsub.f32 %v5025, %v5031
  %v5042 = vsub.f32 %v5026, %v5034
  %v5043 = vsub.f32 %v5027, %v5037
  %v5044 = vsub.f32 %v5028, %v5040
  %v5045 = vmul.f32 %v5041, 1.442695
  %v5046 = vpow.pop %v5045
  %v5047 = vmul.f32 %v5042, 1.442695
  %v5048 = vpow.pop %v5047
  %v5049 = vmul.f32 %v5043, 1.442695
  %v5050 = vpow.pop %v5049
  %v5051 = vmul.f32 %v5044, 1.442695
  %v5052 = vpow.pop %v5051
  %v5053 = vsel %vm450, %v5046, 0.0
  %5054 = vadd.xlane.f32.xlu0 %v5053
  %v5055 = vpop.xlane.xlu0 %5054
  %v5056 = vsel %vm450, %v5048, 0.0
  %5057 = vadd.xlane.f32.xlu0 %v5056
  %v5058 = vpop.xlane.xlu0 %5057
  %v5059 = vsel %vm450, %v5050, 0.0
  %5060 = vadd.xlane.f32.xlu0 %v5059
  %v5061 = vpop.xlane.xlu0 %5060
  %v5062 = vsel %vm450, %v5052, 0.0
  %5063 = vadd.xlane.f32.xlu0 %v5062
  %v5064 = vpop.xlane.xlu0 %5063
  %v5065 = vrcp.pop %v5055
  %v5066 = vrcp.pop %v5058
  %v5067 = vrcp.pop %v5061
  %v5068 = vrcp.pop %v5064
  %v5069 = vmul.f32 %v5046, %v5065
  %v5070 = vmul.f32 %v5048, %v5066
  %v5071 = vmul.f32 %v5050, %v5067
  %v5072 = vmul.f32 %v5052, %v5068
  %v5074 = vsel %vm450, %v5069, 0
  %v5077 = vsel %vm450, %v5070, 0
  %v5080 = vsel %vm450, %v5071, 0
  %v5083 = vsel %vm450, %v5072, 0
  %5085 = vmatprep.subr.mxu0 0.0
  %5086 = vmatpush1.msra.mxu0 %v3262
  %5087 = vmatprep.subr.mxu0 0.0
  %5088 = vmatpush1.msra.mxu0 %v3267
  %5089 = vmatprep.subr.mxu0 0.0
  %5090 = vmatpush1.msra.mxu0 %v3272
  %5091 = vmatprep.subr.mxu0 0.0
  %5092 = vmatpush1.msra.mxu0 %v3277
  %5093 = vmatprep.subr.mxu0 0.0
  %5094 = vmatpush1.msra.mxu0 0.0
  %5095 = vmatprep.subr.mxu0 0.0
  %5096 = vmatpush1.msra.mxu0 0.0
  %5097 = vmatprep.subr.mxu0 0.0
  %5098 = vmatpush1.msra.mxu0 0.0
  %5099 = vmatprep.subr.mxu0 0.0
  %5100 = vmatpush1.msra.mxu0 0.0
  %5101 = vmatprep.subr.mxu0 0.0
  %5102 = vmatpush1.msra.mxu0 0.0
  %5103 = vmatprep.subr.mxu0 0.0
  %5104 = vmatpush1.msra.mxu0 0.0
  %5105 = vmatprep.subr.mxu0 0.0
  %5106 = vmatpush1.msra.mxu0 0.0
  %5107 = vmatprep.subr.mxu0 0.0
  %5108 = vmatpush1.msra.mxu0 0.0
  %5109 = vmatprep.subr.mxu0 0.0
  %5110 = vmatpush1.msra.mxu0 0.0
  %5111 = vmatprep.subr.mxu0 0.0
  %5112 = vmatpush1.msra.mxu0 0.0
  %5113 = vmatprep.subr.mxu0 0.0
  %5114 = vmatpush1.msra.mxu0 0.0
  %5115 = vmatprep.subr.mxu0 0.0
  %5116 = vmatpush1.msra.mxu0 0.0
  %5117 = vmatprep.subr.mxu0 0.0
  %5118 = vmatpush1.msra.mxu0 0.0
  %5119 = vmatprep.subr.mxu0 0.0
  %5120 = vmatpush1.msra.mxu0 0.0
  %5121 = vmatprep.subr.mxu0 0.0
  %5122 = vmatpush1.msra.mxu0 0.0
  %5123 = vmatprep.subr.mxu0 0.0
  %5124 = vmatpush1.msra.mxu0 0.0
  %5125 = vmatprep.subr.mxu0 0.0
  %5126 = vmatpush1.msra.mxu0 0.0
  %5127 = vmatprep.subr.mxu0 0.0
  %5128 = vmatpush1.msra.mxu0 0.0
  %5129 = vmatprep.subr.mxu0 0.0
  %5130 = vmatpush1.msra.mxu0 0.0
  %5131 = vmatprep.subr.mxu0 0.0
  %5132 = vmatpush1.msra.mxu0 0.0
  %5133 = vmatprep.subr.mxu0 0.0
  %5134 = vmatpush1.msra.mxu0 0.0
  %5135 = vmatprep.subr.mxu0 0.0
  %5136 = vmatpush1.msra.mxu0 0.0
  %5137 = vmatprep.subr.mxu0 0.0
  %5138 = vmatpush1.msra.mxu0 0.0
  %5139 = vmatprep.subr.mxu0 0.0
  %5140 = vmatpush1.msra.mxu0 0.0
  %5141 = vmatprep.subr.mxu0 0.0
  %5142 = vmatpush1.msra.mxu0 0.0
  %5143 = vmatprep.subr.mxu0 0.0
  %5144 = vmatpush1.msra.mxu0 0.0
  %5145 = vmatprep.subr.mxu0 0.0
  %5146 = vmatpush1.msra.mxu0 0.0
  %5147 = vmatprep.subr.mxu0 0.0
  %5148 = vmatpush1.msra.mxu0 0.0
  %5149 = vmatprep.mubr.f32.mxu0 0.0
  %5150 = vmatmul.mubr.f32.gmra.mrb[0].mxu0 %v5074
  %v5151 = vpop.f32.mrb[0].mxu0
  %v5152 = vadd.f32 0.0, %v5151
  %v5153 = vpop.f32.mrb[0].mxu0
  %5154 = vmatprep.mubr.f32.mxu0 0.0
  %5155 = vmatmul.mubr.f32.gmra.mrb[0].mxu0 %v5077
  %v5156 = vpop.f32.mrb[0].mxu0
  %v5157 = vadd.f32 0.0, %v5156
  %v5158 = vpop.f32.mrb[0].mxu0
  %5159 = vmatprep.mubr.f32.mxu0 0.0
  %5160 = vmatmul.mubr.f32.gmra.mrb[0].mxu0 %v5080
  %v5161 = vpop.f32.mrb[0].mxu0
  %v5162 = vadd.f32 0.0, %v5161
  %v5163 = vpop.f32.mrb[0].mxu0
  %5164 = vmatprep.mubr.f32.mxu0 0.0
  %5165 = vmatmul.mubr.f32.gmra.mrb[0].mxu0 %v5083
  %v5166 = vpop.f32.mrb[0].mxu0
  %v5167 = vadd.f32 0.0, %v5166
  %v5168 = vpop.f32.mrb[0].mxu0
  %5169 = vdwg.mxu0
  %s5170 = scalar_lea.vmem %s12, 16
  %v5171 = vld [vmem:[%s5170] sm:$0xff]
  %v5172 = vld [vmem:[%s5170 + $0x8] sm:$0xff]
  %v5174 = vsel %vm1457, %v5152, 0
  %v5177 = vsel %vm1457, %v5157, 0
  %v5180 = vsel %vm1457, %v5162, 0
  %v5183 = vsel %vm1457, %v5167, 0
  %5185 = vmatprep.subr.mxu0 0.0
  %5186 = vmatpush1.msra.mxu0 %v5171
  %5187 = vmatprep.subr.mxu0 0.0
  %5188 = vmatpush1.msra.mxu0 %v5172
  %5189 = vmatprep.subr.mxu0 0.0
  %5190 = vmatpush1.msra.mxu0 0.0
  %5191 = vmatprep.subr.mxu0 0.0
  %5192 = vmatpush1.msra.mxu0 0.0
  %5193 = vmatprep.subr.mxu0 0.0
  %5194 = vmatpush1.msra.mxu0 0.0
  %5195 = vmatprep.subr.mxu0 0.0
  %5196 = vmatpush1.msra.mxu0 0.0
  %5197 = vmatprep.subr.mxu0 0.0
  %5198 = vmatpush1.msra.mxu0 0.0
  %5199 = vmatprep.subr.mxu0 0.0
  %5200 = vmatpush1.msra.mxu0 0.0
  %5201 = vmatprep.subr.mxu0 0.0
  %5202 = vmatpush1.msra.mxu0 0.0
  %5203 = vmatprep.subr.mxu0 0.0
  %5204 = vmatpush1.msra.mxu0 0.0
  %5205 = vmatprep.subr.mxu0 0.0
  %5206 = vmatpush1.msra.mxu0 0.0
  %5207 = vmatprep.subr.mxu0 0.0
  %5208 = vmatpush1.msra.mxu0 0.0
  %5209 = vmatprep.subr.mxu0 0.0
  %5210 = vmatpush1.msra.mxu0 0.0
  %5211 = vmatprep.subr.mxu0 0.0
  %5212 = vmatpush1.msra.mxu0 0.0
  %5213 = vmatprep.subr.mxu0 0.0
  %5214 = vmatpush1.msra.mxu0 0.0
  %5215 = vmatprep.subr.mxu0 0.0
  %5216 = vmatpush1.msra.mxu0 0.0
  %5217 = vmatprep.subr.mxu0 0.0
  %5218 = vmatpush1.msra.mxu0 0.0
  %5219 = vmatprep.subr.mxu0 0.0
  %5220 = vmatpush1.msra.mxu0 0.0
  %5221 = vmatprep.subr.mxu0 0.0
  %5222 = vmatpush1.msra.mxu0 0.0
  %5223 = vmatprep.subr.mxu0 0.0
  %5224 = vmatpush1.msra.mxu0 0.0
  %5225 = vmatprep.subr.mxu0 0.0
  %5226 = vmatpush1.msra.mxu0 0.0
  %5227 = vmatprep.subr.mxu0 0.0
  %5228 = vmatpush1.msra.mxu0 0.0
  %5229 = vmatprep.subr.mxu0 0.0
  %5230 = vmatpush1.msra.mxu0 0.0
  %5231 = vmatprep.subr.mxu0 0.0
  %5232 = vmatpush1.msra.mxu0 0.0
  %5233 = vmatprep.subr.mxu0 0.0
  %5234 = vmatpush1.msra.mxu0 0.0
  %5235 = vmatprep.subr.mxu0 0.0
  %5236 = vmatpush1.msra.mxu0 0.0
  %5237 = vmatprep.subr.mxu0 0.0
  %5238 = vmatpush1.msra.mxu0 0.0
  %5239 = vmatprep.subr.mxu0 0.0
  %5240 = vmatpush1.msra.mxu0 0.0
  %5241 = vmatprep.subr.mxu0 0.0
  %5242 = vmatpush1.msra.mxu0 0.0
  %5243 = vmatprep.subr.mxu0 0.0
  %5244 = vmatpush1.msra.mxu0 0.0
  %5245 = vmatprep.subr.mxu0 0.0
  %5246 = vmatpush1.msra.mxu0 0.0
  %5247 = vmatprep.subr.mxu0 0.0
  %5248 = vmatpush1.msra.mxu0 0.0
  %5249 = vmatprep.mubr.f32.mxu0 0.0
  %5250 = vmatmul.mubr.f32.gmra.mrb[0].mxu0 %v5174
  %v5251 = vpop.f32.mrb[0].mxu0
  %v5252 = vadd.f32 0.0, %v5251
  %v5253 = vpop.f32.mrb[0].mxu0
  %5254 = vmatprep.mubr.f32.mxu0 0.0
  %5255 = vmatmul.mubr.f32.gmra.mrb[0].mxu0 %v5177
  %v5256 = vpop.f32.mrb[0].mxu0
  %v5257 = vadd.f32 0.0, %v5256
  %v5258 = vpop.f32.mrb[0].mxu0
  %5259 = vmatprep.mubr.f32.mxu0 0.0
  %5260 = vmatmul.mubr.f32.gmra.mrb[0].mxu0 %v5180
  %v5261 = vpop.f32.mrb[0].mxu0
  %v5262 = vadd.f32 0.0, %v5261
  %v5263 = vpop.f32.mrb[0].mxu0
  %5264 = vmatprep.mubr.f32.mxu0 0.0
  %5265 = vmatmul.mubr.f32.gmra.mrb[0].mxu0 %v5183
  %v5266 = vpop.f32.mrb[0].mxu0
  %v5267 = vadd.f32 0.0, %v5266
  %v5268 = vpop.f32.mrb[0].mxu0
  %5269 = vdwg.mxu0
  %v5270 = vadd.f32 %v2978, %v5252
  %v5271 = vadd.f32 %v2979, %v5257
  %v5272 = vadd.f32 %v2980, %v5262
  %v5273 = vadd.f32 %v2981, %v5267
  %v5274 = vadd.f32 %v566, %v5270
  %v5275 = vadd.f32 %v567, %v5271
  %v5276 = vadd.f32 %v568, %v5272
  %v5277 = vadd.f32 %v569, %v5273
  %s5278 = scalar_lea.vmem %s14, 1
  %v5279 = vld [vmem:[%s5278] sm:$0x1]
  %s5280 = scalar_lea.vmem %s15, 1
  %v5281 = vld [vmem:[%s5280] sm:$0x1]
  %v5282 = vsel %vm450, %v5274, 0.0
  %5283 = vadd.xlane.f32.xlu0 %v5282
  %v5284 = vpop.xlane.xlu0 %5283
  %v5285 = vsel %vm450, %v5275, 0.0
  %5286 = vadd.xlane.f32.xlu0 %v5285
  %v5287 = vpop.xlane.xlu0 %5286
  %v5288 = vsel %vm450, %v5276, 0.0
  %5289 = vadd.xlane.f32.xlu0 %v5288
  %v5290 = vpop.xlane.xlu0 %5289
  %v5291 = vsel %vm450, %v5277, 0.0
  %5292 = vadd.xlane.f32.xlu0 %v5291
  %v5293 = vpop.xlane.xlu0 %5292
  %v5294 = vmul.f32 %v5284, %v599
  %v5295 = vmul.f32 %v5287, %v599
  %v5296 = vmul.f32 %v5290, %v599
  %v5297 = vmul.f32 %v5293, %v599
  %v5298 = vsub.f32 %v5274, %v5294
  %v5299 = vsub.f32 %v5275, %v5295
  %v5300 = vsub.f32 %v5276, %v5296
  %v5301 = vsub.f32 %v5277, %v5297
  %v5302 = vmul.f32 %v5298, %v5298
  %v5303 = vmul.f32 %v5299, %v5299
  %v5304 = vmul.f32 %v5300, %v5300
  %v5305 = vmul.f32 %v5301, %v5301
  %v5306 = vsel %vm450, %v5302, 0.0
  %5307 = vadd.xlane.f32.xlu0 %v5306
  %v5308 = vpop.xlane.xlu0 %5307
  %v5309 = vsel %vm450, %v5303, 0.0
  %5310 = vadd.xlane.f32.xlu0 %v5309
  %v5311 = vpop.xlane.xlu0 %5310
  %v5312 = vsel %vm450, %v5304, 0.0
  %5313 = vadd.xlane.f32.xlu0 %v5312
  %v5314 = vpop.xlane.xlu0 %5313
  %v5315 = vsel %vm450, %v5305, 0.0
  %5316 = vadd.xlane.f32.xlu0 %v5315
  %v5317 = vpop.xlane.xlu0 %5316
  %v5318 = vmul.f32 %v5308, %v599
  %v5319 = vmul.f32 %v5311, %v599
  %v5320 = vmul.f32 %v5314, %v599
  %v5321 = vmul.f32 %v5317, %v599
  %v5322 = vadd.f32 %v5318, 1e-05
  %v5323 = vadd.f32 %v5319, 1e-05
  %v5324 = vadd.f32 %v5320, 1e-05
  %v5325 = vadd.f32 %v5321, 1e-05
  %v5326 = vrsqrt.pop %v5322
  %v5327 = vrsqrt.pop %v5323
  %v5328 = vrsqrt.pop %v5324
  %v5329 = vrsqrt.pop %v5325
  %v5330 = vmul.f32 %v5298, %v5326
  %v5331 = vmul.f32 %v5299, %v5327
  %v5332 = vmul.f32 %v5300, %v5328
  %v5333 = vmul.f32 %v5301, %v5329
  %v5335 = vlaneseq
  %v5336 = vshrl.u32 %v5335, 7
  %v5337 = vsub.s32 0, %v5336
  %v5338 = vrot.slane %v5279, %v5337
  %v5340 = vmul.f32 %v5330, %v5338
  %v5341 = vmul.f32 %v5331, %v5338
  %v5342 = vmul.f32 %v5332, %v5338
  %v5343 = vmul.f32 %v5333, %v5338
  %v5345 = vlaneseq
  %v5346 = vshrl.u32 %v5345, 7
  %v5347 = vsub.s32 0, %v5346
  %v5348 = vrot.slane %v5281, %v5347
  %v5350 = vadd.f32 %v5340, %v5348
  %v5351 = vadd.f32 %v5341, %v5348
  %v5352 = vadd.f32 %v5342, %v5348
  %v5353 = vadd.f32 %v5343, %v5348
  %v5354 = vld [vmem:[%s16] sm:$0xff]
  %v5355 = vld [vmem:[%s16 + $0x8] sm:$0xff]
  %v5356 = vld [vmem:[%s16 + $0x10] sm:$0xff]
  %v5357 = vld [vmem:[%s16 + $0x18] sm:$0xff]
  %v5358 = vld [vmem:[%s17] sm:$0x1]
  %v5360 = vlaneseq
  %v5361 = vshrl.u32 %v5360, 7
  %v5362 = vsub.s32 0, %v5361
  %v5363 = vrot.slane %v5358, %v5362
  %v5366 = vsel %vm450, %v5350, 0
  %v5369 = vsel %vm450, %v5351, 0
  %v5372 = vsel %vm450, %v5352, 0
  %v5375 = vsel %vm450, %v5353, 0
  %5377 = vmatprep.subr.mxu0 0.0
  %5378 = vmatpush1.msra.mxu0 %v5354
  %5379 = vmatprep.subr.mxu0 0.0
  %5380 = vmatpush1.msra.mxu0 %v5355
  %5381 = vmatprep.subr.mxu0 0.0
  %5382 = vmatpush1.msra.mxu0 %v5356
  %5383 = vmatprep.subr.mxu0 0.0
  %5384 = vmatpush1.msra.mxu0 %v5357
  %5385 = vmatprep.subr.mxu0 0.0
  %5386 = vmatpush1.msra.mxu0 0.0
  %5387 = vmatprep.subr.mxu0 0.0
  %5388 = vmatpush1.msra.mxu0 0.0
  %5389 = vmatprep.subr.mxu0 0.0
  %5390 = vmatpush1.msra.mxu0 0.0
  %5391 = vmatprep.subr.mxu0 0.0
  %5392 = vmatpush1.msra.mxu0 0.0
  %5393 = vmatprep.subr.mxu0 0.0
  %5394 = vmatpush1.msra.mxu0 0.0
  %5395 = vmatprep.subr.mxu0 0.0
  %5396 = vmatpush1.msra.mxu0 0.0
  %5397 = vmatprep.subr.mxu0 0.0
  %5398 = vmatpush1.msra.mxu0 0.0
  %5399 = vmatprep.subr.mxu0 0.0
  %5400 = vmatpush1.msra.mxu0 0.0
  %5401 = vmatprep.subr.mxu0 0.0
  %5402 = vmatpush1.msra.mxu0 0.0
  %5403 = vmatprep.subr.mxu0 0.0
  %5404 = vmatpush1.msra.mxu0 0.0
  %5405 = vmatprep.subr.mxu0 0.0
  %5406 = vmatpush1.msra.mxu0 0.0
  %5407 = vmatprep.subr.mxu0 0.0
  %5408 = vmatpush1.msra.mxu0 0.0
  %5409 = vmatprep.subr.mxu0 0.0
  %5410 = vmatpush1.msra.mxu0 0.0
  %5411 = vmatprep.subr.mxu0 0.0
  %5412 = vmatpush1.msra.mxu0 0.0
  %5413 = vmatprep.subr.mxu0 0.0
  %5414 = vmatpush1.msra.mxu0 0.0
  %5415 = vmatprep.subr.mxu0 0.0
  %5416 = vmatpush1.msra.mxu0 0.0
  %5417 = vmatprep.subr.mxu0 0.0
  %5418 = vmatpush1.msra.mxu0 0.0
  %5419 = vmatprep.subr.mxu0 0.0
  %5420 = vmatpush1.msra.mxu0 0.0
  %5421 = vmatprep.subr.mxu0 0.0
  %5422 = vmatpush1.msra.mxu0 0.0
  %5423 = vmatprep.subr.mxu0 0.0
  %5424 = vmatpush1.msra.mxu0 0.0
  %5425 = vmatprep.subr.mxu0 0.0
  %5426 = vmatpush1.msra.mxu0 0.0
  %5427 = vmatprep.subr.mxu0 0.0
  %5428 = vmatpush1.msra.mxu0 0.0
  %5429 = vmatprep.subr.mxu0 0.0
  %5430 = vmatpush1.msra.mxu0 0.0
  %5431 = vmatprep.subr.mxu0 0.0
  %5432 = vmatpush1.msra.mxu0 0.0
  %5433 = vmatprep.subr.mxu0 0.0
  %5434 = vmatpush1.msra.mxu0 0.0
  %5435 = vmatprep.subr.mxu0 0.0
  %5436 = vmatpush1.msra.mxu0 0.0
  %5437 = vmatprep.subr.mxu0 0.0
  %5438 = vmatpush1.msra.mxu0 0.0
  %5439 = vmatprep.subr.mxu0 0.0
  %5440 = vmatpush1.msra.mxu0 0.0
  %5441 = vmatprep.mubr.f32.mxu0 0.0
  %5442 = vmatmul.mubr.f32.gmra.mrb[0].mxu0 %v5366
  %v5443 = vpop.f32.mrb[0].mxu0
  %v5444 = vadd.f32 %v5363, %v5443
  %v5445 = vpop.f32.mrb[0].mxu0
  %5446 = vmatprep.mubr.f32.mxu0 0.0
  %5447 = vmatmul.mubr.f32.gmra.mrb[0].mxu0 %v5369
  %v5448 = vpop.f32.mrb[0].mxu0
  %v5449 = vadd.f32 %v5363, %v5448
  %v5450 = vpop.f32.mrb[0].mxu0
  %5451 = vmatprep.mubr.f32.mxu0 0.0
  %5452 = vmatmul.mubr.f32.gmra.mrb[0].mxu0 %v5372
  %v5453 = vpop.f32.mrb[0].mxu0
  %v5454 = vadd.f32 %v5363, %v5453
  %v5455 = vpop.f32.mrb[0].mxu0
  %5456 = vmatprep.mubr.f32.mxu0 0.0
  %5457 = vmatmul.mubr.f32.gmra.mrb[0].mxu0 %v5375
  %v5458 = vpop.f32.mrb[0].mxu0
  %v5459 = vadd.f32 %v5363, %v5458
  %v5460 = vpop.f32.mrb[0].mxu0
  %5461 = vdwg.mxu0
  %v5462 = vmax.f32 %v5444, 0.0
  %v5463 = vmax.f32 %v5449, 0.0
  %v5464 = vmax.f32 %v5454, 0.0
  %v5465 = vmax.f32 %v5459, 0.0
  %v5466 = vld [vmem:[%s18] sm:$0xff]
  %v5467 = vld [vmem:[%s18 + $0x8] sm:$0xff]
  %v5468 = vld [vmem:[%s18 + $0x10] sm:$0xff]
  %v5469 = vld [vmem:[%s18 + $0x18] sm:$0xff]
  %v5470 = vld [vmem:[%s18 + $0x20] sm:$0xff]
  %v5471 = vld [vmem:[%s18 + $0x28] sm:$0xff]
  %v5472 = vld [vmem:[%s18 + $0x30] sm:$0xff]
  %v5473 = vld [vmem:[%s18 + $0x38] sm:$0xff]
  %v5474 = vld [vmem:[%s19] sm:$0x1]
  %v5476 = vlaneseq
  %v5477 = vshrl.u32 %v5476, 7
  %v5478 = vsub.s32 0, %v5477
  %v5479 = vrot.slane %v5474, %v5478
  %vm5481 = vcmask 523264
  %v5483 = vsel %vm5481, %v5462, 0
  %v5486 = vsel %vm5481, %v5463, 0
  %v5489 = vsel %vm5481, %v5464, 0
  %v5492 = vsel %vm5481, %v5465, 0
  %5494 = vmatprep.subr.mxu0 0.0
  %5495 = vmatpush1.msra.mxu0 %v5466
  %5496 = vmatprep.subr.mxu0 0.0
  %5497 = vmatpush1.msra.mxu0 %v5467
  %5498 = vmatprep.subr.mxu0 0.0
  %5499 = vmatpush1.msra.mxu0 %v5468
  %5500 = vmatprep.subr.mxu0 0.0
  %5501 = vmatpush1.msra.mxu0 %v5469
  %5502 = vmatprep.subr.mxu0 0.0
  %5503 = vmatpush1.msra.mxu0 %v5470
  %5504 = vmatprep.subr.mxu0 0.0
  %5505 = vmatpush1.msra.mxu0 %v5471
  %5506 = vmatprep.subr.mxu0 0.0
  %5507 = vmatpush1.msra.mxu0 %v5472
  %5508 = vmatprep.subr.mxu0 0.0
  %5509 = vmatpush1.msra.mxu0 %v5473
  %5510 = vmatprep.subr.mxu0 0.0
  %5511 = vmatpush1.msra.mxu0 0.0
  %5512 = vmatprep.subr.mxu0 0.0
  %5513 = vmatpush1.msra.mxu0 0.0
  %5514 = vmatprep.subr.mxu0 0.0
  %5515 = vmatpush1.msra.mxu0 0.0
  %5516 = vmatprep.subr.mxu0 0.0
  %5517 = vmatpush1.msra.mxu0 0.0
  %5518 = vmatprep.subr.mxu0 0.0
  %5519 = vmatpush1.msra.mxu0 0.0
  %5520 = vmatprep.subr.mxu0 0.0
  %5521 = vmatpush1.msra.mxu0 0.0
  %5522 = vmatprep.subr.mxu0 0.0
  %5523 = vmatpush1.msra.mxu0 0.0
  %5524 = vmatprep.subr.mxu0 0.0
  %5525 = vmatpush1.msra.mxu0 0.0
  %5526 = vmatprep.subr.mxu0 0.0
  %5527 = vmatpush1.msra.mxu0 0.0
  %5528 = vmatprep.subr.mxu0 0.0
  %5529 = vmatpush1.msra.mxu0 0.0
  %5530 = vmatprep.subr.mxu0 0.0
  %5531 = vmatpush1.msra.mxu0 0.0
  %5532 = vmatprep.subr.mxu0 0.0
  %5533 = vmatpush1.msra.mxu0 0.0
  %5534 = vmatprep.subr.mxu0 0.0
  %5535 = vmatpush1.msra.mxu0 0.0
  %5536 = vmatprep.subr.mxu0 0.0
  %5537 = vmatpush1.msra.mxu0 0.0
  %5538 = vmatprep.subr.mxu0 0.0
  %5539 = vmatpush1.msra.mxu0 0.0
  %5540 = vmatprep.subr.mxu0 0.0
  %5541 = vmatpush1.msra.mxu0 0.0
  %5542 = vmatprep.subr.mxu0 0.0
  %5543 = vmatpush1.msra.mxu0 0.0
  %5544 = vmatprep.subr.mxu0 0.0
  %5545 = vmatpush1.msra.mxu0 0.0
  %5546 = vmatprep.subr.mxu0 0.0
  %5547 = vmatpush1.msra.mxu0 0.0
  %5548 = vmatprep.subr.mxu0 0.0
  %5549 = vmatpush1.msra.mxu0 0.0
  %5550 = vmatprep.subr.mxu0 0.0
  %5551 = vmatpush1.msra.mxu0 0.0
  %5552 = vmatprep.subr.mxu0 0.0
  %5553 = vmatpush1.msra.mxu0 0.0
  %5554 = vmatprep.subr.mxu0 0.0
  %5555 = vmatpush1.msra.mxu0 0.0
  %5556 = vmatprep.subr.mxu0 0.0
  %5557 = vmatpush1.msra.mxu0 0.0
  %5558 = vmatprep.mubr.f32.mxu0 0.0
  %5559 = vmatmul.mubr.f32.gmra.mrb[0].mxu0 %v5483
  %v5560 = vpop.f32.mrb[0].mxu0
  %v5561 = vadd.f32 %v5479, %v5560
  %v5562 = vpop.f32.mrb[0].mxu0
  %5563 = vmatprep.mubr.f32.mxu0 0.0
  %5564 = vmatmul.mubr.f32.gmra.mrb[0].mxu0 %v5486
  %v5565 = vpop.f32.mrb[0].mxu0
  %v5566 = vadd.f32 %v5479, %v5565
  %v5567 = vpop.f32.mrb[0].mxu0
  %5568 = vmatprep.mubr.f32.mxu0 0.0
  %5569 = vmatmul.mubr.f32.gmra.mrb[0].mxu0 %v5489
  %v5570 = vpop.f32.mrb[0].mxu0
  %v5571 = vadd.f32 %v5479, %v5570
  %v5572 = vpop.f32.mrb[0].mxu0
  %5573 = vmatprep.mubr.f32.mxu0 0.0
  %5574 = vmatmul.mubr.f32.gmra.mrb[0].mxu0 %v5492
  %v5575 = vpop.f32.mrb[0].mxu0
  %v5576 = vadd.f32 %v5479, %v5575
  %v5577 = vpop.f32.mrb[0].mxu0
  %5578 = vdwg.mxu0
  %v5579 = vadd.f32 %v5274, %v5561
  %v5580 = vadd.f32 %v5275, %v5566
  %v5581 = vadd.f32 %v5276, %v5571
  %v5582 = vadd.f32 %v5277, %v5576
  %s5583 = scalar_lea.vmem %s14, 2
  %v5584 = vld [vmem:[%s5583] sm:$0x1]
  %s5585 = scalar_lea.vmem %s15, 2
  %v5586 = vld [vmem:[%s5585] sm:$0x1]
  %v5587 = vsel %vm450, %v5579, 0.0
  %5588 = vadd.xlane.f32.xlu0 %v5587
  %v5589 = vpop.xlane.xlu0 %5588
  %v5590 = vsel %vm450, %v5580, 0.0
  %5591 = vadd.xlane.f32.xlu0 %v5590
  %v5592 = vpop.xlane.xlu0 %5591
  %v5593 = vsel %vm450, %v5581, 0.0
  %5594 = vadd.xlane.f32.xlu0 %v5593
  %v5595 = vpop.xlane.xlu0 %5594
  %v5596 = vsel %vm450, %v5582, 0.0
  %5597 = vadd.xlane.f32.xlu0 %v5596
  %v5598 = vpop.xlane.xlu0 %5597
  %v5599 = vmul.f32 %v5589, %v599
  %v5600 = vmul.f32 %v5592, %v599
  %v5601 = vmul.f32 %v5595, %v599
  %v5602 = vmul.f32 %v5598, %v599
  %v5603 = vsub.f32 %v5579, %v5599
  %v5604 = vsub.f32 %v5580, %v5600
  %v5605 = vsub.f32 %v5581, %v5601
  %v5606 = vsub.f32 %v5582, %v5602
  %v5607 = vmul.f32 %v5603, %v5603
  %v5608 = vmul.f32 %v5604, %v5604
  %v5609 = vmul.f32 %v5605, %v5605
  %v5610 = vmul.f32 %v5606, %v5606
  %v5611 = vsel %vm450, %v5607, 0.0
  %5612 = vadd.xlane.f32.xlu0 %v5611
  %v5613 = vpop.xlane.xlu0 %5612
  %v5614 = vsel %vm450, %v5608, 0.0
  %5615 = vadd.xlane.f32.xlu0 %v5614
  %v5616 = vpop.xlane.xlu0 %5615
  %v5617 = vsel %vm450, %v5609, 0.0
  %5618 = vadd.xlane.f32.xlu0 %v5617
  %v5619 = vpop.xlane.xlu0 %5618
  %v5620 = vsel %vm450, %v5610, 0.0
  %5621 = vadd.xlane.f32.xlu0 %v5620
  %v5622 = vpop.xlane.xlu0 %5621
  %v5623 = vmul.f32 %v5613, %v599
  %v5624 = vmul.f32 %v5616, %v599
  %v5625 = vmul.f32 %v5619, %v599
  %v5626 = vmul.f32 %v5622, %v599
  %v5627 = vadd.f32 %v5623, 1e-05
  %v5628 = vadd.f32 %v5624, 1e-05
  %v5629 = vadd.f32 %v5625, 1e-05
  %v5630 = vadd.f32 %v5626, 1e-05
  %v5631 = vrsqrt.pop %v5627
  %v5632 = vrsqrt.pop %v5628
  %v5633 = vrsqrt.pop %v5629
  %v5634 = vrsqrt.pop %v5630
  %v5635 = vmul.f32 %v5603, %v5631
  %v5636 = vmul.f32 %v5604, %v5632
  %v5637 = vmul.f32 %v5605, %v5633
  %v5638 = vmul.f32 %v5606, %v5634
  %v5640 = vlaneseq
  %v5641 = vshrl.u32 %v5640, 7
  %v5642 = vsub.s32 0, %v5641
  %v5643 = vrot.slane %v5584, %v5642
  %v5645 = vmul.f32 %v5635, %v5643
  %v5646 = vmul.f32 %v5636, %v5643
  %v5647 = vmul.f32 %v5637, %v5643
  %v5648 = vmul.f32 %v5638, %v5643
  %v5650 = vlaneseq
  %v5651 = vshrl.u32 %v5650, 7
  %v5652 = vsub.s32 0, %v5651
  %v5653 = vrot.slane %v5586, %v5652
  %v5655 = vadd.f32 %v5645, %v5653
  %v5656 = vadd.f32 %v5646, %v5653
  %v5657 = vadd.f32 %v5647, %v5653
  %v5658 = vadd.f32 %v5648, %v5653
  %s5659 = scalar_lea.vmem %s13, 1
  %v5660 = vld [vmem:[%s5659] sm:$0x1]
  %s5661 = scalar_lea.vmem %s10, 192
  %v5662 = vld [vmem:[%s5661] sm:$0xff]
  %v5663 = vld [vmem:[%s5661 + $0x8] sm:$0xff]
  %v5664 = vld [vmem:[%s5661 + $0x10] sm:$0xff]
  %v5665 = vld [vmem:[%s5661 + $0x18] sm:$0xff]
  %s5666 = scalar_lea.vmem %s11, 6
  %v5667 = vld [vmem:[%s5666] sm:$0x1]
  %v5669 = vlaneseq
  %v5670 = vshrl.u32 %v5669, 7
  %v5671 = vsub.s32 0, %v5670
  %v5672 = vrot.slane %v5667, %v5671
  %v5675 = vsel %vm450, %v5655, 0
  %v5678 = vsel %vm450, %v5656, 0
  %v5681 = vsel %vm450, %v5657, 0
  %v5684 = vsel %vm450, %v5658, 0
  %5686 = vmatprep.subr.mxu0 0.0
  %5687 = vmatpush1.msra.mxu0 %v5662
  %5688 = vmatprep.subr.mxu0 0.0
  %5689 = vmatpush1.msra.mxu0 %v5663
  %5690 = vmatprep.subr.mxu0 0.0
  %5691 = vmatpush1.msra.mxu0 %v5664
  %5692 = vmatprep.subr.mxu0 0.0
  %5693 = vmatpush1.msra.mxu0 %v5665
  %5694 = vmatprep.subr.mxu0 0.0
  %5695 = vmatpush1.msra.mxu0 0.0
  %5696 = vmatprep.subr.mxu0 0.0
  %5697 = vmatpush1.msra.mxu0 0.0
  %5698 = vmatprep.subr.mxu0 0.0
  %5699 = vmatpush1.msra.mxu0 0.0
  %5700 = vmatprep.subr.mxu0 0.0
  %5701 = vmatpush1.msra.mxu0 0.0
  %5702 = vmatprep.subr.mxu0 0.0
  %5703 = vmatpush1.msra.mxu0 0.0
  %5704 = vmatprep.subr.mxu0 0.0
  %5705 = vmatpush1.msra.mxu0 0.0
  %5706 = vmatprep.subr.mxu0 0.0
  %5707 = vmatpush1.msra.mxu0 0.0
  %5708 = vmatprep.subr.mxu0 0.0
  %5709 = vmatpush1.msra.mxu0 0.0
  %5710 = vmatprep.subr.mxu0 0.0
  %5711 = vmatpush1.msra.mxu0 0.0
  %5712 = vmatprep.subr.mxu0 0.0
  %5713 = vmatpush1.msra.mxu0 0.0
  %5714 = vmatprep.subr.mxu0 0.0
  %5715 = vmatpush1.msra.mxu0 0.0
  %5716 = vmatprep.subr.mxu0 0.0
  %5717 = vmatpush1.msra.mxu0 0.0
  %5718 = vmatprep.subr.mxu0 0.0
  %5719 = vmatpush1.msra.mxu0 0.0
  %5720 = vmatprep.subr.mxu0 0.0
  %5721 = vmatpush1.msra.mxu0 0.0
  %5722 = vmatprep.subr.mxu0 0.0
  %5723 = vmatpush1.msra.mxu0 0.0
  %5724 = vmatprep.subr.mxu0 0.0
  %5725 = vmatpush1.msra.mxu0 0.0
  %5726 = vmatprep.subr.mxu0 0.0
  %5727 = vmatpush1.msra.mxu0 0.0
  %5728 = vmatprep.subr.mxu0 0.0
  %5729 = vmatpush1.msra.mxu0 0.0
  %5730 = vmatprep.subr.mxu0 0.0
  %5731 = vmatpush1.msra.mxu0 0.0
  %5732 = vmatprep.subr.mxu0 0.0
  %5733 = vmatpush1.msra.mxu0 0.0
  %5734 = vmatprep.subr.mxu0 0.0
  %5735 = vmatpush1.msra.mxu0 0.0
  %5736 = vmatprep.subr.mxu0 0.0
  %5737 = vmatpush1.msra.mxu0 0.0
  %5738 = vmatprep.subr.mxu0 0.0
  %5739 = vmatpush1.msra.mxu0 0.0
  %5740 = vmatprep.subr.mxu0 0.0
  %5741 = vmatpush1.msra.mxu0 0.0
  %5742 = vmatprep.subr.mxu0 0.0
  %5743 = vmatpush1.msra.mxu0 0.0
  %5744 = vmatprep.subr.mxu0 0.0
  %5745 = vmatpush1.msra.mxu0 0.0
  %5746 = vmatprep.subr.mxu0 0.0
  %5747 = vmatpush1.msra.mxu0 0.0
  %5748 = vmatprep.subr.mxu0 0.0
  %5749 = vmatpush1.msra.mxu0 0.0
  %5750 = vmatprep.mubr.f32.mxu0 0.0
  %5751 = vmatmul.mubr.f32.gmra.mrb[0].mxu0 %v5675
  %v5752 = vpop.f32.mrb[0].mxu0
  %v5753 = vadd.f32 %v5672, %v5752
  %v5754 = vpop.f32.mrb[0].mxu0
  %5755 = vmatprep.mubr.f32.mxu0 0.0
  %5756 = vmatmul.mubr.f32.gmra.mrb[0].mxu0 %v5678
  %v5757 = vpop.f32.mrb[0].mxu0
  %v5758 = vadd.f32 %v5672, %v5757
  %v5759 = vpop.f32.mrb[0].mxu0
  %5760 = vmatprep.mubr.f32.mxu0 0.0
  %5761 = vmatmul.mubr.f32.gmra.mrb[0].mxu0 %v5681
  %v5762 = vpop.f32.mrb[0].mxu0
  %v5763 = vadd.f32 %v5672, %v5762
  %v5764 = vpop.f32.mrb[0].mxu0
  %5765 = vmatprep.mubr.f32.mxu0 0.0
  %5766 = vmatmul.mubr.f32.gmra.mrb[0].mxu0 %v5684
  %v5767 = vpop.f32.mrb[0].mxu0
  %v5768 = vadd.f32 %v5672, %v5767
  %v5769 = vpop.f32.mrb[0].mxu0
  %5770 = vdwg.mxu0
  %v5771 = vmul.f32 %v5753, 0.25
  %v5772 = vmul.f32 %v5758, 0.25
  %v5773 = vmul.f32 %v5763, 0.25
  %v5774 = vmul.f32 %v5768, 0.25
  %s5775 = scalar_lea.vmem %s10, 256
  %v5776 = vld [vmem:[%s5775] sm:$0xff]
  %v5777 = vld [vmem:[%s5775 + $0x8] sm:$0xff]
  %v5778 = vld [vmem:[%s5775 + $0x10] sm:$0xff]
  %v5779 = vld [vmem:[%s5775 + $0x18] sm:$0xff]
  %s5780 = scalar_lea.vmem %s11, 8
  %v5781 = vld [vmem:[%s5780] sm:$0x1]
  %v5783 = vlaneseq
  %v5784 = vshrl.u32 %v5783, 7
  %v5785 = vsub.s32 0, %v5784
  %v5786 = vrot.slane %v5781, %v5785
  %5788 = vmatprep.subr.mxu0 0.0
  %5789 = vmatpush1.msra.mxu0 %v5776
  %5790 = vmatprep.subr.mxu0 0.0
  %5791 = vmatpush1.msra.mxu0 %v5777
  %5792 = vmatprep.subr.mxu0 0.0
  %5793 = vmatpush1.msra.mxu0 %v5778
  %5794 = vmatprep.subr.mxu0 0.0
  %5795 = vmatpush1.msra.mxu0 %v5779
  %5796 = vmatprep.subr.mxu0 0.0
  %5797 = vmatpush1.msra.mxu0 0.0
  %5798 = vmatprep.subr.mxu0 0.0
  %5799 = vmatpush1.msra.mxu0 0.0
  %5800 = vmatprep.subr.mxu0 0.0
  %5801 = vmatpush1.msra.mxu0 0.0
  %5802 = vmatprep.subr.mxu0 0.0
  %5803 = vmatpush1.msra.mxu0 0.0
  %5804 = vmatprep.subr.mxu0 0.0
  %5805 = vmatpush1.msra.mxu0 0.0
  %5806 = vmatprep.subr.mxu0 0.0
  %5807 = vmatpush1.msra.mxu0 0.0
  %5808 = vmatprep.subr.mxu0 0.0
  %5809 = vmatpush1.msra.mxu0 0.0
  %5810 = vmatprep.subr.mxu0 0.0
  %5811 = vmatpush1.msra.mxu0 0.0
  %5812 = vmatprep.subr.mxu0 0.0
  %5813 = vmatpush1.msra.mxu0 0.0
  %5814 = vmatprep.subr.mxu0 0.0
  %5815 = vmatpush1.msra.mxu0 0.0
  %5816 = vmatprep.subr.mxu0 0.0
  %5817 = vmatpush1.msra.mxu0 0.0
  %5818 = vmatprep.subr.mxu0 0.0
  %5819 = vmatpush1.msra.mxu0 0.0
  %5820 = vmatprep.subr.mxu0 0.0
  %5821 = vmatpush1.msra.mxu0 0.0
  %5822 = vmatprep.subr.mxu0 0.0
  %5823 = vmatpush1.msra.mxu0 0.0
  %5824 = vmatprep.subr.mxu0 0.0
  %5825 = vmatpush1.msra.mxu0 0.0
  %5826 = vmatprep.subr.mxu0 0.0
  %5827 = vmatpush1.msra.mxu0 0.0
  %5828 = vmatprep.subr.mxu0 0.0
  %5829 = vmatpush1.msra.mxu0 0.0
  %5830 = vmatprep.subr.mxu0 0.0
  %5831 = vmatpush1.msra.mxu0 0.0
  %5832 = vmatprep.subr.mxu0 0.0
  %5833 = vmatpush1.msra.mxu0 0.0
  %5834 = vmatprep.subr.mxu0 0.0
  %5835 = vmatpush1.msra.mxu0 0.0
  %5836 = vmatprep.subr.mxu0 0.0
  %5837 = vmatpush1.msra.mxu0 0.0
  %5838 = vmatprep.subr.mxu0 0.0
  %5839 = vmatpush1.msra.mxu0 0.0
  %5840 = vmatprep.subr.mxu0 0.0
  %5841 = vmatpush1.msra.mxu0 0.0
  %5842 = vmatprep.subr.mxu0 0.0
  %5843 = vmatpush1.msra.mxu0 0.0
  %5844 = vmatprep.subr.mxu0 0.0
  %5845 = vmatpush1.msra.mxu0 0.0
  %5846 = vmatprep.subr.mxu0 0.0
  %5847 = vmatpush1.msra.mxu0 0.0
  %5848 = vmatprep.subr.mxu0 0.0
  %5849 = vmatpush1.msra.mxu0 0.0
  %5850 = vmatprep.subr.mxu0 0.0
  %5851 = vmatpush1.msra.mxu0 0.0
  %5852 = vmatprep.mubr.f32.mxu0 0.0
  %5853 = vmatmul.mubr.f32.gmra.mrb[0].mxu0 %v5675
  %v5854 = vpop.f32.mrb[0].mxu0
  %v5855 = vadd.f32 %v5786, %v5854
  %v5856 = vpop.f32.mrb[0].mxu0
  %5857 = vmatprep.mubr.f32.mxu0 0.0
  %5858 = vmatmul.mubr.f32.gmra.mrb[0].mxu0 %v5678
  %v5859 = vpop.f32.mrb[0].mxu0
  %v5860 = vadd.f32 %v5786, %v5859
  %v5861 = vpop.f32.mrb[0].mxu0
  %5862 = vmatprep.mubr.f32.mxu0 0.0
  %5863 = vmatmul.mubr.f32.gmra.mrb[0].mxu0 %v5681
  %v5864 = vpop.f32.mrb[0].mxu0
  %v5865 = vadd.f32 %v5786, %v5864
  %v5866 = vpop.f32.mrb[0].mxu0
  %5867 = vmatprep.mubr.f32.mxu0 0.0
  %5868 = vmatmul.mubr.f32.gmra.mrb[0].mxu0 %v5684
  %v5869 = vpop.f32.mrb[0].mxu0
  %v5870 = vadd.f32 %v5786, %v5869
  %v5871 = vpop.f32.mrb[0].mxu0
  %5872 = vdwg.mxu0
  %s5873 = scalar_lea.vmem %s10, 320
  %v5874 = vld [vmem:[%s5873] sm:$0xff]
  %v5875 = vld [vmem:[%s5873 + $0x8] sm:$0xff]
  %v5876 = vld [vmem:[%s5873 + $0x10] sm:$0xff]
  %v5877 = vld [vmem:[%s5873 + $0x18] sm:$0xff]
  %s5878 = scalar_lea.vmem %s11, 10
  %v5879 = vld [vmem:[%s5878] sm:$0x1]
  %v5881 = vlaneseq
  %v5882 = vshrl.u32 %v5881, 7
  %v5883 = vsub.s32 0, %v5882
  %v5884 = vrot.slane %v5879, %v5883
  %5886 = vmatprep.subr.mxu0 0.0
  %5887 = vmatpush1.msra.mxu0 %v5874
  %5888 = vmatprep.subr.mxu0 0.0
  %5889 = vmatpush1.msra.mxu0 %v5875
  %5890 = vmatprep.subr.mxu0 0.0
  %5891 = vmatpush1.msra.mxu0 %v5876
  %5892 = vmatprep.subr.mxu0 0.0
  %5893 = vmatpush1.msra.mxu0 %v5877
  %5894 = vmatprep.subr.mxu0 0.0
  %5895 = vmatpush1.msra.mxu0 0.0
  %5896 = vmatprep.subr.mxu0 0.0
  %5897 = vmatpush1.msra.mxu0 0.0
  %5898 = vmatprep.subr.mxu0 0.0
  %5899 = vmatpush1.msra.mxu0 0.0
  %5900 = vmatprep.subr.mxu0 0.0
  %5901 = vmatpush1.msra.mxu0 0.0
  %5902 = vmatprep.subr.mxu0 0.0
  %5903 = vmatpush1.msra.mxu0 0.0
  %5904 = vmatprep.subr.mxu0 0.0
  %5905 = vmatpush1.msra.mxu0 0.0
  %5906 = vmatprep.subr.mxu0 0.0
  %5907 = vmatpush1.msra.mxu0 0.0
  %5908 = vmatprep.subr.mxu0 0.0
  %5909 = vmatpush1.msra.mxu0 0.0
  %5910 = vmatprep.subr.mxu0 0.0
  %5911 = vmatpush1.msra.mxu0 0.0
  %5912 = vmatprep.subr.mxu0 0.0
  %5913 = vmatpush1.msra.mxu0 0.0
  %5914 = vmatprep.subr.mxu0 0.0
  %5915 = vmatpush1.msra.mxu0 0.0
  %5916 = vmatprep.subr.mxu0 0.0
  %5917 = vmatpush1.msra.mxu0 0.0
  %5918 = vmatprep.subr.mxu0 0.0
  %5919 = vmatpush1.msra.mxu0 0.0
  %5920 = vmatprep.subr.mxu0 0.0
  %5921 = vmatpush1.msra.mxu0 0.0
  %5922 = vmatprep.subr.mxu0 0.0
  %5923 = vmatpush1.msra.mxu0 0.0
  %5924 = vmatprep.subr.mxu0 0.0
  %5925 = vmatpush1.msra.mxu0 0.0
  %5926 = vmatprep.subr.mxu0 0.0
  %5927 = vmatpush1.msra.mxu0 0.0
  %5928 = vmatprep.subr.mxu0 0.0
  %5929 = vmatpush1.msra.mxu0 0.0
  %5930 = vmatprep.subr.mxu0 0.0
  %5931 = vmatpush1.msra.mxu0 0.0
  %5932 = vmatprep.subr.mxu0 0.0
  %5933 = vmatpush1.msra.mxu0 0.0
  %5934 = vmatprep.subr.mxu0 0.0
  %5935 = vmatpush1.msra.mxu0 0.0
  %5936 = vmatprep.subr.mxu0 0.0
  %5937 = vmatpush1.msra.mxu0 0.0
  %5938 = vmatprep.subr.mxu0 0.0
  %5939 = vmatpush1.msra.mxu0 0.0
  %5940 = vmatprep.subr.mxu0 0.0
  %5941 = vmatpush1.msra.mxu0 0.0
  %5942 = vmatprep.subr.mxu0 0.0
  %5943 = vmatpush1.msra.mxu0 0.0
  %5944 = vmatprep.subr.mxu0 0.0
  %5945 = vmatpush1.msra.mxu0 0.0
  %5946 = vmatprep.subr.mxu0 0.0
  %5947 = vmatpush1.msra.mxu0 0.0
  %5948 = vmatprep.subr.mxu0 0.0
  %5949 = vmatpush1.msra.mxu0 0.0
  %5950 = vmatprep.mubr.f32.mxu0 0.0
  %5951 = vmatmul.mubr.f32.gmra.mrb[0].mxu0 %v5675
  %v5952 = vpop.f32.mrb[0].mxu0
  %v5953 = vadd.f32 %v5884, %v5952
  %v5954 = vpop.f32.mrb[0].mxu0
  %5955 = vmatprep.mubr.f32.mxu0 0.0
  %5956 = vmatmul.mubr.f32.gmra.mrb[0].mxu0 %v5678
  %v5957 = vpop.f32.mrb[0].mxu0
  %v5958 = vadd.f32 %v5884, %v5957
  %v5959 = vpop.f32.mrb[0].mxu0
  %5960 = vmatprep.mubr.f32.mxu0 0.0
  %5961 = vmatmul.mubr.f32.gmra.mrb[0].mxu0 %v5681
  %v5962 = vpop.f32.mrb[0].mxu0
  %v5963 = vadd.f32 %v5884, %v5962
  %v5964 = vpop.f32.mrb[0].mxu0
  %5965 = vmatprep.mubr.f32.mxu0 0.0
  %5966 = vmatmul.mubr.f32.gmra.mrb[0].mxu0 %v5684
  %v5967 = vpop.f32.mrb[0].mxu0
  %v5968 = vadd.f32 %v5884, %v5967
  %v5969 = vpop.f32.mrb[0].mxu0
  %5970 = vdwg.mxu0
  %v5975 = vcombine.high %v5771, %v5771
  %v5977 = vunpack.c.l.s4 1966171168
  %v5978 = vunpack.c.0.s8 %v5977
  %v5979 = vlaneseq
  %v5980 = vshrl.u32 %v5979, 7
  %v5981 = vsub.s32 %v5978, %v5980
  %v5982 = vrot.slane %v5771, %v5981
  %v5984 = vunpack.c.l.s4 1966171168
  %v5985 = vunpack.c.0.s8 %v5984
  %v5986 = vlaneseq
  %v5987 = vshrl.u32 %v5986, 7
  %v5988 = vsub.s32 %v5985, %v5987
  %v5989 = vrot.slane %v5975, %v5988
  %v5990 = vcombine.high %v5982, %v5982
  %v5991 = vcombine.high %v5989, %v5989
  %v5993 = vunpack.c.l.s4 1966171168
  %v5994 = vunpack.c.0.s8 %v5993
  %v5995 = vlaneseq
  %v5996 = vshrl.u32 %v5995, 7
  %v5997 = vsub.s32 %v5994, %v5996
  %v5998 = vrot.slane %v5982, %v5997
  %v6000 = vunpack.c.l.s4 1966171168
  %v6001 = vunpack.c.0.s8 %v6000
  %v6002 = vlaneseq
  %v6003 = vshrl.u32 %v6002, 7
  %v6004 = vsub.s32 %v6001, %v6003
  %v6005 = vrot.slane %v5989, %v6004
  %v6007 = vunpack.c.l.s4 1966171168
  %v6008 = vunpack.c.0.s8 %v6007
  %v6009 = vlaneseq
  %v6010 = vshrl.u32 %v6009, 7
  %v6011 = vsub.s32 %v6008, %v6010
  %v6012 = vrot.slane %v5990, %v6011
  %v6014 = vunpack.c.l.s4 1966171168
  %v6015 = vunpack.c.0.s8 %v6014
  %v6016 = vlaneseq
  %v6017 = vshrl.u32 %v6016, 7
  %v6018 = vsub.s32 %v6015, %v6017
  %v6019 = vrot.slane %v5991, %v6018
  %v6020 = vcombine.high %v5998, %v5998
  %v6021 = vcombine.high %v6005, %v6005
  %v6022 = vcombine.high %v6012, %v6012
  %v6023 = vcombine.high %v6019, %v6019
  %v6024 = vcombine.high %v5772, %v5772
  %v6026 = vunpack.c.l.s4 1966171168
  %v6027 = vunpack.c.0.s8 %v6026
  %v6028 = vlaneseq
  %v6029 = vshrl.u32 %v6028, 7
  %v6030 = vsub.s32 %v6027, %v6029
  %v6031 = vrot.slane %v5772, %v6030
  %v6033 = vunpack.c.l.s4 1966171168
  %v6034 = vunpack.c.0.s8 %v6033
  %v6035 = vlaneseq
  %v6036 = vshrl.u32 %v6035, 7
  %v6037 = vsub.s32 %v6034, %v6036
  %v6038 = vrot.slane %v6024, %v6037
  %v6039 = vcombine.high %v6031, %v6031
  %v6040 = vcombine.high %v6038, %v6038
  %v6042 = vunpack.c.l.s4 1966171168
  %v6043 = vunpack.c.0.s8 %v6042
  %v6044 = vlaneseq
  %v6045 = vshrl.u32 %v6044, 7
  %v6046 = vsub.s32 %v6043, %v6045
  %v6047 = vrot.slane %v6031, %v6046
  %v6049 = vunpack.c.l.s4 1966171168
  %v6050 = vunpack.c.0.s8 %v6049
  %v6051 = vlaneseq
  %v6052 = vshrl.u32 %v6051, 7
  %v6053 = vsub.s32 %v6050, %v6052
  %v6054 = vrot.slane %v6038, %v6053
  %v6056 = vunpack.c.l.s4 1966171168
  %v6057 = vunpack.c.0.s8 %v6056
  %v6058 = vlaneseq
  %v6059 = vshrl.u32 %v6058, 7
  %v6060 = vsub.s32 %v6057, %v6059
  %v6061 = vrot.slane %v6039, %v6060
  %v6063 = vunpack.c.l.s4 1966171168
  %v6064 = vunpack.c.0.s8 %v6063
  %v6065 = vlaneseq
  %v6066 = vshrl.u32 %v6065, 7
  %v6067 = vsub.s32 %v6064, %v6066
  %v6068 = vrot.slane %v6040, %v6067
  %v6069 = vcombine.high %v6047, %v6047
  %v6070 = vcombine.high %v6054, %v6054
  %v6071 = vcombine.high %v6061, %v6061
  %v6072 = vcombine.high %v6068, %v6068
  %v6073 = vcombine.high %v5773, %v5773
  %v6075 = vunpack.c.l.s4 1966171168
  %v6076 = vunpack.c.0.s8 %v6075
  %v6077 = vlaneseq
  %v6078 = vshrl.u32 %v6077, 7
  %v6079 = vsub.s32 %v6076, %v6078
  %v6080 = vrot.slane %v5773, %v6079
  %v6082 = vunpack.c.l.s4 1966171168
  %v6083 = vunpack.c.0.s8 %v6082
  %v6084 = vlaneseq
  %v6085 = vshrl.u32 %v6084, 7
  %v6086 = vsub.s32 %v6083, %v6085
  %v6087 = vrot.slane %v6073, %v6086
  %v6088 = vcombine.high %v6080, %v6080
  %v6089 = vcombine.high %v6087, %v6087
  %v6091 = vunpack.c.l.s4 1966171168
  %v6092 = vunpack.c.0.s8 %v6091
  %v6093 = vlaneseq
  %v6094 = vshrl.u32 %v6093, 7
  %v6095 = vsub.s32 %v6092, %v6094
  %v6096 = vrot.slane %v6080, %v6095
  %v6098 = vunpack.c.l.s4 1966171168
  %v6099 = vunpack.c.0.s8 %v6098
  %v6100 = vlaneseq
  %v6101 = vshrl.u32 %v6100, 7
  %v6102 = vsub.s32 %v6099, %v6101
  %v6103 = vrot.slane %v6087, %v6102
  %v6105 = vunpack.c.l.s4 1966171168
  %v6106 = vunpack.c.0.s8 %v6105
  %v6107 = vlaneseq
  %v6108 = vshrl.u32 %v6107, 7
  %v6109 = vsub.s32 %v6106, %v6108
  %v6110 = vrot.slane %v6088, %v6109
  %v6112 = vunpack.c.l.s4 1966171168
  %v6113 = vunpack.c.0.s8 %v6112
  %v6114 = vlaneseq
  %v6115 = vshrl.u32 %v6114, 7
  %v6116 = vsub.s32 %v6113, %v6115
  %v6117 = vrot.slane %v6089, %v6116
  %v6118 = vcombine.high %v6096, %v6096
  %v6119 = vcombine.high %v6103, %v6103
  %v6120 = vcombine.high %v6110, %v6110
  %v6121 = vcombine.high %v6117, %v6117
  %v6122 = vcombine.high %v5774, %v5774
  %v6124 = vunpack.c.l.s4 1966171168
  %v6125 = vunpack.c.0.s8 %v6124
  %v6126 = vlaneseq
  %v6127 = vshrl.u32 %v6126, 7
  %v6128 = vsub.s32 %v6125, %v6127
  %v6129 = vrot.slane %v5774, %v6128
  %v6131 = vunpack.c.l.s4 1966171168
  %v6132 = vunpack.c.0.s8 %v6131
  %v6133 = vlaneseq
  %v6134 = vshrl.u32 %v6133, 7
  %v6135 = vsub.s32 %v6132, %v6134
  %v6136 = vrot.slane %v6122, %v6135
  %v6137 = vcombine.high %v6129, %v6129
  %v6138 = vcombine.high %v6136, %v6136
  %v6140 = vunpack.c.l.s4 1966171168
  %v6141 = vunpack.c.0.s8 %v6140
  %v6142 = vlaneseq
  %v6143 = vshrl.u32 %v6142, 7
  %v6144 = vsub.s32 %v6141, %v6143
  %v6145 = vrot.slane %v6129, %v6144
  %v6147 = vunpack.c.l.s4 1966171168
  %v6148 = vunpack.c.0.s8 %v6147
  %v6149 = vlaneseq
  %v6150 = vshrl.u32 %v6149, 7
  %v6151 = vsub.s32 %v6148, %v6150
  %v6152 = vrot.slane %v6136, %v6151
  %v6154 = vunpack.c.l.s4 1966171168
  %v6155 = vunpack.c.0.s8 %v6154
  %v6156 = vlaneseq
  %v6157 = vshrl.u32 %v6156, 7
  %v6158 = vsub.s32 %v6155, %v6157
  %v6159 = vrot.slane %v6137, %v6158
  %v6161 = vunpack.c.l.s4 1966171168
  %v6162 = vunpack.c.0.s8 %v6161
  %v6163 = vlaneseq
  %v6164 = vshrl.u32 %v6163, 7
  %v6165 = vsub.s32 %v6162, %v6164
  %v6166 = vrot.slane %v6138, %v6165
  %v6167 = vcombine.high %v6145, %v6145
  %v6168 = vcombine.high %v6152, %v6152
  %v6169 = vcombine.high %v6159, %v6159
  %v6170 = vcombine.high %v6166, %v6166
  %v6171 = vlaneseq
  %v6172 = vshrl.u32 %v6171, 7
  %v6173 = vsub.s32 0, %v6172
  %v6174 = vrot.slane %v5998, %v6173
  %v6175 = vlaneseq
  %v6176 = vshrl.u32 %v6175, 7
  %v6177 = vsub.s32 0, %v6176
  %v6178 = vrot.slane %v6012, %v6177
  %v6179 = vlaneseq
  %v6180 = vshrl.u32 %v6179, 7
  %v6181 = vsub.s32 0, %v6180
  %v6182 = vrot.slane %v6020, %v6181
  %v6183 = vlaneseq
  %v6184 = vshrl.u32 %v6183, 7
  %v6185 = vsub.s32 0, %v6184
  %v6186 = vrot.slane %v6022, %v6185
  %v6187 = vlaneseq
  %v6188 = vshrl.u32 %v6187, 7
  %v6189 = vsub.s32 0, %v6188
  %v6190 = vrot.slane %v6005, %v6189
  %v6191 = vlaneseq
  %v6192 = vshrl.u32 %v6191, 7
  %v6193 = vsub.s32 0, %v6192
  %v6194 = vrot.slane %v6019, %v6193
  %v6195 = vlaneseq
  %v6196 = vshrl.u32 %v6195, 7
  %v6197 = vsub.s32 0, %v6196
  %v6198 = vrot.slane %v6021, %v6197
  %v6199 = vlaneseq
  %v6200 = vshrl.u32 %v6199, 7
  %v6201 = vsub.s32 0, %v6200
  %v6202 = vrot.slane %v6023, %v6201
  %v6203 = vlaneseq
  %v6204 = vshrl.u32 %v6203, 7
  %v6205 = vsub.s32 0, %v6204
  %v6206 = vrot.slane %v6047, %v6205
  %v6207 = vlaneseq
  %v6208 = vshrl.u32 %v6207, 7
  %v6209 = vsub.s32 0, %v6208
  %v6210 = vrot.slane %v6061, %v6209
  %v6211 = vlaneseq
  %v6212 = vshrl.u32 %v6211, 7
  %v6213 = vsub.s32 0, %v6212
  %v6214 = vrot.slane %v6069, %v6213
  %v6215 = vlaneseq
  %v6216 = vshrl.u32 %v6215, 7
  %v6217 = vsub.s32 0, %v6216
  %v6218 = vrot.slane %v6071, %v6217
  %v6219 = vlaneseq
  %v6220 = vshrl.u32 %v6219, 7
  %v6221 = vsub.s32 0, %v6220
  %v6222 = vrot.slane %v6054, %v6221
  %v6223 = vlaneseq
  %v6224 = vshrl.u32 %v6223, 7
  %v6225 = vsub.s32 0, %v6224
  %v6226 = vrot.slane %v6068, %v6225
  %v6227 = vlaneseq
  %v6228 = vshrl.u32 %v6227, 7
  %v6229 = vsub.s32 0, %v6228
  %v6230 = vrot.slane %v6070, %v6229
  %v6231 = vlaneseq
  %v6232 = vshrl.u32 %v6231, 7
  %v6233 = vsub.s32 0, %v6232
  %v6234 = vrot.slane %v6072, %v6233
  %v6235 = vlaneseq
  %v6236 = vshrl.u32 %v6235, 7
  %v6237 = vsub.s32 0, %v6236
  %v6238 = vrot.slane %v6096, %v6237
  %v6239 = vlaneseq
  %v6240 = vshrl.u32 %v6239, 7
  %v6241 = vsub.s32 0, %v6240
  %v6242 = vrot.slane %v6110, %v6241
  %v6243 = vlaneseq
  %v6244 = vshrl.u32 %v6243, 7
  %v6245 = vsub.s32 0, %v6244
  %v6246 = vrot.slane %v6118, %v6245
  %v6247 = vlaneseq
  %v6248 = vshrl.u32 %v6247, 7
  %v6249 = vsub.s32 0, %v6248
  %v6250 = vrot.slane %v6120, %v6249
  %v6251 = vlaneseq
  %v6252 = vshrl.u32 %v6251, 7
  %v6253 = vsub.s32 0, %v6252
  %v6254 = vrot.slane %v6103, %v6253
  %v6255 = vlaneseq
  %v6256 = vshrl.u32 %v6255, 7
  %v6257 = vsub.s32 0, %v6256
  %v6258 = vrot.slane %v6117, %v6257
  %v6259 = vlaneseq
  %v6260 = vshrl.u32 %v6259, 7
  %v6261 = vsub.s32 0, %v6260
  %v6262 = vrot.slane %v6119, %v6261
  %v6263 = vlaneseq
  %v6264 = vshrl.u32 %v6263, 7
  %v6265 = vsub.s32 0, %v6264
  %v6266 = vrot.slane %v6121, %v6265
  %v6267 = vlaneseq
  %v6268 = vshrl.u32 %v6267, 7
  %v6269 = vsub.s32 0, %v6268
  %v6270 = vrot.slane %v6145, %v6269
  %v6271 = vlaneseq
  %v6272 = vshrl.u32 %v6271, 7
  %v6273 = vsub.s32 0, %v6272
  %v6274 = vrot.slane %v6159, %v6273
  %v6275 = vlaneseq
  %v6276 = vshrl.u32 %v6275, 7
  %v6277 = vsub.s32 0, %v6276
  %v6278 = vrot.slane %v6167, %v6277
  %v6279 = vlaneseq
  %v6280 = vshrl.u32 %v6279, 7
  %v6281 = vsub.s32 0, %v6280
  %v6282 = vrot.slane %v6169, %v6281
  %v6283 = vlaneseq
  %v6284 = vshrl.u32 %v6283, 7
  %v6285 = vsub.s32 0, %v6284
  %v6286 = vrot.slane %v6152, %v6285
  %v6287 = vlaneseq
  %v6288 = vshrl.u32 %v6287, 7
  %v6289 = vsub.s32 0, %v6288
  %v6290 = vrot.slane %v6166, %v6289
  %v6291 = vlaneseq
  %v6292 = vshrl.u32 %v6291, 7
  %v6293 = vsub.s32 0, %v6292
  %v6294 = vrot.slane %v6168, %v6293
  %v6295 = vlaneseq
  %v6296 = vshrl.u32 %v6295, 7
  %v6297 = vsub.s32 0, %v6296
  %v6298 = vrot.slane %v6170, %v6297
  %v6331 = vmul.f32 %v6174, %v96
  %v6332 = vmul.f32 %v6174, %v97
  %v6333 = vmul.f32 %v6174, %v98
  %v6334 = vmul.f32 %v6174, %v99
  %v6335 = vmul.f32 %v6178, %v100
  %v6336 = vmul.f32 %v6178, %v101
  %v6337 = vmul.f32 %v6178, %v102
  %v6338 = vmul.f32 %v6178, %v103
  %v6339 = vmul.f32 %v6182, %v104
  %v6340 = vmul.f32 %v6182, %v105
  %v6341 = vmul.f32 %v6182, %v106
  %v6342 = vmul.f32 %v6182, %v107
  %v6343 = vmul.f32 %v6186, %v108
  %v6344 = vmul.f32 %v6186, %v109
  %v6345 = vmul.f32 %v6186, %v110
  %v6346 = vmul.f32 %v6186, %v111
  %v6347 = vmul.f32 %v6190, %v112
  %v6348 = vmul.f32 %v6190, %v113
  %v6349 = vmul.f32 %v6190, %v114
  %v6350 = vmul.f32 %v6190, %v115
  %v6351 = vmul.f32 %v6194, %v116
  %v6352 = vmul.f32 %v6194, %v117
  %v6353 = vmul.f32 %v6194, %v118
  %v6354 = vmul.f32 %v6194, %v119
  %v6355 = vmul.f32 %v6198, %v120
  %v6356 = vmul.f32 %v6198, %v121
  %v6357 = vmul.f32 %v6198, %v122
  %v6358 = vmul.f32 %v6198, %v123
  %v6359 = vmul.f32 %v6202, %v124
  %v6360 = vmul.f32 %v6202, %v125
  %v6361 = vmul.f32 %v6202, %v126
  %v6362 = vmul.f32 %v6202, %v127
  %v6363 = vmul.f32 %v6206, %v128
  %v6364 = vmul.f32 %v6206, %v129
  %v6365 = vmul.f32 %v6206, %v130
  %v6366 = vmul.f32 %v6206, %v131
  %v6367 = vmul.f32 %v6210, %v132
  %v6368 = vmul.f32 %v6210, %v133
  %v6369 = vmul.f32 %v6210, %v134
  %v6370 = vmul.f32 %v6210, %v135
  %v6371 = vmul.f32 %v6214, %v136
  %v6372 = vmul.f32 %v6214, %v137
  %v6373 = vmul.f32 %v6214, %v138
  %v6374 = vmul.f32 %v6214, %v139
  %v6375 = vmul.f32 %v6218, %v140
  %v6376 = vmul.f32 %v6218, %v141
  %v6377 = vmul.f32 %v6218, %v142
  %v6378 = vmul.f32 %v6218, %v143
  %v6379 = vmul.f32 %v6222, %v144
  %v6380 = vmul.f32 %v6222, %v145
  %v6381 = vmul.f32 %v6222, %v146
  %v6382 = vmul.f32 %v6222, %v147
  %v6383 = vmul.f32 %v6226, %v148
  %v6384 = vmul.f32 %v6226, %v149
  %v6385 = vmul.f32 %v6226, %v150
  %v6386 = vmul.f32 %v6226, %v151
  %v6387 = vmul.f32 %v6230, %v152
  %v6388 = vmul.f32 %v6230, %v153
  %v6389 = vmul.f32 %v6230, %v154
  %v6390 = vmul.f32 %v6230, %v155
  %v6391 = vmul.f32 %v6234, %v156
  %v6392 = vmul.f32 %v6234, %v157
  %v6393 = vmul.f32 %v6234, %v158
  %v6394 = vmul.f32 %v6234, %v159
  %v6395 = vmul.f32 %v6238, %v160
  %v6396 = vmul.f32 %v6238, %v161
  %v6397 = vmul.f32 %v6238, %v162
  %v6398 = vmul.f32 %v6238, %v163
  %v6399 = vmul.f32 %v6242, %v164
  %v6400 = vmul.f32 %v6242, %v165
  %v6401 = vmul.f32 %v6242, %v166
  %v6402 = vmul.f32 %v6242, %v167
  %v6403 = vmul.f32 %v6246, %v168
  %v6404 = vmul.f32 %v6246, %v169
  %v6405 = vmul.f32 %v6246, %v170
  %v6406 = vmul.f32 %v6246, %v171
  %v6407 = vmul.f32 %v6250, %v172
  %v6408 = vmul.f32 %v6250, %v173
  %v6409 = vmul.f32 %v6250, %v174
  %v6410 = vmul.f32 %v6250, %v175
  %v6411 = vmul.f32 %v6254, %v176
  %v6412 = vmul.f32 %v6254, %v177
  %v6413 = vmul.f32 %v6254, %v178
  %v6414 = vmul.f32 %v6254, %v179
  %v6415 = vmul.f32 %v6258, %v180
  %v6416 = vmul.f32 %v6258, %v181
  %v6417 = vmul.f32 %v6258, %v182
  %v6418 = vmul.f32 %v6258, %v183
  %v6419 = vmul.f32 %v6262, %v184
  %v6420 = vmul.f32 %v6262, %v185
  %v6421 = vmul.f32 %v6262, %v186
  %v6422 = vmul.f32 %v6262, %v187
  %v6423 = vmul.f32 %v6266, %v188
  %v6424 = vmul.f32 %v6266, %v189
  %v6425 = vmul.f32 %v6266, %v190
  %v6426 = vmul.f32 %v6266, %v191
  %v6427 = vmul.f32 %v6270, %v192
  %v6428 = vmul.f32 %v6270, %v193
  %v6429 = vmul.f32 %v6270, %v194
  %v6430 = vmul.f32 %v6270, %v195
  %v6431 = vmul.f32 %v6274, %v196
  %v6432 = vmul.f32 %v6274, %v197
  %v6433 = vmul.f32 %v6274, %v198
  %v6434 = vmul.f32 %v6274, %v199
  %v6435 = vmul.f32 %v6278, %v200
  %v6436 = vmul.f32 %v6278, %v201
  %v6437 = vmul.f32 %v6278, %v202
  %v6438 = vmul.f32 %v6278, %v203
  %v6439 = vmul.f32 %v6282, %v204
  %v6440 = vmul.f32 %v6282, %v205
  %v6441 = vmul.f32 %v6282, %v206
  %v6442 = vmul.f32 %v6282, %v207
  %v6443 = vmul.f32 %v6286, %v208
  %v6444 = vmul.f32 %v6286, %v209
  %v6445 = vmul.f32 %v6286, %v210
  %v6446 = vmul.f32 %v6286, %v211
  %v6447 = vmul.f32 %v6290, %v212
  %v6448 = vmul.f32 %v6290, %v213
  %v6449 = vmul.f32 %v6290, %v214
  %v6450 = vmul.f32 %v6290, %v215
  %v6451 = vmul.f32 %v6294, %v216
  %v6452 = vmul.f32 %v6294, %v217
  %v6453 = vmul.f32 %v6294, %v218
  %v6454 = vmul.f32 %v6294, %v219
  %v6455 = vmul.f32 %v6298, %v220
  %v6456 = vmul.f32 %v6298, %v221
  %v6457 = vmul.f32 %v6298, %v222
  %v6458 = vmul.f32 %v6298, %v223
  %v6459 = vsel %vm1457, %v6331, 0.0
  %6460 = vadd.xlane.f32.xlu0 %v6459
  %v6461 = vpop.xlane.xlu0 %6460
  %v6462 = vsel %vm1457, %v6332, 0.0
  %6463 = vadd.xlane.f32.xlu0 %v6462
  %v6464 = vpop.xlane.xlu0 %6463
  %v6465 = vsel %vm1457, %v6333, 0.0
  %6466 = vadd.xlane.f32.xlu0 %v6465
  %v6467 = vpop.xlane.xlu0 %6466
  %v6468 = vsel %vm1457, %v6334, 0.0
  %6469 = vadd.xlane.f32.xlu0 %v6468
  %v6470 = vpop.xlane.xlu0 %6469
  %v6471 = vsel %vm1457, %v6335, 0.0
  %6472 = vadd.xlane.f32.xlu0 %v6471
  %v6473 = vpop.xlane.xlu0 %6472
  %v6474 = vsel %vm1457, %v6336, 0.0
  %6475 = vadd.xlane.f32.xlu0 %v6474
  %v6476 = vpop.xlane.xlu0 %6475
  %v6477 = vsel %vm1457, %v6337, 0.0
  %6478 = vadd.xlane.f32.xlu0 %v6477
  %v6479 = vpop.xlane.xlu0 %6478
  %v6480 = vsel %vm1457, %v6338, 0.0
  %6481 = vadd.xlane.f32.xlu0 %v6480
  %v6482 = vpop.xlane.xlu0 %6481
  %v6483 = vsel %vm1457, %v6339, 0.0
  %6484 = vadd.xlane.f32.xlu0 %v6483
  %v6485 = vpop.xlane.xlu0 %6484
  %v6486 = vsel %vm1457, %v6340, 0.0
  %6487 = vadd.xlane.f32.xlu0 %v6486
  %v6488 = vpop.xlane.xlu0 %6487
  %v6489 = vsel %vm1457, %v6341, 0.0
  %6490 = vadd.xlane.f32.xlu0 %v6489
  %v6491 = vpop.xlane.xlu0 %6490
  %v6492 = vsel %vm1457, %v6342, 0.0
  %6493 = vadd.xlane.f32.xlu0 %v6492
  %v6494 = vpop.xlane.xlu0 %6493
  %v6495 = vsel %vm1457, %v6343, 0.0
  %6496 = vadd.xlane.f32.xlu0 %v6495
  %v6497 = vpop.xlane.xlu0 %6496
  %v6498 = vsel %vm1457, %v6344, 0.0
  %6499 = vadd.xlane.f32.xlu0 %v6498
  %v6500 = vpop.xlane.xlu0 %6499
  %v6501 = vsel %vm1457, %v6345, 0.0
  %6502 = vadd.xlane.f32.xlu0 %v6501
  %v6503 = vpop.xlane.xlu0 %6502
  %v6504 = vsel %vm1457, %v6346, 0.0
  %6505 = vadd.xlane.f32.xlu0 %v6504
  %v6506 = vpop.xlane.xlu0 %6505
  %v6507 = vsel %vm1457, %v6347, 0.0
  %6508 = vadd.xlane.f32.xlu0 %v6507
  %v6509 = vpop.xlane.xlu0 %6508
  %v6510 = vsel %vm1457, %v6348, 0.0
  %6511 = vadd.xlane.f32.xlu0 %v6510
  %v6512 = vpop.xlane.xlu0 %6511
  %v6513 = vsel %vm1457, %v6349, 0.0
  %6514 = vadd.xlane.f32.xlu0 %v6513
  %v6515 = vpop.xlane.xlu0 %6514
  %v6516 = vsel %vm1457, %v6350, 0.0
  %6517 = vadd.xlane.f32.xlu0 %v6516
  %v6518 = vpop.xlane.xlu0 %6517
  %v6519 = vsel %vm1457, %v6351, 0.0
  %6520 = vadd.xlane.f32.xlu0 %v6519
  %v6521 = vpop.xlane.xlu0 %6520
  %v6522 = vsel %vm1457, %v6352, 0.0
  %6523 = vadd.xlane.f32.xlu0 %v6522
  %v6524 = vpop.xlane.xlu0 %6523
  %v6525 = vsel %vm1457, %v6353, 0.0
  %6526 = vadd.xlane.f32.xlu0 %v6525
  %v6527 = vpop.xlane.xlu0 %6526
  %v6528 = vsel %vm1457, %v6354, 0.0
  %6529 = vadd.xlane.f32.xlu0 %v6528
  %v6530 = vpop.xlane.xlu0 %6529
  %v6531 = vsel %vm1457, %v6355, 0.0
  %6532 = vadd.xlane.f32.xlu0 %v6531
  %v6533 = vpop.xlane.xlu0 %6532
  %v6534 = vsel %vm1457, %v6356, 0.0
  %6535 = vadd.xlane.f32.xlu0 %v6534
  %v6536 = vpop.xlane.xlu0 %6535
  %v6537 = vsel %vm1457, %v6357, 0.0
  %6538 = vadd.xlane.f32.xlu0 %v6537
  %v6539 = vpop.xlane.xlu0 %6538
  %v6540 = vsel %vm1457, %v6358, 0.0
  %6541 = vadd.xlane.f32.xlu0 %v6540
  %v6542 = vpop.xlane.xlu0 %6541
  %v6543 = vsel %vm1457, %v6359, 0.0
  %6544 = vadd.xlane.f32.xlu0 %v6543
  %v6545 = vpop.xlane.xlu0 %6544
  %v6546 = vsel %vm1457, %v6360, 0.0
  %6547 = vadd.xlane.f32.xlu0 %v6546
  %v6548 = vpop.xlane.xlu0 %6547
  %v6549 = vsel %vm1457, %v6361, 0.0
  %6550 = vadd.xlane.f32.xlu0 %v6549
  %v6551 = vpop.xlane.xlu0 %6550
  %v6552 = vsel %vm1457, %v6362, 0.0
  %6553 = vadd.xlane.f32.xlu0 %v6552
  %v6554 = vpop.xlane.xlu0 %6553
  %v6555 = vsel %vm1457, %v6363, 0.0
  %6556 = vadd.xlane.f32.xlu0 %v6555
  %v6557 = vpop.xlane.xlu0 %6556
  %v6558 = vsel %vm1457, %v6364, 0.0
  %6559 = vadd.xlane.f32.xlu0 %v6558
  %v6560 = vpop.xlane.xlu0 %6559
  %v6561 = vsel %vm1457, %v6365, 0.0
  %6562 = vadd.xlane.f32.xlu0 %v6561
  %v6563 = vpop.xlane.xlu0 %6562
  %v6564 = vsel %vm1457, %v6366, 0.0
  %6565 = vadd.xlane.f32.xlu0 %v6564
  %v6566 = vpop.xlane.xlu0 %6565
  %v6567 = vsel %vm1457, %v6367, 0.0
  %6568 = vadd.xlane.f32.xlu0 %v6567
  %v6569 = vpop.xlane.xlu0 %6568
  %v6570 = vsel %vm1457, %v6368, 0.0
  %6571 = vadd.xlane.f32.xlu0 %v6570
  %v6572 = vpop.xlane.xlu0 %6571
  %v6573 = vsel %vm1457, %v6369, 0.0
  %6574 = vadd.xlane.f32.xlu0 %v6573
  %v6575 = vpop.xlane.xlu0 %6574
  %v6576 = vsel %vm1457, %v6370, 0.0
  %6577 = vadd.xlane.f32.xlu0 %v6576
  %v6578 = vpop.xlane.xlu0 %6577
  %v6579 = vsel %vm1457, %v6371, 0.0
  %6580 = vadd.xlane.f32.xlu0 %v6579
  %v6581 = vpop.xlane.xlu0 %6580
  %v6582 = vsel %vm1457, %v6372, 0.0
  %6583 = vadd.xlane.f32.xlu0 %v6582
  %v6584 = vpop.xlane.xlu0 %6583
  %v6585 = vsel %vm1457, %v6373, 0.0
  %6586 = vadd.xlane.f32.xlu0 %v6585
  %v6587 = vpop.xlane.xlu0 %6586
  %v6588 = vsel %vm1457, %v6374, 0.0
  %6589 = vadd.xlane.f32.xlu0 %v6588
  %v6590 = vpop.xlane.xlu0 %6589
  %v6591 = vsel %vm1457, %v6375, 0.0
  %6592 = vadd.xlane.f32.xlu0 %v6591
  %v6593 = vpop.xlane.xlu0 %6592
  %v6594 = vsel %vm1457, %v6376, 0.0
  %6595 = vadd.xlane.f32.xlu0 %v6594
  %v6596 = vpop.xlane.xlu0 %6595
  %v6597 = vsel %vm1457, %v6377, 0.0
  %6598 = vadd.xlane.f32.xlu0 %v6597
  %v6599 = vpop.xlane.xlu0 %6598
  %v6600 = vsel %vm1457, %v6378, 0.0
  %6601 = vadd.xlane.f32.xlu0 %v6600
  %v6602 = vpop.xlane.xlu0 %6601
  %v6603 = vsel %vm1457, %v6379, 0.0
  %6604 = vadd.xlane.f32.xlu0 %v6603
  %v6605 = vpop.xlane.xlu0 %6604
  %v6606 = vsel %vm1457, %v6380, 0.0
  %6607 = vadd.xlane.f32.xlu0 %v6606
  %v6608 = vpop.xlane.xlu0 %6607
  %v6609 = vsel %vm1457, %v6381, 0.0
  %6610 = vadd.xlane.f32.xlu0 %v6609
  %v6611 = vpop.xlane.xlu0 %6610
  %v6612 = vsel %vm1457, %v6382, 0.0
  %6613 = vadd.xlane.f32.xlu0 %v6612
  %v6614 = vpop.xlane.xlu0 %6613
  %v6615 = vsel %vm1457, %v6383, 0.0
  %6616 = vadd.xlane.f32.xlu0 %v6615
  %v6617 = vpop.xlane.xlu0 %6616
  %v6618 = vsel %vm1457, %v6384, 0.0
  %6619 = vadd.xlane.f32.xlu0 %v6618
  %v6620 = vpop.xlane.xlu0 %6619
  %v6621 = vsel %vm1457, %v6385, 0.0
  %6622 = vadd.xlane.f32.xlu0 %v6621
  %v6623 = vpop.xlane.xlu0 %6622
  %v6624 = vsel %vm1457, %v6386, 0.0
  %6625 = vadd.xlane.f32.xlu0 %v6624
  %v6626 = vpop.xlane.xlu0 %6625
  %v6627 = vsel %vm1457, %v6387, 0.0
  %6628 = vadd.xlane.f32.xlu0 %v6627
  %v6629 = vpop.xlane.xlu0 %6628
  %v6630 = vsel %vm1457, %v6388, 0.0
  %6631 = vadd.xlane.f32.xlu0 %v6630
  %v6632 = vpop.xlane.xlu0 %6631
  %v6633 = vsel %vm1457, %v6389, 0.0
  %6634 = vadd.xlane.f32.xlu0 %v6633
  %v6635 = vpop.xlane.xlu0 %6634
  %v6636 = vsel %vm1457, %v6390, 0.0
  %6637 = vadd.xlane.f32.xlu0 %v6636
  %v6638 = vpop.xlane.xlu0 %6637
  %v6639 = vsel %vm1457, %v6391, 0.0
  %6640 = vadd.xlane.f32.xlu0 %v6639
  %v6641 = vpop.xlane.xlu0 %6640
  %v6642 = vsel %vm1457, %v6392, 0.0
  %6643 = vadd.xlane.f32.xlu0 %v6642
  %v6644 = vpop.xlane.xlu0 %6643
  %v6645 = vsel %vm1457, %v6393, 0.0
  %6646 = vadd.xlane.f32.xlu0 %v6645
  %v6647 = vpop.xlane.xlu0 %6646
  %v6648 = vsel %vm1457, %v6394, 0.0
  %6649 = vadd.xlane.f32.xlu0 %v6648
  %v6650 = vpop.xlane.xlu0 %6649
  %v6651 = vsel %vm1457, %v6395, 0.0
  %6652 = vadd.xlane.f32.xlu0 %v6651
  %v6653 = vpop.xlane.xlu0 %6652
  %v6654 = vsel %vm1457, %v6396, 0.0
  %6655 = vadd.xlane.f32.xlu0 %v6654
  %v6656 = vpop.xlane.xlu0 %6655
  %v6657 = vsel %vm1457, %v6397, 0.0
  %6658 = vadd.xlane.f32.xlu0 %v6657
  %v6659 = vpop.xlane.xlu0 %6658
  %v6660 = vsel %vm1457, %v6398, 0.0
  %6661 = vadd.xlane.f32.xlu0 %v6660
  %v6662 = vpop.xlane.xlu0 %6661
  %v6663 = vsel %vm1457, %v6399, 0.0
  %6664 = vadd.xlane.f32.xlu0 %v6663
  %v6665 = vpop.xlane.xlu0 %6664
  %v6666 = vsel %vm1457, %v6400, 0.0
  %6667 = vadd.xlane.f32.xlu0 %v6666
  %v6668 = vpop.xlane.xlu0 %6667
  %v6669 = vsel %vm1457, %v6401, 0.0
  %6670 = vadd.xlane.f32.xlu0 %v6669
  %v6671 = vpop.xlane.xlu0 %6670
  %v6672 = vsel %vm1457, %v6402, 0.0
  %6673 = vadd.xlane.f32.xlu0 %v6672
  %v6674 = vpop.xlane.xlu0 %6673
  %v6675 = vsel %vm1457, %v6403, 0.0
  %6676 = vadd.xlane.f32.xlu0 %v6675
  %v6677 = vpop.xlane.xlu0 %6676
  %v6678 = vsel %vm1457, %v6404, 0.0
  %6679 = vadd.xlane.f32.xlu0 %v6678
  %v6680 = vpop.xlane.xlu0 %6679
  %v6681 = vsel %vm1457, %v6405, 0.0
  %6682 = vadd.xlane.f32.xlu0 %v6681
  %v6683 = vpop.xlane.xlu0 %6682
  %v6684 = vsel %vm1457, %v6406, 0.0
  %6685 = vadd.xlane.f32.xlu0 %v6684
  %v6686 = vpop.xlane.xlu0 %6685
  %v6687 = vsel %vm1457, %v6407, 0.0
  %6688 = vadd.xlane.f32.xlu0 %v6687
  %v6689 = vpop.xlane.xlu0 %6688
  %v6690 = vsel %vm1457, %v6408, 0.0
  %6691 = vadd.xlane.f32.xlu0 %v6690
  %v6692 = vpop.xlane.xlu0 %6691
  %v6693 = vsel %vm1457, %v6409, 0.0
  %6694 = vadd.xlane.f32.xlu0 %v6693
  %v6695 = vpop.xlane.xlu0 %6694
  %v6696 = vsel %vm1457, %v6410, 0.0
  %6697 = vadd.xlane.f32.xlu0 %v6696
  %v6698 = vpop.xlane.xlu0 %6697
  %v6699 = vsel %vm1457, %v6411, 0.0
  %6700 = vadd.xlane.f32.xlu0 %v6699
  %v6701 = vpop.xlane.xlu0 %6700
  %v6702 = vsel %vm1457, %v6412, 0.0
  %6703 = vadd.xlane.f32.xlu0 %v6702
  %v6704 = vpop.xlane.xlu0 %6703
  %v6705 = vsel %vm1457, %v6413, 0.0
  %6706 = vadd.xlane.f32.xlu0 %v6705
  %v6707 = vpop.xlane.xlu0 %6706
  %v6708 = vsel %vm1457, %v6414, 0.0
  %6709 = vadd.xlane.f32.xlu0 %v6708
  %v6710 = vpop.xlane.xlu0 %6709
  %v6711 = vsel %vm1457, %v6415, 0.0
  %6712 = vadd.xlane.f32.xlu0 %v6711
  %v6713 = vpop.xlane.xlu0 %6712
  %v6714 = vsel %vm1457, %v6416, 0.0
  %6715 = vadd.xlane.f32.xlu0 %v6714
  %v6716 = vpop.xlane.xlu0 %6715
  %v6717 = vsel %vm1457, %v6417, 0.0
  %6718 = vadd.xlane.f32.xlu0 %v6717
  %v6719 = vpop.xlane.xlu0 %6718
  %v6720 = vsel %vm1457, %v6418, 0.0
  %6721 = vadd.xlane.f32.xlu0 %v6720
  %v6722 = vpop.xlane.xlu0 %6721
  %v6723 = vsel %vm1457, %v6419, 0.0
  %6724 = vadd.xlane.f32.xlu0 %v6723
  %v6725 = vpop.xlane.xlu0 %6724
  %v6726 = vsel %vm1457, %v6420, 0.0
  %6727 = vadd.xlane.f32.xlu0 %v6726
  %v6728 = vpop.xlane.xlu0 %6727
  %v6729 = vsel %vm1457, %v6421, 0.0
  %6730 = vadd.xlane.f32.xlu0 %v6729
  %v6731 = vpop.xlane.xlu0 %6730
  %v6732 = vsel %vm1457, %v6422, 0.0
  %6733 = vadd.xlane.f32.xlu0 %v6732
  %v6734 = vpop.xlane.xlu0 %6733
  %v6735 = vsel %vm1457, %v6423, 0.0
  %6736 = vadd.xlane.f32.xlu0 %v6735
  %v6737 = vpop.xlane.xlu0 %6736
  %v6738 = vsel %vm1457, %v6424, 0.0
  %6739 = vadd.xlane.f32.xlu0 %v6738
  %v6740 = vpop.xlane.xlu0 %6739
  %v6741 = vsel %vm1457, %v6425, 0.0
  %6742 = vadd.xlane.f32.xlu0 %v6741
  %v6743 = vpop.xlane.xlu0 %6742
  %v6744 = vsel %vm1457, %v6426, 0.0
  %6745 = vadd.xlane.f32.xlu0 %v6744
  %v6746 = vpop.xlane.xlu0 %6745
  %v6747 = vsel %vm1457, %v6427, 0.0
  %6748 = vadd.xlane.f32.xlu0 %v6747
  %v6749 = vpop.xlane.xlu0 %6748
  %v6750 = vsel %vm1457, %v6428, 0.0
  %6751 = vadd.xlane.f32.xlu0 %v6750
  %v6752 = vpop.xlane.xlu0 %6751
  %v6753 = vsel %vm1457, %v6429, 0.0
  %6754 = vadd.xlane.f32.xlu0 %v6753
  %v6755 = vpop.xlane.xlu0 %6754
  %v6756 = vsel %vm1457, %v6430, 0.0
  %6757 = vadd.xlane.f32.xlu0 %v6756
  %v6758 = vpop.xlane.xlu0 %6757
  %v6759 = vsel %vm1457, %v6431, 0.0
  %6760 = vadd.xlane.f32.xlu0 %v6759
  %v6761 = vpop.xlane.xlu0 %6760
  %v6762 = vsel %vm1457, %v6432, 0.0
  %6763 = vadd.xlane.f32.xlu0 %v6762
  %v6764 = vpop.xlane.xlu0 %6763
  %v6765 = vsel %vm1457, %v6433, 0.0
  %6766 = vadd.xlane.f32.xlu0 %v6765
  %v6767 = vpop.xlane.xlu0 %6766
  %v6768 = vsel %vm1457, %v6434, 0.0
  %6769 = vadd.xlane.f32.xlu0 %v6768
  %v6770 = vpop.xlane.xlu0 %6769
  %v6771 = vsel %vm1457, %v6435, 0.0
  %6772 = vadd.xlane.f32.xlu0 %v6771
  %v6773 = vpop.xlane.xlu0 %6772
  %v6774 = vsel %vm1457, %v6436, 0.0
  %6775 = vadd.xlane.f32.xlu0 %v6774
  %v6776 = vpop.xlane.xlu0 %6775
  %v6777 = vsel %vm1457, %v6437, 0.0
  %6778 = vadd.xlane.f32.xlu0 %v6777
  %v6779 = vpop.xlane.xlu0 %6778
  %v6780 = vsel %vm1457, %v6438, 0.0
  %6781 = vadd.xlane.f32.xlu0 %v6780
  %v6782 = vpop.xlane.xlu0 %6781
  %v6783 = vsel %vm1457, %v6439, 0.0
  %6784 = vadd.xlane.f32.xlu0 %v6783
  %v6785 = vpop.xlane.xlu0 %6784
  %v6786 = vsel %vm1457, %v6440, 0.0
  %6787 = vadd.xlane.f32.xlu0 %v6786
  %v6788 = vpop.xlane.xlu0 %6787
  %v6789 = vsel %vm1457, %v6441, 0.0
  %6790 = vadd.xlane.f32.xlu0 %v6789
  %v6791 = vpop.xlane.xlu0 %6790
  %v6792 = vsel %vm1457, %v6442, 0.0
  %6793 = vadd.xlane.f32.xlu0 %v6792
  %v6794 = vpop.xlane.xlu0 %6793
  %v6795 = vsel %vm1457, %v6443, 0.0
  %6796 = vadd.xlane.f32.xlu0 %v6795
  %v6797 = vpop.xlane.xlu0 %6796
  %v6798 = vsel %vm1457, %v6444, 0.0
  %6799 = vadd.xlane.f32.xlu0 %v6798
  %v6800 = vpop.xlane.xlu0 %6799
  %v6801 = vsel %vm1457, %v6445, 0.0
  %6802 = vadd.xlane.f32.xlu0 %v6801
  %v6803 = vpop.xlane.xlu0 %6802
  %v6804 = vsel %vm1457, %v6446, 0.0
  %6805 = vadd.xlane.f32.xlu0 %v6804
  %v6806 = vpop.xlane.xlu0 %6805
  %v6807 = vsel %vm1457, %v6447, 0.0
  %6808 = vadd.xlane.f32.xlu0 %v6807
  %v6809 = vpop.xlane.xlu0 %6808
  %v6810 = vsel %vm1457, %v6448, 0.0
  %6811 = vadd.xlane.f32.xlu0 %v6810
  %v6812 = vpop.xlane.xlu0 %6811
  %v6813 = vsel %vm1457, %v6449, 0.0
  %6814 = vadd.xlane.f32.xlu0 %v6813
  %v6815 = vpop.xlane.xlu0 %6814
  %v6816 = vsel %vm1457, %v6450, 0.0
  %6817 = vadd.xlane.f32.xlu0 %v6816
  %v6818 = vpop.xlane.xlu0 %6817
  %v6819 = vsel %vm1457, %v6451, 0.0
  %6820 = vadd.xlane.f32.xlu0 %v6819
  %v6821 = vpop.xlane.xlu0 %6820
  %v6822 = vsel %vm1457, %v6452, 0.0
  %6823 = vadd.xlane.f32.xlu0 %v6822
  %v6824 = vpop.xlane.xlu0 %6823
  %v6825 = vsel %vm1457, %v6453, 0.0
  %6826 = vadd.xlane.f32.xlu0 %v6825
  %v6827 = vpop.xlane.xlu0 %6826
  %v6828 = vsel %vm1457, %v6454, 0.0
  %6829 = vadd.xlane.f32.xlu0 %v6828
  %v6830 = vpop.xlane.xlu0 %6829
  %v6831 = vsel %vm1457, %v6455, 0.0
  %6832 = vadd.xlane.f32.xlu0 %v6831
  %v6833 = vpop.xlane.xlu0 %6832
  %v6834 = vsel %vm1457, %v6456, 0.0
  %6835 = vadd.xlane.f32.xlu0 %v6834
  %v6836 = vpop.xlane.xlu0 %6835
  %v6837 = vsel %vm1457, %v6457, 0.0
  %6838 = vadd.xlane.f32.xlu0 %v6837
  %v6839 = vpop.xlane.xlu0 %6838
  %v6840 = vsel %vm1457, %v6458, 0.0
  %6841 = vadd.xlane.f32.xlu0 %v6840
  %v6842 = vpop.xlane.xlu0 %6841
  %v6971 = vlaneseq
  %v6972 = vshrl.u32 %v6971, 7
  %v6973 = vsub.s32 %v571, %v6972
  %v6974 = vrot.slane %v6461, %v6973
  %v6975 = vlaneseq
  %v6976 = vshrl.u32 %v6975, 7
  %v6977 = vsub.s32 %v1974, %v6976
  %v6978 = vrot.slane %v6464, %v6977
  %v6979 = vsel %vm1979, %v6978, %v6974
  %v6980 = vlaneseq
  %v6981 = vshrl.u32 %v6980, 7
  %v6982 = vsub.s32 %v1981, %v6981
  %v6983 = vrot.slane %v6467, %v6982
  %v6984 = vsel %vm1986, %v6983, %v6979
  %v6985 = vlaneseq
  %v6986 = vshrl.u32 %v6985, 7
  %v6987 = vsub.s32 %v1988, %v6986
  %v6988 = vrot.slane %v6470, %v6987
  %v6989 = vsel %vm1993, %v6988, %v6984
  %v6990 = vlaneseq
  %v6991 = vshrl.u32 %v6990, 7
  %v6992 = vsub.s32 %v571, %v6991
  %v6993 = vrot.slane %v6473, %v6992
  %v6994 = vlaneseq
  %v6995 = vshrl.u32 %v6994, 7
  %v6996 = vsub.s32 %v1974, %v6995
  %v6997 = vrot.slane %v6476, %v6996
  %v6998 = vsel %vm1979, %v6997, %v6993
  %v6999 = vlaneseq
  %v7000 = vshrl.u32 %v6999, 7
  %v7001 = vsub.s32 %v1981, %v7000
  %v7002 = vrot.slane %v6479, %v7001
  %v7003 = vsel %vm1986, %v7002, %v6998
  %v7004 = vlaneseq
  %v7005 = vshrl.u32 %v7004, 7
  %v7006 = vsub.s32 %v1988, %v7005
  %v7007 = vrot.slane %v6482, %v7006
  %v7008 = vsel %vm1993, %v7007, %v7003
  %v7009 = vlaneseq
  %v7010 = vshrl.u32 %v7009, 7
  %v7011 = vsub.s32 %v571, %v7010
  %v7012 = vrot.slane %v6485, %v7011
  %v7013 = vlaneseq
  %v7014 = vshrl.u32 %v7013, 7
  %v7015 = vsub.s32 %v1974, %v7014
  %v7016 = vrot.slane %v6488, %v7015
  %v7017 = vsel %vm1979, %v7016, %v7012
  %v7018 = vlaneseq
  %v7019 = vshrl.u32 %v7018, 7
  %v7020 = vsub.s32 %v1981, %v7019
  %v7021 = vrot.slane %v6491, %v7020
  %v7022 = vsel %vm1986, %v7021, %v7017
  %v7023 = vlaneseq
  %v7024 = vshrl.u32 %v7023, 7
  %v7025 = vsub.s32 %v1988, %v7024
  %v7026 = vrot.slane %v6494, %v7025
  %v7027 = vsel %vm1993, %v7026, %v7022
  %v7028 = vlaneseq
  %v7029 = vshrl.u32 %v7028, 7
  %v7030 = vsub.s32 %v571, %v7029
  %v7031 = vrot.slane %v6497, %v7030
  %v7032 = vlaneseq
  %v7033 = vshrl.u32 %v7032, 7
  %v7034 = vsub.s32 %v1974, %v7033
  %v7035 = vrot.slane %v6500, %v7034
  %v7036 = vsel %vm1979, %v7035, %v7031
  %v7037 = vlaneseq
  %v7038 = vshrl.u32 %v7037, 7
  %v7039 = vsub.s32 %v1981, %v7038
  %v7040 = vrot.slane %v6503, %v7039
  %v7041 = vsel %vm1986, %v7040, %v7036
  %v7042 = vlaneseq
  %v7043 = vshrl.u32 %v7042, 7
  %v7044 = vsub.s32 %v1988, %v7043
  %v7045 = vrot.slane %v6506, %v7044
  %v7046 = vsel %vm1993, %v7045, %v7041
  %v7047 = vlaneseq
  %v7048 = vshrl.u32 %v7047, 7
  %v7049 = vsub.s32 %v571, %v7048
  %v7050 = vrot.slane %v6509, %v7049
  %v7051 = vlaneseq
  %v7052 = vshrl.u32 %v7051, 7
  %v7053 = vsub.s32 %v1974, %v7052
  %v7054 = vrot.slane %v6512, %v7053
  %v7055 = vsel %vm1979, %v7054, %v7050
  %v7056 = vlaneseq
  %v7057 = vshrl.u32 %v7056, 7
  %v7058 = vsub.s32 %v1981, %v7057
  %v7059 = vrot.slane %v6515, %v7058
  %v7060 = vsel %vm1986, %v7059, %v7055
  %v7061 = vlaneseq
  %v7062 = vshrl.u32 %v7061, 7
  %v7063 = vsub.s32 %v1988, %v7062
  %v7064 = vrot.slane %v6518, %v7063
  %v7065 = vsel %vm1993, %v7064, %v7060
  %v7066 = vlaneseq
  %v7067 = vshrl.u32 %v7066, 7
  %v7068 = vsub.s32 %v571, %v7067
  %v7069 = vrot.slane %v6521, %v7068
  %v7070 = vlaneseq
  %v7071 = vshrl.u32 %v7070, 7
  %v7072 = vsub.s32 %v1974, %v7071
  %v7073 = vrot.slane %v6524, %v7072
  %v7074 = vsel %vm1979, %v7073, %v7069
  %v7075 = vlaneseq
  %v7076 = vshrl.u32 %v7075, 7
  %v7077 = vsub.s32 %v1981, %v7076
  %v7078 = vrot.slane %v6527, %v7077
  %v7079 = vsel %vm1986, %v7078, %v7074
  %v7080 = vlaneseq
  %v7081 = vshrl.u32 %v7080, 7
  %v7082 = vsub.s32 %v1988, %v7081
  %v7083 = vrot.slane %v6530, %v7082
  %v7084 = vsel %vm1993, %v7083, %v7079
  %v7085 = vlaneseq
  %v7086 = vshrl.u32 %v7085, 7
  %v7087 = vsub.s32 %v571, %v7086
  %v7088 = vrot.slane %v6533, %v7087
  %v7089 = vlaneseq
  %v7090 = vshrl.u32 %v7089, 7
  %v7091 = vsub.s32 %v1974, %v7090
  %v7092 = vrot.slane %v6536, %v7091
  %v7093 = vsel %vm1979, %v7092, %v7088
  %v7094 = vlaneseq
  %v7095 = vshrl.u32 %v7094, 7
  %v7096 = vsub.s32 %v1981, %v7095
  %v7097 = vrot.slane %v6539, %v7096
  %v7098 = vsel %vm1986, %v7097, %v7093
  %v7099 = vlaneseq
  %v7100 = vshrl.u32 %v7099, 7
  %v7101 = vsub.s32 %v1988, %v7100
  %v7102 = vrot.slane %v6542, %v7101
  %v7103 = vsel %vm1993, %v7102, %v7098
  %v7104 = vlaneseq
  %v7105 = vshrl.u32 %v7104, 7
  %v7106 = vsub.s32 %v571, %v7105
  %v7107 = vrot.slane %v6545, %v7106
  %v7108 = vlaneseq
  %v7109 = vshrl.u32 %v7108, 7
  %v7110 = vsub.s32 %v1974, %v7109
  %v7111 = vrot.slane %v6548, %v7110
  %v7112 = vsel %vm1979, %v7111, %v7107
  %v7113 = vlaneseq
  %v7114 = vshrl.u32 %v7113, 7
  %v7115 = vsub.s32 %v1981, %v7114
  %v7116 = vrot.slane %v6551, %v7115
  %v7117 = vsel %vm1986, %v7116, %v7112
  %v7118 = vlaneseq
  %v7119 = vshrl.u32 %v7118, 7
  %v7120 = vsub.s32 %v1988, %v7119
  %v7121 = vrot.slane %v6554, %v7120
  %v7122 = vsel %vm1993, %v7121, %v7117
  %v7123 = vlaneseq
  %v7124 = vshrl.u32 %v7123, 7
  %v7125 = vsub.s32 %v571, %v7124
  %v7126 = vrot.slane %v6557, %v7125
  %v7127 = vlaneseq
  %v7128 = vshrl.u32 %v7127, 7
  %v7129 = vsub.s32 %v1974, %v7128
  %v7130 = vrot.slane %v6560, %v7129
  %v7131 = vsel %vm1979, %v7130, %v7126
  %v7132 = vlaneseq
  %v7133 = vshrl.u32 %v7132, 7
  %v7134 = vsub.s32 %v1981, %v7133
  %v7135 = vrot.slane %v6563, %v7134
  %v7136 = vsel %vm1986, %v7135, %v7131
  %v7137 = vlaneseq
  %v7138 = vshrl.u32 %v7137, 7
  %v7139 = vsub.s32 %v1988, %v7138
  %v7140 = vrot.slane %v6566, %v7139
  %v7141 = vsel %vm1993, %v7140, %v7136
  %v7142 = vlaneseq
  %v7143 = vshrl.u32 %v7142, 7
  %v7144 = vsub.s32 %v571, %v7143
  %v7145 = vrot.slane %v6569, %v7144
  %v7146 = vlaneseq
  %v7147 = vshrl.u32 %v7146, 7
  %v7148 = vsub.s32 %v1974, %v7147
  %v7149 = vrot.slane %v6572, %v7148
  %v7150 = vsel %vm1979, %v7149, %v7145
  %v7151 = vlaneseq
  %v7152 = vshrl.u32 %v7151, 7
  %v7153 = vsub.s32 %v1981, %v7152
  %v7154 = vrot.slane %v6575, %v7153
  %v7155 = vsel %vm1986, %v7154, %v7150
  %v7156 = vlaneseq
  %v7157 = vshrl.u32 %v7156, 7
  %v7158 = vsub.s32 %v1988, %v7157
  %v7159 = vrot.slane %v6578, %v7158
  %v7160 = vsel %vm1993, %v7159, %v7155
  %v7161 = vlaneseq
  %v7162 = vshrl.u32 %v7161, 7
  %v7163 = vsub.s32 %v571, %v7162
  %v7164 = vrot.slane %v6581, %v7163
  %v7165 = vlaneseq
  %v7166 = vshrl.u32 %v7165, 7
  %v7167 = vsub.s32 %v1974, %v7166
  %v7168 = vrot.slane %v6584, %v7167
  %v7169 = vsel %vm1979, %v7168, %v7164
  %v7170 = vlaneseq
  %v7171 = vshrl.u32 %v7170, 7
  %v7172 = vsub.s32 %v1981, %v7171
  %v7173 = vrot.slane %v6587, %v7172
  %v7174 = vsel %vm1986, %v7173, %v7169
  %v7175 = vlaneseq
  %v7176 = vshrl.u32 %v7175, 7
  %v7177 = vsub.s32 %v1988, %v7176
  %v7178 = vrot.slane %v6590, %v7177
  %v7179 = vsel %vm1993, %v7178, %v7174
  %v7180 = vlaneseq
  %v7181 = vshrl.u32 %v7180, 7
  %v7182 = vsub.s32 %v571, %v7181
  %v7183 = vrot.slane %v6593, %v7182
  %v7184 = vlaneseq
  %v7185 = vshrl.u32 %v7184, 7
  %v7186 = vsub.s32 %v1974, %v7185
  %v7187 = vrot.slane %v6596, %v7186
  %v7188 = vsel %vm1979, %v7187, %v7183
  %v7189 = vlaneseq
  %v7190 = vshrl.u32 %v7189, 7
  %v7191 = vsub.s32 %v1981, %v7190
  %v7192 = vrot.slane %v6599, %v7191
  %v7193 = vsel %vm1986, %v7192, %v7188
  %v7194 = vlaneseq
  %v7195 = vshrl.u32 %v7194, 7
  %v7196 = vsub.s32 %v1988, %v7195
  %v7197 = vrot.slane %v6602, %v7196
  %v7198 = vsel %vm1993, %v7197, %v7193
  %v7199 = vlaneseq
  %v7200 = vshrl.u32 %v7199, 7
  %v7201 = vsub.s32 %v571, %v7200
  %v7202 = vrot.slane %v6605, %v7201
  %v7203 = vlaneseq
  %v7204 = vshrl.u32 %v7203, 7
  %v7205 = vsub.s32 %v1974, %v7204
  %v7206 = vrot.slane %v6608, %v7205
  %v7207 = vsel %vm1979, %v7206, %v7202
  %v7208 = vlaneseq
  %v7209 = vshrl.u32 %v7208, 7
  %v7210 = vsub.s32 %v1981, %v7209
  %v7211 = vrot.slane %v6611, %v7210
  %v7212 = vsel %vm1986, %v7211, %v7207
  %v7213 = vlaneseq
  %v7214 = vshrl.u32 %v7213, 7
  %v7215 = vsub.s32 %v1988, %v7214
  %v7216 = vrot.slane %v6614, %v7215
  %v7217 = vsel %vm1993, %v7216, %v7212
  %v7218 = vlaneseq
  %v7219 = vshrl.u32 %v7218, 7
  %v7220 = vsub.s32 %v571, %v7219
  %v7221 = vrot.slane %v6617, %v7220
  %v7222 = vlaneseq
  %v7223 = vshrl.u32 %v7222, 7
  %v7224 = vsub.s32 %v1974, %v7223
  %v7225 = vrot.slane %v6620, %v7224
  %v7226 = vsel %vm1979, %v7225, %v7221
  %v7227 = vlaneseq
  %v7228 = vshrl.u32 %v7227, 7
  %v7229 = vsub.s32 %v1981, %v7228
  %v7230 = vrot.slane %v6623, %v7229
  %v7231 = vsel %vm1986, %v7230, %v7226
  %v7232 = vlaneseq
  %v7233 = vshrl.u32 %v7232, 7
  %v7234 = vsub.s32 %v1988, %v7233
  %v7235 = vrot.slane %v6626, %v7234
  %v7236 = vsel %vm1993, %v7235, %v7231
  %v7237 = vlaneseq
  %v7238 = vshrl.u32 %v7237, 7
  %v7239 = vsub.s32 %v571, %v7238
  %v7240 = vrot.slane %v6629, %v7239
  %v7241 = vlaneseq
  %v7242 = vshrl.u32 %v7241, 7
  %v7243 = vsub.s32 %v1974, %v7242
  %v7244 = vrot.slane %v6632, %v7243
  %v7245 = vsel %vm1979, %v7244, %v7240
  %v7246 = vlaneseq
  %v7247 = vshrl.u32 %v7246, 7
  %v7248 = vsub.s32 %v1981, %v7247
  %v7249 = vrot.slane %v6635, %v7248
  %v7250 = vsel %vm1986, %v7249, %v7245
  %v7251 = vlaneseq
  %v7252 = vshrl.u32 %v7251, 7
  %v7253 = vsub.s32 %v1988, %v7252
  %v7254 = vrot.slane %v6638, %v7253
  %v7255 = vsel %vm1993, %v7254, %v7250
  %v7256 = vlaneseq
  %v7257 = vshrl.u32 %v7256, 7
  %v7258 = vsub.s32 %v571, %v7257
  %v7259 = vrot.slane %v6641, %v7258
  %v7260 = vlaneseq
  %v7261 = vshrl.u32 %v7260, 7
  %v7262 = vsub.s32 %v1974, %v7261
  %v7263 = vrot.slane %v6644, %v7262
  %v7264 = vsel %vm1979, %v7263, %v7259
  %v7265 = vlaneseq
  %v7266 = vshrl.u32 %v7265, 7
  %v7267 = vsub.s32 %v1981, %v7266
  %v7268 = vrot.slane %v6647, %v7267
  %v7269 = vsel %vm1986, %v7268, %v7264
  %v7270 = vlaneseq
  %v7271 = vshrl.u32 %v7270, 7
  %v7272 = vsub.s32 %v1988, %v7271
  %v7273 = vrot.slane %v6650, %v7272
  %v7274 = vsel %vm1993, %v7273, %v7269
  %v7275 = vlaneseq
  %v7276 = vshrl.u32 %v7275, 7
  %v7277 = vsub.s32 %v571, %v7276
  %v7278 = vrot.slane %v6653, %v7277
  %v7279 = vlaneseq
  %v7280 = vshrl.u32 %v7279, 7
  %v7281 = vsub.s32 %v1974, %v7280
  %v7282 = vrot.slane %v6656, %v7281
  %v7283 = vsel %vm1979, %v7282, %v7278
  %v7284 = vlaneseq
  %v7285 = vshrl.u32 %v7284, 7
  %v7286 = vsub.s32 %v1981, %v7285
  %v7287 = vrot.slane %v6659, %v7286
  %v7288 = vsel %vm1986, %v7287, %v7283
  %v7289 = vlaneseq
  %v7290 = vshrl.u32 %v7289, 7
  %v7291 = vsub.s32 %v1988, %v7290
  %v7292 = vrot.slane %v6662, %v7291
  %v7293 = vsel %vm1993, %v7292, %v7288
  %v7294 = vlaneseq
  %v7295 = vshrl.u32 %v7294, 7
  %v7296 = vsub.s32 %v571, %v7295
  %v7297 = vrot.slane %v6665, %v7296
  %v7298 = vlaneseq
  %v7299 = vshrl.u32 %v7298, 7
  %v7300 = vsub.s32 %v1974, %v7299
  %v7301 = vrot.slane %v6668, %v7300
  %v7302 = vsel %vm1979, %v7301, %v7297
  %v7303 = vlaneseq
  %v7304 = vshrl.u32 %v7303, 7
  %v7305 = vsub.s32 %v1981, %v7304
  %v7306 = vrot.slane %v6671, %v7305
  %v7307 = vsel %vm1986, %v7306, %v7302
  %v7308 = vlaneseq
  %v7309 = vshrl.u32 %v7308, 7
  %v7310 = vsub.s32 %v1988, %v7309
  %v7311 = vrot.slane %v6674, %v7310
  %v7312 = vsel %vm1993, %v7311, %v7307
  %v7313 = vlaneseq
  %v7314 = vshrl.u32 %v7313, 7
  %v7315 = vsub.s32 %v571, %v7314
  %v7316 = vrot.slane %v6677, %v7315
  %v7317 = vlaneseq
  %v7318 = vshrl.u32 %v7317, 7
  %v7319 = vsub.s32 %v1974, %v7318
  %v7320 = vrot.slane %v6680, %v7319
  %v7321 = vsel %vm1979, %v7320, %v7316
  %v7322 = vlaneseq
  %v7323 = vshrl.u32 %v7322, 7
  %v7324 = vsub.s32 %v1981, %v7323
  %v7325 = vrot.slane %v6683, %v7324
  %v7326 = vsel %vm1986, %v7325, %v7321
  %v7327 = vlaneseq
  %v7328 = vshrl.u32 %v7327, 7
  %v7329 = vsub.s32 %v1988, %v7328
  %v7330 = vrot.slane %v6686, %v7329
  %v7331 = vsel %vm1993, %v7330, %v7326
  %v7332 = vlaneseq
  %v7333 = vshrl.u32 %v7332, 7
  %v7334 = vsub.s32 %v571, %v7333
  %v7335 = vrot.slane %v6689, %v7334
  %v7336 = vlaneseq
  %v7337 = vshrl.u32 %v7336, 7
  %v7338 = vsub.s32 %v1974, %v7337
  %v7339 = vrot.slane %v6692, %v7338
  %v7340 = vsel %vm1979, %v7339, %v7335
  %v7341 = vlaneseq
  %v7342 = vshrl.u32 %v7341, 7
  %v7343 = vsub.s32 %v1981, %v7342
  %v7344 = vrot.slane %v6695, %v7343
  %v7345 = vsel %vm1986, %v7344, %v7340
  %v7346 = vlaneseq
  %v7347 = vshrl.u32 %v7346, 7
  %v7348 = vsub.s32 %v1988, %v7347
  %v7349 = vrot.slane %v6698, %v7348
  %v7350 = vsel %vm1993, %v7349, %v7345
  %v7351 = vlaneseq
  %v7352 = vshrl.u32 %v7351, 7
  %v7353 = vsub.s32 %v571, %v7352
  %v7354 = vrot.slane %v6701, %v7353
  %v7355 = vlaneseq
  %v7356 = vshrl.u32 %v7355, 7
  %v7357 = vsub.s32 %v1974, %v7356
  %v7358 = vrot.slane %v6704, %v7357
  %v7359 = vsel %vm1979, %v7358, %v7354
  %v7360 = vlaneseq
  %v7361 = vshrl.u32 %v7360, 7
  %v7362 = vsub.s32 %v1981, %v7361
  %v7363 = vrot.slane %v6707, %v7362
  %v7364 = vsel %vm1986, %v7363, %v7359
  %v7365 = vlaneseq
  %v7366 = vshrl.u32 %v7365, 7
  %v7367 = vsub.s32 %v1988, %v7366
  %v7368 = vrot.slane %v6710, %v7367
  %v7369 = vsel %vm1993, %v7368, %v7364
  %v7370 = vlaneseq
  %v7371 = vshrl.u32 %v7370, 7
  %v7372 = vsub.s32 %v571, %v7371
  %v7373 = vrot.slane %v6713, %v7372
  %v7374 = vlaneseq
  %v7375 = vshrl.u32 %v7374, 7
  %v7376 = vsub.s32 %v1974, %v7375
  %v7377 = vrot.slane %v6716, %v7376
  %v7378 = vsel %vm1979, %v7377, %v7373
  %v7379 = vlaneseq
  %v7380 = vshrl.u32 %v7379, 7
  %v7381 = vsub.s32 %v1981, %v7380
  %v7382 = vrot.slane %v6719, %v7381
  %v7383 = vsel %vm1986, %v7382, %v7378
  %v7384 = vlaneseq
  %v7385 = vshrl.u32 %v7384, 7
  %v7386 = vsub.s32 %v1988, %v7385
  %v7387 = vrot.slane %v6722, %v7386
  %v7388 = vsel %vm1993, %v7387, %v7383
  %v7389 = vlaneseq
  %v7390 = vshrl.u32 %v7389, 7
  %v7391 = vsub.s32 %v571, %v7390
  %v7392 = vrot.slane %v6725, %v7391
  %v7393 = vlaneseq
  %v7394 = vshrl.u32 %v7393, 7
  %v7395 = vsub.s32 %v1974, %v7394
  %v7396 = vrot.slane %v6728, %v7395
  %v7397 = vsel %vm1979, %v7396, %v7392
  %v7398 = vlaneseq
  %v7399 = vshrl.u32 %v7398, 7
  %v7400 = vsub.s32 %v1981, %v7399
  %v7401 = vrot.slane %v6731, %v7400
  %v7402 = vsel %vm1986, %v7401, %v7397
  %v7403 = vlaneseq
  %v7404 = vshrl.u32 %v7403, 7
  %v7405 = vsub.s32 %v1988, %v7404
  %v7406 = vrot.slane %v6734, %v7405
  %v7407 = vsel %vm1993, %v7406, %v7402
  %v7408 = vlaneseq
  %v7409 = vshrl.u32 %v7408, 7
  %v7410 = vsub.s32 %v571, %v7409
  %v7411 = vrot.slane %v6737, %v7410
  %v7412 = vlaneseq
  %v7413 = vshrl.u32 %v7412, 7
  %v7414 = vsub.s32 %v1974, %v7413
  %v7415 = vrot.slane %v6740, %v7414
  %v7416 = vsel %vm1979, %v7415, %v7411
  %v7417 = vlaneseq
  %v7418 = vshrl.u32 %v7417, 7
  %v7419 = vsub.s32 %v1981, %v7418
  %v7420 = vrot.slane %v6743, %v7419
  %v7421 = vsel %vm1986, %v7420, %v7416
  %v7422 = vlaneseq
  %v7423 = vshrl.u32 %v7422, 7
  %v7424 = vsub.s32 %v1988, %v7423
  %v7425 = vrot.slane %v6746, %v7424
  %v7426 = vsel %vm1993, %v7425, %v7421
  %v7427 = vlaneseq
  %v7428 = vshrl.u32 %v7427, 7
  %v7429 = vsub.s32 %v571, %v7428
  %v7430 = vrot.slane %v6749, %v7429
  %v7431 = vlaneseq
  %v7432 = vshrl.u32 %v7431, 7
  %v7433 = vsub.s32 %v1974, %v7432
  %v7434 = vrot.slane %v6752, %v7433
  %v7435 = vsel %vm1979, %v7434, %v7430
  %v7436 = vlaneseq
  %v7437 = vshrl.u32 %v7436, 7
  %v7438 = vsub.s32 %v1981, %v7437
  %v7439 = vrot.slane %v6755, %v7438
  %v7440 = vsel %vm1986, %v7439, %v7435
  %v7441 = vlaneseq
  %v7442 = vshrl.u32 %v7441, 7
  %v7443 = vsub.s32 %v1988, %v7442
  %v7444 = vrot.slane %v6758, %v7443
  %v7445 = vsel %vm1993, %v7444, %v7440
  %v7446 = vlaneseq
  %v7447 = vshrl.u32 %v7446, 7
  %v7448 = vsub.s32 %v571, %v7447
  %v7449 = vrot.slane %v6761, %v7448
  %v7450 = vlaneseq
  %v7451 = vshrl.u32 %v7450, 7
  %v7452 = vsub.s32 %v1974, %v7451
  %v7453 = vrot.slane %v6764, %v7452
  %v7454 = vsel %vm1979, %v7453, %v7449
  %v7455 = vlaneseq
  %v7456 = vshrl.u32 %v7455, 7
  %v7457 = vsub.s32 %v1981, %v7456
  %v7458 = vrot.slane %v6767, %v7457
  %v7459 = vsel %vm1986, %v7458, %v7454
  %v7460 = vlaneseq
  %v7461 = vshrl.u32 %v7460, 7
  %v7462 = vsub.s32 %v1988, %v7461
  %v7463 = vrot.slane %v6770, %v7462
  %v7464 = vsel %vm1993, %v7463, %v7459
  %v7465 = vlaneseq
  %v7466 = vshrl.u32 %v7465, 7
  %v7467 = vsub.s32 %v571, %v7466
  %v7468 = vrot.slane %v6773, %v7467
  %v7469 = vlaneseq
  %v7470 = vshrl.u32 %v7469, 7
  %v7471 = vsub.s32 %v1974, %v7470
  %v7472 = vrot.slane %v6776, %v7471
  %v7473 = vsel %vm1979, %v7472, %v7468
  %v7474 = vlaneseq
  %v7475 = vshrl.u32 %v7474, 7
  %v7476 = vsub.s32 %v1981, %v7475
  %v7477 = vrot.slane %v6779, %v7476
  %v7478 = vsel %vm1986, %v7477, %v7473
  %v7479 = vlaneseq
  %v7480 = vshrl.u32 %v7479, 7
  %v7481 = vsub.s32 %v1988, %v7480
  %v7482 = vrot.slane %v6782, %v7481
  %v7483 = vsel %vm1993, %v7482, %v7478
  %v7484 = vlaneseq
  %v7485 = vshrl.u32 %v7484, 7
  %v7486 = vsub.s32 %v571, %v7485
  %v7487 = vrot.slane %v6785, %v7486
  %v7488 = vlaneseq
  %v7489 = vshrl.u32 %v7488, 7
  %v7490 = vsub.s32 %v1974, %v7489
  %v7491 = vrot.slane %v6788, %v7490
  %v7492 = vsel %vm1979, %v7491, %v7487
  %v7493 = vlaneseq
  %v7494 = vshrl.u32 %v7493, 7
  %v7495 = vsub.s32 %v1981, %v7494
  %v7496 = vrot.slane %v6791, %v7495
  %v7497 = vsel %vm1986, %v7496, %v7492
  %v7498 = vlaneseq
  %v7499 = vshrl.u32 %v7498, 7
  %v7500 = vsub.s32 %v1988, %v7499
  %v7501 = vrot.slane %v6794, %v7500
  %v7502 = vsel %vm1993, %v7501, %v7497
  %v7503 = vlaneseq
  %v7504 = vshrl.u32 %v7503, 7
  %v7505 = vsub.s32 %v571, %v7504
  %v7506 = vrot.slane %v6797, %v7505
  %v7507 = vlaneseq
  %v7508 = vshrl.u32 %v7507, 7
  %v7509 = vsub.s32 %v1974, %v7508
  %v7510 = vrot.slane %v6800, %v7509
  %v7511 = vsel %vm1979, %v7510, %v7506
  %v7512 = vlaneseq
  %v7513 = vshrl.u32 %v7512, 7
  %v7514 = vsub.s32 %v1981, %v7513
  %v7515 = vrot.slane %v6803, %v7514
  %v7516 = vsel %vm1986, %v7515, %v7511
  %v7517 = vlaneseq
  %v7518 = vshrl.u32 %v7517, 7
  %v7519 = vsub.s32 %v1988, %v7518
  %v7520 = vrot.slane %v6806, %v7519
  %v7521 = vsel %vm1993, %v7520, %v7516
  %v7522 = vlaneseq
  %v7523 = vshrl.u32 %v7522, 7
  %v7524 = vsub.s32 %v571, %v7523
  %v7525 = vrot.slane %v6809, %v7524
  %v7526 = vlaneseq
  %v7527 = vshrl.u32 %v7526, 7
  %v7528 = vsub.s32 %v1974, %v7527
  %v7529 = vrot.slane %v6812, %v7528
  %v7530 = vsel %vm1979, %v7529, %v7525
  %v7531 = vlaneseq
  %v7532 = vshrl.u32 %v7531, 7
  %v7533 = vsub.s32 %v1981, %v7532
  %v7534 = vrot.slane %v6815, %v7533
  %v7535 = vsel %vm1986, %v7534, %v7530
  %v7536 = vlaneseq
  %v7537 = vshrl.u32 %v7536, 7
  %v7538 = vsub.s32 %v1988, %v7537
  %v7539 = vrot.slane %v6818, %v7538
  %v7540 = vsel %vm1993, %v7539, %v7535
  %v7541 = vlaneseq
  %v7542 = vshrl.u32 %v7541, 7
  %v7543 = vsub.s32 %v571, %v7542
  %v7544 = vrot.slane %v6821, %v7543
  %v7545 = vlaneseq
  %v7546 = vshrl.u32 %v7545, 7
  %v7547 = vsub.s32 %v1974, %v7546
  %v7548 = vrot.slane %v6824, %v7547
  %v7549 = vsel %vm1979, %v7548, %v7544
  %v7550 = vlaneseq
  %v7551 = vshrl.u32 %v7550, 7
  %v7552 = vsub.s32 %v1981, %v7551
  %v7553 = vrot.slane %v6827, %v7552
  %v7554 = vsel %vm1986, %v7553, %v7549
  %v7555 = vlaneseq
  %v7556 = vshrl.u32 %v7555, 7
  %v7557 = vsub.s32 %v1988, %v7556
  %v7558 = vrot.slane %v6830, %v7557
  %v7559 = vsel %vm1993, %v7558, %v7554
  %v7560 = vlaneseq
  %v7561 = vshrl.u32 %v7560, 7
  %v7562 = vsub.s32 %v571, %v7561
  %v7563 = vrot.slane %v6833, %v7562
  %v7564 = vlaneseq
  %v7565 = vshrl.u32 %v7564, 7
  %v7566 = vsub.s32 %v1974, %v7565
  %v7567 = vrot.slane %v6836, %v7566
  %v7568 = vsel %vm1979, %v7567, %v7563
  %v7569 = vlaneseq
  %v7570 = vshrl.u32 %v7569, 7
  %v7571 = vsub.s32 %v1981, %v7570
  %v7572 = vrot.slane %v6839, %v7571
  %v7573 = vsel %vm1986, %v7572, %v7568
  %v7574 = vlaneseq
  %v7575 = vshrl.u32 %v7574, 7
  %v7576 = vsub.s32 %v1988, %v7575
  %v7577 = vrot.slane %v6842, %v7576
  %v7578 = vsel %vm1993, %v7577, %v7573
  %v7579 = vsel %vm2584, %v7008, %v6989
  %v7580 = vsel %vm2586, %v7027, %v7579
  %v7581 = vsel %vm2588, %v7046, %v7580
  %v7582 = vsel %vm2590, %v7065, %v7581
  %v7583 = vsel %vm2592, %v7084, %v7582
  %v7584 = vsel %vm2594, %v7103, %v7583
  %v7585 = vsel %vm2596, %v7122, %v7584
  %v7586 = vsel %vm2584, %v7160, %v7141
  %v7587 = vsel %vm2586, %v7179, %v7586
  %v7588 = vsel %vm2588, %v7198, %v7587
  %v7589 = vsel %vm2590, %v7217, %v7588
  %v7590 = vsel %vm2592, %v7236, %v7589
  %v7591 = vsel %vm2594, %v7255, %v7590
  %v7592 = vsel %vm2596, %v7274, %v7591
  %v7593 = vsel %vm2584, %v7312, %v7293
  %v7594 = vsel %vm2586, %v7331, %v7593
  %v7595 = vsel %vm2588, %v7350, %v7594
  %v7596 = vsel %vm2590, %v7369, %v7595
  %v7597 = vsel %vm2592, %v7388, %v7596
  %v7598 = vsel %vm2594, %v7407, %v7597
  %v7599 = vsel %vm2596, %v7426, %v7598
  %v7600 = vsel %vm2584, %v7464, %v7445
  %v7601 = vsel %vm2586, %v7483, %v7600
  %v7602 = vsel %vm2588, %v7502, %v7601
  %v7603 = vsel %vm2590, %v7521, %v7602
  %v7604 = vsel %vm2592, %v7540, %v7603
  %v7605 = vsel %vm2594, %v7559, %v7604
  %v7606 = vsel %vm2596, %v7578, %v7605
  %v7611 = vsel %vm1457, %v5771, 0
  %v7613 = vsel %vm1457, %v5772, 0
  %v7615 = vsel %vm1457, %v5773, 0
  %v7617 = vsel %vm1457, %v5774, 0
  %v7620 = vsel %vm1457, %v5855, 0
  %v7623 = vsel %vm1457, %v5860, 0
  %v7626 = vsel %vm1457, %v5865, 0
  %v7629 = vsel %vm1457, %v5870, 0
  %7631 = vmatprep.subr.mxu0 0.0
  %7632 = vmatpush1.xpose.msra.mxu0 %v7620
  %7633 = vmatprep.subr.mxu0 0.0
  %7634 = vmatpush1.xpose.msra.mxu0 %v7623
  %7635 = vmatprep.subr.mxu0 0.0
  %7636 = vmatpush1.xpose.msra.mxu0 %v7626
  %7637 = vmatprep.subr.mxu0 0.0
  %7638 = vmatpush1.xpose.msra.mxu0 %v7629
  %7639 = vmatprep.subr.mxu0 0.0
  %7640 = vmatpush1.xpose.msra.mxu0 0.0
  %7641 = vmatprep.subr.mxu0 0.0
  %7642 = vmatpush1.xpose.msra.mxu0 0.0
  %7643 = vmatprep.subr.mxu0 0.0
  %7644 = vmatpush1.xpose.msra.mxu0 0.0
  %7645 = vmatprep.subr.mxu0 0.0
  %7646 = vmatpush1.xpose.msra.mxu0 0.0
  %7647 = vmatprep.subr.mxu0 0.0
  %7648 = vmatpush1.xpose.msra.mxu0 0.0
  %7649 = vmatprep.subr.mxu0 0.0
  %7650 = vmatpush1.xpose.msra.mxu0 0.0
  %7651 = vmatprep.subr.mxu0 0.0
  %7652 = vmatpush1.xpose.msra.mxu0 0.0
  %7653 = vmatprep.subr.mxu0 0.0
  %7654 = vmatpush1.xpose.msra.mxu0 0.0
  %7655 = vmatprep.subr.mxu0 0.0
  %7656 = vmatpush1.xpose.msra.mxu0 0.0
  %7657 = vmatprep.subr.mxu0 0.0
  %7658 = vmatpush1.xpose.msra.mxu0 0.0
  %7659 = vmatprep.subr.mxu0 0.0
  %7660 = vmatpush1.xpose.msra.mxu0 0.0
  %7661 = vmatprep.subr.mxu0 0.0
  %7662 = vmatpush1.xpose.msra.mxu0 0.0
  %7663 = vmatprep.subr.mxu0 0.0
  %7664 = vmatpush1.xpose.msra.mxu0 0.0
  %7665 = vmatprep.subr.mxu0 0.0
  %7666 = vmatpush1.xpose.msra.mxu0 0.0
  %7667 = vmatprep.subr.mxu0 0.0
  %7668 = vmatpush1.xpose.msra.mxu0 0.0
  %7669 = vmatprep.subr.mxu0 0.0
  %7670 = vmatpush1.xpose.msra.mxu0 0.0
  %7671 = vmatprep.subr.mxu0 0.0
  %7672 = vmatpush1.xpose.msra.mxu0 0.0
  %7673 = vmatprep.subr.mxu0 0.0
  %7674 = vmatpush1.xpose.msra.mxu0 0.0
  %7675 = vmatprep.subr.mxu0 0.0
  %7676 = vmatpush1.xpose.msra.mxu0 0.0
  %7677 = vmatprep.subr.mxu0 0.0
  %7678 = vmatpush1.xpose.msra.mxu0 0.0
  %7679 = vmatprep.subr.mxu0 0.0
  %7680 = vmatpush1.xpose.msra.mxu0 0.0
  %7681 = vmatprep.subr.mxu0 0.0
  %7682 = vmatpush1.xpose.msra.mxu0 0.0
  %7683 = vmatprep.subr.mxu0 0.0
  %7684 = vmatpush1.xpose.msra.mxu0 0.0
  %7685 = vmatprep.subr.mxu0 0.0
  %7686 = vmatpush1.xpose.msra.mxu0 0.0
  %7687 = vmatprep.subr.mxu0 0.0
  %7688 = vmatpush1.xpose.msra.mxu0 0.0
  %7689 = vmatprep.subr.mxu0 0.0
  %7690 = vmatpush1.xpose.msra.mxu0 0.0
  %7691 = vmatprep.subr.mxu0 0.0
  %7692 = vmatpush1.xpose.msra.mxu0 0.0
  %7693 = vmatprep.subr.mxu0 0.0
  %7694 = vmatpush1.xpose.msra.mxu0 0.0
  %7695 = vmatprep.mubr.f32.mxu0 0.0
  %7696 = vmatmul.mubr.f32.gmra.mrb[0].mxu0 %v7611
  %v7697 = vpop.f32.mrb[0].mxu0
  %v7698 = vadd.f32 %v7585, %v7697
  %v7699 = vpop.f32.mrb[0].mxu0
  %7700 = vmatprep.mubr.f32.mxu0 0.0
  %7701 = vmatmul.mubr.f32.gmra.mrb[0].mxu0 %v7613
  %v7702 = vpop.f32.mrb[0].mxu0
  %v7703 = vadd.f32 %v7592, %v7702
  %v7704 = vpop.f32.mrb[0].mxu0
  %7705 = vmatprep.mubr.f32.mxu0 0.0
  %7706 = vmatmul.mubr.f32.gmra.mrb[0].mxu0 %v7615
  %v7707 = vpop.f32.mrb[0].mxu0
  %v7708 = vadd.f32 %v7599, %v7707
  %v7709 = vpop.f32.mrb[0].mxu0
  %7710 = vmatprep.mubr.f32.mxu0 0.0
  %7711 = vmatmul.mubr.f32.gmra.mrb[0].mxu0 %v7617
  %v7712 = vpop.f32.mrb[0].mxu0
  %v7713 = vadd.f32 %v7606, %v7712
  %v7714 = vpop.f32.mrb[0].mxu0
  %7715 = vdwg.mxu0
  %v7716 = vadd.f32 %v7698, %v581
  %v7717 = vadd.f32 %v7703, %v582
  %v7718 = vadd.f32 %v7708, %v583
  %v7719 = vadd.f32 %v7713, %v584
  %v7720 = vsel %vm450, %v7716, -inf
  %7721 = vmax.xlane.f32.xlu0 %v7720
  %v7722 = vpop.xlane.xlu0 %7721
  %v7723 = vsel %vm450, %v7717, -inf
  %7724 = vmax.xlane.f32.xlu0 %v7723
  %v7725 = vpop.xlane.xlu0 %7724
  %v7726 = vsel %vm450, %v7718, -inf
  %7727 = vmax.xlane.f32.xlu0 %v7726
  %v7728 = vpop.xlane.xlu0 %7727
  %v7729 = vsel %vm450, %v7719, -inf
  %7730 = vmax.xlane.f32.xlu0 %v7729
  %v7731 = vpop.xlane.xlu0 %7730
  %v7732 = vsub.f32 %v7716, %v7722
  %v7733 = vsub.f32 %v7717, %v7725
  %v7734 = vsub.f32 %v7718, %v7728
  %v7735 = vsub.f32 %v7719, %v7731
  %v7736 = vmul.f32 %v7732, 1.442695
  %v7737 = vpow.pop %v7736
  %v7738 = vmul.f32 %v7733, 1.442695
  %v7739 = vpow.pop %v7738
  %v7740 = vmul.f32 %v7734, 1.442695
  %v7741 = vpow.pop %v7740
  %v7742 = vmul.f32 %v7735, 1.442695
  %v7743 = vpow.pop %v7742
  %v7744 = vsel %vm450, %v7737, 0.0
  %7745 = vadd.xlane.f32.xlu0 %v7744
  %v7746 = vpop.xlane.xlu0 %7745
  %v7747 = vsel %vm450, %v7739, 0.0
  %7748 = vadd.xlane.f32.xlu0 %v7747
  %v7749 = vpop.xlane.xlu0 %7748
  %v7750 = vsel %vm450, %v7741, 0.0
  %7751 = vadd.xlane.f32.xlu0 %v7750
  %v7752 = vpop.xlane.xlu0 %7751
  %v7753 = vsel %vm450, %v7743, 0.0
  %7754 = vadd.xlane.f32.xlu0 %v7753
  %v7755 = vpop.xlane.xlu0 %7754
  %v7756 = vrcp.pop %v7746
  %v7757 = vrcp.pop %v7749
  %v7758 = vrcp.pop %v7752
  %v7759 = vrcp.pop %v7755
  %v7760 = vmul.f32 %v7737, %v7756
  %v7761 = vmul.f32 %v7739, %v7757
  %v7762 = vmul.f32 %v7741, %v7758
  %v7763 = vmul.f32 %v7743, %v7759
  %v7765 = vsel %vm450, %v7760, 0
  %v7768 = vsel %vm450, %v7761, 0
  %v7771 = vsel %vm450, %v7762, 0
  %v7774 = vsel %vm450, %v7763, 0
  %7776 = vmatprep.subr.mxu0 0.0
  %7777 = vmatpush1.msra.mxu0 %v5953
  %7778 = vmatprep.subr.mxu0 0.0
  %7779 = vmatpush1.msra.mxu0 %v5958
  %7780 = vmatprep.subr.mxu0 0.0
  %7781 = vmatpush1.msra.mxu0 %v5963
  %7782 = vmatprep.subr.mxu0 0.0
  %7783 = vmatpush1.msra.mxu0 %v5968
  %7784 = vmatprep.subr.mxu0 0.0
  %7785 = vmatpush1.msra.mxu0 0.0
  %7786 = vmatprep.subr.mxu0 0.0
  %7787 = vmatpush1.msra.mxu0 0.0
  %7788 = vmatprep.subr.mxu0 0.0
  %7789 = vmatpush1.msra.mxu0 0.0
  %7790 = vmatprep.subr.mxu0 0.0
  %7791 = vmatpush1.msra.mxu0 0.0
  %7792 = vmatprep.subr.mxu0 0.0
  %7793 = vmatpush1.msra.mxu0 0.0
  %7794 = vmatprep.subr.mxu0 0.0
  %7795 = vmatpush1.msra.mxu0 0.0
  %7796 = vmatprep.subr.mxu0 0.0
  %7797 = vmatpush1.msra.mxu0 0.0
  %7798 = vmatprep.subr.mxu0 0.0
  %7799 = vmatpush1.msra.mxu0 0.0
  %7800 = vmatprep.subr.mxu0 0.0
  %7801 = vmatpush1.msra.mxu0 0.0
  %7802 = vmatprep.subr.mxu0 0.0
  %7803 = vmatpush1.msra.mxu0 0.0
  %7804 = vmatprep.subr.mxu0 0.0
  %7805 = vmatpush1.msra.mxu0 0.0
  %7806 = vmatprep.subr.mxu0 0.0
  %7807 = vmatpush1.msra.mxu0 0.0
  %7808 = vmatprep.subr.mxu0 0.0
  %7809 = vmatpush1.msra.mxu0 0.0
  %7810 = vmatprep.subr.mxu0 0.0
  %7811 = vmatpush1.msra.mxu0 0.0
  %7812 = vmatprep.subr.mxu0 0.0
  %7813 = vmatpush1.msra.mxu0 0.0
  %7814 = vmatprep.subr.mxu0 0.0
  %7815 = vmatpush1.msra.mxu0 0.0
  %7816 = vmatprep.subr.mxu0 0.0
  %7817 = vmatpush1.msra.mxu0 0.0
  %7818 = vmatprep.subr.mxu0 0.0
  %7819 = vmatpush1.msra.mxu0 0.0
  %7820 = vmatprep.subr.mxu0 0.0
  %7821 = vmatpush1.msra.mxu0 0.0
  %7822 = vmatprep.subr.mxu0 0.0
  %7823 = vmatpush1.msra.mxu0 0.0
  %7824 = vmatprep.subr.mxu0 0.0
  %7825 = vmatpush1.msra.mxu0 0.0
  %7826 = vmatprep.subr.mxu0 0.0
  %7827 = vmatpush1.msra.mxu0 0.0
  %7828 = vmatprep.subr.mxu0 0.0
  %7829 = vmatpush1.msra.mxu0 0.0
  %7830 = vmatprep.subr.mxu0 0.0
  %7831 = vmatpush1.msra.mxu0 0.0
  %7832 = vmatprep.subr.mxu0 0.0
  %7833 = vmatpush1.msra.mxu0 0.0
  %7834 = vmatprep.subr.mxu0 0.0
  %7835 = vmatpush1.msra.mxu0 0.0
  %7836 = vmatprep.subr.mxu0 0.0
  %7837 = vmatpush1.msra.mxu0 0.0
  %7838 = vmatprep.subr.mxu0 0.0
  %7839 = vmatpush1.msra.mxu0 0.0
  %7840 = vmatprep.mubr.f32.mxu0 0.0
  %7841 = vmatmul.mubr.f32.gmra.mrb[0].mxu0 %v7765
  %v7842 = vpop.f32.mrb[0].mxu0
  %v7843 = vadd.f32 0.0, %v7842
  %v7844 = vpop.f32.mrb[0].mxu0
  %7845 = vmatprep.mubr.f32.mxu0 0.0
  %7846 = vmatmul.mubr.f32.gmra.mrb[0].mxu0 %v7768
  %v7847 = vpop.f32.mrb[0].mxu0
  %v7848 = vadd.f32 0.0, %v7847
  %v7849 = vpop.f32.mrb[0].mxu0
  %7850 = vmatprep.mubr.f32.mxu0 0.0
  %7851 = vmatmul.mubr.f32.gmra.mrb[0].mxu0 %v7771
  %v7852 = vpop.f32.mrb[0].mxu0
  %v7853 = vadd.f32 0.0, %v7852
  %v7854 = vpop.f32.mrb[0].mxu0
  %7855 = vmatprep.mubr.f32.mxu0 0.0
  %7856 = vmatmul.mubr.f32.gmra.mrb[0].mxu0 %v7774
  %v7857 = vpop.f32.mrb[0].mxu0
  %v7858 = vadd.f32 0.0, %v7857
  %v7859 = vpop.f32.mrb[0].mxu0
  %7860 = vdwg.mxu0
  %s7861 = scalar_lea.vmem %s12, 32
  %v7862 = vld [vmem:[%s7861] sm:$0xff]
  %v7863 = vld [vmem:[%s7861 + $0x8] sm:$0xff]
  %v7865 = vsel %vm1457, %v7843, 0
  %v7868 = vsel %vm1457, %v7848, 0
  %v7871 = vsel %vm1457, %v7853, 0
  %v7874 = vsel %vm1457, %v7858, 0
  %7876 = vmatprep.subr.mxu0 0.0
  %7877 = vmatpush1.msra.mxu0 %v7862
  %7878 = vmatprep.subr.mxu0 0.0
  %7879 = vmatpush1.msra.mxu0 %v7863
  %7880 = vmatprep.subr.mxu0 0.0
  %7881 = vmatpush1.msra.mxu0 0.0
  %7882 = vmatprep.subr.mxu0 0.0
  %7883 = vmatpush1.msra.mxu0 0.0
  %7884 = vmatprep.subr.mxu0 0.0
  %7885 = vmatpush1.msra.mxu0 0.0
  %7886 = vmatprep.subr.mxu0 0.0
  %7887 = vmatpush1.msra.mxu0 0.0
  %7888 = vmatprep.subr.mxu0 0.0
  %7889 = vmatpush1.msra.mxu0 0.0
  %7890 = vmatprep.subr.mxu0 0.0
  %7891 = vmatpush1.msra.mxu0 0.0
  %7892 = vmatprep.subr.mxu0 0.0
  %7893 = vmatpush1.msra.mxu0 0.0
  %7894 = vmatprep.subr.mxu0 0.0
  %7895 = vmatpush1.msra.mxu0 0.0
  %7896 = vmatprep.subr.mxu0 0.0
  %7897 = vmatpush1.msra.mxu0 0.0
  %7898 = vmatprep.subr.mxu0 0.0
  %7899 = vmatpush1.msra.mxu0 0.0
  %7900 = vmatprep.subr.mxu0 0.0
  %7901 = vmatpush1.msra.mxu0 0.0
  %7902 = vmatprep.subr.mxu0 0.0
  %7903 = vmatpush1.msra.mxu0 0.0
  %7904 = vmatprep.subr.mxu0 0.0
  %7905 = vmatpush1.msra.mxu0 0.0
  %7906 = vmatprep.subr.mxu0 0.0
  %7907 = vmatpush1.msra.mxu0 0.0
  %7908 = vmatprep.subr.mxu0 0.0
  %7909 = vmatpush1.msra.mxu0 0.0
  %7910 = vmatprep.subr.mxu0 0.0
  %7911 = vmatpush1.msra.mxu0 0.0
  %7912 = vmatprep.subr.mxu0 0.0
  %7913 = vmatpush1.msra.mxu0 0.0
  %7914 = vmatprep.subr.mxu0 0.0
  %7915 = vmatpush1.msra.mxu0 0.0
  %7916 = vmatprep.subr.mxu0 0.0
  %7917 = vmatpush1.msra.mxu0 0.0
  %7918 = vmatprep.subr.mxu0 0.0
  %7919 = vmatpush1.msra.mxu0 0.0
  %7920 = vmatprep.subr.mxu0 0.0
  %7921 = vmatpush1.msra.mxu0 0.0
  %7922 = vmatprep.subr.mxu0 0.0
  %7923 = vmatpush1.msra.mxu0 0.0
  %7924 = vmatprep.subr.mxu0 0.0
  %7925 = vmatpush1.msra.mxu0 0.0
  %7926 = vmatprep.subr.mxu0 0.0
  %7927 = vmatpush1.msra.mxu0 0.0
  %7928 = vmatprep.subr.mxu0 0.0
  %7929 = vmatpush1.msra.mxu0 0.0
  %7930 = vmatprep.subr.mxu0 0.0
  %7931 = vmatpush1.msra.mxu0 0.0
  %7932 = vmatprep.subr.mxu0 0.0
  %7933 = vmatpush1.msra.mxu0 0.0
  %7934 = vmatprep.subr.mxu0 0.0
  %7935 = vmatpush1.msra.mxu0 0.0
  %7936 = vmatprep.subr.mxu0 0.0
  %7937 = vmatpush1.msra.mxu0 0.0
  %7938 = vmatprep.subr.mxu0 0.0
  %7939 = vmatpush1.msra.mxu0 0.0
  %7940 = vmatprep.mubr.f32.mxu0 0.0
  %7941 = vmatmul.mubr.f32.gmra.mrb[0].mxu0 %v7865
  %v7942 = vpop.f32.mrb[0].mxu0
  %v7943 = vadd.f32 0.0, %v7942
  %v7944 = vpop.f32.mrb[0].mxu0
  %7945 = vmatprep.mubr.f32.mxu0 0.0
  %7946 = vmatmul.mubr.f32.gmra.mrb[0].mxu0 %v7868
  %v7947 = vpop.f32.mrb[0].mxu0
  %v7948 = vadd.f32 0.0, %v7947
  %v7949 = vpop.f32.mrb[0].mxu0
  %7950 = vmatprep.mubr.f32.mxu0 0.0
  %7951 = vmatmul.mubr.f32.gmra.mrb[0].mxu0 %v7871
  %v7952 = vpop.f32.mrb[0].mxu0
  %v7953 = vadd.f32 0.0, %v7952
  %v7954 = vpop.f32.mrb[0].mxu0
  %7955 = vmatprep.mubr.f32.mxu0 0.0
  %7956 = vmatmul.mubr.f32.gmra.mrb[0].mxu0 %v7874
  %v7957 = vpop.f32.mrb[0].mxu0
  %v7958 = vadd.f32 0.0, %v7957
  %v7959 = vpop.f32.mrb[0].mxu0
  %7960 = vdwg.mxu0
  %v7962 = vlaneseq
  %v7963 = vshrl.u32 %v7962, 7
  %v7964 = vsub.s32 0, %v7963
  %v7965 = vrot.slane %v5660, %v7964
  %v7967 = vadd.f32 %v7965, %v7943
  %v7968 = vadd.f32 %v7965, %v7948
  %v7969 = vadd.f32 %v7965, %v7953
  %v7970 = vadd.f32 %v7965, %v7958
  %s7971 = scalar_lea.vmem %s10, 224
  %v7972 = vld [vmem:[%s7971] sm:$0xff]
  %v7973 = vld [vmem:[%s7971 + $0x8] sm:$0xff]
  %v7974 = vld [vmem:[%s7971 + $0x10] sm:$0xff]
  %v7975 = vld [vmem:[%s7971 + $0x18] sm:$0xff]
  %s7976 = scalar_lea.vmem %s11, 7
  %v7977 = vld [vmem:[%s7976] sm:$0x1]
  %v7979 = vlaneseq
  %v7980 = vshrl.u32 %v7979, 7
  %v7981 = vsub.s32 0, %v7980
  %v7982 = vrot.slane %v7977, %v7981
  %7984 = vmatprep.subr.mxu0 0.0
  %7985 = vmatpush1.msra.mxu0 %v7972
  %7986 = vmatprep.subr.mxu0 0.0
  %7987 = vmatpush1.msra.mxu0 %v7973
  %7988 = vmatprep.subr.mxu0 0.0
  %7989 = vmatpush1.msra.mxu0 %v7974
  %7990 = vmatprep.subr.mxu0 0.0
  %7991 = vmatpush1.msra.mxu0 %v7975
  %7992 = vmatprep.subr.mxu0 0.0
  %7993 = vmatpush1.msra.mxu0 0.0
  %7994 = vmatprep.subr.mxu0 0.0
  %7995 = vmatpush1.msra.mxu0 0.0
  %7996 = vmatprep.subr.mxu0 0.0
  %7997 = vmatpush1.msra.mxu0 0.0
  %7998 = vmatprep.subr.mxu0 0.0
  %7999 = vmatpush1.msra.mxu0 0.0
  %8000 = vmatprep.subr.mxu0 0.0
  %8001 = vmatpush1.msra.mxu0 0.0
  %8002 = vmatprep.subr.mxu0 0.0
  %8003 = vmatpush1.msra.mxu0 0.0
  %8004 = vmatprep.subr.mxu0 0.0
  %8005 = vmatpush1.msra.mxu0 0.0
  %8006 = vmatprep.subr.mxu0 0.0
  %8007 = vmatpush1.msra.mxu0 0.0
  %8008 = vmatprep.subr.mxu0 0.0
  %8009 = vmatpush1.msra.mxu0 0.0
  %8010 = vmatprep.subr.mxu0 0.0
  %8011 = vmatpush1.msra.mxu0 0.0
  %8012 = vmatprep.subr.mxu0 0.0
  %8013 = vmatpush1.msra.mxu0 0.0
  %8014 = vmatprep.subr.mxu0 0.0
  %8015 = vmatpush1.msra.mxu0 0.0
  %8016 = vmatprep.subr.mxu0 0.0
  %8017 = vmatpush1.msra.mxu0 0.0
  %8018 = vmatprep.subr.mxu0 0.0
  %8019 = vmatpush1.msra.mxu0 0.0
  %8020 = vmatprep.subr.mxu0 0.0
  %8021 = vmatpush1.msra.mxu0 0.0
  %8022 = vmatprep.subr.mxu0 0.0
  %8023 = vmatpush1.msra.mxu0 0.0
  %8024 = vmatprep.subr.mxu0 0.0
  %8025 = vmatpush1.msra.mxu0 0.0
  %8026 = vmatprep.subr.mxu0 0.0
  %8027 = vmatpush1.msra.mxu0 0.0
  %8028 = vmatprep.subr.mxu0 0.0
  %8029 = vmatpush1.msra.mxu0 0.0
  %8030 = vmatprep.subr.mxu0 0.0
  %8031 = vmatpush1.msra.mxu0 0.0
  %8032 = vmatprep.subr.mxu0 0.0
  %8033 = vmatpush1.msra.mxu0 0.0
  %8034 = vmatprep.subr.mxu0 0.0
  %8035 = vmatpush1.msra.mxu0 0.0
  %8036 = vmatprep.subr.mxu0 0.0
  %8037 = vmatpush1.msra.mxu0 0.0
  %8038 = vmatprep.subr.mxu0 0.0
  %8039 = vmatpush1.msra.mxu0 0.0
  %8040 = vmatprep.subr.mxu0 0.0
  %8041 = vmatpush1.msra.mxu0 0.0
  %8042 = vmatprep.subr.mxu0 0.0
  %8043 = vmatpush1.msra.mxu0 0.0
  %8044 = vmatprep.subr.mxu0 0.0
  %8045 = vmatpush1.msra.mxu0 0.0
  %8046 = vmatprep.subr.mxu0 0.0
  %8047 = vmatpush1.msra.mxu0 0.0
  %8048 = vmatprep.mubr.f32.mxu0 0.0
  %8049 = vmatmul.mubr.f32.gmra.mrb[0].mxu0 %v5675
  %v8050 = vpop.f32.mrb[0].mxu0
  %v8051 = vadd.f32 %v7982, %v8050
  %v8052 = vpop.f32.mrb[0].mxu0
  %8053 = vmatprep.mubr.f32.mxu0 0.0
  %8054 = vmatmul.mubr.f32.gmra.mrb[0].mxu0 %v5678
  %v8055 = vpop.f32.mrb[0].mxu0
  %v8056 = vadd.f32 %v7982, %v8055
  %v8057 = vpop.f32.mrb[0].mxu0
  %8058 = vmatprep.mubr.f32.mxu0 0.0
  %8059 = vmatmul.mubr.f32.gmra.mrb[0].mxu0 %v5681
  %v8060 = vpop.f32.mrb[0].mxu0
  %v8061 = vadd.f32 %v7982, %v8060
  %v8062 = vpop.f32.mrb[0].mxu0
  %8063 = vmatprep.mubr.f32.mxu0 0.0
  %8064 = vmatmul.mubr.f32.gmra.mrb[0].mxu0 %v5684
  %v8065 = vpop.f32.mrb[0].mxu0
  %v8066 = vadd.f32 %v7982, %v8065
  %v8067 = vpop.f32.mrb[0].mxu0
  %8068 = vdwg.mxu0
  %v8069 = vmul.f32 %v8051, 0.25
  %v8070 = vmul.f32 %v8056, 0.25
  %v8071 = vmul.f32 %v8061, 0.25
  %v8072 = vmul.f32 %v8066, 0.25
  %s8073 = scalar_lea.vmem %s10, 288
  %v8074 = vld [vmem:[%s8073] sm:$0xff]
  %v8075 = vld [vmem:[%s8073 + $0x8] sm:$0xff]
  %v8076 = vld [vmem:[%s8073 + $0x10] sm:$0xff]
  %v8077 = vld [vmem:[%s8073 + $0x18] sm:$0xff]
  %s8078 = scalar_lea.vmem %s11, 9
  %v8079 = vld [vmem:[%s8078] sm:$0x1]
  %v8081 = vlaneseq
  %v8082 = vshrl.u32 %v8081, 7
  %v8083 = vsub.s32 0, %v8082
  %v8084 = vrot.slane %v8079, %v8083
  %8086 = vmatprep.subr.mxu0 0.0
  %8087 = vmatpush1.msra.mxu0 %v8074
  %8088 = vmatprep.subr.mxu0 0.0
  %8089 = vmatpush1.msra.mxu0 %v8075
  %8090 = vmatprep.subr.mxu0 0.0
  %8091 = vmatpush1.msra.mxu0 %v8076
  %8092 = vmatprep.subr.mxu0 0.0
  %8093 = vmatpush1.msra.mxu0 %v8077
  %8094 = vmatprep.subr.mxu0 0.0
  %8095 = vmatpush1.msra.mxu0 0.0
  %8096 = vmatprep.subr.mxu0 0.0
  %8097 = vmatpush1.msra.mxu0 0.0
  %8098 = vmatprep.subr.mxu0 0.0
  %8099 = vmatpush1.msra.mxu0 0.0
  %8100 = vmatprep.subr.mxu0 0.0
  %8101 = vmatpush1.msra.mxu0 0.0
  %8102 = vmatprep.subr.mxu0 0.0
  %8103 = vmatpush1.msra.mxu0 0.0
  %8104 = vmatprep.subr.mxu0 0.0
  %8105 = vmatpush1.msra.mxu0 0.0
  %8106 = vmatprep.subr.mxu0 0.0
  %8107 = vmatpush1.msra.mxu0 0.0
  %8108 = vmatprep.subr.mxu0 0.0
  %8109 = vmatpush1.msra.mxu0 0.0
  %8110 = vmatprep.subr.mxu0 0.0
  %8111 = vmatpush1.msra.mxu0 0.0
  %8112 = vmatprep.subr.mxu0 0.0
  %8113 = vmatpush1.msra.mxu0 0.0
  %8114 = vmatprep.subr.mxu0 0.0
  %8115 = vmatpush1.msra.mxu0 0.0
  %8116 = vmatprep.subr.mxu0 0.0
  %8117 = vmatpush1.msra.mxu0 0.0
  %8118 = vmatprep.subr.mxu0 0.0
  %8119 = vmatpush1.msra.mxu0 0.0
  %8120 = vmatprep.subr.mxu0 0.0
  %8121 = vmatpush1.msra.mxu0 0.0
  %8122 = vmatprep.subr.mxu0 0.0
  %8123 = vmatpush1.msra.mxu0 0.0
  %8124 = vmatprep.subr.mxu0 0.0
  %8125 = vmatpush1.msra.mxu0 0.0
  %8126 = vmatprep.subr.mxu0 0.0
  %8127 = vmatpush1.msra.mxu0 0.0
  %8128 = vmatprep.subr.mxu0 0.0
  %8129 = vmatpush1.msra.mxu0 0.0
  %8130 = vmatprep.subr.mxu0 0.0
  %8131 = vmatpush1.msra.mxu0 0.0
  %8132 = vmatprep.subr.mxu0 0.0
  %8133 = vmatpush1.msra.mxu0 0.0
  %8134 = vmatprep.subr.mxu0 0.0
  %8135 = vmatpush1.msra.mxu0 0.0
  %8136 = vmatprep.subr.mxu0 0.0
  %8137 = vmatpush1.msra.mxu0 0.0
  %8138 = vmatprep.subr.mxu0 0.0
  %8139 = vmatpush1.msra.mxu0 0.0
  %8140 = vmatprep.subr.mxu0 0.0
  %8141 = vmatpush1.msra.mxu0 0.0
  %8142 = vmatprep.subr.mxu0 0.0
  %8143 = vmatpush1.msra.mxu0 0.0
  %8144 = vmatprep.subr.mxu0 0.0
  %8145 = vmatpush1.msra.mxu0 0.0
  %8146 = vmatprep.subr.mxu0 0.0
  %8147 = vmatpush1.msra.mxu0 0.0
  %8148 = vmatprep.subr.mxu0 0.0
  %8149 = vmatpush1.msra.mxu0 0.0
  %8150 = vmatprep.mubr.f32.mxu0 0.0
  %8151 = vmatmul.mubr.f32.gmra.mrb[0].mxu0 %v5675
  %v8152 = vpop.f32.mrb[0].mxu0
  %v8153 = vadd.f32 %v8084, %v8152
  %v8154 = vpop.f32.mrb[0].mxu0
  %8155 = vmatprep.mubr.f32.mxu0 0.0
  %8156 = vmatmul.mubr.f32.gmra.mrb[0].mxu0 %v5678
  %v8157 = vpop.f32.mrb[0].mxu0
  %v8158 = vadd.f32 %v8084, %v8157
  %v8159 = vpop.f32.mrb[0].mxu0
  %8160 = vmatprep.mubr.f32.mxu0 0.0
  %8161 = vmatmul.mubr.f32.gmra.mrb[0].mxu0 %v5681
  %v8162 = vpop.f32.mrb[0].mxu0
  %v8163 = vadd.f32 %v8084, %v8162
  %v8164 = vpop.f32.mrb[0].mxu0
  %8165 = vmatprep.mubr.f32.mxu0 0.0
  %8166 = vmatmul.mubr.f32.gmra.mrb[0].mxu0 %v5684
  %v8167 = vpop.f32.mrb[0].mxu0
  %v8168 = vadd.f32 %v8084, %v8167
  %v8169 = vpop.f32.mrb[0].mxu0
  %8170 = vdwg.mxu0
  %s8171 = scalar_lea.vmem %s10, 352
  %v8172 = vld [vmem:[%s8171] sm:$0xff]
  %v8173 = vld [vmem:[%s8171 + $0x8] sm:$0xff]
  %v8174 = vld [vmem:[%s8171 + $0x10] sm:$0xff]
  %v8175 = vld [vmem:[%s8171 + $0x18] sm:$0xff]
  %s8176 = scalar_lea.vmem %s11, 11
  %v8177 = vld [vmem:[%s8176] sm:$0x1]
  %v8179 = vlaneseq
  %v8180 = vshrl.u32 %v8179, 7
  %v8181 = vsub.s32 0, %v8180
  %v8182 = vrot.slane %v8177, %v8181
  %8184 = vmatprep.subr.mxu0 0.0
  %8185 = vmatpush1.msra.mxu0 %v8172
  %8186 = vmatprep.subr.mxu0 0.0
  %8187 = vmatpush1.msra.mxu0 %v8173
  %8188 = vmatprep.subr.mxu0 0.0
  %8189 = vmatpush1.msra.mxu0 %v8174
  %8190 = vmatprep.subr.mxu0 0.0
  %8191 = vmatpush1.msra.mxu0 %v8175
  %8192 = vmatprep.subr.mxu0 0.0
  %8193 = vmatpush1.msra.mxu0 0.0
  %8194 = vmatprep.subr.mxu0 0.0
  %8195 = vmatpush1.msra.mxu0 0.0
  %8196 = vmatprep.subr.mxu0 0.0
  %8197 = vmatpush1.msra.mxu0 0.0
  %8198 = vmatprep.subr.mxu0 0.0
  %8199 = vmatpush1.msra.mxu0 0.0
  %8200 = vmatprep.subr.mxu0 0.0
  %8201 = vmatpush1.msra.mxu0 0.0
  %8202 = vmatprep.subr.mxu0 0.0
  %8203 = vmatpush1.msra.mxu0 0.0
  %8204 = vmatprep.subr.mxu0 0.0
  %8205 = vmatpush1.msra.mxu0 0.0
  %8206 = vmatprep.subr.mxu0 0.0
  %8207 = vmatpush1.msra.mxu0 0.0
  %8208 = vmatprep.subr.mxu0 0.0
  %8209 = vmatpush1.msra.mxu0 0.0
  %8210 = vmatprep.subr.mxu0 0.0
  %8211 = vmatpush1.msra.mxu0 0.0
  %8212 = vmatprep.subr.mxu0 0.0
  %8213 = vmatpush1.msra.mxu0 0.0
  %8214 = vmatprep.subr.mxu0 0.0
  %8215 = vmatpush1.msra.mxu0 0.0
  %8216 = vmatprep.subr.mxu0 0.0
  %8217 = vmatpush1.msra.mxu0 0.0
  %8218 = vmatprep.subr.mxu0 0.0
  %8219 = vmatpush1.msra.mxu0 0.0
  %8220 = vmatprep.subr.mxu0 0.0
  %8221 = vmatpush1.msra.mxu0 0.0
  %8222 = vmatprep.subr.mxu0 0.0
  %8223 = vmatpush1.msra.mxu0 0.0
  %8224 = vmatprep.subr.mxu0 0.0
  %8225 = vmatpush1.msra.mxu0 0.0
  %8226 = vmatprep.subr.mxu0 0.0
  %8227 = vmatpush1.msra.mxu0 0.0
  %8228 = vmatprep.subr.mxu0 0.0
  %8229 = vmatpush1.msra.mxu0 0.0
  %8230 = vmatprep.subr.mxu0 0.0
  %8231 = vmatpush1.msra.mxu0 0.0
  %8232 = vmatprep.subr.mxu0 0.0
  %8233 = vmatpush1.msra.mxu0 0.0
  %8234 = vmatprep.subr.mxu0 0.0
  %8235 = vmatpush1.msra.mxu0 0.0
  %8236 = vmatprep.subr.mxu0 0.0
  %8237 = vmatpush1.msra.mxu0 0.0
  %8238 = vmatprep.subr.mxu0 0.0
  %8239 = vmatpush1.msra.mxu0 0.0
  %8240 = vmatprep.subr.mxu0 0.0
  %8241 = vmatpush1.msra.mxu0 0.0
  %8242 = vmatprep.subr.mxu0 0.0
  %8243 = vmatpush1.msra.mxu0 0.0
  %8244 = vmatprep.subr.mxu0 0.0
  %8245 = vmatpush1.msra.mxu0 0.0
  %8246 = vmatprep.subr.mxu0 0.0
  %8247 = vmatpush1.msra.mxu0 0.0
  %8248 = vmatprep.mubr.f32.mxu0 0.0
  %8249 = vmatmul.mubr.f32.gmra.mrb[0].mxu0 %v5675
  %v8250 = vpop.f32.mrb[0].mxu0
  %v8251 = vadd.f32 %v8182, %v8250
  %v8252 = vpop.f32.mrb[0].mxu0
  %8253 = vmatprep.mubr.f32.mxu0 0.0
  %8254 = vmatmul.mubr.f32.gmra.mrb[0].mxu0 %v5678
  %v8255 = vpop.f32.mrb[0].mxu0
  %v8256 = vadd.f32 %v8182, %v8255
  %v8257 = vpop.f32.mrb[0].mxu0
  %8258 = vmatprep.mubr.f32.mxu0 0.0
  %8259 = vmatmul.mubr.f32.gmra.mrb[0].mxu0 %v5681
  %v8260 = vpop.f32.mrb[0].mxu0
  %v8261 = vadd.f32 %v8182, %v8260
  %v8262 = vpop.f32.mrb[0].mxu0
  %8263 = vmatprep.mubr.f32.mxu0 0.0
  %8264 = vmatmul.mubr.f32.gmra.mrb[0].mxu0 %v5684
  %v8265 = vpop.f32.mrb[0].mxu0
  %v8266 = vadd.f32 %v8182, %v8265
  %v8267 = vpop.f32.mrb[0].mxu0
  %8268 = vdwg.mxu0
  %v8273 = vcombine.high %v8069, %v8069
  %v8275 = vunpack.c.l.s4 1966171168
  %v8276 = vunpack.c.0.s8 %v8275
  %v8277 = vlaneseq
  %v8278 = vshrl.u32 %v8277, 7
  %v8279 = vsub.s32 %v8276, %v8278
  %v8280 = vrot.slane %v8069, %v8279
  %v8282 = vunpack.c.l.s4 1966171168
  %v8283 = vunpack.c.0.s8 %v8282
  %v8284 = vlaneseq
  %v8285 = vshrl.u32 %v8284, 7
  %v8286 = vsub.s32 %v8283, %v8285
  %v8287 = vrot.slane %v8273, %v8286
  %v8288 = vcombine.high %v8280, %v8280
  %v8289 = vcombine.high %v8287, %v8287
  %v8291 = vunpack.c.l.s4 1966171168
  %v8292 = vunpack.c.0.s8 %v8291
  %v8293 = vlaneseq
  %v8294 = vshrl.u32 %v8293, 7
  %v8295 = vsub.s32 %v8292, %v8294
  %v8296 = vrot.slane %v8280, %v8295
  %v8298 = vunpack.c.l.s4 1966171168
  %v8299 = vunpack.c.0.s8 %v8298
  %v8300 = vlaneseq
  %v8301 = vshrl.u32 %v8300, 7
  %v8302 = vsub.s32 %v8299, %v8301
  %v8303 = vrot.slane %v8287, %v8302
  %v8305 = vunpack.c.l.s4 1966171168
  %v8306 = vunpack.c.0.s8 %v8305
  %v8307 = vlaneseq
  %v8308 = vshrl.u32 %v8307, 7
  %v8309 = vsub.s32 %v8306, %v8308
  %v8310 = vrot.slane %v8288, %v8309
  %v8312 = vunpack.c.l.s4 1966171168
  %v8313 = vunpack.c.0.s8 %v8312
  %v8314 = vlaneseq
  %v8315 = vshrl.u32 %v8314, 7
  %v8316 = vsub.s32 %v8313, %v8315
  %v8317 = vrot.slane %v8289, %v8316
  %v8318 = vcombine.high %v8296, %v8296
  %v8319 = vcombine.high %v8303, %v8303
  %v8320 = vcombine.high %v8310, %v8310
  %v8321 = vcombine.high %v8317, %v8317
  %v8322 = vcombine.high %v8070, %v8070
  %v8324 = vunpack.c.l.s4 1966171168
  %v8325 = vunpack.c.0.s8 %v8324
  %v8326 = vlaneseq
  %v8327 = vshrl.u32 %v8326, 7
  %v8328 = vsub.s32 %v8325, %v8327
  %v8329 = vrot.slane %v8070, %v8328
  %v8331 = vunpack.c.l.s4 1966171168
  %v8332 = vunpack.c.0.s8 %v8331
  %v8333 = vlaneseq
  %v8334 = vshrl.u32 %v8333, 7
  %v8335 = vsub.s32 %v8332, %v8334
  %v8336 = vrot.slane %v8322, %v8335
  %v8337 = vcombine.high %v8329, %v8329
  %v8338 = vcombine.high %v8336, %v8336
  %v8340 = vunpack.c.l.s4 1966171168
  %v8341 = vunpack.c.0.s8 %v8340
  %v8342 = vlaneseq
  %v8343 = vshrl.u32 %v8342, 7
  %v8344 = vsub.s32 %v8341, %v8343
  %v8345 = vrot.slane %v8329, %v8344
  %v8347 = vunpack.c.l.s4 1966171168
  %v8348 = vunpack.c.0.s8 %v8347
  %v8349 = vlaneseq
  %v8350 = vshrl.u32 %v8349, 7
  %v8351 = vsub.s32 %v8348, %v8350
  %v8352 = vrot.slane %v8336, %v8351
  %v8354 = vunpack.c.l.s4 1966171168
  %v8355 = vunpack.c.0.s8 %v8354
  %v8356 = vlaneseq
  %v8357 = vshrl.u32 %v8356, 7
  %v8358 = vsub.s32 %v8355, %v8357
  %v8359 = vrot.slane %v8337, %v8358
  %v8361 = vunpack.c.l.s4 1966171168
  %v8362 = vunpack.c.0.s8 %v8361
  %v8363 = vlaneseq
  %v8364 = vshrl.u32 %v8363, 7
  %v8365 = vsub.s32 %v8362, %v8364
  %v8366 = vrot.slane %v8338, %v8365
  %v8367 = vcombine.high %v8345, %v8345
  %v8368 = vcombine.high %v8352, %v8352
  %v8369 = vcombine.high %v8359, %v8359
  %v8370 = vcombine.high %v8366, %v8366
  %v8371 = vcombine.high %v8071, %v8071
  %v8373 = vunpack.c.l.s4 1966171168
  %v8374 = vunpack.c.0.s8 %v8373
  %v8375 = vlaneseq
  %v8376 = vshrl.u32 %v8375, 7
  %v8377 = vsub.s32 %v8374, %v8376
  %v8378 = vrot.slane %v8071, %v8377
  %v8380 = vunpack.c.l.s4 1966171168
  %v8381 = vunpack.c.0.s8 %v8380
  %v8382 = vlaneseq
  %v8383 = vshrl.u32 %v8382, 7
  %v8384 = vsub.s32 %v8381, %v8383
  %v8385 = vrot.slane %v8371, %v8384
  %v8386 = vcombine.high %v8378, %v8378
  %v8387 = vcombine.high %v8385, %v8385
  %v8389 = vunpack.c.l.s4 1966171168
  %v8390 = vunpack.c.0.s8 %v8389
  %v8391 = vlaneseq
  %v8392 = vshrl.u32 %v8391, 7
  %v8393 = vsub.s32 %v8390, %v8392
  %v8394 = vrot.slane %v8378, %v8393
  %v8396 = vunpack.c.l.s4 1966171168
  %v8397 = vunpack.c.0.s8 %v8396
  %v8398 = vlaneseq
  %v8399 = vshrl.u32 %v8398, 7
  %v8400 = vsub.s32 %v8397, %v8399
  %v8401 = vrot.slane %v8385, %v8400
  %v8403 = vunpack.c.l.s4 1966171168
  %v8404 = vunpack.c.0.s8 %v8403
  %v8405 = vlaneseq
  %v8406 = vshrl.u32 %v8405, 7
  %v8407 = vsub.s32 %v8404, %v8406
  %v8408 = vrot.slane %v8386, %v8407
  %v8410 = vunpack.c.l.s4 1966171168
  %v8411 = vunpack.c.0.s8 %v8410
  %v8412 = vlaneseq
  %v8413 = vshrl.u32 %v8412, 7
  %v8414 = vsub.s32 %v8411, %v8413
  %v8415 = vrot.slane %v8387, %v8414
  %v8416 = vcombine.high %v8394, %v8394
  %v8417 = vcombine.high %v8401, %v8401
  %v8418 = vcombine.high %v8408, %v8408
  %v8419 = vcombine.high %v8415, %v8415
  %v8420 = vcombine.high %v8072, %v8072
  %v8422 = vunpack.c.l.s4 1966171168
  %v8423 = vunpack.c.0.s8 %v8422
  %v8424 = vlaneseq
  %v8425 = vshrl.u32 %v8424, 7
  %v8426 = vsub.s32 %v8423, %v8425
  %v8427 = vrot.slane %v8072, %v8426
  %v8429 = vunpack.c.l.s4 1966171168
  %v8430 = vunpack.c.0.s8 %v8429
  %v8431 = vlaneseq
  %v8432 = vshrl.u32 %v8431, 7
  %v8433 = vsub.s32 %v8430, %v8432
  %v8434 = vrot.slane %v8420, %v8433
  %v8435 = vcombine.high %v8427, %v8427
  %v8436 = vcombine.high %v8434, %v8434
  %v8438 = vunpack.c.l.s4 1966171168
  %v8439 = vunpack.c.0.s8 %v8438
  %v8440 = vlaneseq
  %v8441 = vshrl.u32 %v8440, 7
  %v8442 = vsub.s32 %v8439, %v8441
  %v8443 = vrot.slane %v8427, %v8442
  %v8445 = vunpack.c.l.s4 1966171168
  %v8446 = vunpack.c.0.s8 %v8445
  %v8447 = vlaneseq
  %v8448 = vshrl.u32 %v8447, 7
  %v8449 = vsub.s32 %v8446, %v8448
  %v8450 = vrot.slane %v8434, %v8449
  %v8452 = vunpack.c.l.s4 1966171168
  %v8453 = vunpack.c.0.s8 %v8452
  %v8454 = vlaneseq
  %v8455 = vshrl.u32 %v8454, 7
  %v8456 = vsub.s32 %v8453, %v8455
  %v8457 = vrot.slane %v8435, %v8456
  %v8459 = vunpack.c.l.s4 1966171168
  %v8460 = vunpack.c.0.s8 %v8459
  %v8461 = vlaneseq
  %v8462 = vshrl.u32 %v8461, 7
  %v8463 = vsub.s32 %v8460, %v8462
  %v8464 = vrot.slane %v8436, %v8463
  %v8465 = vcombine.high %v8443, %v8443
  %v8466 = vcombine.high %v8450, %v8450
  %v8467 = vcombine.high %v8457, %v8457
  %v8468 = vcombine.high %v8464, %v8464
  %v8469 = vlaneseq
  %v8470 = vshrl.u32 %v8469, 7
  %v8471 = vsub.s32 0, %v8470
  %v8472 = vrot.slane %v8296, %v8471
  %v8473 = vlaneseq
  %v8474 = vshrl.u32 %v8473, 7
  %v8475 = vsub.s32 0, %v8474
  %v8476 = vrot.slane %v8310, %v8475
  %v8477 = vlaneseq
  %v8478 = vshrl.u32 %v8477, 7
  %v8479 = vsub.s32 0, %v8478
  %v8480 = vrot.slane %v8318, %v8479
  %v8481 = vlaneseq
  %v8482 = vshrl.u32 %v8481, 7
  %v8483 = vsub.s32 0, %v8482
  %v8484 = vrot.slane %v8320, %v8483
  %v8485 = vlaneseq
  %v8486 = vshrl.u32 %v8485, 7
  %v8487 = vsub.s32 0, %v8486
  %v8488 = vrot.slane %v8303, %v8487
  %v8489 = vlaneseq
  %v8490 = vshrl.u32 %v8489, 7
  %v8491 = vsub.s32 0, %v8490
  %v8492 = vrot.slane %v8317, %v8491
  %v8493 = vlaneseq
  %v8494 = vshrl.u32 %v8493, 7
  %v8495 = vsub.s32 0, %v8494
  %v8496 = vrot.slane %v8319, %v8495
  %v8497 = vlaneseq
  %v8498 = vshrl.u32 %v8497, 7
  %v8499 = vsub.s32 0, %v8498
  %v8500 = vrot.slane %v8321, %v8499
  %v8501 = vlaneseq
  %v8502 = vshrl.u32 %v8501, 7
  %v8503 = vsub.s32 0, %v8502
  %v8504 = vrot.slane %v8345, %v8503
  %v8505 = vlaneseq
  %v8506 = vshrl.u32 %v8505, 7
  %v8507 = vsub.s32 0, %v8506
  %v8508 = vrot.slane %v8359, %v8507
  %v8509 = vlaneseq
  %v8510 = vshrl.u32 %v8509, 7
  %v8511 = vsub.s32 0, %v8510
  %v8512 = vrot.slane %v8367, %v8511
  %v8513 = vlaneseq
  %v8514 = vshrl.u32 %v8513, 7
  %v8515 = vsub.s32 0, %v8514
  %v8516 = vrot.slane %v8369, %v8515
  %v8517 = vlaneseq
  %v8518 = vshrl.u32 %v8517, 7
  %v8519 = vsub.s32 0, %v8518
  %v8520 = vrot.slane %v8352, %v8519
  %v8521 = vlaneseq
  %v8522 = vshrl.u32 %v8521, 7
  %v8523 = vsub.s32 0, %v8522
  %v8524 = vrot.slane %v8366, %v8523
  %v8525 = vlaneseq
  %v8526 = vshrl.u32 %v8525, 7
  %v8527 = vsub.s32 0, %v8526
  %v8528 = vrot.slane %v8368, %v8527
  %v8529 = vlaneseq
  %v8530 = vshrl.u32 %v8529, 7
  %v8531 = vsub.s32 0, %v8530
  %v8532 = vrot.slane %v8370, %v8531
  %v8533 = vlaneseq
  %v8534 = vshrl.u32 %v8533, 7
  %v8535 = vsub.s32 0, %v8534
  %v8536 = vrot.slane %v8394, %v8535
  %v8537 = vlaneseq
  %v8538 = vshrl.u32 %v8537, 7
  %v8539 = vsub.s32 0, %v8538
  %v8540 = vrot.slane %v8408, %v8539
  %v8541 = vlaneseq
  %v8542 = vshrl.u32 %v8541, 7
  %v8543 = vsub.s32 0, %v8542
  %v8544 = vrot.slane %v8416, %v8543
  %v8545 = vlaneseq
  %v8546 = vshrl.u32 %v8545, 7
  %v8547 = vsub.s32 0, %v8546
  %v8548 = vrot.slane %v8418, %v8547
  %v8549 = vlaneseq
  %v8550 = vshrl.u32 %v8549, 7
  %v8551 = vsub.s32 0, %v8550
  %v8552 = vrot.slane %v8401, %v8551
  %v8553 = vlaneseq
  %v8554 = vshrl.u32 %v8553, 7
  %v8555 = vsub.s32 0, %v8554
  %v8556 = vrot.slane %v8415, %v8555
  %v8557 = vlaneseq
  %v8558 = vshrl.u32 %v8557, 7
  %v8559 = vsub.s32 0, %v8558
  %v8560 = vrot.slane %v8417, %v8559
  %v8561 = vlaneseq
  %v8562 = vshrl.u32 %v8561, 7
  %v8563 = vsub.s32 0, %v8562
  %v8564 = vrot.slane %v8419, %v8563
  %v8565 = vlaneseq
  %v8566 = vshrl.u32 %v8565, 7
  %v8567 = vsub.s32 0, %v8566
  %v8568 = vrot.slane %v8443, %v8567
  %v8569 = vlaneseq
  %v8570 = vshrl.u32 %v8569, 7
  %v8571 = vsub.s32 0, %v8570
  %v8572 = vrot.slane %v8457, %v8571
  %v8573 = vlaneseq
  %v8574 = vshrl.u32 %v8573, 7
  %v8575 = vsub.s32 0, %v8574
  %v8576 = vrot.slane %v8465, %v8575
  %v8577 = vlaneseq
  %v8578 = vshrl.u32 %v8577, 7
  %v8579 = vsub.s32 0, %v8578
  %v8580 = vrot.slane %v8467, %v8579
  %v8581 = vlaneseq
  %v8582 = vshrl.u32 %v8581, 7
  %v8583 = vsub.s32 0, %v8582
  %v8584 = vrot.slane %v8450, %v8583
  %v8585 = vlaneseq
  %v8586 = vshrl.u32 %v8585, 7
  %v8587 = vsub.s32 0, %v8586
  %v8588 = vrot.slane %v8464, %v8587
  %v8589 = vlaneseq
  %v8590 = vshrl.u32 %v8589, 7
  %v8591 = vsub.s32 0, %v8590
  %v8592 = vrot.slane %v8466, %v8591
  %v8593 = vlaneseq
  %v8594 = vshrl.u32 %v8593, 7
  %v8595 = vsub.s32 0, %v8594
  %v8596 = vrot.slane %v8468, %v8595
  %v8629 = vmul.f32 %v8472, %v96
  %v8630 = vmul.f32 %v8472, %v97
  %v8631 = vmul.f32 %v8472, %v98
  %v8632 = vmul.f32 %v8472, %v99
  %v8633 = vmul.f32 %v8476, %v100
  %v8634 = vmul.f32 %v8476, %v101
  %v8635 = vmul.f32 %v8476, %v102
  %v8636 = vmul.f32 %v8476, %v103
  %v8637 = vmul.f32 %v8480, %v104
  %v8638 = vmul.f32 %v8480, %v105
  %v8639 = vmul.f32 %v8480, %v106
  %v8640 = vmul.f32 %v8480, %v107
  %v8641 = vmul.f32 %v8484, %v108
  %v8642 = vmul.f32 %v8484, %v109
  %v8643 = vmul.f32 %v8484, %v110
  %v8644 = vmul.f32 %v8484, %v111
  %v8645 = vmul.f32 %v8488, %v112
  %v8646 = vmul.f32 %v8488, %v113
  %v8647 = vmul.f32 %v8488, %v114
  %v8648 = vmul.f32 %v8488, %v115
  %v8649 = vmul.f32 %v8492, %v116
  %v8650 = vmul.f32 %v8492, %v117
  %v8651 = vmul.f32 %v8492, %v118
  %v8652 = vmul.f32 %v8492, %v119
  %v8653 = vmul.f32 %v8496, %v120
  %v8654 = vmul.f32 %v8496, %v121
  %v8655 = vmul.f32 %v8496, %v122
  %v8656 = vmul.f32 %v8496, %v123
  %v8657 = vmul.f32 %v8500, %v124
  %v8658 = vmul.f32 %v8500, %v125
  %v8659 = vmul.f32 %v8500, %v126
  %v8660 = vmul.f32 %v8500, %v127
  %v8661 = vmul.f32 %v8504, %v128
  %v8662 = vmul.f32 %v8504, %v129
  %v8663 = vmul.f32 %v8504, %v130
  %v8664 = vmul.f32 %v8504, %v131
  %v8665 = vmul.f32 %v8508, %v132
  %v8666 = vmul.f32 %v8508, %v133
  %v8667 = vmul.f32 %v8508, %v134
  %v8668 = vmul.f32 %v8508, %v135
  %v8669 = vmul.f32 %v8512, %v136
  %v8670 = vmul.f32 %v8512, %v137
  %v8671 = vmul.f32 %v8512, %v138
  %v8672 = vmul.f32 %v8512, %v139
  %v8673 = vmul.f32 %v8516, %v140
  %v8674 = vmul.f32 %v8516, %v141
  %v8675 = vmul.f32 %v8516, %v142
  %v8676 = vmul.f32 %v8516, %v143
  %v8677 = vmul.f32 %v8520, %v144
  %v8678 = vmul.f32 %v8520, %v145
  %v8679 = vmul.f32 %v8520, %v146
  %v8680 = vmul.f32 %v8520, %v147
  %v8681 = vmul.f32 %v8524, %v148
  %v8682 = vmul.f32 %v8524, %v149
  %v8683 = vmul.f32 %v8524, %v150
  %v8684 = vmul.f32 %v8524, %v151
  %v8685 = vmul.f32 %v8528, %v152
  %v8686 = vmul.f32 %v8528, %v153
  %v8687 = vmul.f32 %v8528, %v154
  %v8688 = vmul.f32 %v8528, %v155
  %v8689 = vmul.f32 %v8532, %v156
  %v8690 = vmul.f32 %v8532, %v157
  %v8691 = vmul.f32 %v8532, %v158
  %v8692 = vmul.f32 %v8532, %v159
  %v8693 = vmul.f32 %v8536, %v160
  %v8694 = vmul.f32 %v8536, %v161
  %v8695 = vmul.f32 %v8536, %v162
  %v8696 = vmul.f32 %v8536, %v163
  %v8697 = vmul.f32 %v8540, %v164
  %v8698 = vmul.f32 %v8540, %v165
  %v8699 = vmul.f32 %v8540, %v166
  %v8700 = vmul.f32 %v8540, %v167
  %v8701 = vmul.f32 %v8544, %v168
  %v8702 = vmul.f32 %v8544, %v169
  %v8703 = vmul.f32 %v8544, %v170
  %v8704 = vmul.f32 %v8544, %v171
  %v8705 = vmul.f32 %v8548, %v172
  %v8706 = vmul.f32 %v8548, %v173
  %v8707 = vmul.f32 %v8548, %v174
  %v8708 = vmul.f32 %v8548, %v175
  %v8709 = vmul.f32 %v8552, %v176
  %v8710 = vmul.f32 %v8552, %v177
  %v8711 = vmul.f32 %v8552, %v178
  %v8712 = vmul.f32 %v8552, %v179
  %v8713 = vmul.f32 %v8556, %v180
  %v8714 = vmul.f32 %v8556, %v181
  %v8715 = vmul.f32 %v8556, %v182
  %v8716 = vmul.f32 %v8556, %v183
  %v8717 = vmul.f32 %v8560, %v184
  %v8718 = vmul.f32 %v8560, %v185
  %v8719 = vmul.f32 %v8560, %v186
  %v8720 = vmul.f32 %v8560, %v187
  %v8721 = vmul.f32 %v8564, %v188
  %v8722 = vmul.f32 %v8564, %v189
  %v8723 = vmul.f32 %v8564, %v190
  %v8724 = vmul.f32 %v8564, %v191
  %v8725 = vmul.f32 %v8568, %v192
  %v8726 = vmul.f32 %v8568, %v193
  %v8727 = vmul.f32 %v8568, %v194
  %v8728 = vmul.f32 %v8568, %v195
  %v8729 = vmul.f32 %v8572, %v196
  %v8730 = vmul.f32 %v8572, %v197
  %v8731 = vmul.f32 %v8572, %v198
  %v8732 = vmul.f32 %v8572, %v199
  %v8733 = vmul.f32 %v8576, %v200
  %v8734 = vmul.f32 %v8576, %v201
  %v8735 = vmul.f32 %v8576, %v202
  %v8736 = vmul.f32 %v8576, %v203
  %v8737 = vmul.f32 %v8580, %v204
  %v8738 = vmul.f32 %v8580, %v205
  %v8739 = vmul.f32 %v8580, %v206
  %v8740 = vmul.f32 %v8580, %v207
  %v8741 = vmul.f32 %v8584, %v208
  %v8742 = vmul.f32 %v8584, %v209
  %v8743 = vmul.f32 %v8584, %v210
  %v8744 = vmul.f32 %v8584, %v211
  %v8745 = vmul.f32 %v8588, %v212
  %v8746 = vmul.f32 %v8588, %v213
  %v8747 = vmul.f32 %v8588, %v214
  %v8748 = vmul.f32 %v8588, %v215
  %v8749 = vmul.f32 %v8592, %v216
  %v8750 = vmul.f32 %v8592, %v217
  %v8751 = vmul.f32 %v8592, %v218
  %v8752 = vmul.f32 %v8592, %v219
  %v8753 = vmul.f32 %v8596, %v220
  %v8754 = vmul.f32 %v8596, %v221
  %v8755 = vmul.f32 %v8596, %v222
  %v8756 = vmul.f32 %v8596, %v223
  %v8757 = vsel %vm1457, %v8629, 0.0
  %8758 = vadd.xlane.f32.xlu0 %v8757
  %v8759 = vpop.xlane.xlu0 %8758
  %v8760 = vsel %vm1457, %v8630, 0.0
  %8761 = vadd.xlane.f32.xlu0 %v8760
  %v8762 = vpop.xlane.xlu0 %8761
  %v8763 = vsel %vm1457, %v8631, 0.0
  %8764 = vadd.xlane.f32.xlu0 %v8763
  %v8765 = vpop.xlane.xlu0 %8764
  %v8766 = vsel %vm1457, %v8632, 0.0
  %8767 = vadd.xlane.f32.xlu0 %v8766
  %v8768 = vpop.xlane.xlu0 %8767
  %v8769 = vsel %vm1457, %v8633, 0.0
  %8770 = vadd.xlane.f32.xlu0 %v8769
  %v8771 = vpop.xlane.xlu0 %8770
  %v8772 = vsel %vm1457, %v8634, 0.0
  %8773 = vadd.xlane.f32.xlu0 %v8772
  %v8774 = vpop.xlane.xlu0 %8773
  %v8775 = vsel %vm1457, %v8635, 0.0
  %8776 = vadd.xlane.f32.xlu0 %v8775
  %v8777 = vpop.xlane.xlu0 %8776
  %v8778 = vsel %vm1457, %v8636, 0.0
  %8779 = vadd.xlane.f32.xlu0 %v8778
  %v8780 = vpop.xlane.xlu0 %8779
  %v8781 = vsel %vm1457, %v8637, 0.0
  %8782 = vadd.xlane.f32.xlu0 %v8781
  %v8783 = vpop.xlane.xlu0 %8782
  %v8784 = vsel %vm1457, %v8638, 0.0
  %8785 = vadd.xlane.f32.xlu0 %v8784
  %v8786 = vpop.xlane.xlu0 %8785
  %v8787 = vsel %vm1457, %v8639, 0.0
  %8788 = vadd.xlane.f32.xlu0 %v8787
  %v8789 = vpop.xlane.xlu0 %8788
  %v8790 = vsel %vm1457, %v8640, 0.0
  %8791 = vadd.xlane.f32.xlu0 %v8790
  %v8792 = vpop.xlane.xlu0 %8791
  %v8793 = vsel %vm1457, %v8641, 0.0
  %8794 = vadd.xlane.f32.xlu0 %v8793
  %v8795 = vpop.xlane.xlu0 %8794
  %v8796 = vsel %vm1457, %v8642, 0.0
  %8797 = vadd.xlane.f32.xlu0 %v8796
  %v8798 = vpop.xlane.xlu0 %8797
  %v8799 = vsel %vm1457, %v8643, 0.0
  %8800 = vadd.xlane.f32.xlu0 %v8799
  %v8801 = vpop.xlane.xlu0 %8800
  %v8802 = vsel %vm1457, %v8644, 0.0
  %8803 = vadd.xlane.f32.xlu0 %v8802
  %v8804 = vpop.xlane.xlu0 %8803
  %v8805 = vsel %vm1457, %v8645, 0.0
  %8806 = vadd.xlane.f32.xlu0 %v8805
  %v8807 = vpop.xlane.xlu0 %8806
  %v8808 = vsel %vm1457, %v8646, 0.0
  %8809 = vadd.xlane.f32.xlu0 %v8808
  %v8810 = vpop.xlane.xlu0 %8809
  %v8811 = vsel %vm1457, %v8647, 0.0
  %8812 = vadd.xlane.f32.xlu0 %v8811
  %v8813 = vpop.xlane.xlu0 %8812
  %v8814 = vsel %vm1457, %v8648, 0.0
  %8815 = vadd.xlane.f32.xlu0 %v8814
  %v8816 = vpop.xlane.xlu0 %8815
  %v8817 = vsel %vm1457, %v8649, 0.0
  %8818 = vadd.xlane.f32.xlu0 %v8817
  %v8819 = vpop.xlane.xlu0 %8818
  %v8820 = vsel %vm1457, %v8650, 0.0
  %8821 = vadd.xlane.f32.xlu0 %v8820
  %v8822 = vpop.xlane.xlu0 %8821
  %v8823 = vsel %vm1457, %v8651, 0.0
  %8824 = vadd.xlane.f32.xlu0 %v8823
  %v8825 = vpop.xlane.xlu0 %8824
  %v8826 = vsel %vm1457, %v8652, 0.0
  %8827 = vadd.xlane.f32.xlu0 %v8826
  %v8828 = vpop.xlane.xlu0 %8827
  %v8829 = vsel %vm1457, %v8653, 0.0
  %8830 = vadd.xlane.f32.xlu0 %v8829
  %v8831 = vpop.xlane.xlu0 %8830
  %v8832 = vsel %vm1457, %v8654, 0.0
  %8833 = vadd.xlane.f32.xlu0 %v8832
  %v8834 = vpop.xlane.xlu0 %8833
  %v8835 = vsel %vm1457, %v8655, 0.0
  %8836 = vadd.xlane.f32.xlu0 %v8835
  %v8837 = vpop.xlane.xlu0 %8836
  %v8838 = vsel %vm1457, %v8656, 0.0
  %8839 = vadd.xlane.f32.xlu0 %v8838
  %v8840 = vpop.xlane.xlu0 %8839
  %v8841 = vsel %vm1457, %v8657, 0.0
  %8842 = vadd.xlane.f32.xlu0 %v8841
  %v8843 = vpop.xlane.xlu0 %8842
  %v8844 = vsel %vm1457, %v8658, 0.0
  %8845 = vadd.xlane.f32.xlu0 %v8844
  %v8846 = vpop.xlane.xlu0 %8845
  %v8847 = vsel %vm1457, %v8659, 0.0
  %8848 = vadd.xlane.f32.xlu0 %v8847
  %v8849 = vpop.xlane.xlu0 %8848
  %v8850 = vsel %vm1457, %v8660, 0.0
  %8851 = vadd.xlane.f32.xlu0 %v8850
  %v8852 = vpop.xlane.xlu0 %8851
  %v8853 = vsel %vm1457, %v8661, 0.0
  %8854 = vadd.xlane.f32.xlu0 %v8853
  %v8855 = vpop.xlane.xlu0 %8854
  %v8856 = vsel %vm1457, %v8662, 0.0
  %8857 = vadd.xlane.f32.xlu0 %v8856
  %v8858 = vpop.xlane.xlu0 %8857
  %v8859 = vsel %vm1457, %v8663, 0.0
  %8860 = vadd.xlane.f32.xlu0 %v8859
  %v8861 = vpop.xlane.xlu0 %8860
  %v8862 = vsel %vm1457, %v8664, 0.0
  %8863 = vadd.xlane.f32.xlu0 %v8862
  %v8864 = vpop.xlane.xlu0 %8863
  %v8865 = vsel %vm1457, %v8665, 0.0
  %8866 = vadd.xlane.f32.xlu0 %v8865
  %v8867 = vpop.xlane.xlu0 %8866
  %v8868 = vsel %vm1457, %v8666, 0.0
  %8869 = vadd.xlane.f32.xlu0 %v8868
  %v8870 = vpop.xlane.xlu0 %8869
  %v8871 = vsel %vm1457, %v8667, 0.0
  %8872 = vadd.xlane.f32.xlu0 %v8871
  %v8873 = vpop.xlane.xlu0 %8872
  %v8874 = vsel %vm1457, %v8668, 0.0
  %8875 = vadd.xlane.f32.xlu0 %v8874
  %v8876 = vpop.xlane.xlu0 %8875
  %v8877 = vsel %vm1457, %v8669, 0.0
  %8878 = vadd.xlane.f32.xlu0 %v8877
  %v8879 = vpop.xlane.xlu0 %8878
  %v8880 = vsel %vm1457, %v8670, 0.0
  %8881 = vadd.xlane.f32.xlu0 %v8880
  %v8882 = vpop.xlane.xlu0 %8881
  %v8883 = vsel %vm1457, %v8671, 0.0
  %8884 = vadd.xlane.f32.xlu0 %v8883
  %v8885 = vpop.xlane.xlu0 %8884
  %v8886 = vsel %vm1457, %v8672, 0.0
  %8887 = vadd.xlane.f32.xlu0 %v8886
  %v8888 = vpop.xlane.xlu0 %8887
  %v8889 = vsel %vm1457, %v8673, 0.0
  %8890 = vadd.xlane.f32.xlu0 %v8889
  %v8891 = vpop.xlane.xlu0 %8890
  %v8892 = vsel %vm1457, %v8674, 0.0
  %8893 = vadd.xlane.f32.xlu0 %v8892
  %v8894 = vpop.xlane.xlu0 %8893
  %v8895 = vsel %vm1457, %v8675, 0.0
  %8896 = vadd.xlane.f32.xlu0 %v8895
  %v8897 = vpop.xlane.xlu0 %8896
  %v8898 = vsel %vm1457, %v8676, 0.0
  %8899 = vadd.xlane.f32.xlu0 %v8898
  %v8900 = vpop.xlane.xlu0 %8899
  %v8901 = vsel %vm1457, %v8677, 0.0
  %8902 = vadd.xlane.f32.xlu0 %v8901
  %v8903 = vpop.xlane.xlu0 %8902
  %v8904 = vsel %vm1457, %v8678, 0.0
  %8905 = vadd.xlane.f32.xlu0 %v8904
  %v8906 = vpop.xlane.xlu0 %8905
  %v8907 = vsel %vm1457, %v8679, 0.0
  %8908 = vadd.xlane.f32.xlu0 %v8907
  %v8909 = vpop.xlane.xlu0 %8908
  %v8910 = vsel %vm1457, %v8680, 0.0
  %8911 = vadd.xlane.f32.xlu0 %v8910
  %v8912 = vpop.xlane.xlu0 %8911
  %v8913 = vsel %vm1457, %v8681, 0.0
  %8914 = vadd.xlane.f32.xlu0 %v8913
  %v8915 = vpop.xlane.xlu0 %8914
  %v8916 = vsel %vm1457, %v8682, 0.0
  %8917 = vadd.xlane.f32.xlu0 %v8916
  %v8918 = vpop.xlane.xlu0 %8917
  %v8919 = vsel %vm1457, %v8683, 0.0
  %8920 = vadd.xlane.f32.xlu0 %v8919
  %v8921 = vpop.xlane.xlu0 %8920
  %v8922 = vsel %vm1457, %v8684, 0.0
  %8923 = vadd.xlane.f32.xlu0 %v8922
  %v8924 = vpop.xlane.xlu0 %8923
  %v8925 = vsel %vm1457, %v8685, 0.0
  %8926 = vadd.xlane.f32.xlu0 %v8925
  %v8927 = vpop.xlane.xlu0 %8926
  %v8928 = vsel %vm1457, %v8686, 0.0
  %8929 = vadd.xlane.f32.xlu0 %v8928
  %v8930 = vpop.xlane.xlu0 %8929
  %v8931 = vsel %vm1457, %v8687, 0.0
  %8932 = vadd.xlane.f32.xlu0 %v8931
  %v8933 = vpop.xlane.xlu0 %8932
  %v8934 = vsel %vm1457, %v8688, 0.0
  %8935 = vadd.xlane.f32.xlu0 %v8934
  %v8936 = vpop.xlane.xlu0 %8935
  %v8937 = vsel %vm1457, %v8689, 0.0
  %8938 = vadd.xlane.f32.xlu0 %v8937
  %v8939 = vpop.xlane.xlu0 %8938
  %v8940 = vsel %vm1457, %v8690, 0.0
  %8941 = vadd.xlane.f32.xlu0 %v8940
  %v8942 = vpop.xlane.xlu0 %8941
  %v8943 = vsel %vm1457, %v8691, 0.0
  %8944 = vadd.xlane.f32.xlu0 %v8943
  %v8945 = vpop.xlane.xlu0 %8944
  %v8946 = vsel %vm1457, %v8692, 0.0
  %8947 = vadd.xlane.f32.xlu0 %v8946
  %v8948 = vpop.xlane.xlu0 %8947
  %v8949 = vsel %vm1457, %v8693, 0.0
  %8950 = vadd.xlane.f32.xlu0 %v8949
  %v8951 = vpop.xlane.xlu0 %8950
  %v8952 = vsel %vm1457, %v8694, 0.0
  %8953 = vadd.xlane.f32.xlu0 %v8952
  %v8954 = vpop.xlane.xlu0 %8953
  %v8955 = vsel %vm1457, %v8695, 0.0
  %8956 = vadd.xlane.f32.xlu0 %v8955
  %v8957 = vpop.xlane.xlu0 %8956
  %v8958 = vsel %vm1457, %v8696, 0.0
  %8959 = vadd.xlane.f32.xlu0 %v8958
  %v8960 = vpop.xlane.xlu0 %8959
  %v8961 = vsel %vm1457, %v8697, 0.0
  %8962 = vadd.xlane.f32.xlu0 %v8961
  %v8963 = vpop.xlane.xlu0 %8962
  %v8964 = vsel %vm1457, %v8698, 0.0
  %8965 = vadd.xlane.f32.xlu0 %v8964
  %v8966 = vpop.xlane.xlu0 %8965
  %v8967 = vsel %vm1457, %v8699, 0.0
  %8968 = vadd.xlane.f32.xlu0 %v8967
  %v8969 = vpop.xlane.xlu0 %8968
  %v8970 = vsel %vm1457, %v8700, 0.0
  %8971 = vadd.xlane.f32.xlu0 %v8970
  %v8972 = vpop.xlane.xlu0 %8971
  %v8973 = vsel %vm1457, %v8701, 0.0
  %8974 = vadd.xlane.f32.xlu0 %v8973
  %v8975 = vpop.xlane.xlu0 %8974
  %v8976 = vsel %vm1457, %v8702, 0.0
  %8977 = vadd.xlane.f32.xlu0 %v8976
  %v8978 = vpop.xlane.xlu0 %8977
  %v8979 = vsel %vm1457, %v8703, 0.0
  %8980 = vadd.xlane.f32.xlu0 %v8979
  %v8981 = vpop.xlane.xlu0 %8980
  %v8982 = vsel %vm1457, %v8704, 0.0
  %8983 = vadd.xlane.f32.xlu0 %v8982
  %v8984 = vpop.xlane.xlu0 %8983
  %v8985 = vsel %vm1457, %v8705, 0.0
  %8986 = vadd.xlane.f32.xlu0 %v8985
  %v8987 = vpop.xlane.xlu0 %8986
  %v8988 = vsel %vm1457, %v8706, 0.0
  %8989 = vadd.xlane.f32.xlu0 %v8988
  %v8990 = vpop.xlane.xlu0 %8989
  %v8991 = vsel %vm1457, %v8707, 0.0
  %8992 = vadd.xlane.f32.xlu0 %v8991
  %v8993 = vpop.xlane.xlu0 %8992
  %v8994 = vsel %vm1457, %v8708, 0.0
  %8995 = vadd.xlane.f32.xlu0 %v8994
  %v8996 = vpop.xlane.xlu0 %8995
  %v8997 = vsel %vm1457, %v8709, 0.0
  %8998 = vadd.xlane.f32.xlu0 %v8997
  %v8999 = vpop.xlane.xlu0 %8998
  %v9000 = vsel %vm1457, %v8710, 0.0
  %9001 = vadd.xlane.f32.xlu0 %v9000
  %v9002 = vpop.xlane.xlu0 %9001
  %v9003 = vsel %vm1457, %v8711, 0.0
  %9004 = vadd.xlane.f32.xlu0 %v9003
  %v9005 = vpop.xlane.xlu0 %9004
  %v9006 = vsel %vm1457, %v8712, 0.0
  %9007 = vadd.xlane.f32.xlu0 %v9006
  %v9008 = vpop.xlane.xlu0 %9007
  %v9009 = vsel %vm1457, %v8713, 0.0
  %9010 = vadd.xlane.f32.xlu0 %v9009
  %v9011 = vpop.xlane.xlu0 %9010
  %v9012 = vsel %vm1457, %v8714, 0.0
  %9013 = vadd.xlane.f32.xlu0 %v9012
  %v9014 = vpop.xlane.xlu0 %9013
  %v9015 = vsel %vm1457, %v8715, 0.0
  %9016 = vadd.xlane.f32.xlu0 %v9015
  %v9017 = vpop.xlane.xlu0 %9016
  %v9018 = vsel %vm1457, %v8716, 0.0
  %9019 = vadd.xlane.f32.xlu0 %v9018
  %v9020 = vpop.xlane.xlu0 %9019
  %v9021 = vsel %vm1457, %v8717, 0.0
  %9022 = vadd.xlane.f32.xlu0 %v9021
  %v9023 = vpop.xlane.xlu0 %9022
  %v9024 = vsel %vm1457, %v8718, 0.0
  %9025 = vadd.xlane.f32.xlu0 %v9024
  %v9026 = vpop.xlane.xlu0 %9025
  %v9027 = vsel %vm1457, %v8719, 0.0
  %9028 = vadd.xlane.f32.xlu0 %v9027
  %v9029 = vpop.xlane.xlu0 %9028
  %v9030 = vsel %vm1457, %v8720, 0.0
  %9031 = vadd.xlane.f32.xlu0 %v9030
  %v9032 = vpop.xlane.xlu0 %9031
  %v9033 = vsel %vm1457, %v8721, 0.0
  %9034 = vadd.xlane.f32.xlu0 %v9033
  %v9035 = vpop.xlane.xlu0 %9034
  %v9036 = vsel %vm1457, %v8722, 0.0
  %9037 = vadd.xlane.f32.xlu0 %v9036
  %v9038 = vpop.xlane.xlu0 %9037
  %v9039 = vsel %vm1457, %v8723, 0.0
  %9040 = vadd.xlane.f32.xlu0 %v9039
  %v9041 = vpop.xlane.xlu0 %9040
  %v9042 = vsel %vm1457, %v8724, 0.0
  %9043 = vadd.xlane.f32.xlu0 %v9042
  %v9044 = vpop.xlane.xlu0 %9043
  %v9045 = vsel %vm1457, %v8725, 0.0
  %9046 = vadd.xlane.f32.xlu0 %v9045
  %v9047 = vpop.xlane.xlu0 %9046
  %v9048 = vsel %vm1457, %v8726, 0.0
  %9049 = vadd.xlane.f32.xlu0 %v9048
  %v9050 = vpop.xlane.xlu0 %9049
  %v9051 = vsel %vm1457, %v8727, 0.0
  %9052 = vadd.xlane.f32.xlu0 %v9051
  %v9053 = vpop.xlane.xlu0 %9052
  %v9054 = vsel %vm1457, %v8728, 0.0
  %9055 = vadd.xlane.f32.xlu0 %v9054
  %v9056 = vpop.xlane.xlu0 %9055
  %v9057 = vsel %vm1457, %v8729, 0.0
  %9058 = vadd.xlane.f32.xlu0 %v9057
  %v9059 = vpop.xlane.xlu0 %9058
  %v9060 = vsel %vm1457, %v8730, 0.0
  %9061 = vadd.xlane.f32.xlu0 %v9060
  %v9062 = vpop.xlane.xlu0 %9061
  %v9063 = vsel %vm1457, %v8731, 0.0
  %9064 = vadd.xlane.f32.xlu0 %v9063
  %v9065 = vpop.xlane.xlu0 %9064
  %v9066 = vsel %vm1457, %v8732, 0.0
  %9067 = vadd.xlane.f32.xlu0 %v9066
  %v9068 = vpop.xlane.xlu0 %9067
  %v9069 = vsel %vm1457, %v8733, 0.0
  %9070 = vadd.xlane.f32.xlu0 %v9069
  %v9071 = vpop.xlane.xlu0 %9070
  %v9072 = vsel %vm1457, %v8734, 0.0
  %9073 = vadd.xlane.f32.xlu0 %v9072
  %v9074 = vpop.xlane.xlu0 %9073
  %v9075 = vsel %vm1457, %v8735, 0.0
  %9076 = vadd.xlane.f32.xlu0 %v9075
  %v9077 = vpop.xlane.xlu0 %9076
  %v9078 = vsel %vm1457, %v8736, 0.0
  %9079 = vadd.xlane.f32.xlu0 %v9078
  %v9080 = vpop.xlane.xlu0 %9079
  %v9081 = vsel %vm1457, %v8737, 0.0
  %9082 = vadd.xlane.f32.xlu0 %v9081
  %v9083 = vpop.xlane.xlu0 %9082
  %v9084 = vsel %vm1457, %v8738, 0.0
  %9085 = vadd.xlane.f32.xlu0 %v9084
  %v9086 = vpop.xlane.xlu0 %9085
  %v9087 = vsel %vm1457, %v8739, 0.0
  %9088 = vadd.xlane.f32.xlu0 %v9087
  %v9089 = vpop.xlane.xlu0 %9088
  %v9090 = vsel %vm1457, %v8740, 0.0
  %9091 = vadd.xlane.f32.xlu0 %v9090
  %v9092 = vpop.xlane.xlu0 %9091
  %v9093 = vsel %vm1457, %v8741, 0.0
  %9094 = vadd.xlane.f32.xlu0 %v9093
  %v9095 = vpop.xlane.xlu0 %9094
  %v9096 = vsel %vm1457, %v8742, 0.0
  %9097 = vadd.xlane.f32.xlu0 %v9096
  %v9098 = vpop.xlane.xlu0 %9097
  %v9099 = vsel %vm1457, %v8743, 0.0
  %9100 = vadd.xlane.f32.xlu0 %v9099
  %v9101 = vpop.xlane.xlu0 %9100
  %v9102 = vsel %vm1457, %v8744, 0.0
  %9103 = vadd.xlane.f32.xlu0 %v9102
  %v9104 = vpop.xlane.xlu0 %9103
  %v9105 = vsel %vm1457, %v8745, 0.0
  %9106 = vadd.xlane.f32.xlu0 %v9105
  %v9107 = vpop.xlane.xlu0 %9106
  %v9108 = vsel %vm1457, %v8746, 0.0
  %9109 = vadd.xlane.f32.xlu0 %v9108
  %v9110 = vpop.xlane.xlu0 %9109
  %v9111 = vsel %vm1457, %v8747, 0.0
  %9112 = vadd.xlane.f32.xlu0 %v9111
  %v9113 = vpop.xlane.xlu0 %9112
  %v9114 = vsel %vm1457, %v8748, 0.0
  %9115 = vadd.xlane.f32.xlu0 %v9114
  %v9116 = vpop.xlane.xlu0 %9115
  %v9117 = vsel %vm1457, %v8749, 0.0
  %9118 = vadd.xlane.f32.xlu0 %v9117
  %v9119 = vpop.xlane.xlu0 %9118
  %v9120 = vsel %vm1457, %v8750, 0.0
  %9121 = vadd.xlane.f32.xlu0 %v9120
  %v9122 = vpop.xlane.xlu0 %9121
  %v9123 = vsel %vm1457, %v8751, 0.0
  %9124 = vadd.xlane.f32.xlu0 %v9123
  %v9125 = vpop.xlane.xlu0 %9124
  %v9126 = vsel %vm1457, %v8752, 0.0
  %9127 = vadd.xlane.f32.xlu0 %v9126
  %v9128 = vpop.xlane.xlu0 %9127
  %v9129 = vsel %vm1457, %v8753, 0.0
  %9130 = vadd.xlane.f32.xlu0 %v9129
  %v9131 = vpop.xlane.xlu0 %9130
  %v9132 = vsel %vm1457, %v8754, 0.0
  %9133 = vadd.xlane.f32.xlu0 %v9132
  %v9134 = vpop.xlane.xlu0 %9133
  %v9135 = vsel %vm1457, %v8755, 0.0
  %9136 = vadd.xlane.f32.xlu0 %v9135
  %v9137 = vpop.xlane.xlu0 %9136
  %v9138 = vsel %vm1457, %v8756, 0.0
  %9139 = vadd.xlane.f32.xlu0 %v9138
  %v9140 = vpop.xlane.xlu0 %9139
  %v9269 = vlaneseq
  %v9270 = vshrl.u32 %v9269, 7
  %v9271 = vsub.s32 %v571, %v9270
  %v9272 = vrot.slane %v8759, %v9271
  %v9273 = vlaneseq
  %v9274 = vshrl.u32 %v9273, 7
  %v9275 = vsub.s32 %v1974, %v9274
  %v9276 = vrot.slane %v8762, %v9275
  %v9277 = vsel %vm1979, %v9276, %v9272
  %v9278 = vlaneseq
  %v9279 = vshrl.u32 %v9278, 7
  %v9280 = vsub.s32 %v1981, %v9279
  %v9281 = vrot.slane %v8765, %v9280
  %v9282 = vsel %vm1986, %v9281, %v9277
  %v9283 = vlaneseq
  %v9284 = vshrl.u32 %v9283, 7
  %v9285 = vsub.s32 %v1988, %v9284
  %v9286 = vrot.slane %v8768, %v9285
  %v9287 = vsel %vm1993, %v9286, %v9282
  %v9288 = vlaneseq
  %v9289 = vshrl.u32 %v9288, 7
  %v9290 = vsub.s32 %v571, %v9289
  %v9291 = vrot.slane %v8771, %v9290
  %v9292 = vlaneseq
  %v9293 = vshrl.u32 %v9292, 7
  %v9294 = vsub.s32 %v1974, %v9293
  %v9295 = vrot.slane %v8774, %v9294
  %v9296 = vsel %vm1979, %v9295, %v9291
  %v9297 = vlaneseq
  %v9298 = vshrl.u32 %v9297, 7
  %v9299 = vsub.s32 %v1981, %v9298
  %v9300 = vrot.slane %v8777, %v9299
  %v9301 = vsel %vm1986, %v9300, %v9296
  %v9302 = vlaneseq
  %v9303 = vshrl.u32 %v9302, 7
  %v9304 = vsub.s32 %v1988, %v9303
  %v9305 = vrot.slane %v8780, %v9304
  %v9306 = vsel %vm1993, %v9305, %v9301
  %v9307 = vlaneseq
  %v9308 = vshrl.u32 %v9307, 7
  %v9309 = vsub.s32 %v571, %v9308
  %v9310 = vrot.slane %v8783, %v9309
  %v9311 = vlaneseq
  %v9312 = vshrl.u32 %v9311, 7
  %v9313 = vsub.s32 %v1974, %v9312
  %v9314 = vrot.slane %v8786, %v9313
  %v9315 = vsel %vm1979, %v9314, %v9310
  %v9316 = vlaneseq
  %v9317 = vshrl.u32 %v9316, 7
  %v9318 = vsub.s32 %v1981, %v9317
  %v9319 = vrot.slane %v8789, %v9318
  %v9320 = vsel %vm1986, %v9319, %v9315
  %v9321 = vlaneseq
  %v9322 = vshrl.u32 %v9321, 7
  %v9323 = vsub.s32 %v1988, %v9322
  %v9324 = vrot.slane %v8792, %v9323
  %v9325 = vsel %vm1993, %v9324, %v9320
  %v9326 = vlaneseq
  %v9327 = vshrl.u32 %v9326, 7
  %v9328 = vsub.s32 %v571, %v9327
  %v9329 = vrot.slane %v8795, %v9328
  %v9330 = vlaneseq
  %v9331 = vshrl.u32 %v9330, 7
  %v9332 = vsub.s32 %v1974, %v9331
  %v9333 = vrot.slane %v8798, %v9332
  %v9334 = vsel %vm1979, %v9333, %v9329
  %v9335 = vlaneseq
  %v9336 = vshrl.u32 %v9335, 7
  %v9337 = vsub.s32 %v1981, %v9336
  %v9338 = vrot.slane %v8801, %v9337
  %v9339 = vsel %vm1986, %v9338, %v9334
  %v9340 = vlaneseq
  %v9341 = vshrl.u32 %v9340, 7
  %v9342 = vsub.s32 %v1988, %v9341
  %v9343 = vrot.slane %v8804, %v9342
  %v9344 = vsel %vm1993, %v9343, %v9339
  %v9345 = vlaneseq
  %v9346 = vshrl.u32 %v9345, 7
  %v9347 = vsub.s32 %v571, %v9346
  %v9348 = vrot.slane %v8807, %v9347
  %v9349 = vlaneseq
  %v9350 = vshrl.u32 %v9349, 7
  %v9351 = vsub.s32 %v1974, %v9350
  %v9352 = vrot.slane %v8810, %v9351
  %v9353 = vsel %vm1979, %v9352, %v9348
  %v9354 = vlaneseq
  %v9355 = vshrl.u32 %v9354, 7
  %v9356 = vsub.s32 %v1981, %v9355
  %v9357 = vrot.slane %v8813, %v9356
  %v9358 = vsel %vm1986, %v9357, %v9353
  %v9359 = vlaneseq
  %v9360 = vshrl.u32 %v9359, 7
  %v9361 = vsub.s32 %v1988, %v9360
  %v9362 = vrot.slane %v8816, %v9361
  %v9363 = vsel %vm1993, %v9362, %v9358
  %v9364 = vlaneseq
  %v9365 = vshrl.u32 %v9364, 7
  %v9366 = vsub.s32 %v571, %v9365
  %v9367 = vrot.slane %v8819, %v9366
  %v9368 = vlaneseq
  %v9369 = vshrl.u32 %v9368, 7
  %v9370 = vsub.s32 %v1974, %v9369
  %v9371 = vrot.slane %v8822, %v9370
  %v9372 = vsel %vm1979, %v9371, %v9367
  %v9373 = vlaneseq
  %v9374 = vshrl.u32 %v9373, 7
  %v9375 = vsub.s32 %v1981, %v9374
  %v9376 = vrot.slane %v8825, %v9375
  %v9377 = vsel %vm1986, %v9376, %v9372
  %v9378 = vlaneseq
  %v9379 = vshrl.u32 %v9378, 7
  %v9380 = vsub.s32 %v1988, %v9379
  %v9381 = vrot.slane %v8828, %v9380
  %v9382 = vsel %vm1993, %v9381, %v9377
  %v9383 = vlaneseq
  %v9384 = vshrl.u32 %v9383, 7
  %v9385 = vsub.s32 %v571, %v9384
  %v9386 = vrot.slane %v8831, %v9385
  %v9387 = vlaneseq
  %v9388 = vshrl.u32 %v9387, 7
  %v9389 = vsub.s32 %v1974, %v9388
  %v9390 = vrot.slane %v8834, %v9389
  %v9391 = vsel %vm1979, %v9390, %v9386
  %v9392 = vlaneseq
  %v9393 = vshrl.u32 %v9392, 7
  %v9394 = vsub.s32 %v1981, %v9393
  %v9395 = vrot.slane %v8837, %v9394
  %v9396 = vsel %vm1986, %v9395, %v9391
  %v9397 = vlaneseq
  %v9398 = vshrl.u32 %v9397, 7
  %v9399 = vsub.s32 %v1988, %v9398
  %v9400 = vrot.slane %v8840, %v9399
  %v9401 = vsel %vm1993, %v9400, %v9396
  %v9402 = vlaneseq
  %v9403 = vshrl.u32 %v9402, 7
  %v9404 = vsub.s32 %v571, %v9403
  %v9405 = vrot.slane %v8843, %v9404
  %v9406 = vlaneseq
  %v9407 = vshrl.u32 %v9406, 7
  %v9408 = vsub.s32 %v1974, %v9407
  %v9409 = vrot.slane %v8846, %v9408
  %v9410 = vsel %vm1979, %v9409, %v9405
  %v9411 = vlaneseq
  %v9412 = vshrl.u32 %v9411, 7
  %v9413 = vsub.s32 %v1981, %v9412
  %v9414 = vrot.slane %v8849, %v9413
  %v9415 = vsel %vm1986, %v9414, %v9410
  %v9416 = vlaneseq
  %v9417 = vshrl.u32 %v9416, 7
  %v9418 = vsub.s32 %v1988, %v9417
  %v9419 = vrot.slane %v8852, %v9418
  %v9420 = vsel %vm1993, %v9419, %v9415
  %v9421 = vlaneseq
  %v9422 = vshrl.u32 %v9421, 7
  %v9423 = vsub.s32 %v571, %v9422
  %v9424 = vrot.slane %v8855, %v9423
  %v9425 = vlaneseq
  %v9426 = vshrl.u32 %v9425, 7
  %v9427 = vsub.s32 %v1974, %v9426
  %v9428 = vrot.slane %v8858, %v9427
  %v9429 = vsel %vm1979, %v9428, %v9424
  %v9430 = vlaneseq
  %v9431 = vshrl.u32 %v9430, 7
  %v9432 = vsub.s32 %v1981, %v9431
  %v9433 = vrot.slane %v8861, %v9432
  %v9434 = vsel %vm1986, %v9433, %v9429
  %v9435 = vlaneseq
  %v9436 = vshrl.u32 %v9435, 7
  %v9437 = vsub.s32 %v1988, %v9436
  %v9438 = vrot.slane %v8864, %v9437
  %v9439 = vsel %vm1993, %v9438, %v9434
  %v9440 = vlaneseq
  %v9441 = vshrl.u32 %v9440, 7
  %v9442 = vsub.s32 %v571, %v9441
  %v9443 = vrot.slane %v8867, %v9442
  %v9444 = vlaneseq
  %v9445 = vshrl.u32 %v9444, 7
  %v9446 = vsub.s32 %v1974, %v9445
  %v9447 = vrot.slane %v8870, %v9446
  %v9448 = vsel %vm1979, %v9447, %v9443
  %v9449 = vlaneseq
  %v9450 = vshrl.u32 %v9449, 7
  %v9451 = vsub.s32 %v1981, %v9450
  %v9452 = vrot.slane %v8873, %v9451
  %v9453 = vsel %vm1986, %v9452, %v9448
  %v9454 = vlaneseq
  %v9455 = vshrl.u32 %v9454, 7
  %v9456 = vsub.s32 %v1988, %v9455
  %v9457 = vrot.slane %v8876, %v9456
  %v9458 = vsel %vm1993, %v9457, %v9453
  %v9459 = vlaneseq
  %v9460 = vshrl.u32 %v9459, 7
  %v9461 = vsub.s32 %v571, %v9460
  %v9462 = vrot.slane %v8879, %v9461
  %v9463 = vlaneseq
  %v9464 = vshrl.u32 %v9463, 7
  %v9465 = vsub.s32 %v1974, %v9464
  %v9466 = vrot.slane %v8882, %v9465
  %v9467 = vsel %vm1979, %v9466, %v9462
  %v9468 = vlaneseq
  %v9469 = vshrl.u32 %v9468, 7
  %v9470 = vsub.s32 %v1981, %v9469
  %v9471 = vrot.slane %v8885, %v9470
  %v9472 = vsel %vm1986, %v9471, %v9467
  %v9473 = vlaneseq
  %v9474 = vshrl.u32 %v9473, 7
  %v9475 = vsub.s32 %v1988, %v9474
  %v9476 = vrot.slane %v8888, %v9475
  %v9477 = vsel %vm1993, %v9476, %v9472
  %v9478 = vlaneseq
  %v9479 = vshrl.u32 %v9478, 7
  %v9480 = vsub.s32 %v571, %v9479
  %v9481 = vrot.slane %v8891, %v9480
  %v9482 = vlaneseq
  %v9483 = vshrl.u32 %v9482, 7
  %v9484 = vsub.s32 %v1974, %v9483
  %v9485 = vrot.slane %v8894, %v9484
  %v9486 = vsel %vm1979, %v9485, %v9481
  %v9487 = vlaneseq
  %v9488 = vshrl.u32 %v9487, 7
  %v9489 = vsub.s32 %v1981, %v9488
  %v9490 = vrot.slane %v8897, %v9489
  %v9491 = vsel %vm1986, %v9490, %v9486
  %v9492 = vlaneseq
  %v9493 = vshrl.u32 %v9492, 7
  %v9494 = vsub.s32 %v1988, %v9493
  %v9495 = vrot.slane %v8900, %v9494
  %v9496 = vsel %vm1993, %v9495, %v9491
  %v9497 = vlaneseq
  %v9498 = vshrl.u32 %v9497, 7
  %v9499 = vsub.s32 %v571, %v9498
  %v9500 = vrot.slane %v8903, %v9499
  %v9501 = vlaneseq
  %v9502 = vshrl.u32 %v9501, 7
  %v9503 = vsub.s32 %v1974, %v9502
  %v9504 = vrot.slane %v8906, %v9503
  %v9505 = vsel %vm1979, %v9504, %v9500
  %v9506 = vlaneseq
  %v9507 = vshrl.u32 %v9506, 7
  %v9508 = vsub.s32 %v1981, %v9507
  %v9509 = vrot.slane %v8909, %v9508
  %v9510 = vsel %vm1986, %v9509, %v9505
  %v9511 = vlaneseq
  %v9512 = vshrl.u32 %v9511, 7
  %v9513 = vsub.s32 %v1988, %v9512
  %v9514 = vrot.slane %v8912, %v9513
  %v9515 = vsel %vm1993, %v9514, %v9510
  %v9516 = vlaneseq
  %v9517 = vshrl.u32 %v9516, 7
  %v9518 = vsub.s32 %v571, %v9517
  %v9519 = vrot.slane %v8915, %v9518
  %v9520 = vlaneseq
  %v9521 = vshrl.u32 %v9520, 7
  %v9522 = vsub.s32 %v1974, %v9521
  %v9523 = vrot.slane %v8918, %v9522
  %v9524 = vsel %vm1979, %v9523, %v9519
  %v9525 = vlaneseq
  %v9526 = vshrl.u32 %v9525, 7
  %v9527 = vsub.s32 %v1981, %v9526
  %v9528 = vrot.slane %v8921, %v9527
  %v9529 = vsel %vm1986, %v9528, %v9524
  %v9530 = vlaneseq
  %v9531 = vshrl.u32 %v9530, 7
  %v9532 = vsub.s32 %v1988, %v9531
  %v9533 = vrot.slane %v8924, %v9532
  %v9534 = vsel %vm1993, %v9533, %v9529
  %v9535 = vlaneseq
  %v9536 = vshrl.u32 %v9535, 7
  %v9537 = vsub.s32 %v571, %v9536
  %v9538 = vrot.slane %v8927, %v9537
  %v9539 = vlaneseq
  %v9540 = vshrl.u32 %v9539, 7
  %v9541 = vsub.s32 %v1974, %v9540
  %v9542 = vrot.slane %v8930, %v9541
  %v9543 = vsel %vm1979, %v9542, %v9538
  %v9544 = vlaneseq
  %v9545 = vshrl.u32 %v9544, 7
  %v9546 = vsub.s32 %v1981, %v9545
  %v9547 = vrot.slane %v8933, %v9546
  %v9548 = vsel %vm1986, %v9547, %v9543
  %v9549 = vlaneseq
  %v9550 = vshrl.u32 %v9549, 7
  %v9551 = vsub.s32 %v1988, %v9550
  %v9552 = vrot.slane %v8936, %v9551
  %v9553 = vsel %vm1993, %v9552, %v9548
  %v9554 = vlaneseq
  %v9555 = vshrl.u32 %v9554, 7
  %v9556 = vsub.s32 %v571, %v9555
  %v9557 = vrot.slane %v8939, %v9556
  %v9558 = vlaneseq
  %v9559 = vshrl.u32 %v9558, 7
  %v9560 = vsub.s32 %v1974, %v9559
  %v9561 = vrot.slane %v8942, %v9560
  %v9562 = vsel %vm1979, %v9561, %v9557
  %v9563 = vlaneseq
  %v9564 = vshrl.u32 %v9563, 7
  %v9565 = vsub.s32 %v1981, %v9564
  %v9566 = vrot.slane %v8945, %v9565
  %v9567 = vsel %vm1986, %v9566, %v9562
  %v9568 = vlaneseq
  %v9569 = vshrl.u32 %v9568, 7
  %v9570 = vsub.s32 %v1988, %v9569
  %v9571 = vrot.slane %v8948, %v9570
  %v9572 = vsel %vm1993, %v9571, %v9567
  %v9573 = vlaneseq
  %v9574 = vshrl.u32 %v9573, 7
  %v9575 = vsub.s32 %v571, %v9574
  %v9576 = vrot.slane %v8951, %v9575
  %v9577 = vlaneseq
  %v9578 = vshrl.u32 %v9577, 7
  %v9579 = vsub.s32 %v1974, %v9578
  %v9580 = vrot.slane %v8954, %v9579
  %v9581 = vsel %vm1979, %v9580, %v9576
  %v9582 = vlaneseq
  %v9583 = vshrl.u32 %v9582, 7
  %v9584 = vsub.s32 %v1981, %v9583
  %v9585 = vrot.slane %v8957, %v9584
  %v9586 = vsel %vm1986, %v9585, %v9581
  %v9587 = vlaneseq
  %v9588 = vshrl.u32 %v9587, 7
  %v9589 = vsub.s32 %v1988, %v9588
  %v9590 = vrot.slane %v8960, %v9589
  %v9591 = vsel %vm1993, %v9590, %v9586
  %v9592 = vlaneseq
  %v9593 = vshrl.u32 %v9592, 7
  %v9594 = vsub.s32 %v571, %v9593
  %v9595 = vrot.slane %v8963, %v9594
  %v9596 = vlaneseq
  %v9597 = vshrl.u32 %v9596, 7
  %v9598 = vsub.s32 %v1974, %v9597
  %v9599 = vrot.slane %v8966, %v9598
  %v9600 = vsel %vm1979, %v9599, %v9595
  %v9601 = vlaneseq
  %v9602 = vshrl.u32 %v9601, 7
  %v9603 = vsub.s32 %v1981, %v9602
  %v9604 = vrot.slane %v8969, %v9603
  %v9605 = vsel %vm1986, %v9604, %v9600
  %v9606 = vlaneseq
  %v9607 = vshrl.u32 %v9606, 7
  %v9608 = vsub.s32 %v1988, %v9607
  %v9609 = vrot.slane %v8972, %v9608
  %v9610 = vsel %vm1993, %v9609, %v9605
  %v9611 = vlaneseq
  %v9612 = vshrl.u32 %v9611, 7
  %v9613 = vsub.s32 %v571, %v9612
  %v9614 = vrot.slane %v8975, %v9613
  %v9615 = vlaneseq
  %v9616 = vshrl.u32 %v9615, 7
  %v9617 = vsub.s32 %v1974, %v9616
  %v9618 = vrot.slane %v8978, %v9617
  %v9619 = vsel %vm1979, %v9618, %v9614
  %v9620 = vlaneseq
  %v9621 = vshrl.u32 %v9620, 7
  %v9622 = vsub.s32 %v1981, %v9621
  %v9623 = vrot.slane %v8981, %v9622
  %v9624 = vsel %vm1986, %v9623, %v9619
  %v9625 = vlaneseq
  %v9626 = vshrl.u32 %v9625, 7
  %v9627 = vsub.s32 %v1988, %v9626
  %v9628 = vrot.slane %v8984, %v9627
  %v9629 = vsel %vm1993, %v9628, %v9624
  %v9630 = vlaneseq
  %v9631 = vshrl.u32 %v9630, 7
  %v9632 = vsub.s32 %v571, %v9631
  %v9633 = vrot.slane %v8987, %v9632
  %v9634 = vlaneseq
  %v9635 = vshrl.u32 %v9634, 7
  %v9636 = vsub.s32 %v1974, %v9635
  %v9637 = vrot.slane %v8990, %v9636
  %v9638 = vsel %vm1979, %v9637, %v9633
  %v9639 = vlaneseq
  %v9640 = vshrl.u32 %v9639, 7
  %v9641 = vsub.s32 %v1981, %v9640
  %v9642 = vrot.slane %v8993, %v9641
  %v9643 = vsel %vm1986, %v9642, %v9638
  %v9644 = vlaneseq
  %v9645 = vshrl.u32 %v9644, 7
  %v9646 = vsub.s32 %v1988, %v9645
  %v9647 = vrot.slane %v8996, %v9646
  %v9648 = vsel %vm1993, %v9647, %v9643
  %v9649 = vlaneseq
  %v9650 = vshrl.u32 %v9649, 7
  %v9651 = vsub.s32 %v571, %v9650
  %v9652 = vrot.slane %v8999, %v9651
  %v9653 = vlaneseq
  %v9654 = vshrl.u32 %v9653, 7
  %v9655 = vsub.s32 %v1974, %v9654
  %v9656 = vrot.slane %v9002, %v9655
  %v9657 = vsel %vm1979, %v9656, %v9652
  %v9658 = vlaneseq
  %v9659 = vshrl.u32 %v9658, 7
  %v9660 = vsub.s32 %v1981, %v9659
  %v9661 = vrot.slane %v9005, %v9660
  %v9662 = vsel %vm1986, %v9661, %v9657
  %v9663 = vlaneseq
  %v9664 = vshrl.u32 %v9663, 7
  %v9665 = vsub.s32 %v1988, %v9664
  %v9666 = vrot.slane %v9008, %v9665
  %v9667 = vsel %vm1993, %v9666, %v9662
  %v9668 = vlaneseq
  %v9669 = vshrl.u32 %v9668, 7
  %v9670 = vsub.s32 %v571, %v9669
  %v9671 = vrot.slane %v9011, %v9670
  %v9672 = vlaneseq
  %v9673 = vshrl.u32 %v9672, 7
  %v9674 = vsub.s32 %v1974, %v9673
  %v9675 = vrot.slane %v9014, %v9674
  %v9676 = vsel %vm1979, %v9675, %v9671
  %v9677 = vlaneseq
  %v9678 = vshrl.u32 %v9677, 7
  %v9679 = vsub.s32 %v1981, %v9678
  %v9680 = vrot.slane %v9017, %v9679
  %v9681 = vsel %vm1986, %v9680, %v9676
  %v9682 = vlaneseq
  %v9683 = vshrl.u32 %v9682, 7
  %v9684 = vsub.s32 %v1988, %v9683
  %v9685 = vrot.slane %v9020, %v9684
  %v9686 = vsel %vm1993, %v9685, %v9681
  %v9687 = vlaneseq
  %v9688 = vshrl.u32 %v9687, 7
  %v9689 = vsub.s32 %v571, %v9688
  %v9690 = vrot.slane %v9023, %v9689
  %v9691 = vlaneseq
  %v9692 = vshrl.u32 %v9691, 7
  %v9693 = vsub.s32 %v1974, %v9692
  %v9694 = vrot.slane %v9026, %v9693
  %v9695 = vsel %vm1979, %v9694, %v9690
  %v9696 = vlaneseq
  %v9697 = vshrl.u32 %v9696, 7
  %v9698 = vsub.s32 %v1981, %v9697
  %v9699 = vrot.slane %v9029, %v9698
  %v9700 = vsel %vm1986, %v9699, %v9695
  %v9701 = vlaneseq
  %v9702 = vshrl.u32 %v9701, 7
  %v9703 = vsub.s32 %v1988, %v9702
  %v9704 = vrot.slane %v9032, %v9703
  %v9705 = vsel %vm1993, %v9704, %v9700
  %v9706 = vlaneseq
  %v9707 = vshrl.u32 %v9706, 7
  %v9708 = vsub.s32 %v571, %v9707
  %v9709 = vrot.slane %v9035, %v9708
  %v9710 = vlaneseq
  %v9711 = vshrl.u32 %v9710, 7
  %v9712 = vsub.s32 %v1974, %v9711
  %v9713 = vrot.slane %v9038, %v9712
  %v9714 = vsel %vm1979, %v9713, %v9709
  %v9715 = vlaneseq
  %v9716 = vshrl.u32 %v9715, 7
  %v9717 = vsub.s32 %v1981, %v9716
  %v9718 = vrot.slane %v9041, %v9717
  %v9719 = vsel %vm1986, %v9718, %v9714
  %v9720 = vlaneseq
  %v9721 = vshrl.u32 %v9720, 7
  %v9722 = vsub.s32 %v1988, %v9721
  %v9723 = vrot.slane %v9044, %v9722
  %v9724 = vsel %vm1993, %v9723, %v9719
  %v9725 = vlaneseq
  %v9726 = vshrl.u32 %v9725, 7
  %v9727 = vsub.s32 %v571, %v9726
  %v9728 = vrot.slane %v9047, %v9727
  %v9729 = vlaneseq
  %v9730 = vshrl.u32 %v9729, 7
  %v9731 = vsub.s32 %v1974, %v9730
  %v9732 = vrot.slane %v9050, %v9731
  %v9733 = vsel %vm1979, %v9732, %v9728
  %v9734 = vlaneseq
  %v9735 = vshrl.u32 %v9734, 7
  %v9736 = vsub.s32 %v1981, %v9735
  %v9737 = vrot.slane %v9053, %v9736
  %v9738 = vsel %vm1986, %v9737, %v9733
  %v9739 = vlaneseq
  %v9740 = vshrl.u32 %v9739, 7
  %v9741 = vsub.s32 %v1988, %v9740
  %v9742 = vrot.slane %v9056, %v9741
  %v9743 = vsel %vm1993, %v9742, %v9738
  %v9744 = vlaneseq
  %v9745 = vshrl.u32 %v9744, 7
  %v9746 = vsub.s32 %v571, %v9745
  %v9747 = vrot.slane %v9059, %v9746
  %v9748 = vlaneseq
  %v9749 = vshrl.u32 %v9748, 7
  %v9750 = vsub.s32 %v1974, %v9749
  %v9751 = vrot.slane %v9062, %v9750
  %v9752 = vsel %vm1979, %v9751, %v9747
  %v9753 = vlaneseq
  %v9754 = vshrl.u32 %v9753, 7
  %v9755 = vsub.s32 %v1981, %v9754
  %v9756 = vrot.slane %v9065, %v9755
  %v9757 = vsel %vm1986, %v9756, %v9752
  %v9758 = vlaneseq
  %v9759 = vshrl.u32 %v9758, 7
  %v9760 = vsub.s32 %v1988, %v9759
  %v9761 = vrot.slane %v9068, %v9760
  %v9762 = vsel %vm1993, %v9761, %v9757
  %v9763 = vlaneseq
  %v9764 = vshrl.u32 %v9763, 7
  %v9765 = vsub.s32 %v571, %v9764
  %v9766 = vrot.slane %v9071, %v9765
  %v9767 = vlaneseq
  %v9768 = vshrl.u32 %v9767, 7
  %v9769 = vsub.s32 %v1974, %v9768
  %v9770 = vrot.slane %v9074, %v9769
  %v9771 = vsel %vm1979, %v9770, %v9766
  %v9772 = vlaneseq
  %v9773 = vshrl.u32 %v9772, 7
  %v9774 = vsub.s32 %v1981, %v9773
  %v9775 = vrot.slane %v9077, %v9774
  %v9776 = vsel %vm1986, %v9775, %v9771
  %v9777 = vlaneseq
  %v9778 = vshrl.u32 %v9777, 7
  %v9779 = vsub.s32 %v1988, %v9778
  %v9780 = vrot.slane %v9080, %v9779
  %v9781 = vsel %vm1993, %v9780, %v9776
  %v9782 = vlaneseq
  %v9783 = vshrl.u32 %v9782, 7
  %v9784 = vsub.s32 %v571, %v9783
  %v9785 = vrot.slane %v9083, %v9784
  %v9786 = vlaneseq
  %v9787 = vshrl.u32 %v9786, 7
  %v9788 = vsub.s32 %v1974, %v9787
  %v9789 = vrot.slane %v9086, %v9788
  %v9790 = vsel %vm1979, %v9789, %v9785
  %v9791 = vlaneseq
  %v9792 = vshrl.u32 %v9791, 7
  %v9793 = vsub.s32 %v1981, %v9792
  %v9794 = vrot.slane %v9089, %v9793
  %v9795 = vsel %vm1986, %v9794, %v9790
  %v9796 = vlaneseq
  %v9797 = vshrl.u32 %v9796, 7
  %v9798 = vsub.s32 %v1988, %v9797
  %v9799 = vrot.slane %v9092, %v9798
  %v9800 = vsel %vm1993, %v9799, %v9795
  %v9801 = vlaneseq
  %v9802 = vshrl.u32 %v9801, 7
  %v9803 = vsub.s32 %v571, %v9802
  %v9804 = vrot.slane %v9095, %v9803
  %v9805 = vlaneseq
  %v9806 = vshrl.u32 %v9805, 7
  %v9807 = vsub.s32 %v1974, %v9806
  %v9808 = vrot.slane %v9098, %v9807
  %v9809 = vsel %vm1979, %v9808, %v9804
  %v9810 = vlaneseq
  %v9811 = vshrl.u32 %v9810, 7
  %v9812 = vsub.s32 %v1981, %v9811
  %v9813 = vrot.slane %v9101, %v9812
  %v9814 = vsel %vm1986, %v9813, %v9809
  %v9815 = vlaneseq
  %v9816 = vshrl.u32 %v9815, 7
  %v9817 = vsub.s32 %v1988, %v9816
  %v9818 = vrot.slane %v9104, %v9817
  %v9819 = vsel %vm1993, %v9818, %v9814
  %v9820 = vlaneseq
  %v9821 = vshrl.u32 %v9820, 7
  %v9822 = vsub.s32 %v571, %v9821
  %v9823 = vrot.slane %v9107, %v9822
  %v9824 = vlaneseq
  %v9825 = vshrl.u32 %v9824, 7
  %v9826 = vsub.s32 %v1974, %v9825
  %v9827 = vrot.slane %v9110, %v9826
  %v9828 = vsel %vm1979, %v9827, %v9823
  %v9829 = vlaneseq
  %v9830 = vshrl.u32 %v9829, 7
  %v9831 = vsub.s32 %v1981, %v9830
  %v9832 = vrot.slane %v9113, %v9831
  %v9833 = vsel %vm1986, %v9832, %v9828
  %v9834 = vlaneseq
  %v9835 = vshrl.u32 %v9834, 7
  %v9836 = vsub.s32 %v1988, %v9835
  %v9837 = vrot.slane %v9116, %v9836
  %v9838 = vsel %vm1993, %v9837, %v9833
  %v9839 = vlaneseq
  %v9840 = vshrl.u32 %v9839, 7
  %v9841 = vsub.s32 %v571, %v9840
  %v9842 = vrot.slane %v9119, %v9841
  %v9843 = vlaneseq
  %v9844 = vshrl.u32 %v9843, 7
  %v9845 = vsub.s32 %v1974, %v9844
  %v9846 = vrot.slane %v9122, %v9845
  %v9847 = vsel %vm1979, %v9846, %v9842
  %v9848 = vlaneseq
  %v9849 = vshrl.u32 %v9848, 7
  %v9850 = vsub.s32 %v1981, %v9849
  %v9851 = vrot.slane %v9125, %v9850
  %v9852 = vsel %vm1986, %v9851, %v9847
  %v9853 = vlaneseq
  %v9854 = vshrl.u32 %v9853, 7
  %v9855 = vsub.s32 %v1988, %v9854
  %v9856 = vrot.slane %v9128, %v9855
  %v9857 = vsel %vm1993, %v9856, %v9852
  %v9858 = vlaneseq
  %v9859 = vshrl.u32 %v9858, 7
  %v9860 = vsub.s32 %v571, %v9859
  %v9861 = vrot.slane %v9131, %v9860
  %v9862 = vlaneseq
  %v9863 = vshrl.u32 %v9862, 7
  %v9864 = vsub.s32 %v1974, %v9863
  %v9865 = vrot.slane %v9134, %v9864
  %v9866 = vsel %vm1979, %v9865, %v9861
  %v9867 = vlaneseq
  %v9868 = vshrl.u32 %v9867, 7
  %v9869 = vsub.s32 %v1981, %v9868
  %v9870 = vrot.slane %v9137, %v9869
  %v9871 = vsel %vm1986, %v9870, %v9866
  %v9872 = vlaneseq
  %v9873 = vshrl.u32 %v9872, 7
  %v9874 = vsub.s32 %v1988, %v9873
  %v9875 = vrot.slane %v9140, %v9874
  %v9876 = vsel %vm1993, %v9875, %v9871
  %v9877 = vsel %vm2584, %v9306, %v9287
  %v9878 = vsel %vm2586, %v9325, %v9877
  %v9879 = vsel %vm2588, %v9344, %v9878
  %v9880 = vsel %vm2590, %v9363, %v9879
  %v9881 = vsel %vm2592, %v9382, %v9880
  %v9882 = vsel %vm2594, %v9401, %v9881
  %v9883 = vsel %vm2596, %v9420, %v9882
  %v9884 = vsel %vm2584, %v9458, %v9439
  %v9885 = vsel %vm2586, %v9477, %v9884
  %v9886 = vsel %vm2588, %v9496, %v9885
  %v9887 = vsel %vm2590, %v9515, %v9886
  %v9888 = vsel %vm2592, %v9534, %v9887
  %v9889 = vsel %vm2594, %v9553, %v9888
  %v9890 = vsel %vm2596, %v9572, %v9889
  %v9891 = vsel %vm2584, %v9610, %v9591
  %v9892 = vsel %vm2586, %v9629, %v9891
  %v9893 = vsel %vm2588, %v9648, %v9892
  %v9894 = vsel %vm2590, %v9667, %v9893
  %v9895 = vsel %vm2592, %v9686, %v9894
  %v9896 = vsel %vm2594, %v9705, %v9895
  %v9897 = vsel %vm2596, %v9724, %v9896
  %v9898 = vsel %vm2584, %v9762, %v9743
  %v9899 = vsel %vm2586, %v9781, %v9898
  %v9900 = vsel %vm2588, %v9800, %v9899
  %v9901 = vsel %vm2590, %v9819, %v9900
  %v9902 = vsel %vm2592, %v9838, %v9901
  %v9903 = vsel %vm2594, %v9857, %v9902
  %v9904 = vsel %vm2596, %v9876, %v9903
  %v9909 = vsel %vm1457, %v8069, 0
  %v9911 = vsel %vm1457, %v8070, 0
  %v9913 = vsel %vm1457, %v8071, 0
  %v9915 = vsel %vm1457, %v8072, 0
  %v9918 = vsel %vm1457, %v8153, 0
  %v9921 = vsel %vm1457, %v8158, 0
  %v9924 = vsel %vm1457, %v8163, 0
  %v9927 = vsel %vm1457, %v8168, 0
  %9929 = vmatprep.subr.mxu0 0.0
  %9930 = vmatpush1.xpose.msra.mxu0 %v9918
  %9931 = vmatprep.subr.mxu0 0.0
  %9932 = vmatpush1.xpose.msra.mxu0 %v9921
  %9933 = vmatprep.subr.mxu0 0.0
  %9934 = vmatpush1.xpose.msra.mxu0 %v9924
  %9935 = vmatprep.subr.mxu0 0.0
  %9936 = vmatpush1.xpose.msra.mxu0 %v9927
  %9937 = vmatprep.subr.mxu0 0.0
  %9938 = vmatpush1.xpose.msra.mxu0 0.0
  %9939 = vmatprep.subr.mxu0 0.0
  %9940 = vmatpush1.xpose.msra.mxu0 0.0
  %9941 = vmatprep.subr.mxu0 0.0
  %9942 = vmatpush1.xpose.msra.mxu0 0.0
  %9943 = vmatprep.subr.mxu0 0.0
  %9944 = vmatpush1.xpose.msra.mxu0 0.0
  %9945 = vmatprep.subr.mxu0 0.0
  %9946 = vmatpush1.xpose.msra.mxu0 0.0
  %9947 = vmatprep.subr.mxu0 0.0
  %9948 = vmatpush1.xpose.msra.mxu0 0.0
  %9949 = vmatprep.subr.mxu0 0.0
  %9950 = vmatpush1.xpose.msra.mxu0 0.0
  %9951 = vmatprep.subr.mxu0 0.0
  %9952 = vmatpush1.xpose.msra.mxu0 0.0
  %9953 = vmatprep.subr.mxu0 0.0
  %9954 = vmatpush1.xpose.msra.mxu0 0.0
  %9955 = vmatprep.subr.mxu0 0.0
  %9956 = vmatpush1.xpose.msra.mxu0 0.0
  %9957 = vmatprep.subr.mxu0 0.0
  %9958 = vmatpush1.xpose.msra.mxu0 0.0
  %9959 = vmatprep.subr.mxu0 0.0
  %9960 = vmatpush1.xpose.msra.mxu0 0.0
  %9961 = vmatprep.subr.mxu0 0.0
  %9962 = vmatpush1.xpose.msra.mxu0 0.0
  %9963 = vmatprep.subr.mxu0 0.0
  %9964 = vmatpush1.xpose.msra.mxu0 0.0
  %9965 = vmatprep.subr.mxu0 0.0
  %9966 = vmatpush1.xpose.msra.mxu0 0.0
  %9967 = vmatprep.subr.mxu0 0.0
  %9968 = vmatpush1.xpose.msra.mxu0 0.0
  %9969 = vmatprep.subr.mxu0 0.0
  %9970 = vmatpush1.xpose.msra.mxu0 0.0
  %9971 = vmatprep.subr.mxu0 0.0
  %9972 = vmatpush1.xpose.msra.mxu0 0.0
  %9973 = vmatprep.subr.mxu0 0.0
  %9974 = vmatpush1.xpose.msra.mxu0 0.0
  %9975 = vmatprep.subr.mxu0 0.0
  %9976 = vmatpush1.xpose.msra.mxu0 0.0
  %9977 = vmatprep.subr.mxu0 0.0
  %9978 = vmatpush1.xpose.msra.mxu0 0.0
  %9979 = vmatprep.subr.mxu0 0.0
  %9980 = vmatpush1.xpose.msra.mxu0 0.0
  %9981 = vmatprep.subr.mxu0 0.0
  %9982 = vmatpush1.xpose.msra.mxu0 0.0
  %9983 = vmatprep.subr.mxu0 0.0
  %9984 = vmatpush1.xpose.msra.mxu0 0.0
  %9985 = vmatprep.subr.mxu0 0.0
  %9986 = vmatpush1.xpose.msra.mxu0 0.0
  %9987 = vmatprep.subr.mxu0 0.0
  %9988 = vmatpush1.xpose.msra.mxu0 0.0
  %9989 = vmatprep.subr.mxu0 0.0
  %9990 = vmatpush1.xpose.msra.mxu0 0.0
  %9991 = vmatprep.subr.mxu0 0.0
  %9992 = vmatpush1.xpose.msra.mxu0 0.0
  %9993 = vmatprep.mubr.f32.mxu0 0.0
  %9994 = vmatmul.mubr.f32.gmra.mrb[0].mxu0 %v9909
  %v9995 = vpop.f32.mrb[0].mxu0
  %v9996 = vadd.f32 %v9883, %v9995
  %v9997 = vpop.f32.mrb[0].mxu0
  %9998 = vmatprep.mubr.f32.mxu0 0.0
  %9999 = vmatmul.mubr.f32.gmra.mrb[0].mxu0 %v9911
  %v10000 = vpop.f32.mrb[0].mxu0
  %v10001 = vadd.f32 %v9890, %v10000
  %v10002 = vpop.f32.mrb[0].mxu0
  %10003 = vmatprep.mubr.f32.mxu0 0.0
  %10004 = vmatmul.mubr.f32.gmra.mrb[0].mxu0 %v9913
  %v10005 = vpop.f32.mrb[0].mxu0
  %v10006 = vadd.f32 %v9897, %v10005
  %v10007 = vpop.f32.mrb[0].mxu0
  %10008 = vmatprep.mubr.f32.mxu0 0.0
  %10009 = vmatmul.mubr.f32.gmra.mrb[0].mxu0 %v9915
  %v10010 = vpop.f32.mrb[0].mxu0
  %v10011 = vadd.f32 %v9904, %v10010
  %v10012 = vpop.f32.mrb[0].mxu0
  %10013 = vdwg.mxu0
  %v10014 = vadd.f32 %v9996, %v581
  %v10015 = vadd.f32 %v10001, %v582
  %v10016 = vadd.f32 %v10006, %v583
  %v10017 = vadd.f32 %v10011, %v584
  %v10018 = vsel %vm450, %v10014, -inf
  %10019 = vmax.xlane.f32.xlu0 %v10018
  %v10020 = vpop.xlane.xlu0 %10019
  %v10021 = vsel %vm450, %v10015, -inf
  %10022 = vmax.xlane.f32.xlu0 %v10021
  %v10023 = vpop.xlane.xlu0 %10022
  %v10024 = vsel %vm450, %v10016, -inf
  %10025 = vmax.xlane.f32.xlu0 %v10024
  %v10026 = vpop.xlane.xlu0 %10025
  %v10027 = vsel %vm450, %v10017, -inf
  %10028 = vmax.xlane.f32.xlu0 %v10027
  %v10029 = vpop.xlane.xlu0 %10028
  %v10030 = vsub.f32 %v10014, %v10020
  %v10031 = vsub.f32 %v10015, %v10023
  %v10032 = vsub.f32 %v10016, %v10026
  %v10033 = vsub.f32 %v10017, %v10029
  %v10034 = vmul.f32 %v10030, 1.442695
  %v10035 = vpow.pop %v10034
  %v10036 = vmul.f32 %v10031, 1.442695
  %v10037 = vpow.pop %v10036
  %v10038 = vmul.f32 %v10032, 1.442695
  %v10039 = vpow.pop %v10038
  %v10040 = vmul.f32 %v10033, 1.442695
  %v10041 = vpow.pop %v10040
  %v10042 = vsel %vm450, %v10035, 0.0
  %10043 = vadd.xlane.f32.xlu0 %v10042
  %v10044 = vpop.xlane.xlu0 %10043
  %v10045 = vsel %vm450, %v10037, 0.0
  %10046 = vadd.xlane.f32.xlu0 %v10045
  %v10047 = vpop.xlane.xlu0 %10046
  %v10048 = vsel %vm450, %v10039, 0.0
  %10049 = vadd.xlane.f32.xlu0 %v10048
  %v10050 = vpop.xlane.xlu0 %10049
  %v10051 = vsel %vm450, %v10041, 0.0
  %10052 = vadd.xlane.f32.xlu0 %v10051
  %v10053 = vpop.xlane.xlu0 %10052
  %v10054 = vrcp.pop %v10044
  %v10055 = vrcp.pop %v10047
  %v10056 = vrcp.pop %v10050
  %v10057 = vrcp.pop %v10053
  %v10058 = vmul.f32 %v10035, %v10054
  %v10059 = vmul.f32 %v10037, %v10055
  %v10060 = vmul.f32 %v10039, %v10056
  %v10061 = vmul.f32 %v10041, %v10057
  %v10063 = vsel %vm450, %v10058, 0
  %v10066 = vsel %vm450, %v10059, 0
  %v10069 = vsel %vm450, %v10060, 0
  %v10072 = vsel %vm450, %v10061, 0
  %10074 = vmatprep.subr.mxu0 0.0
  %10075 = vmatpush1.msra.mxu0 %v8251
  %10076 = vmatprep.subr.mxu0 0.0
  %10077 = vmatpush1.msra.mxu0 %v8256
  %10078 = vmatprep.subr.mxu0 0.0
  %10079 = vmatpush1.msra.mxu0 %v8261
  %10080 = vmatprep.subr.mxu0 0.0
  %10081 = vmatpush1.msra.mxu0 %v8266
  %10082 = vmatprep.subr.mxu0 0.0
  %10083 = vmatpush1.msra.mxu0 0.0
  %10084 = vmatprep.subr.mxu0 0.0
  %10085 = vmatpush1.msra.mxu0 0.0
  %10086 = vmatprep.subr.mxu0 0.0
  %10087 = vmatpush1.msra.mxu0 0.0
  %10088 = vmatprep.subr.mxu0 0.0
  %10089 = vmatpush1.msra.mxu0 0.0
  %10090 = vmatprep.subr.mxu0 0.0
  %10091 = vmatpush1.msra.mxu0 0.0
  %10092 = vmatprep.subr.mxu0 0.0
  %10093 = vmatpush1.msra.mxu0 0.0
  %10094 = vmatprep.subr.mxu0 0.0
  %10095 = vmatpush1.msra.mxu0 0.0
  %10096 = vmatprep.subr.mxu0 0.0
  %10097 = vmatpush1.msra.mxu0 0.0
  %10098 = vmatprep.subr.mxu0 0.0
  %10099 = vmatpush1.msra.mxu0 0.0
  %10100 = vmatprep.subr.mxu0 0.0
  %10101 = vmatpush1.msra.mxu0 0.0
  %10102 = vmatprep.subr.mxu0 0.0
  %10103 = vmatpush1.msra.mxu0 0.0
  %10104 = vmatprep.subr.mxu0 0.0
  %10105 = vmatpush1.msra.mxu0 0.0
  %10106 = vmatprep.subr.mxu0 0.0
  %10107 = vmatpush1.msra.mxu0 0.0
  %10108 = vmatprep.subr.mxu0 0.0
  %10109 = vmatpush1.msra.mxu0 0.0
  %10110 = vmatprep.subr.mxu0 0.0
  %10111 = vmatpush1.msra.mxu0 0.0
  %10112 = vmatprep.subr.mxu0 0.0
  %10113 = vmatpush1.msra.mxu0 0.0
  %10114 = vmatprep.subr.mxu0 0.0
  %10115 = vmatpush1.msra.mxu0 0.0
  %10116 = vmatprep.subr.mxu0 0.0
  %10117 = vmatpush1.msra.mxu0 0.0
  %10118 = vmatprep.subr.mxu0 0.0
  %10119 = vmatpush1.msra.mxu0 0.0
  %10120 = vmatprep.subr.mxu0 0.0
  %10121 = vmatpush1.msra.mxu0 0.0
  %10122 = vmatprep.subr.mxu0 0.0
  %10123 = vmatpush1.msra.mxu0 0.0
  %10124 = vmatprep.subr.mxu0 0.0
  %10125 = vmatpush1.msra.mxu0 0.0
  %10126 = vmatprep.subr.mxu0 0.0
  %10127 = vmatpush1.msra.mxu0 0.0
  %10128 = vmatprep.subr.mxu0 0.0
  %10129 = vmatpush1.msra.mxu0 0.0
  %10130 = vmatprep.subr.mxu0 0.0
  %10131 = vmatpush1.msra.mxu0 0.0
  %10132 = vmatprep.subr.mxu0 0.0
  %10133 = vmatpush1.msra.mxu0 0.0
  %10134 = vmatprep.subr.mxu0 0.0
  %10135 = vmatpush1.msra.mxu0 0.0
  %10136 = vmatprep.subr.mxu0 0.0
  %10137 = vmatpush1.msra.mxu0 0.0
  %10138 = vmatprep.mubr.f32.mxu0 0.0
  %10139 = vmatmul.mubr.f32.gmra.mrb[0].mxu0 %v10063
  %v10140 = vpop.f32.mrb[0].mxu0
  %v10141 = vadd.f32 0.0, %v10140
  %v10142 = vpop.f32.mrb[0].mxu0
  %10143 = vmatprep.mubr.f32.mxu0 0.0
  %10144 = vmatmul.mubr.f32.gmra.mrb[0].mxu0 %v10066
  %v10145 = vpop.f32.mrb[0].mxu0
  %v10146 = vadd.f32 0.0, %v10145
  %v10147 = vpop.f32.mrb[0].mxu0
  %10148 = vmatprep.mubr.f32.mxu0 0.0
  %10149 = vmatmul.mubr.f32.gmra.mrb[0].mxu0 %v10069
  %v10150 = vpop.f32.mrb[0].mxu0
  %v10151 = vadd.f32 0.0, %v10150
  %v10152 = vpop.f32.mrb[0].mxu0
  %10153 = vmatprep.mubr.f32.mxu0 0.0
  %10154 = vmatmul.mubr.f32.gmra.mrb[0].mxu0 %v10072
  %v10155 = vpop.f32.mrb[0].mxu0
  %v10156 = vadd.f32 0.0, %v10155
  %v10157 = vpop.f32.mrb[0].mxu0
  %10158 = vdwg.mxu0
  %s10159 = scalar_lea.vmem %s12, 48
  %v10160 = vld [vmem:[%s10159] sm:$0xff]
  %v10161 = vld [vmem:[%s10159 + $0x8] sm:$0xff]
  %v10163 = vsel %vm1457, %v10141, 0
  %v10166 = vsel %vm1457, %v10146, 0
  %v10169 = vsel %vm1457, %v10151, 0
  %v10172 = vsel %vm1457, %v10156, 0
  %10174 = vmatprep.subr.mxu0 0.0
  %10175 = vmatpush1.msra.mxu0 %v10160
  %10176 = vmatprep.subr.mxu0 0.0
  %10177 = vmatpush1.msra.mxu0 %v10161
  %10178 = vmatprep.subr.mxu0 0.0
  %10179 = vmatpush1.msra.mxu0 0.0
  %10180 = vmatprep.subr.mxu0 0.0
  %10181 = vmatpush1.msra.mxu0 0.0
  %10182 = vmatprep.subr.mxu0 0.0
  %10183 = vmatpush1.msra.mxu0 0.0
  %10184 = vmatprep.subr.mxu0 0.0
  %10185 = vmatpush1.msra.mxu0 0.0
  %10186 = vmatprep.subr.mxu0 0.0
  %10187 = vmatpush1.msra.mxu0 0.0
  %10188 = vmatprep.subr.mxu0 0.0
  %10189 = vmatpush1.msra.mxu0 0.0
  %10190 = vmatprep.subr.mxu0 0.0
  %10191 = vmatpush1.msra.mxu0 0.0
  %10192 = vmatprep.subr.mxu0 0.0
  %10193 = vmatpush1.msra.mxu0 0.0
  %10194 = vmatprep.subr.mxu0 0.0
  %10195 = vmatpush1.msra.mxu0 0.0
  %10196 = vmatprep.subr.mxu0 0.0
  %10197 = vmatpush1.msra.mxu0 0.0
  %10198 = vmatprep.subr.mxu0 0.0
  %10199 = vmatpush1.msra.mxu0 0.0
  %10200 = vmatprep.subr.mxu0 0.0
  %10201 = vmatpush1.msra.mxu0 0.0
  %10202 = vmatprep.subr.mxu0 0.0
  %10203 = vmatpush1.msra.mxu0 0.0
  %10204 = vmatprep.subr.mxu0 0.0
  %10205 = vmatpush1.msra.mxu0 0.0
  %10206 = vmatprep.subr.mxu0 0.0
  %10207 = vmatpush1.msra.mxu0 0.0
  %10208 = vmatprep.subr.mxu0 0.0
  %10209 = vmatpush1.msra.mxu0 0.0
  %10210 = vmatprep.subr.mxu0 0.0
  %10211 = vmatpush1.msra.mxu0 0.0
  %10212 = vmatprep.subr.mxu0 0.0
  %10213 = vmatpush1.msra.mxu0 0.0
  %10214 = vmatprep.subr.mxu0 0.0
  %10215 = vmatpush1.msra.mxu0 0.0
  %10216 = vmatprep.subr.mxu0 0.0
  %10217 = vmatpush1.msra.mxu0 0.0
  %10218 = vmatprep.subr.mxu0 0.0
  %10219 = vmatpush1.msra.mxu0 0.0
  %10220 = vmatprep.subr.mxu0 0.0
  %10221 = vmatpush1.msra.mxu0 0.0
  %10222 = vmatprep.subr.mxu0 0.0
  %10223 = vmatpush1.msra.mxu0 0.0
  %10224 = vmatprep.subr.mxu0 0.0
  %10225 = vmatpush1.msra.mxu0 0.0
  %10226 = vmatprep.subr.mxu0 0.0
  %10227 = vmatpush1.msra.mxu0 0.0
  %10228 = vmatprep.subr.mxu0 0.0
  %10229 = vmatpush1.msra.mxu0 0.0
  %10230 = vmatprep.subr.mxu0 0.0
  %10231 = vmatpush1.msra.mxu0 0.0
  %10232 = vmatprep.subr.mxu0 0.0
  %10233 = vmatpush1.msra.mxu0 0.0
  %10234 = vmatprep.subr.mxu0 0.0
  %10235 = vmatpush1.msra.mxu0 0.0
  %10236 = vmatprep.subr.mxu0 0.0
  %10237 = vmatpush1.msra.mxu0 0.0
  %10238 = vmatprep.mubr.f32.mxu0 0.0
  %10239 = vmatmul.mubr.f32.gmra.mrb[0].mxu0 %v10163
  %v10240 = vpop.f32.mrb[0].mxu0
  %v10241 = vadd.f32 0.0, %v10240
  %v10242 = vpop.f32.mrb[0].mxu0
  %10243 = vmatprep.mubr.f32.mxu0 0.0
  %10244 = vmatmul.mubr.f32.gmra.mrb[0].mxu0 %v10166
  %v10245 = vpop.f32.mrb[0].mxu0
  %v10246 = vadd.f32 0.0, %v10245
  %v10247 = vpop.f32.mrb[0].mxu0
  %10248 = vmatprep.mubr.f32.mxu0 0.0
  %10249 = vmatmul.mubr.f32.gmra.mrb[0].mxu0 %v10169
  %v10250 = vpop.f32.mrb[0].mxu0
  %v10251 = vadd.f32 0.0, %v10250
  %v10252 = vpop.f32.mrb[0].mxu0
  %10253 = vmatprep.mubr.f32.mxu0 0.0
  %10254 = vmatmul.mubr.f32.gmra.mrb[0].mxu0 %v10172
  %v10255 = vpop.f32.mrb[0].mxu0
  %v10256 = vadd.f32 0.0, %v10255
  %v10257 = vpop.f32.mrb[0].mxu0
  %10258 = vdwg.mxu0
  %v10259 = vadd.f32 %v7967, %v10241
  %v10260 = vadd.f32 %v7968, %v10246
  %v10261 = vadd.f32 %v7969, %v10251
  %v10262 = vadd.f32 %v7970, %v10256
  %v10263 = vadd.f32 %v5579, %v10259
  %v10264 = vadd.f32 %v5580, %v10260
  %v10265 = vadd.f32 %v5581, %v10261
  %v10266 = vadd.f32 %v5582, %v10262
  %s10267 = scalar_lea.vmem %s14, 3
  %v10268 = vld [vmem:[%s10267] sm:$0x1]
  %s10269 = scalar_lea.vmem %s15, 3
  %v10270 = vld [vmem:[%s10269] sm:$0x1]
  %v10271 = vsel %vm450, %v10263, 0.0
  %10272 = vadd.xlane.f32.xlu0 %v10271
  %v10273 = vpop.xlane.xlu0 %10272
  %v10274 = vsel %vm450, %v10264, 0.0
  %10275 = vadd.xlane.f32.xlu0 %v10274
  %v10276 = vpop.xlane.xlu0 %10275
  %v10277 = vsel %vm450, %v10265, 0.0
  %10278 = vadd.xlane.f32.xlu0 %v10277
  %v10279 = vpop.xlane.xlu0 %10278
  %v10280 = vsel %vm450, %v10266, 0.0
  %10281 = vadd.xlane.f32.xlu0 %v10280
  %v10282 = vpop.xlane.xlu0 %10281
  %v10283 = vmul.f32 %v10273, %v599
  %v10284 = vmul.f32 %v10276, %v599
  %v10285 = vmul.f32 %v10279, %v599
  %v10286 = vmul.f32 %v10282, %v599
  %v10287 = vsub.f32 %v10263, %v10283
  %v10288 = vsub.f32 %v10264, %v10284
  %v10289 = vsub.f32 %v10265, %v10285
  %v10290 = vsub.f32 %v10266, %v10286
  %v10291 = vmul.f32 %v10287, %v10287
  %v10292 = vmul.f32 %v10288, %v10288
  %v10293 = vmul.f32 %v10289, %v10289
  %v10294 = vmul.f32 %v10290, %v10290
  %v10295 = vsel %vm450, %v10291, 0.0
  %10296 = vadd.xlane.f32.xlu0 %v10295
  %v10297 = vpop.xlane.xlu0 %10296
  %v10298 = vsel %vm450, %v10292, 0.0
  %10299 = vadd.xlane.f32.xlu0 %v10298
  %v10300 = vpop.xlane.xlu0 %10299
  %v10301 = vsel %vm450, %v10293, 0.0
  %10302 = vadd.xlane.f32.xlu0 %v10301
  %v10303 = vpop.xlane.xlu0 %10302
  %v10304 = vsel %vm450, %v10294, 0.0
  %10305 = vadd.xlane.f32.xlu0 %v10304
  %v10306 = vpop.xlane.xlu0 %10305
  %v10307 = vmul.f32 %v10297, %v599
  %v10308 = vmul.f32 %v10300, %v599
  %v10309 = vmul.f32 %v10303, %v599
  %v10310 = vmul.f32 %v10306, %v599
  %v10311 = vadd.f32 %v10307, 1e-05
  %v10312 = vadd.f32 %v10308, 1e-05
  %v10313 = vadd.f32 %v10309, 1e-05
  %v10314 = vadd.f32 %v10310, 1e-05
  %v10315 = vrsqrt.pop %v10311
  %v10316 = vrsqrt.pop %v10312
  %v10317 = vrsqrt.pop %v10313
  %v10318 = vrsqrt.pop %v10314
  %v10319 = vmul.f32 %v10287, %v10315
  %v10320 = vmul.f32 %v10288, %v10316
  %v10321 = vmul.f32 %v10289, %v10317
  %v10322 = vmul.f32 %v10290, %v10318
  %v10324 = vlaneseq
  %v10325 = vshrl.u32 %v10324, 7
  %v10326 = vsub.s32 0, %v10325
  %v10327 = vrot.slane %v10268, %v10326
  %v10329 = vmul.f32 %v10319, %v10327
  %v10330 = vmul.f32 %v10320, %v10327
  %v10331 = vmul.f32 %v10321, %v10327
  %v10332 = vmul.f32 %v10322, %v10327
  %v10334 = vlaneseq
  %v10335 = vshrl.u32 %v10334, 7
  %v10336 = vsub.s32 0, %v10335
  %v10337 = vrot.slane %v10270, %v10336
  %v10339 = vadd.f32 %v10329, %v10337
  %v10340 = vadd.f32 %v10330, %v10337
  %v10341 = vadd.f32 %v10331, %v10337
  %v10342 = vadd.f32 %v10332, %v10337
  %s10343 = scalar_lea.vmem %s16, 32
  %v10344 = vld [vmem:[%s10343] sm:$0xff]
  %v10345 = vld [vmem:[%s10343 + $0x8] sm:$0xff]
  %v10346 = vld [vmem:[%s10343 + $0x10] sm:$0xff]
  %v10347 = vld [vmem:[%s10343 + $0x18] sm:$0xff]
  %s10348 = scalar_lea.vmem %s17, 1
  %v10349 = vld [vmem:[%s10348] sm:$0x1]
  %v10351 = vlaneseq
  %v10352 = vshrl.u32 %v10351, 7
  %v10353 = vsub.s32 0, %v10352
  %v10354 = vrot.slane %v10349, %v10353
  %v10357 = vsel %vm450, %v10339, 0
  %v10360 = vsel %vm450, %v10340, 0
  %v10363 = vsel %vm450, %v10341, 0
  %v10366 = vsel %vm450, %v10342, 0
  %10368 = vmatprep.subr.mxu0 0.0
  %10369 = vmatpush1.msra.mxu0 %v10344
  %10370 = vmatprep.subr.mxu0 0.0
  %10371 = vmatpush1.msra.mxu0 %v10345
  %10372 = vmatprep.subr.mxu0 0.0
  %10373 = vmatpush1.msra.mxu0 %v10346
  %10374 = vmatprep.subr.mxu0 0.0
  %10375 = vmatpush1.msra.mxu0 %v10347
  %10376 = vmatprep.subr.mxu0 0.0
  %10377 = vmatpush1.msra.mxu0 0.0
  %10378 = vmatprep.subr.mxu0 0.0
  %10379 = vmatpush1.msra.mxu0 0.0
  %10380 = vmatprep.subr.mxu0 0.0
  %10381 = vmatpush1.msra.mxu0 0.0
  %10382 = vmatprep.subr.mxu0 0.0
  %10383 = vmatpush1.msra.mxu0 0.0
  %10384 = vmatprep.subr.mxu0 0.0
  %10385 = vmatpush1.msra.mxu0 0.0
  %10386 = vmatprep.subr.mxu0 0.0
  %10387 = vmatpush1.msra.mxu0 0.0
  %10388 = vmatprep.subr.mxu0 0.0
  %10389 = vmatpush1.msra.mxu0 0.0
  %10390 = vmatprep.subr.mxu0 0.0
  %10391 = vmatpush1.msra.mxu0 0.0
  %10392 = vmatprep.subr.mxu0 0.0
  %10393 = vmatpush1.msra.mxu0 0.0
  %10394 = vmatprep.subr.mxu0 0.0
  %10395 = vmatpush1.msra.mxu0 0.0
  %10396 = vmatprep.subr.mxu0 0.0
  %10397 = vmatpush1.msra.mxu0 0.0
  %10398 = vmatprep.subr.mxu0 0.0
  %10399 = vmatpush1.msra.mxu0 0.0
  %10400 = vmatprep.subr.mxu0 0.0
  %10401 = vmatpush1.msra.mxu0 0.0
  %10402 = vmatprep.subr.mxu0 0.0
  %10403 = vmatpush1.msra.mxu0 0.0
  %10404 = vmatprep.subr.mxu0 0.0
  %10405 = vmatpush1.msra.mxu0 0.0
  %10406 = vmatprep.subr.mxu0 0.0
  %10407 = vmatpush1.msra.mxu0 0.0
  %10408 = vmatprep.subr.mxu0 0.0
  %10409 = vmatpush1.msra.mxu0 0.0
  %10410 = vmatprep.subr.mxu0 0.0
  %10411 = vmatpush1.msra.mxu0 0.0
  %10412 = vmatprep.subr.mxu0 0.0
  %10413 = vmatpush1.msra.mxu0 0.0
  %10414 = vmatprep.subr.mxu0 0.0
  %10415 = vmatpush1.msra.mxu0 0.0
  %10416 = vmatprep.subr.mxu0 0.0
  %10417 = vmatpush1.msra.mxu0 0.0
  %10418 = vmatprep.subr.mxu0 0.0
  %10419 = vmatpush1.msra.mxu0 0.0
  %10420 = vmatprep.subr.mxu0 0.0
  %10421 = vmatpush1.msra.mxu0 0.0
  %10422 = vmatprep.subr.mxu0 0.0
  %10423 = vmatpush1.msra.mxu0 0.0
  %10424 = vmatprep.subr.mxu0 0.0
  %10425 = vmatpush1.msra.mxu0 0.0
  %10426 = vmatprep.subr.mxu0 0.0
  %10427 = vmatpush1.msra.mxu0 0.0
  %10428 = vmatprep.subr.mxu0 0.0
  %10429 = vmatpush1.msra.mxu0 0.0
  %10430 = vmatprep.subr.mxu0 0.0
  %10431 = vmatpush1.msra.mxu0 0.0
  %10432 = vmatprep.mubr.f32.mxu0 0.0
  %10433 = vmatmul.mubr.f32.gmra.mrb[0].mxu0 %v10357
  %v10434 = vpop.f32.mrb[0].mxu0
  %v10435 = vadd.f32 %v10354, %v10434
  %v10436 = vpop.f32.mrb[0].mxu0
  %10437 = vmatprep.mubr.f32.mxu0 0.0
  %10438 = vmatmul.mubr.f32.gmra.mrb[0].mxu0 %v10360
  %v10439 = vpop.f32.mrb[0].mxu0
  %v10440 = vadd.f32 %v10354, %v10439
  %v10441 = vpop.f32.mrb[0].mxu0
  %10442 = vmatprep.mubr.f32.mxu0 0.0
  %10443 = vmatmul.mubr.f32.gmra.mrb[0].mxu0 %v10363
  %v10444 = vpop.f32.mrb[0].mxu0
  %v10445 = vadd.f32 %v10354, %v10444
  %v10446 = vpop.f32.mrb[0].mxu0
  %10447 = vmatprep.mubr.f32.mxu0 0.0
  %10448 = vmatmul.mubr.f32.gmra.mrb[0].mxu0 %v10366
  %v10449 = vpop.f32.mrb[0].mxu0
  %v10450 = vadd.f32 %v10354, %v10449
  %v10451 = vpop.f32.mrb[0].mxu0
  %10452 = vdwg.mxu0
  %v10453 = vmax.f32 %v10435, 0.0
  %v10454 = vmax.f32 %v10440, 0.0
  %v10455 = vmax.f32 %v10445, 0.0
  %v10456 = vmax.f32 %v10450, 0.0
  %s10457 = scalar_lea.vmem %s18, 64
  %v10458 = vld [vmem:[%s10457] sm:$0xff]
  %v10459 = vld [vmem:[%s10457 + $0x8] sm:$0xff]
  %v10460 = vld [vmem:[%s10457 + $0x10] sm:$0xff]
  %v10461 = vld [vmem:[%s10457 + $0x18] sm:$0xff]
  %v10462 = vld [vmem:[%s10457 + $0x20] sm:$0xff]
  %v10463 = vld [vmem:[%s10457 + $0x28] sm:$0xff]
  %v10464 = vld [vmem:[%s10457 + $0x30] sm:$0xff]
  %v10465 = vld [vmem:[%s10457 + $0x38] sm:$0xff]
  %s10466 = scalar_lea.vmem %s19, 1
  %v10467 = vld [vmem:[%s10466] sm:$0x1]
  %v10469 = vlaneseq
  %v10470 = vshrl.u32 %v10469, 7
  %v10471 = vsub.s32 0, %v10470
  %v10472 = vrot.slane %v10467, %v10471
  %v10475 = vsel %vm5481, %v10453, 0
  %v10478 = vsel %vm5481, %v10454, 0
  %v10481 = vsel %vm5481, %v10455, 0
  %v10484 = vsel %vm5481, %v10456, 0
  %10486 = vmatprep.subr.mxu0 0.0
  %10487 = vmatpush1.msra.mxu0 %v10458
  %10488 = vmatprep.subr.mxu0 0.0
  %10489 = vmatpush1.msra.mxu0 %v10459
  %10490 = vmatprep.subr.mxu0 0.0
  %10491 = vmatpush1.msra.mxu0 %v10460
  %10492 = vmatprep.subr.mxu0 0.0
  %10493 = vmatpush1.msra.mxu0 %v10461
  %10494 = vmatprep.subr.mxu0 0.0
  %10495 = vmatpush1.msra.mxu0 %v10462
  %10496 = vmatprep.subr.mxu0 0.0
  %10497 = vmatpush1.msra.mxu0 %v10463
  %10498 = vmatprep.subr.mxu0 0.0
  %10499 = vmatpush1.msra.mxu0 %v10464
  %10500 = vmatprep.subr.mxu0 0.0
  %10501 = vmatpush1.msra.mxu0 %v10465
  %10502 = vmatprep.subr.mxu0 0.0
  %10503 = vmatpush1.msra.mxu0 0.0
  %10504 = vmatprep.subr.mxu0 0.0
  %10505 = vmatpush1.msra.mxu0 0.0
  %10506 = vmatprep.subr.mxu0 0.0
  %10507 = vmatpush1.msra.mxu0 0.0
  %10508 = vmatprep.subr.mxu0 0.0
  %10509 = vmatpush1.msra.mxu0 0.0
  %10510 = vmatprep.subr.mxu0 0.0
  %10511 = vmatpush1.msra.mxu0 0.0
  %10512 = vmatprep.subr.mxu0 0.0
  %10513 = vmatpush1.msra.mxu0 0.0
  %10514 = vmatprep.subr.mxu0 0.0
  %10515 = vmatpush1.msra.mxu0 0.0
  %10516 = vmatprep.subr.mxu0 0.0
  %10517 = vmatpush1.msra.mxu0 0.0
  %10518 = vmatprep.subr.mxu0 0.0
  %10519 = vmatpush1.msra.mxu0 0.0
  %10520 = vmatprep.subr.mxu0 0.0
  %10521 = vmatpush1.msra.mxu0 0.0
  %10522 = vmatprep.subr.mxu0 0.0
  %10523 = vmatpush1.msra.mxu0 0.0
  %10524 = vmatprep.subr.mxu0 0.0
  %10525 = vmatpush1.msra.mxu0 0.0
  %10526 = vmatprep.subr.mxu0 0.0
  %10527 = vmatpush1.msra.mxu0 0.0
  %10528 = vmatprep.subr.mxu0 0.0
  %10529 = vmatpush1.msra.mxu0 0.0
  %10530 = vmatprep.subr.mxu0 0.0
  %10531 = vmatpush1.msra.mxu0 0.0
  %10532 = vmatprep.subr.mxu0 0.0
  %10533 = vmatpush1.msra.mxu0 0.0
  %10534 = vmatprep.subr.mxu0 0.0
  %10535 = vmatpush1.msra.mxu0 0.0
  %10536 = vmatprep.subr.mxu0 0.0
  %10537 = vmatpush1.msra.mxu0 0.0
  %10538 = vmatprep.subr.mxu0 0.0
  %10539 = vmatpush1.msra.mxu0 0.0
  %10540 = vmatprep.subr.mxu0 0.0
  %10541 = vmatpush1.msra.mxu0 0.0
  %10542 = vmatprep.subr.mxu0 0.0
  %10543 = vmatpush1.msra.mxu0 0.0
  %10544 = vmatprep.subr.mxu0 0.0
  %10545 = vmatpush1.msra.mxu0 0.0
  %10546 = vmatprep.subr.mxu0 0.0
  %10547 = vmatpush1.msra.mxu0 0.0
  %10548 = vmatprep.subr.mxu0 0.0
  %10549 = vmatpush1.msra.mxu0 0.0
  %10550 = vmatprep.mubr.f32.mxu0 0.0
  %10551 = vmatmul.mubr.f32.gmra.mrb[0].mxu0 %v10475
  %v10552 = vpop.f32.mrb[0].mxu0
  %v10553 = vadd.f32 %v10472, %v10552
  %v10554 = vpop.f32.mrb[0].mxu0
  %10555 = vmatprep.mubr.f32.mxu0 0.0
  %10556 = vmatmul.mubr.f32.gmra.mrb[0].mxu0 %v10478
  %v10557 = vpop.f32.mrb[0].mxu0
  %v10558 = vadd.f32 %v10472, %v10557
  %v10559 = vpop.f32.mrb[0].mxu0
  %10560 = vmatprep.mubr.f32.mxu0 0.0
  %10561 = vmatmul.mubr.f32.gmra.mrb[0].mxu0 %v10481
  %v10562 = vpop.f32.mrb[0].mxu0
  %v10563 = vadd.f32 %v10472, %v10562
  %v10564 = vpop.f32.mrb[0].mxu0
  %10565 = vmatprep.mubr.f32.mxu0 0.0
  %10566 = vmatmul.mubr.f32.gmra.mrb[0].mxu0 %v10484
  %v10567 = vpop.f32.mrb[0].mxu0
  %v10568 = vadd.f32 %v10472, %v10567
  %v10569 = vpop.f32.mrb[0].mxu0
  %10570 = vdwg.mxu0
  %v10571 = vadd.f32 %v10263, %v10553
  %v10572 = vadd.f32 %v10264, %v10558
  %v10573 = vadd.f32 %v10265, %v10563
  %v10574 = vadd.f32 %v10266, %v10568
  %v10575 = vld [vmem:[%s20] sm:$0x1]
  %v10576 = vld [vmem:[%s21] sm:$0x1]
  %v10577 = vsel %vm450, %v10571, 0.0
  %10578 = vadd.xlane.f32.xlu0 %v10577
  %v10579 = vpop.xlane.xlu0 %10578
  %v10580 = vsel %vm450, %v10572, 0.0
  %10581 = vadd.xlane.f32.xlu0 %v10580
  %v10582 = vpop.xlane.xlu0 %10581
  %v10583 = vsel %vm450, %v10573, 0.0
  %10584 = vadd.xlane.f32.xlu0 %v10583
  %v10585 = vpop.xlane.xlu0 %10584
  %v10586 = vsel %vm450, %v10574, 0.0
  %10587 = vadd.xlane.f32.xlu0 %v10586
  %v10588 = vpop.xlane.xlu0 %10587
  %v10589 = vmul.f32 %v10579, %v599
  %v10590 = vmul.f32 %v10582, %v599
  %v10591 = vmul.f32 %v10585, %v599
  %v10592 = vmul.f32 %v10588, %v599
  %v10593 = vsub.f32 %v10571, %v10589
  %v10594 = vsub.f32 %v10572, %v10590
  %v10595 = vsub.f32 %v10573, %v10591
  %v10596 = vsub.f32 %v10574, %v10592
  %v10597 = vmul.f32 %v10593, %v10593
  %v10598 = vmul.f32 %v10594, %v10594
  %v10599 = vmul.f32 %v10595, %v10595
  %v10600 = vmul.f32 %v10596, %v10596
  %v10601 = vsel %vm450, %v10597, 0.0
  %10602 = vadd.xlane.f32.xlu0 %v10601
  %v10603 = vpop.xlane.xlu0 %10602
  %v10604 = vsel %vm450, %v10598, 0.0
  %10605 = vadd.xlane.f32.xlu0 %v10604
  %v10606 = vpop.xlane.xlu0 %10605
  %v10607 = vsel %vm450, %v10599, 0.0
  %10608 = vadd.xlane.f32.xlu0 %v10607
  %v10609 = vpop.xlane.xlu0 %10608
  %v10610 = vsel %vm450, %v10600, 0.0
  %10611 = vadd.xlane.f32.xlu0 %v10610
  %v10612 = vpop.xlane.xlu0 %10611
  %v10613 = vmul.f32 %v10603, %v599
  %v10614 = vmul.f32 %v10606, %v599
  %v10615 = vmul.f32 %v10609, %v599
  %v10616 = vmul.f32 %v10612, %v599
  %v10617 = vadd.f32 %v10613, 1e-05
  %v10618 = vadd.f32 %v10614, 1e-05
  %v10619 = vadd.f32 %v10615, 1e-05
  %v10620 = vadd.f32 %v10616, 1e-05
  %v10621 = vrsqrt.pop %v10617
  %v10622 = vrsqrt.pop %v10618
  %v10623 = vrsqrt.pop %v10619
  %v10624 = vrsqrt.pop %v10620
  %v10625 = vmul.f32 %v10593, %v10621
  %v10626 = vmul.f32 %v10594, %v10622
  %v10627 = vmul.f32 %v10595, %v10623
  %v10628 = vmul.f32 %v10596, %v10624
  %v10630 = vlaneseq
  %v10631 = vshrl.u32 %v10630, 7
  %v10632 = vsub.s32 0, %v10631
  %v10633 = vrot.slane %v10575, %v10632
  %v10635 = vmul.f32 %v10625, %v10633
  %v10636 = vmul.f32 %v10626, %v10633
  %v10637 = vmul.f32 %v10627, %v10633
  %v10638 = vmul.f32 %v10628, %v10633
  %v10640 = vlaneseq
  %v10641 = vshrl.u32 %v10640, 7
  %v10642 = vsub.s32 0, %v10641
  %v10643 = vrot.slane %v10576, %v10642
  %v10645 = vadd.f32 %v10635, %v10643
  %v10646 = vadd.f32 %v10636, %v10643
  %v10647 = vadd.f32 %v10637, %v10643
  %v10648 = vadd.f32 %v10638, %v10643
  %v10649 = vld [vmem:[%s22] sm:$0xff]
  %v10650 = vld [vmem:[%s22 + $0x8] sm:$0xff]
  %v10651 = vld [vmem:[%s22 + $0x10] sm:$0xff]
  %v10652 = vld [vmem:[%s22 + $0x18] sm:$0xff]
  %v10653 = vld [vmem:[%s23] sm:$0x1]
  %v10655 = vlaneseq
  %v10656 = vshrl.u32 %v10655, 7
  %v10657 = vsub.s32 0, %v10656
  %v10658 = vrot.slane %v10653, %v10657
  %v10661 = vsel %vm450, %v10645, 0
  %v10664 = vsel %vm450, %v10646, 0
  %v10667 = vsel %vm450, %v10647, 0
  %v10670 = vsel %vm450, %v10648, 0
  %10672 = vmatprep.subr.mxu0 0.0
  %10673 = vmatpush1.msra.mxu0 %v10649
  %10674 = vmatprep.subr.mxu0 0.0
  %10675 = vmatpush1.msra.mxu0 %v10650
  %10676 = vmatprep.subr.mxu0 0.0
  %10677 = vmatpush1.msra.mxu0 %v10651
  %10678 = vmatprep.subr.mxu0 0.0
  %10679 = vmatpush1.msra.mxu0 %v10652
  %10680 = vmatprep.subr.mxu0 0.0
  %10681 = vmatpush1.msra.mxu0 0.0
  %10682 = vmatprep.subr.mxu0 0.0
  %10683 = vmatpush1.msra.mxu0 0.0
  %10684 = vmatprep.subr.mxu0 0.0
  %10685 = vmatpush1.msra.mxu0 0.0
  %10686 = vmatprep.subr.mxu0 0.0
  %10687 = vmatpush1.msra.mxu0 0.0
  %10688 = vmatprep.subr.mxu0 0.0
  %10689 = vmatpush1.msra.mxu0 0.0
  %10690 = vmatprep.subr.mxu0 0.0
  %10691 = vmatpush1.msra.mxu0 0.0
  %10692 = vmatprep.subr.mxu0 0.0
  %10693 = vmatpush1.msra.mxu0 0.0
  %10694 = vmatprep.subr.mxu0 0.0
  %10695 = vmatpush1.msra.mxu0 0.0
  %10696 = vmatprep.subr.mxu0 0.0
  %10697 = vmatpush1.msra.mxu0 0.0
  %10698 = vmatprep.subr.mxu0 0.0
  %10699 = vmatpush1.msra.mxu0 0.0
  %10700 = vmatprep.subr.mxu0 0.0
  %10701 = vmatpush1.msra.mxu0 0.0
  %10702 = vmatprep.subr.mxu0 0.0
  %10703 = vmatpush1.msra.mxu0 0.0
  %10704 = vmatprep.subr.mxu0 0.0
  %10705 = vmatpush1.msra.mxu0 0.0
  %10706 = vmatprep.subr.mxu0 0.0
  %10707 = vmatpush1.msra.mxu0 0.0
  %10708 = vmatprep.subr.mxu0 0.0
  %10709 = vmatpush1.msra.mxu0 0.0
  %10710 = vmatprep.subr.mxu0 0.0
  %10711 = vmatpush1.msra.mxu0 0.0
  %10712 = vmatprep.subr.mxu0 0.0
  %10713 = vmatpush1.msra.mxu0 0.0
  %10714 = vmatprep.subr.mxu0 0.0
  %10715 = vmatpush1.msra.mxu0 0.0
  %10716 = vmatprep.subr.mxu0 0.0
  %10717 = vmatpush1.msra.mxu0 0.0
  %10718 = vmatprep.subr.mxu0 0.0
  %10719 = vmatpush1.msra.mxu0 0.0
  %10720 = vmatprep.subr.mxu0 0.0
  %10721 = vmatpush1.msra.mxu0 0.0
  %10722 = vmatprep.subr.mxu0 0.0
  %10723 = vmatpush1.msra.mxu0 0.0
  %10724 = vmatprep.subr.mxu0 0.0
  %10725 = vmatpush1.msra.mxu0 0.0
  %10726 = vmatprep.subr.mxu0 0.0
  %10727 = vmatpush1.msra.mxu0 0.0
  %10728 = vmatprep.subr.mxu0 0.0
  %10729 = vmatpush1.msra.mxu0 0.0
  %10730 = vmatprep.subr.mxu0 0.0
  %10731 = vmatpush1.msra.mxu0 0.0
  %10732 = vmatprep.subr.mxu0 0.0
  %10733 = vmatpush1.msra.mxu0 0.0
  %10734 = vmatprep.subr.mxu0 0.0
  %10735 = vmatpush1.msra.mxu0 0.0
  %10736 = vmatprep.mubr.f32.mxu0 0.0
  %10737 = vmatmul.mubr.f32.gmra.mrb[0].mxu0 %v10661
  %v10738 = vpop.f32.mrb[0].mxu0
  %v10739 = vadd.f32 %v10658, %v10738
  %v10740 = vpop.f32.mrb[0].mxu0
  %10741 = vmatprep.mubr.f32.mxu0 0.0
  %10742 = vmatmul.mubr.f32.gmra.mrb[0].mxu0 %v10664
  %v10743 = vpop.f32.mrb[0].mxu0
  %v10744 = vadd.f32 %v10658, %v10743
  %v10745 = vpop.f32.mrb[0].mxu0
  %10746 = vmatprep.mubr.f32.mxu0 0.0
  %10747 = vmatmul.mubr.f32.gmra.mrb[0].mxu0 %v10667
  %v10748 = vpop.f32.mrb[0].mxu0
  %v10749 = vadd.f32 %v10658, %v10748
  %v10750 = vpop.f32.mrb[0].mxu0
  %10751 = vmatprep.mubr.f32.mxu0 0.0
  %10752 = vmatmul.mubr.f32.gmra.mrb[0].mxu0 %v10670
  %v10753 = vpop.f32.mrb[0].mxu0
  %v10754 = vadd.f32 %v10658, %v10753
  %v10755 = vpop.f32.mrb[0].mxu0
  %10756 = vdwg.mxu0
  %v10757 = vld [vmem:[#allocation4] sm:$0x1]
  %vm10758 = vcmp.gt.f32.partialorder %v10739, 0.0
  %vm10759 = vcmp.gt.f32.partialorder %v10744, 0.0
  %vm10760 = vcmp.gt.f32.partialorder %v10749, 0.0
  %vm10761 = vcmp.gt.f32.partialorder %v10754, 0.0
  %v10763 = vlaneseq
  %v10764 = vshrl.u32 %v10763, 7
  %v10765 = vsub.s32 0, %v10764
  %v10766 = vrot.slane %v10757, %v10765
  %10767 = vset.pattern.permute.xlu0 0
  %10768 = vperm.xlu0 %10767, %v10766
  %v10769 = vpop.permute.xlu0 %10768
  %v10771 = vmul.f32 %v10769, %v10739
  %v10772 = vmul.f32 %v10769, %v10744
  %v10773 = vmul.f32 %v10769, %v10749
  %v10774 = vmul.f32 %v10769, %v10754
  %v10775 = vsel %vm10758, %v10739, %v10771
  %v10776 = vsel %vm10759, %v10744, %v10772
  %v10777 = vsel %vm10760, %v10749, %v10773
  %v10778 = vsel %vm10761, %v10754, %v10774
  %v10779 = vld [vmem:[%s25] sm:$0xff]
  %v10780 = vld [vmem:[%s25 + $0x8] sm:$0xff]
  %v10781 = vld [vmem:[%s25 + $0x10] sm:$0xff]
  %v10782 = vld [vmem:[%s25 + $0x18] sm:$0xff]
  %v10783 = vld [vmem:[%s26] sm:$0x1]
  %v10785 = vlaneseq
  %v10786 = vshrl.u32 %v10785, 7
  %v10787 = vsub.s32 0, %v10786
  %v10788 = vrot.slane %v10783, %v10787
  %v10791 = vsel %vm450, %v10775, 0
  %v10794 = vsel %vm450, %v10776, 0
  %v10797 = vsel %vm450, %v10777, 0
  %v10800 = vsel %vm450, %v10778, 0
  %10802 = vmatprep.subr.mxu0 0.0
  %10803 = vmatpush1.msra.mxu0 %v10779
  %10804 = vmatprep.subr.mxu0 0.0
  %10805 = vmatpush1.msra.mxu0 %v10780
  %10806 = vmatprep.subr.mxu0 0.0
  %10807 = vmatpush1.msra.mxu0 %v10781
  %10808 = vmatprep.subr.mxu0 0.0
  %10809 = vmatpush1.msra.mxu0 %v10782
  %10810 = vmatprep.subr.mxu0 0.0
  %10811 = vmatpush1.msra.mxu0 0.0
  %10812 = vmatprep.subr.mxu0 0.0
  %10813 = vmatpush1.msra.mxu0 0.0
  %10814 = vmatprep.subr.mxu0 0.0
  %10815 = vmatpush1.msra.mxu0 0.0
  %10816 = vmatprep.subr.mxu0 0.0
  %10817 = vmatpush1.msra.mxu0 0.0
  %10818 = vmatprep.subr.mxu0 0.0
  %10819 = vmatpush1.msra.mxu0 0.0
  %10820 = vmatprep.subr.mxu0 0.0
  %10821 = vmatpush1.msra.mxu0 0.0
  %10822 = vmatprep.subr.mxu0 0.0
  %10823 = vmatpush1.msra.mxu0 0.0
  %10824 = vmatprep.subr.mxu0 0.0
  %10825 = vmatpush1.msra.mxu0 0.0
  %10826 = vmatprep.subr.mxu0 0.0
  %10827 = vmatpush1.msra.mxu0 0.0
  %10828 = vmatprep.subr.mxu0 0.0
  %10829 = vmatpush1.msra.mxu0 0.0
  %10830 = vmatprep.subr.mxu0 0.0
  %10831 = vmatpush1.msra.mxu0 0.0
  %10832 = vmatprep.subr.mxu0 0.0
  %10833 = vmatpush1.msra.mxu0 0.0
  %10834 = vmatprep.subr.mxu0 0.0
  %10835 = vmatpush1.msra.mxu0 0.0
  %10836 = vmatprep.subr.mxu0 0.0
  %10837 = vmatpush1.msra.mxu0 0.0
  %10838 = vmatprep.subr.mxu0 0.0
  %10839 = vmatpush1.msra.mxu0 0.0
  %10840 = vmatprep.subr.mxu0 0.0
  %10841 = vmatpush1.msra.mxu0 0.0
  %10842 = vmatprep.subr.mxu0 0.0
  %10843 = vmatpush1.msra.mxu0 0.0
  %10844 = vmatprep.subr.mxu0 0.0
  %10845 = vmatpush1.msra.mxu0 0.0
  %10846 = vmatprep.subr.mxu0 0.0
  %10847 = vmatpush1.msra.mxu0 0.0
  %10848 = vmatprep.subr.mxu0 0.0
  %10849 = vmatpush1.msra.mxu0 0.0
  %10850 = vmatprep.subr.mxu0 0.0
  %10851 = vmatpush1.msra.mxu0 0.0
  %10852 = vmatprep.subr.mxu0 0.0
  %10853 = vmatpush1.msra.mxu0 0.0
  %10854 = vmatprep.subr.mxu0 0.0
  %10855 = vmatpush1.msra.mxu0 0.0
  %10856 = vmatprep.subr.mxu0 0.0
  %10857 = vmatpush1.msra.mxu0 0.0
  %10858 = vmatprep.subr.mxu0 0.0
  %10859 = vmatpush1.msra.mxu0 0.0
  %10860 = vmatprep.subr.mxu0 0.0
  %10861 = vmatpush1.msra.mxu0 0.0
  %10862 = vmatprep.subr.mxu0 0.0
  %10863 = vmatpush1.msra.mxu0 0.0
  %10864 = vmatprep.subr.mxu0 0.0
  %10865 = vmatpush1.msra.mxu0 0.0
  %10866 = vmatprep.mubr.f32.mxu0 0.0
  %10867 = vmatmul.mubr.f32.gmra.mrb[0].mxu0 %v10791
  %v10868 = vpop.f32.mrb[0].mxu0
  %v10869 = vadd.f32 %v10788, %v10868
  %v10870 = vpop.f32.mrb[0].mxu0
  %10871 = vmatprep.mubr.f32.mxu0 0.0
  %10872 = vmatmul.mubr.f32.gmra.mrb[0].mxu0 %v10794
  %v10873 = vpop.f32.mrb[0].mxu0
  %v10874 = vadd.f32 %v10788, %v10873
  %v10875 = vpop.f32.mrb[0].mxu0
  %10876 = vmatprep.mubr.f32.mxu0 0.0
  %10877 = vmatmul.mubr.f32.gmra.mrb[0].mxu0 %v10797
  %v10878 = vpop.f32.mrb[0].mxu0
  %v10879 = vadd.f32 %v10788, %v10878
  %v10880 = vpop.f32.mrb[0].mxu0
  %10881 = vmatprep.mubr.f32.mxu0 0.0
  %10882 = vmatmul.mubr.f32.gmra.mrb[0].mxu0 %v10800
  %v10883 = vpop.f32.mrb[0].mxu0
  %v10884 = vadd.f32 %v10788, %v10883
  %v10885 = vpop.f32.mrb[0].mxu0
  %10886 = vdwg.mxu0
  %v10887 = vadd.f32 %v92, %v10869
  %v10888 = vadd.f32 %v93, %v10874
  %v10889 = vadd.f32 %v94, %v10879
  %v10890 = vadd.f32 %v95, %v10884
  %vm10891 = vcmask 97280
  %10892 = vst.msk [vmem:[%s27] sm:$0xff] %vm10891, %v10887
  %10893 = vst.msk [vmem:[%s27 + $0x8] sm:$0xff] %vm10891, %v10888
  %10894 = vst.msk [vmem:[%s27 + $0x10] sm:$0xff] %vm10891, %v10889
  %10895 = vst.msk [vmem:[%s27 + $0x18] sm:$0xff] %vm10891, %v10890
  // Predicated region
  $region110: #{_forward.1} parent=0 // pred_check
    _
  $region111: #{_forward.1} parent=0 // pred_check_branch
    %10897 = sbr.rel (0) target = $region113
  $region112: #{_forward.1} parent=0 // pred_region
    _
  $region113: #{_forward.1} parent=0 // pred_fallthru
    _
  // Predicated region
  $region114: #{_forward.1} parent=0 // pred_check
    _
  $region115: #{_forward.1} parent=0 // pred_check_branch
    %10899 = sbr.rel (0) target = $region117
  $region116: #{_forward.1} parent=0 // pred_region
    _
  $region117: #{_forward.1} parent=0 // pred_fallthru
    _

</llo_original>
